<compile_context>
chip_gen: v5e
topology: v5e:2x2
jax: 0.10.0
libtpu: 0.0.40
codegen_flags: <defaults>
</compile_context>

<pallas_src>
import functools

import jax
import jax.numpy as jnp
from jax import lax
from jax.experimental import pallas as pl
from jax.experimental.pallas import tpu as pltpu

IN_DIM = 784      # real input / reconstruction feature size
HID_DIM = 400     # real hidden size

_LANE = 128
_SUBLANE = 8


def _round_up(n, m):
    return ((n + m - 1) // m) * m


IN_PAD = _round_up(IN_DIM, _LANE)    # 896 (lane-dense reconstruction store)
HID_PAD = _round_up(HID_DIM, _LANE)  # 512


def _vqvae_kernel(
    x_ref,                         # (TB, 784)        batch tile (pipelined)
    w1_ref, b1_ref,                # (784, HID_PAD), (1, HID_PAD)   resident
    w2_ref, b2_ref,                # (HID_PAD, D_PAD), (1, D_PAD)
    w3_ref, b3_ref,                # (D_PAD, HID_PAD), (1, HID_PAD)
    w4_ref, b4_ref,                # (HID_PAD, IN_PAD), (1, IN_PAD)
    emb_ref,                       # (E_PAD, D_PAD)   f32 codebook
    emb_sq_ref,                    # (1, E_PAD)       precomputed ||emb||^2
    xr_ref,                        # (TB, IN_PAD)     output tile (lane-dense)
    bce_ref,                       # (1, 8, 784)      per-tile BCE column sums
    sq_ref,                        # (1, 8, D_PAD)    per-tile ||z_e-z_q||^2 sums
    *, batch, embed_num, approx_recip,
):
    tb = x_ref.shape[0]
    mm_dtype = w1_ref.dtype        # f32 or bf16 (wrapper decides)

    # ---------------- encode (MXU, f32 accumulation) ----------------
    h1 = jnp.maximum(
        jnp.dot(x_ref[...].astype(mm_dtype), w1_ref[...],
                preferred_element_type=jnp.float32) + b1_ref[...], 0.0)
    z_e = jnp.dot(h1.astype(mm_dtype), w2_ref[...],
                  preferred_element_type=jnp.float32) + b2_ref[...]

    # ---------------- vector quantization (kept in f32) ----------------
    emb = emb_ref[...]
    ze_sq = jnp.sum(z_e * z_e, axis=-1, keepdims=True)              # (TB, 1)
    cross = lax.dot_general(z_e, emb, (((1,), (1,)), ((), ())),
                            preferred_element_type=jnp.float32)      # (TB, E_PAD)
    dist = ze_sq + emb_sq_ref[...] - 2.0 * cross
    lane = lax.broadcasted_iota(jnp.int32, dist.shape, 1)
    dist = jnp.where(lane < embed_num, dist, jnp.float32(1e30))      # mask padding
    min_d = jnp.min(dist, axis=-1, keepdims=True)
    # first index attaining the minimum (matches torch.min tie behaviour)
    idx = jnp.min(jnp.where(dist <= min_d, lane, jnp.int32(dist.shape[1])),
                  axis=-1, keepdims=True)
    one_hot = (lane == idx).astype(jnp.float32)                      # (TB, E_PAD)
    z_q = jnp.dot(one_hot, emb, preferred_element_type=jnp.float32)

    # ---------------- decode ----------------
    h3 = jnp.maximum(
        jnp.dot(z_q.astype(mm_dtype), w3_ref[...],
                preferred_element_type=jnp.float32) + b3_ref[...], 0.0)
    logits = jnp.dot(h3.astype(mm_dtype), w4_ref[...],
                     preferred_element_type=jnp.float32) + b4_ref[...]

    # sigmoid and softplus share a single exp(-|z|); divide -> EUP reciprocal.
    t = jnp.exp(-jnp.abs(logits))
    one_plus_t = 1.0 + t
    if approx_recip:
        inv = pl.reciprocal(one_plus_t, approx=True)
    else:
        inv = 1.0 / one_plus_t
    xr_ref[...] = jnp.where(logits >= 0.0, inv, t * inv).astype(xr_ref.dtype)

    # ---------------- losses (per-tile, lane-dense column partials) ------
    row = pl.program_id(0) * tb + lax.broadcasted_iota(jnp.int32, (tb, 1), 0)
    row_ok = row < batch                                             # (TB, 1)

    xv = x_ref[...]                     # re-read near use: no long live range
    lx = logits[:, :IN_DIM]             # drop the 784->896 padding columns
    # BCE(x, sigmoid(z)) = softplus(z) - x*z.  (torch clamps log-probs at
    # -100, which only differs when |z| > 100 — negligible.)
    sp = jnp.maximum(lx, 0.0) + jnp.log(one_plus_t[:, :IN_DIM])
    bce = jnp.where(row_ok, sp - xv * lx, 0.0)                       # (TB, 784)
    bce_ref[...] = jnp.broadcast_to(
        jnp.sum(bce, axis=0, keepdims=True)[None], bce_ref.shape)

    diff = jnp.where(row_ok, z_e - z_q, 0.0)                         # (TB, D_PAD)
    sq_ref[...] = jnp.broadcast_to(
        jnp.sum(diff * diff, axis=0, keepdims=True)[None], sq_ref.shape)


def _pad2(a, r, c):
    a = jnp.asarray(a, jnp.float32)
    return jnp.pad(a, ((0, r - a.shape[0]), (0, c - a.shape[1])))


def vqvae_forward(x, params, *, tile_b=512, matmul_dtype=jnp.bfloat16,
                  vmem_limit_bytes=32 * 1024 * 1024, trim_output=True):
    """Forward pass: returns (x_reconst, reconst_loss, embed_loss, commit_loss).

    x: (B, 784) float32.  params: unpadded weights (w1..w4, b1..b4, emb).
    tile_b: batch rows per grid step (256-512 on v5e, 512-1024 on v6e and
        per-TensorCore on v7x).
    matmul_dtype: dtype of the four dense-layer matmuls (bf16 default; pass
        jnp.float32 for PyTorch-matching numerics).  The VQ distance and
        codebook lookup always run in f32.
    vmem_limit_bytes: raise toward ~48 MiB on v7x only if tile_b > 1024.
    """
    B, in_dim = x.shape
    assert in_dim == IN_DIM
    E, D = params["emb"].shape
    D_PAD = max(_round_up(D, _LANE), _LANE)
    E_PAD = max(_round_up(E, _LANE), _LANE)

    tile_b = max(_SUBLANE,
                 min(_round_up(tile_b, _SUBLANE), _round_up(B, _SUBLANE)))
    b_pad = _round_up(B, tile_b)
    num_tiles = b_pad // tile_b

    w_dtype = jnp.dtype(matmul_dtype) if matmul_dtype is not None else jnp.dtype(jnp.float32)
    approx_recip = bool(w_dtype != jnp.dtype(jnp.float32))

    x32 = jnp.asarray(x, jnp.float32)
    xp = x32 if b_pad == B else jnp.pad(x32, ((0, b_pad - B), (0, 0)))

    # TODO(synk): optional fp8 (e4m3 + per-column scales) path for w1/w4 on v7x.
    w1 = _pad2(params["w1"], IN_DIM, HID_PAD).astype(w_dtype)
    b1 = _pad2(params["b1"], 1, HID_PAD)
    w2 = _pad2(params["w2"], HID_PAD, D_PAD).astype(w_dtype)
    b2 = _pad2(params["b2"], 1, D_PAD)
    w3 = _pad2(params["w3"], D_PAD, HID_PAD).astype(w_dtype)
    b3 = _pad2(params["b3"], 1, HID_PAD)
    w4 = _pad2(params["w4"], HID_PAD, IN_PAD).astype(w_dtype)
    b4 = _pad2(params["b4"], 1, IN_PAD)
    emb = _pad2(params["emb"], E_PAD, D_PAD)
    emb_sq = jnp.sum(emb * emb, axis=-1, keepdims=True).T            # (1, E_PAD)

    out_specs = (
        pl.BlockSpec((tile_b, IN_PAD), lambda i: (i, 0)),
        pl.BlockSpec((1, _SUBLANE, IN_DIM), lambda i: (i, 0, 0)),
        pl.BlockSpec((1, _SUBLANE, D_PAD), lambda i: (i, 0, 0)),
    )
    out_shape = (
        jax.ShapeDtypeStruct((b_pad, IN_PAD), jnp.float32),
        jax.ShapeDtypeStruct((num_tiles, _SUBLANE, IN_DIM), jnp.float32),
        jax.ShapeDtypeStruct((num_tiles, _SUBLANE, D_PAD), jnp.float32),
    )
    kernel = functools.partial(_vqvae_kernel, batch=B, embed_num=E,
                               approx_recip=approx_recip)

    def run(single_buffer_weights):
        def resident(shape):
            # Constant index_map -> weights stay VMEM-resident; single buffer
            # avoids the dead 2x allocation of the default double buffering.
            if single_buffer_weights and hasattr(pl, "Buffered"):
                return pl.BlockSpec(shape, lambda i: (0, 0),
                                    pipeline_mode=pl.Buffered(1))
            return pl.BlockSpec(shape, lambda i: (0, 0))

        in_specs = [
            pl.BlockSpec((tile_b, IN_DIM), lambda i: (i, 0)),        # x tile
            resident((IN_DIM, HID_PAD)), resident((1, HID_PAD)),     # fc1
            resident((HID_PAD, D_PAD)), resident((1, D_PAD)),        # fc2
            resident((D_PAD, HID_PAD)), resident((1, HID_PAD)),      # fc3
            resident((HID_PAD, IN_PAD)), resident((1, IN_PAD)),      # fc4
            resident((E_PAD, D_PAD)), resident((1, E_PAD)),          # emb, ||emb||^2
        ]
        return pl.pallas_call(
            kernel,
            grid=(num_tiles,),
            in_specs=in_specs,
            out_specs=out_specs,
            out_shape=out_shape,
            compiler_params=pltpu.CompilerParams(
                dimension_semantics=("parallel",),    # megacore sharding on v7x
                vmem_limit_bytes=vmem_limit_bytes,
            ),
        )(xp, w1, b1, w2, b2, w3, b3, w4, b4, emb, emb_sq)

    try:
        xr_p, bce_p, sq_p = run(True)
    except Exception:
        # pl.Buffered(1) on resident inputs not supported by this JAX build.
        xr_p, bce_p, sq_p = run(False)

    rloss = jnp.sum(bce_p[:, 0, :]) / jnp.float32(B * IN_DIM)
    sq = jnp.sum(sq_p[:, 0, :])
    eloss = sq / jnp.float32(B)
    # embed_loss and commit_loss have identical forward values (they differ
    # only in which tensor is detached for the backward pass).
    closs = sq / jnp.float32(B)
    xr = xr_p[:B, :IN_DIM] if trim_output else xr_p
    return xr, rloss, eloss, closs


# ----------------------------------------------------------------------------
# Parameter init (torch.nn.Linear default) and a pure-JAX reference.
# ----------------------------------------------------------------------------
def _init_linear(key, fan_in, fan_out):
    kw, kb = jax.random.split(key)
    bound = 1.0 / jnp.sqrt(jnp.float32(fan_in))
    w = jax.random.uniform(kw, (fan_in, fan_out), jnp.float32, -bound, bound)
    b = jax.random.uniform(kb, (1, fan_out), jnp.float32, -bound, bound)
    return w, b


def make_params(key, embed_dim, embed_num):
    keys = jax.random.split(key, 5)
    w1, b1 = _init_linear(keys[0], IN_DIM, HID_DIM)
    w2, b2 = _init_linear(keys[1], HID_DIM, embed_dim)
    w3, b3 = _init_linear(keys[2], embed_dim, HID_DIM)
    w4, b4 = _init_linear(keys[3], HID_DIM, IN_DIM)
    emb = jax.random.normal(keys[4], (embed_num, embed_dim), jnp.float32)
    return dict(w1=w1, b1=b1, w2=w2, b2=b2, w3=w3, b3=b3, w4=w4, b4=b4, emb=emb)


def _reference_forward(x, p):
    """Pure-JAX reference mirroring the PyTorch semantics (for verification)."""
    h1 = jnp.maximum(x @ p["w1"] + p["b1"], 0.0)
    z_e = h1 @ p["w2"] + p["b2"]
    emb = p["emb"]
    dist = jnp.sum((z_e[:, None, :] - emb[None, :, :]) ** 2, axis=-1)
    idx = jnp.argmin(dist, axis=-1)
    z_q = emb[idx]
    h3 = jnp.maximum(z_q @ p["w3"] + p["b3"], 0.0)
    xr = jax.nn.sigmoid(h3 @ p["w4"] + p["b4"])
    bce = -(x * jnp.maximum(jnp.log(xr), -100.0)
            + (1.0 - x) * jnp.maximum(jnp.log(1.0 - xr), -100.0))
    rloss = jnp.mean(bce)
    eloss = jnp.sum((z_e - z_q) ** 2) / x.shape[0]
    return xr, rloss, eloss, eloss


if __name__ == "__main__":
    B = 18          # deliberately not a tile multiple, to exercise row masking
    embed_dim = 32  # D
    embed_num = 16  # codebook entries

    key = jax.random.PRNGKey(0)
    kx, kp = jax.random.split(key)
    # BCE targets must be in [0, 1] (MNIST-like pixels)
    x = jax.random.uniform(kx, (B, IN_DIM), jnp.float32)
    params = make_params(kp, embed_dim, embed_num)

    # Production path (bf16 matmuls, default).  Small demo tile so the 3-step
    # grid + pipeline is exercised; real batches should use tile_b=256-512 on
    # v5e and 512-1024 on v6e / per-TensorCore on v7x.
    xr_b, rl_b, el_b, cl_b = jax.block_until_ready(
        vqvae_forward(x, params, tile_b=8))
    for v in (xr_b, rl_b, el_b, cl_b):
        assert bool(jnp.all(jnp.isfinite(v)))

    # f32 path: matches the PyTorch / pure-JAX reference numerics.
    xr, rloss, eloss, closs = jax.block_until_ready(
        vqvae_forward(x, params, tile_b=8, matmul_dtype=jnp.float32))
    xr_ref, rloss_ref, eloss_ref, closs_ref = _reference_forward(x, params)
    assert jnp.allclose(xr, xr_ref, atol=1e-5, rtol=1e-5)
    assert jnp.allclose(rloss, rloss_ref, atol=1e-5, rtol=1e-5)
    assert jnp.allclose(eloss, eloss_ref, atol=1e-4, rtol=1e-4)
    assert jnp.allclose(closs, closs_ref, atol=1e-4, rtol=1e-4)

    print("KERNEL_OK")
</pallas_src>

<mosaic_0001>
module attributes {stable_mosaic.version = 11 : i64} {
  func.func @_vqvae_kernel(%arg0: i32, %arg1: memref<8x784xf32, #tpu.memory_space<vmem>>, %arg2: memref<784x512xbf16, #tpu.memory_space<vmem>>, %arg3: memref<1x512xf32, #tpu.memory_space<vmem>>, %arg4: memref<512x128xbf16, #tpu.memory_space<vmem>>, %arg5: memref<1x128xf32, #tpu.memory_space<vmem>>, %arg6: memref<128x512xbf16, #tpu.memory_space<vmem>>, %arg7: memref<1x512xf32, #tpu.memory_space<vmem>>, %arg8: memref<512x896xbf16, #tpu.memory_space<vmem>>, %arg9: memref<1x896xf32, #tpu.memory_space<vmem>>, %arg10: memref<128x128xf32, #tpu.memory_space<vmem>>, %arg11: memref<1x128xf32, #tpu.memory_space<vmem>>, %arg12: memref<8x896xf32, #tpu.memory_space<vmem>>, %arg13: memref<1x8x784xf32, #tpu.memory_space<vmem>>, %arg14: memref<1x8x128xf32, #tpu.memory_space<vmem>>) attributes {dimension_semantics = [#tpu.dimension_semantics<parallel>], iteration_bounds = array<i64: 3>, scalar_prefetch = 0 : i64, scratch_operands = 0 : i64, tpu.core_type = #tpu.core_type<tc>, window_params = [{transform_indices = @transform_0, window_bounds = array<i64: 8, 784>}, {pipeline_mode = #tpu.pipeline_mode<synchronous>, transform_indices = @transform_1, window_bounds = array<i64: 784, 512>}, {pipeline_mode = #tpu.pipeline_mode<synchronous>, transform_indices = @transform_2, window_bounds = array<i64: 1, 512>}, {pipeline_mode = #tpu.pipeline_mode<synchronous>, transform_indices = @transform_3, window_bounds = array<i64: 512, 128>}, {pipeline_mode = #tpu.pipeline_mode<synchronous>, transform_indices = @transform_4, window_bounds = array<i64: 1, 128>}, {pipeline_mode = #tpu.pipeline_mode<synchronous>, transform_indices = @transform_5, window_bounds = array<i64: 128, 512>}, {pipeline_mode = #tpu.pipeline_mode<synchronous>, transform_indices = @transform_6, window_bounds = array<i64: 1, 512>}, {pipeline_mode = #tpu.pipeline_mode<synchronous>, transform_indices = @transform_7, window_bounds = array<i64: 512, 896>}, {pipeline_mode = #tpu.pipeline_mode<synchronous>, transform_indices = @transform_8, window_bounds = array<i64: 1, 896>}, {pipeline_mode = #tpu.pipeline_mode<synchronous>, transform_indices = @transform_9, window_bounds = array<i64: 128, 128>}, {pipeline_mode = #tpu.pipeline_mode<synchronous>, transform_indices = @transform_10, window_bounds = array<i64: 1, 128>}, {transform_indices = @transform_11, window_bounds = array<i64: 8, 896>}, {transform_indices = @transform_12, window_bounds = array<i64: 1, 8, 784>}, {transform_indices = @transform_13, window_bounds = array<i64: 1, 8, 128>}]} {
    %c0 = arith.constant 0 : index
    %c0_0 = arith.constant 0 : index
    %0 = vector.load %arg1[%c0, %c0_0] : memref<8x784xf32, #tpu.memory_space<vmem>>, vector<8x784xf32>
    %1 = arith.truncf %0 : vector<8x784xf32> to vector<8x784xbf16>
    %c0_1 = arith.constant 0 : index
    %c0_2 = arith.constant 0 : index
    %2 = vector.load %arg2[%c0_1, %c0_2] : memref<784x512xbf16, #tpu.memory_space<vmem>>, vector<784x512xbf16>
    %cst = arith.constant dense<0.000000e+00> : vector<8x512xf32>
    %3 = tpu.matmul %1, %2, %cst {dimension_numbers = #tpu.dot_dimension_numbers<[1], [0], [0], [1], [0, 0, 1, 1], [], []>} : vector<8x784xbf16>, vector<784x512xbf16>, vector<8x512xf32> -> vector<8x512xf32>
    %c0_3 = arith.constant 0 : index
    %c0_4 = arith.constant 0 : index
    %4 = vector.load %arg3[%c0_3, %c0_4] : memref<1x512xf32, #tpu.memory_space<vmem>>, vector<1x512xf32>
    %5 = vector.broadcast %4 : vector<1x512xf32> to vector<8x512xf32>
    %6 = arith.addf %3, %5 : vector<8x512xf32>
    %cst_5 = arith.constant 0.000000e+00 : f32
    %7 = vector.broadcast %cst_5 : f32 to vector<8x512xf32>
    %8 = arith.maximumf %6, %7 : vector<8x512xf32>
    %9 = arith.truncf %8 : vector<8x512xf32> to vector<8x512xbf16>
    %c0_6 = arith.constant 0 : index
    %c0_7 = arith.constant 0 : index
    %10 = vector.load %arg4[%c0_6, %c0_7] : memref<512x128xbf16, #tpu.memory_space<vmem>>, vector<512x128xbf16>
    %cst_8 = arith.constant dense<0.000000e+00> : vector<8x128xf32>
    %11 = tpu.matmul %9, %10, %cst_8 {dimension_numbers = #tpu.dot_dimension_numbers<[1], [0], [0], [1], [0, 0, 1, 1], [], []>} : vector<8x512xbf16>, vector<512x128xbf16>, vector<8x128xf32> -> vector<8x128xf32>
    %c0_9 = arith.constant 0 : index
    %c0_10 = arith.constant 0 : index
    %12 = vector.load %arg5[%c0_9, %c0_10] : memref<1x128xf32, #tpu.memory_space<vmem>>, vector<1x128xf32>
    %13 = vector.broadcast %12 : vector<1x128xf32> to vector<8x128xf32>
    %14 = arith.addf %11, %13 : vector<8x128xf32>
    %c0_11 = arith.constant 0 : index
    %c0_12 = arith.constant 0 : index
    %15 = vector.load %arg10[%c0_11, %c0_12] : memref<128x128xf32, #tpu.memory_space<vmem>>, vector<128x128xf32>
    %16 = arith.mulf %14, %14 : vector<8x128xf32>
    %cst_13 = arith.constant dense<0.000000e+00> : vector<8xf32>
    %17 = vector.multi_reduction <add>, %16, %cst_13 [1] : vector<8x128xf32> to vector<8xf32>
    %18 = vector.shape_cast %17 : vector<8xf32> to vector<8x1xf32>
    %cst_14 = arith.constant dense<0.000000e+00> : vector<8x128xf32>
    %19 = tpu.matmul %14, %15, %cst_14 {dimension_numbers = #tpu.dot_dimension_numbers<[1], [1], [0], [0], [0, 0, 1, 0], [], []>} : vector<8x128xf32>, vector<128x128xf32>, vector<8x128xf32> -> vector<8x128xf32>
    %c0_15 = arith.constant 0 : index
    %c0_16 = arith.constant 0 : index
    %20 = vector.load %arg11[%c0_15, %c0_16] : memref<1x128xf32, #tpu.memory_space<vmem>>, vector<1x128xf32>
    %21 = vector.broadcast %18 : vector<8x1xf32> to vector<8x128xf32>
    %22 = vector.broadcast %20 : vector<1x128xf32> to vector<8x128xf32>
    %23 = arith.addf %21, %22 : vector<8x128xf32>
    %cst_17 = arith.constant 2.000000e+00 : f32
    %24 = vector.broadcast %cst_17 : f32 to vector<8x128xf32>
    %25 = arith.mulf %24, %19 : vector<8x128xf32>
    %26 = arith.subf %23, %25 : vector<8x128xf32>
    %27 = tpu.iota {dimensions = array<i32: 1>} : vector<8x128xi32>
    %c16_i32 = arith.constant 16 : i32
    %28 = vector.broadcast %c16_i32 : i32 to vector<8x128xi32>
    %29 = arith.cmpi slt, %27, %28 : vector<8x128xi32>
    %cst_18 = arith.constant 1.000000e+30 : f32
    %30 = vector.broadcast %cst_18 : f32 to vector<8x128xf32>
    %31 = arith.select %29, %26, %30 : vector<8x128xi1>, vector<8x128xf32>
    %cst_19 = arith.constant dense<0x7F800000> : vector<8xf32>
    %32 = vector.multi_reduction <minimumf>, %31, %cst_19 [1] : vector<8x128xf32> to vector<8xf32>
    %33 = vector.shape_cast %32 : vector<8xf32> to vector<8x1xf32>
    %34 = vector.broadcast %33 : vector<8x1xf32> to vector<8x128xf32>
    %35 = arith.cmpf ole, %31, %34 : vector<8x128xf32>
    %c128_i32 = arith.constant 128 : i32
    %36 = vector.broadcast %c128_i32 : i32 to vector<8x128xi32>
    %37 = arith.select %35, %27, %36 : vector<8x128xi1>, vector<8x128xi32>
    %cst_20 = arith.constant dense<2147483647> : vector<8xi32>
    %38 = vector.multi_reduction <minsi>, %37, %cst_20 [1] : vector<8x128xi32> to vector<8xi32>
    %39 = vector.shape_cast %38 : vector<8xi32> to vector<8x1xi32>
    %40 = vector.broadcast %39 : vector<8x1xi32> to vector<8x128xi32>
    %41 = arith.cmpi eq, %27, %40 : vector<8x128xi32>
    %42 = arith.extui %41 : vector<8x128xi1> to vector<8x128xi32>
    %43 = arith.sitofp %42 : vector<8x128xi32> to vector<8x128xf32>
    %cst_21 = arith.constant dense<0.000000e+00> : vector<8x128xf32>
    %44 = tpu.matmul %43, %15, %cst_21 {dimension_numbers = #tpu.dot_dimension_numbers<[1], [0], [0], [1], [0, 0, 1, 1], [], []>} : vector<8x128xf32>, vector<128x128xf32>, vector<8x128xf32> -> vector<8x128xf32>
    %45 = arith.truncf %44 : vector<8x128xf32> to vector<8x128xbf16>
    %c0_22 = arith.constant 0 : index
    %c0_23 = arith.constant 0 : index
    %46 = vector.load %arg6[%c0_22, %c0_23] : memref<128x512xbf16, #tpu.memory_space<vmem>>, vector<128x512xbf16>
    %cst_24 = arith.constant dense<0.000000e+00> : vector<8x512xf32>
    %47 = tpu.matmul %45, %46, %cst_24 {dimension_numbers = #tpu.dot_dimension_numbers<[1], [0], [0], [1], [0, 0, 1, 1], [], []>} : vector<8x128xbf16>, vector<128x512xbf16>, vector<8x512xf32> -> vector<8x512xf32>
    %c0_25 = arith.constant 0 : index
    %c0_26 = arith.constant 0 : index
    %48 = vector.load %arg7[%c0_25, %c0_26] : memref<1x512xf32, #tpu.memory_space<vmem>>, vector<1x512xf32>
    %49 = vector.broadcast %48 : vector<1x512xf32> to vector<8x512xf32>
    %50 = arith.addf %47, %49 : vector<8x512xf32>
    %cst_27 = arith.constant 0.000000e+00 : f32
    %51 = vector.broadcast %cst_27 : f32 to vector<8x512xf32>
    %52 = arith.maximumf %50, %51 : vector<8x512xf32>
    %53 = arith.truncf %52 : vector<8x512xf32> to vector<8x512xbf16>
    %c0_28 = arith.constant 0 : index
    %c0_29 = arith.constant 0 : index
    %54 = vector.load %arg8[%c0_28, %c0_29] : memref<512x896xbf16, #tpu.memory_space<vmem>>, vector<512x896xbf16>
    %cst_30 = arith.constant dense<0.000000e+00> : vector<8x896xf32>
    %55 = tpu.matmul %53, %54, %cst_30 {dimension_numbers = #tpu.dot_dimension_numbers<[1], [0], [0], [1], [0, 0, 1, 1], [], []>} : vector<8x512xbf16>, vector<512x896xbf16>, vector<8x896xf32> -> vector<8x896xf32>
    %c0_31 = arith.constant 0 : index
    %c0_32 = arith.constant 0 : index
    %56 = vector.load %arg9[%c0_31, %c0_32] : memref<1x896xf32, #tpu.memory_space<vmem>>, vector<1x896xf32>
    %57 = vector.broadcast %56 : vector<1x896xf32> to vector<8x896xf32>
    %58 = arith.addf %55, %57 : vector<8x896xf32>
    %59 = math.absf %58 : vector<8x896xf32>
    %cst_33 = arith.constant 0.000000e+00 : f32
    %60 = vector.broadcast %cst_33 : f32 to vector<8x896xf32>
    %61 = arith.subf %60, %59 : vector<8x896xf32>
    %62 = math.exp %61 : vector<8x896xf32>
    %cst_34 = arith.constant 1.000000e+00 : f32
    %63 = vector.broadcast %cst_34 : f32 to vector<8x896xf32>
    %64 = arith.addf %63, %62 : vector<8x896xf32>
    %65 = tpu.reciprocal %64 {approx = true} : vector<8x896xf32> -> vector<8x896xf32>
    %cst_35 = arith.constant 0.000000e+00 : f32
    %66 = vector.broadcast %cst_35 : f32 to vector<8x896xf32>
    %67 = arith.cmpf oge, %58, %66 : vector<8x896xf32>
    %68 = arith.mulf %62, %65 : vector<8x896xf32>
    %69 = arith.select %67, %65, %68 : vector<8x896xi1>, vector<8x896xf32>
    %c0_36 = arith.constant 0 : index
    %c0_37 = arith.constant 0 : index
    %70 = vector.load %arg12[%c0_36, %c0_37] : memref<8x896xf32, #tpu.memory_space<vmem>>, vector<8x896xf32>
    tpu.vector_store %arg12[%c0_36, %c0_37], %69 {strides = array<i32>} : memref<8x896xf32, #tpu.memory_space<vmem>>, vector<8x896xf32>,
    %c8_i32 = arith.constant 8 : i32
    %71 = arith.muli %arg0, %c8_i32 : i32
    %72 = tpu.iota {dimensions = array<i32: 0>} : vector<8x1xi32>
    %73 = vector.broadcast %71 : i32 to vector<8x1xi32>
    %74 = arith.addi %73, %72 : vector<8x1xi32>
    %c18_i32 = arith.constant 18 : i32
    %75 = vector.broadcast %c18_i32 : i32 to vector<8x1xi32>
    %76 = arith.cmpi slt, %74, %75 : vector<8x1xi32>
    %c0_38 = arith.constant 0 : index
    %c0_39 = arith.constant 0 : index
    %77 = vector.load %arg1[%c0_38, %c0_39] : memref<8x784xf32, #tpu.memory_space<vmem>>, vector<8x784xf32>
    %78 = vector.extract_strided_slice %58 {offsets = [0, 0], sizes = [8, 784], strides = [1, 1]} : vector<8x896xf32> to vector<8x784xf32>
    %cst_40 = arith.constant 0.000000e+00 : f32
    %79 = vector.broadcast %cst_40 : f32 to vector<8x784xf32>
    %80 = arith.maximumf %78, %79 : vector<8x784xf32>
    %81 = vector.extract_strided_slice %64 {offsets = [0, 0], sizes = [8, 784], strides = [1, 1]} : vector<8x896xf32> to vector<8x784xf32>
    %82 = math.log %81 : vector<8x784xf32>
    %83 = arith.addf %80, %82 : vector<8x784xf32>
    %84 = arith.mulf %77, %78 : vector<8x784xf32>
    %85 = arith.subf %83, %84 : vector<8x784xf32>
    %cst_41 = arith.constant 0.000000e+00 : f32
    %86 = vector.shape_cast %76 : vector<8x1xi1> to vector<8x1xi1>
    %87 = vector.broadcast %86 : vector<8x1xi1> to vector<8x784xi1>
    %88 = vector.broadcast %cst_41 : f32 to vector<8x784xf32>
    %89 = arith.select %87, %85, %88 : vector<8x784xi1>, vector<8x784xf32>
    %cst_42 = arith.constant dense<0.000000e+00> : vector<784xf32>
    %90 = vector.multi_reduction <add>, %89, %cst_42 [0] : vector<8x784xf32> to vector<784xf32>
    %91 = vector.shape_cast %90 : vector<784xf32> to vector<1x784xf32>
    %92 = vector.shape_cast %91 : vector<1x784xf32> to vector<1x1x784xf32>
    %93 = vector.shape_cast %92 : vector<1x1x784xf32> to vector<1x1x784xf32>
    %94 = vector.broadcast %93 : vector<1x1x784xf32> to vector<1x8x784xf32>
    %c0_43 = arith.constant 0 : index
    %c0_44 = arith.constant 0 : index
    %c0_45 = arith.constant 0 : index
    %95 = vector.load %arg13[%c0_43, %c0_44, %c0_45] : memref<1x8x784xf32, #tpu.memory_space<vmem>>, vector<1x8x784xf32>
    tpu.vector_store %arg13[%c0_43, %c0_44, %c0_45], %94 {strides = array<i32>} : memref<1x8x784xf32, #tpu.memory_space<vmem>>, vector<1x8x784xf32>,
    %96 = arith.subf %14, %44 : vector<8x128xf32>
    %cst_46 = arith.constant 0.000000e+00 : f32
    %97 = vector.shape_cast %76 : vector<8x1xi1> to vector<8x1xi1>
    %98 = vector.broadcast %97 : vector<8x1xi1> to vector<8x128xi1>
    %99 = vector.broadcast %cst_46 : f32 to vector<8x128xf32>
    %100 = arith.select %98, %96, %99 : vector<8x128xi1>, vector<8x128xf32>
    %101 = arith.mulf %100, %100 : vector<8x128xf32>
    %cst_47 = arith.constant dense<0.000000e+00> : vector<128xf32>
    %102 = vector.multi_reduction <add>, %101, %cst_47 [0] : vector<8x128xf32> to vector<128xf32>
    %103 = vector.shape_cast %102 : vector<128xf32> to vector<1x128xf32>
    %104 = vector.shape_cast %103 : vector<1x128xf32> to vector<1x1x128xf32>
    %105 = vector.shape_cast %104 : vector<1x1x128xf32> to vector<1x1x128xf32>
    %106 = vector.broadcast %105 : vector<1x1x128xf32> to vector<1x8x128xf32>
    %c0_48 = arith.constant 0 : index
    %c0_49 = arith.constant 0 : index
    %c0_50 = arith.constant 0 : index
    %107 = vector.load %arg14[%c0_48, %c0_49, %c0_50] : memref<1x8x128xf32, #tpu.memory_space<vmem>>, vector<1x8x128xf32>
    tpu.vector_store %arg14[%c0_48, %c0_49, %c0_50], %106 {strides = array<i32>} : memref<1x8x128xf32, #tpu.memory_space<vmem>>, vector<1x8x128xf32>,
    return
  }
  func.func @transform_0(%arg0: i32) -> (i32, i32) {
    %c0_i32 = arith.constant 0 : i32
    %c0_i32_0 = arith.constant 0 : i32
    return %arg0, %c0_i32 : i32, i32
  }
  func.func @transform_1(%arg0: i32) -> (i32, i32) {
    %c0_i32 = arith.constant 0 : i32
    %c0_i32_0 = arith.constant 0 : i32
    %c0_i32_1 = arith.constant 0 : i32
    return %c0_i32, %c0_i32_0 : i32, i32
  }
  func.func @transform_2(%arg0: i32) -> (i32, i32) {
    %c0_i32 = arith.constant 0 : i32
    %c0_i32_0 = arith.constant 0 : i32
    %c0_i32_1 = arith.constant 0 : i32
    return %c0_i32, %c0_i32_0 : i32, i32
  }
  func.func @transform_3(%arg0: i32) -> (i32, i32) {
    %c0_i32 = arith.constant 0 : i32
    %c0_i32_0 = arith.constant 0 : i32
    %c0_i32_1 = arith.constant 0 : i32
    return %c0_i32, %c0_i32_0 : i32, i32
  }
  func.func @transform_4(%arg0: i32) -> (i32, i32) {
    %c0_i32 = arith.constant 0 : i32
    %c0_i32_0 = arith.constant 0 : i32
    %c0_i32_1 = arith.constant 0 : i32
    return %c0_i32, %c0_i32_0 : i32, i32
  }
  func.func @transform_5(%arg0: i32) -> (i32, i32) {
    %c0_i32 = arith.constant 0 : i32
    %c0_i32_0 = arith.constant 0 : i32
    %c0_i32_1 = arith.constant 0 : i32
    return %c0_i32, %c0_i32_0 : i32, i32
  }
  func.func @transform_6(%arg0: i32) -> (i32, i32) {
    %c0_i32 = arith.constant 0 : i32
    %c0_i32_0 = arith.constant 0 : i32
    %c0_i32_1 = arith.constant 0 : i32
    return %c0_i32, %c0_i32_0 : i32, i32
  }
  func.func @transform_7(%arg0: i32) -> (i32, i32) {
    %c0_i32 = arith.constant 0 : i32
    %c0_i32_0 = arith.constant 0 : i32
    %c0_i32_1 = arith.constant 0 : i32
    return %c0_i32, %c0_i32_0 : i32, i32
  }
  func.func @transform_8(%arg0: i32) -> (i32, i32) {
    %c0_i32 = arith.constant 0 : i32
    %c0_i32_0 = arith.constant 0 : i32
    %c0_i32_1 = arith.constant 0 : i32
    return %c0_i32, %c0_i32_0 : i32, i32
  }
  func.func @transform_9(%arg0: i32) -> (i32, i32) {
    %c0_i32 = arith.constant 0 : i32
    %c0_i32_0 = arith.constant 0 : i32
    %c0_i32_1 = arith.constant 0 : i32
    return %c0_i32, %c0_i32_0 : i32, i32
  }
  func.func @transform_10(%arg0: i32) -> (i32, i32) {
    %c0_i32 = arith.constant 0 : i32
    %c0_i32_0 = arith.constant 0 : i32
    %c0_i32_1 = arith.constant 0 : i32
    return %c0_i32, %c0_i32_0 : i32, i32
  }
  func.func @transform_11(%arg0: i32) -> (i32, i32) {
    %c0_i32 = arith.constant 0 : i32
    %c0_i32_0 = arith.constant 0 : i32
    return %arg0, %c0_i32 : i32, i32
  }
  func.func @transform_12(%arg0: i32) -> (i32, i32, i32) {
    %c0_i32 = arith.constant 0 : i32
    %c0_i32_0 = arith.constant 0 : i32
    %c0_i32_1 = arith.constant 0 : i32
    return %arg0, %c0_i32, %c0_i32_0 : i32, i32, i32
  }
  func.func @transform_13(%arg0: i32) -> (i32, i32, i32) {
    %c0_i32 = arith.constant 0 : i32
    %c0_i32_0 = arith.constant 0 : i32
    %c0_i32_1 = arith.constant 0 : i32
    return %arg0, %c0_i32, %c0_i32_0 : i32, i32, i32
  }
}

module attributes {stable_mosaic.version = 11 : i64} {
  func.func @_vqvae_kernel(%arg0: i32, %arg1: memref<8x784xf32, #tpu.memory_space<vmem>>, %arg2: memref<784x512xbf16, #tpu.memory_space<vmem>>, %arg3: memref<1x512xf32, #tpu.memory_space<vmem>>, %arg4: memref<512x128xbf16, #tpu.memory_space<vmem>>, %arg5: memref<1x128xf32, #tpu.memory_space<vmem>>, %arg6: memref<128x512xbf16, #tpu.memory_space<vmem>>, %arg7: memref<1x512xf32, #tpu.memory_space<vmem>>, %arg8: memref<512x896xbf16, #tpu.memory_space<vmem>>, %arg9: memref<1x896xf32, #tpu.memory_space<vmem>>, %arg10: memref<128x128xf32, #tpu.memory_space<vmem>>, %arg11: memref<1x128xf32, #tpu.memory_space<vmem>>, %arg12: memref<8x896xf32, #tpu.memory_space<vmem>>, %arg13: memref<1x8x784xf32, #tpu.memory_space<vmem>>, %arg14: memref<1x8x128xf32, #tpu.memory_space<vmem>>) attributes {dimension_semantics = [#tpu.dimension_semantics<parallel>], iteration_bounds = array<i64: 3>, scalar_prefetch = 0 : i64, scratch_operands = 0 : i64, tpu.core_type = #tpu.core_type<tc>, window_params = [{transform_indices = @transform_0, window_bounds = array<i64: 8, 784>}, {pipeline_mode = #tpu.pipeline_mode<synchronous>, transform_indices = @transform_1, window_bounds = array<i64: 784, 512>}, {pipeline_mode = #tpu.pipeline_mode<synchronous>, transform_indices = @transform_2, window_bounds = array<i64: 1, 512>}, {pipeline_mode = #tpu.pipeline_mode<synchronous>, transform_indices = @transform_3, window_bounds = array<i64: 512, 128>}, {pipeline_mode = #tpu.pipeline_mode<synchronous>, transform_indices = @transform_4, window_bounds = array<i64: 1, 128>}, {pipeline_mode = #tpu.pipeline_mode<synchronous>, transform_indices = @transform_5, window_bounds = array<i64: 128, 512>}, {pipeline_mode = #tpu.pipeline_mode<synchronous>, transform_indices = @transform_6, window_bounds = array<i64: 1, 512>}, {pipeline_mode = #tpu.pipeline_mode<synchronous>, transform_indices = @transform_7, window_bounds = array<i64: 512, 896>}, {pipeline_mode = #tpu.pipeline_mode<synchronous>, transform_indices = @transform_8, window_bounds = array<i64: 1, 896>}, {pipeline_mode = #tpu.pipeline_mode<synchronous>, transform_indices = @transform_9, window_bounds = array<i64: 128, 128>}, {pipeline_mode = #tpu.pipeline_mode<synchronous>, transform_indices = @transform_10, window_bounds = array<i64: 1, 128>}, {transform_indices = @transform_11, window_bounds = array<i64: 8, 896>}, {transform_indices = @transform_12, window_bounds = array<i64: 1, 8, 784>}, {transform_indices = @transform_13, window_bounds = array<i64: 1, 8, 128>}]} {
    %c0 = arith.constant 0 : index
    %c0_0 = arith.constant 0 : index
    %0 = vector.load %arg1[%c0, %c0_0] : memref<8x784xf32, #tpu.memory_space<vmem>>, vector<8x784xf32>
    %1 = arith.truncf %0 : vector<8x784xf32> to vector<8x784xbf16>
    %c0_1 = arith.constant 0 : index
    %c0_2 = arith.constant 0 : index
    %2 = vector.load %arg2[%c0_1, %c0_2] : memref<784x512xbf16, #tpu.memory_space<vmem>>, vector<784x512xbf16>
    %cst = arith.constant dense<0.000000e+00> : vector<8x512xf32>
    %3 = tpu.matmul %1, %2, %cst {dimension_numbers = #tpu.dot_dimension_numbers<[1], [0], [0], [1], [0, 0, 1, 1], [], []>} : vector<8x784xbf16>, vector<784x512xbf16>, vector<8x512xf32> -> vector<8x512xf32>
    %c0_3 = arith.constant 0 : index
    %c0_4 = arith.constant 0 : index
    %4 = vector.load %arg3[%c0_3, %c0_4] : memref<1x512xf32, #tpu.memory_space<vmem>>, vector<1x512xf32>
    %5 = vector.broadcast %4 : vector<1x512xf32> to vector<8x512xf32>
    %6 = arith.addf %3, %5 : vector<8x512xf32>
    %cst_5 = arith.constant 0.000000e+00 : f32
    %7 = vector.broadcast %cst_5 : f32 to vector<8x512xf32>
    %8 = arith.maximumf %6, %7 : vector<8x512xf32>
    %9 = arith.truncf %8 : vector<8x512xf32> to vector<8x512xbf16>
    %c0_6 = arith.constant 0 : index
    %c0_7 = arith.constant 0 : index
    %10 = vector.load %arg4[%c0_6, %c0_7] : memref<512x128xbf16, #tpu.memory_space<vmem>>, vector<512x128xbf16>
    %cst_8 = arith.constant dense<0.000000e+00> : vector<8x128xf32>
    %11 = tpu.matmul %9, %10, %cst_8 {dimension_numbers = #tpu.dot_dimension_numbers<[1], [0], [0], [1], [0, 0, 1, 1], [], []>} : vector<8x512xbf16>, vector<512x128xbf16>, vector<8x128xf32> -> vector<8x128xf32>
    %c0_9 = arith.constant 0 : index
    %c0_10 = arith.constant 0 : index
    %12 = vector.load %arg5[%c0_9, %c0_10] : memref<1x128xf32, #tpu.memory_space<vmem>>, vector<1x128xf32>
    %13 = vector.broadcast %12 : vector<1x128xf32> to vector<8x128xf32>
    %14 = arith.addf %11, %13 : vector<8x128xf32>
    %c0_11 = arith.constant 0 : index
    %c0_12 = arith.constant 0 : index
    %15 = vector.load %arg10[%c0_11, %c0_12] : memref<128x128xf32, #tpu.memory_space<vmem>>, vector<128x128xf32>
    %16 = arith.mulf %14, %14 : vector<8x128xf32>
    %cst_13 = arith.constant dense<0.000000e+00> : vector<8xf32>
    %17 = vector.multi_reduction <add>, %16, %cst_13 [1] : vector<8x128xf32> to vector<8xf32>
    %18 = vector.shape_cast %17 : vector<8xf32> to vector<8x1xf32>
    %cst_14 = arith.constant dense<0.000000e+00> : vector<8x128xf32>
    %19 = tpu.matmul %14, %15, %cst_14 {dimension_numbers = #tpu.dot_dimension_numbers<[1], [1], [0], [0], [0, 0, 1, 0], [], []>} : vector<8x128xf32>, vector<128x128xf32>, vector<8x128xf32> -> vector<8x128xf32>
    %c0_15 = arith.constant 0 : index
    %c0_16 = arith.constant 0 : index
    %20 = vector.load %arg11[%c0_15, %c0_16] : memref<1x128xf32, #tpu.memory_space<vmem>>, vector<1x128xf32>
    %21 = vector.broadcast %18 : vector<8x1xf32> to vector<8x128xf32>
    %22 = vector.broadcast %20 : vector<1x128xf32> to vector<8x128xf32>
    %23 = arith.addf %21, %22 : vector<8x128xf32>
    %cst_17 = arith.constant 2.000000e+00 : f32
    %24 = vector.broadcast %cst_17 : f32 to vector<8x128xf32>
    %25 = arith.mulf %24, %19 : vector<8x128xf32>
    %26 = arith.subf %23, %25 : vector<8x128xf32>
    %27 = tpu.iota {dimensions = array<i32: 1>} : vector<8x128xi32>
    %c16_i32 = arith.constant 16 : i32
    %28 = vector.broadcast %c16_i32 : i32 to vector<8x128xi32>
    %29 = arith.cmpi slt, %27, %28 : vector<8x128xi32>
    %cst_18 = arith.constant 1.000000e+30 : f32
    %30 = vector.broadcast %cst_18 : f32 to vector<8x128xf32>
    %31 = arith.select %29, %26, %30 : vector<8x128xi1>, vector<8x128xf32>
    %cst_19 = arith.constant dense<0x7F800000> : vector<8xf32>
    %32 = vector.multi_reduction <minimumf>, %31, %cst_19 [1] : vector<8x128xf32> to vector<8xf32>
    %33 = vector.shape_cast %32 : vector<8xf32> to vector<8x1xf32>
    %34 = vector.broadcast %33 : vector<8x1xf32> to vector<8x128xf32>
    %35 = arith.cmpf ole, %31, %34 : vector<8x128xf32>
    %c128_i32 = arith.constant 128 : i32
    %36 = vector.broadcast %c128_i32 : i32 to vector<8x128xi32>
    %37 = arith.select %35, %27, %36 : vector<8x128xi1>, vector<8x128xi32>
    %cst_20 = arith.constant dense<2147483647> : vector<8xi32>
    %38 = vector.multi_reduction <minsi>, %37, %cst_20 [1] : vector<8x128xi32> to vector<8xi32>
    %39 = vector.shape_cast %38 : vector<8xi32> to vector<8x1xi32>
    %40 = vector.broadcast %39 : vector<8x1xi32> to vector<8x128xi32>
    %41 = arith.cmpi eq, %27, %40 : vector<8x128xi32>
    %42 = arith.extui %41 : vector<8x128xi1> to vector<8x128xi32>
    %43 = arith.sitofp %42 : vector<8x128xi32> to vector<8x128xf32>
    %cst_21 = arith.constant dense<0.000000e+00> : vector<8x128xf32>
    %44 = tpu.matmul %43, %15, %cst_21 {dimension_numbers = #tpu.dot_dimension_numbers<[1], [0], [0], [1], [0, 0, 1, 1], [], []>} : vector<8x128xf32>, vector<128x128xf32>, vector<8x128xf32> -> vector<8x128xf32>
    %45 = arith.truncf %44 : vector<8x128xf32> to vector<8x128xbf16>
    %c0_22 = arith.constant 0 : index
    %c0_23 = arith.constant 0 : index
    %46 = vector.load %arg6[%c0_22, %c0_23] : memref<128x512xbf16, #tpu.memory_space<vmem>>, vector<128x512xbf16>
    %cst_24 = arith.constant dense<0.000000e+00> : vector<8x512xf32>
    %47 = tpu.matmul %45, %46, %cst_24 {dimension_numbers = #tpu.dot_dimension_numbers<[1], [0], [0], [1], [0, 0, 1, 1], [], []>} : vector<8x128xbf16>, vector<128x512xbf16>, vector<8x512xf32> -> vector<8x512xf32>
    %c0_25 = arith.constant 0 : index
    %c0_26 = arith.constant 0 : index
    %48 = vector.load %arg7[%c0_25, %c0_26] : memref<1x512xf32, #tpu.memory_space<vmem>>, vector<1x512xf32>
    %49 = vector.broadcast %48 : vector<1x512xf32> to vector<8x512xf32>
    %50 = arith.addf %47, %49 : vector<8x512xf32>
    %cst_27 = arith.constant 0.000000e+00 : f32
    %51 = vector.broadcast %cst_27 : f32 to vector<8x512xf32>
    %52 = arith.maximumf %50, %51 : vector<8x512xf32>
    %53 = arith.truncf %52 : vector<8x512xf32> to vector<8x512xbf16>
    %c0_28 = arith.constant 0 : index
    %c0_29 = arith.constant 0 : index
    %54 = vector.load %arg8[%c0_28, %c0_29] : memref<512x896xbf16, #tpu.memory_space<vmem>>, vector<512x896xbf16>
    %cst_30 = arith.constant dense<0.000000e+00> : vector<8x896xf32>
    %55 = tpu.matmul %53, %54, %cst_30 {dimension_numbers = #tpu.dot_dimension_numbers<[1], [0], [0], [1], [0, 0, 1, 1], [], []>} : vector<8x512xbf16>, vector<512x896xbf16>, vector<8x896xf32> -> vector<8x896xf32>
    %c0_31 = arith.constant 0 : index
    %c0_32 = arith.constant 0 : index
    %56 = vector.load %arg9[%c0_31, %c0_32] : memref<1x896xf32, #tpu.memory_space<vmem>>, vector<1x896xf32>
    %57 = vector.broadcast %56 : vector<1x896xf32> to vector<8x896xf32>
    %58 = arith.addf %55, %57 : vector<8x896xf32>
    %59 = math.absf %58 : vector<8x896xf32>
    %cst_33 = arith.constant 0.000000e+00 : f32
    %60 = vector.broadcast %cst_33 : f32 to vector<8x896xf32>
    %61 = arith.subf %60, %59 : vector<8x896xf32>
    %62 = math.exp %61 : vector<8x896xf32>
    %cst_34 = arith.constant 1.000000e+00 : f32
    %63 = vector.broadcast %cst_34 : f32 to vector<8x896xf32>
    %64 = arith.addf %63, %62 : vector<8x896xf32>
    %65 = tpu.reciprocal %64 {approx = true} : vector<8x896xf32> -> vector<8x896xf32>
    %cst_35 = arith.constant 0.000000e+00 : f32
    %66 = vector.broadcast %cst_35 : f32 to vector<8x896xf32>
    %67 = arith.cmpf oge, %58, %66 : vector<8x896xf32>
    %68 = arith.mulf %62, %65 : vector<8x896xf32>
    %69 = arith.select %67, %65, %68 : vector<8x896xi1>, vector<8x896xf32>
    %c0_36 = arith.constant 0 : index
    %c0_37 = arith.constant 0 : index
    %70 = vector.load %arg12[%c0_36, %c0_37] : memref<8x896xf32, #tpu.memory_space<vmem>>, vector<8x896xf32>
    tpu.vector_store %arg12[%c0_36, %c0_37], %69 {strides = array<i32>} : memref<8x896xf32, #tpu.memory_space<vmem>>, vector<8x896xf32>,
    %c8_i32 = arith.constant 8 : i32
    %71 = arith.muli %arg0, %c8_i32 : i32
    %72 = tpu.iota {dimensions = array<i32: 0>} : vector<8x1xi32>
    %73 = vector.broadcast %71 : i32 to vector<8x1xi32>
    %74 = arith.addi %73, %72 : vector<8x1xi32>
    %c18_i32 = arith.constant 18 : i32
    %75 = vector.broadcast %c18_i32 : i32 to vector<8x1xi32>
    %76 = arith.cmpi slt, %74, %75 : vector<8x1xi32>
    %c0_38 = arith.constant 0 : index
    %c0_39 = arith.constant 0 : index
    %77 = vector.load %arg1[%c0_38, %c0_39] : memref<8x784xf32, #tpu.memory_space<vmem>>, vector<8x784xf32>
    %78 = vector.extract_strided_slice %58 {offsets = [0, 0], sizes = [8, 784], strides = [1, 1]} : vector<8x896xf32> to vector<8x784xf32>
    %cst_40 = arith.constant 0.000000e+00 : f32
    %79 = vector.broadcast %cst_40 : f32 to vector<8x784xf32>
    %80 = arith.maximumf %78, %79 : vector<8x784xf32>
    %81 = vector.extract_strided_slice %64 {offsets = [0, 0], sizes = [8, 784], strides = [1, 1]} : vector<8x896xf32> to vector<8x784xf32>
    %82 = math.log %81 : vector<8x784xf32>
    %83 = arith.addf %80, %82 : vector<8x784xf32>
    %84 = arith.mulf %77, %78 : vector<8x784xf32>
    %85 = arith.subf %83, %84 : vector<8x784xf32>
    %cst_41 = arith.constant 0.000000e+00 : f32
    %86 = vector.shape_cast %76 : vector<8x1xi1> to vector<8x1xi1>
    %87 = vector.broadcast %86 : vector<8x1xi1> to vector<8x784xi1>
    %88 = vector.broadcast %cst_41 : f32 to vector<8x784xf32>
    %89 = arith.select %87, %85, %88 : vector<8x784xi1>, vector<8x784xf32>
    %cst_42 = arith.constant dense<0.000000e+00> : vector<784xf32>
    %90 = vector.multi_reduction <add>, %89, %cst_42 [0] : vector<8x784xf32> to vector<784xf32>
    %91 = vector.shape_cast %90 : vector<784xf32> to vector<1x784xf32>
    %92 = vector.shape_cast %91 : vector<1x784xf32> to vector<1x1x784xf32>
    %93 = vector.shape_cast %92 : vector<1x1x784xf32> to vector<1x1x784xf32>
    %94 = vector.broadcast %93 : vector<1x1x784xf32> to vector<1x8x784xf32>
    %c0_43 = arith.constant 0 : index
    %c0_44 = arith.constant 0 : index
    %c0_45 = arith.constant 0 : index
    %95 = vector.load %arg13[%c0_43, %c0_44, %c0_45] : memref<1x8x784xf32, #tpu.memory_space<vmem>>, vector<1x8x784xf32>
    tpu.vector_store %arg13[%c0_43, %c0_44, %c0_45], %94 {strides = array<i32>} : memref<1x8x784xf32, #tpu.memory_space<vmem>>, vector<1x8x784xf32>,
    %96 = arith.subf %14, %44 : vector<8x128xf32>
    %cst_46 = arith.constant 0.000000e+00 : f32
    %97 = vector.shape_cast %76 : vector<8x1xi1> to vector<8x1xi1>
    %98 = vector.broadcast %97 : vector<8x1xi1> to vector<8x128xi1>
    %99 = vector.broadcast %cst_46 : f32 to vector<8x128xf32>
    %100 = arith.select %98, %96, %99 : vector<8x128xi1>, vector<8x128xf32>
    %101 = arith.mulf %100, %100 : vector<8x128xf32>
    %cst_47 = arith.constant dense<0.000000e+00> : vector<128xf32>
    %102 = vector.multi_reduction <add>, %101, %cst_47 [0] : vector<8x128xf32> to vector<128xf32>
    %103 = vector.shape_cast %102 : vector<128xf32> to vector<1x128xf32>
    %104 = vector.shape_cast %103 : vector<1x128xf32> to vector<1x1x128xf32>
    %105 = vector.shape_cast %104 : vector<1x1x128xf32> to vector<1x1x128xf32>
    %106 = vector.broadcast %105 : vector<1x1x128xf32> to vector<1x8x128xf32>
    %c0_48 = arith.constant 0 : index
    %c0_49 = arith.constant 0 : index
    %c0_50 = arith.constant 0 : index
    %107 = vector.load %arg14[%c0_48, %c0_49, %c0_50] : memref<1x8x128xf32, #tpu.memory_space<vmem>>, vector<1x8x128xf32>
    tpu.vector_store %arg14[%c0_48, %c0_49, %c0_50], %106 {strides = array<i32>} : memref<1x8x128xf32, #tpu.memory_space<vmem>>, vector<1x8x128xf32>,
    return
  }
  func.func @transform_0(%arg0: i32) -> (i32, i32) {
    %c0_i32 = arith.constant 0 : i32
    %c0_i32_0 = arith.constant 0 : i32
    return %arg0, %c0_i32 : i32, i32
  }
  func.func @transform_1(%arg0: i32) -> (i32, i32) {
    %c0_i32 = arith.constant 0 : i32
    %c0_i32_0 = arith.constant 0 : i32
    %c0_i32_1 = arith.constant 0 : i32
    return %c0_i32, %c0_i32_0 : i32, i32
  }
  func.func @transform_2(%arg0: i32) -> (i32, i32) {
    %c0_i32 = arith.constant 0 : i32
    %c0_i32_0 = arith.constant 0 : i32
    %c0_i32_1 = arith.constant 0 : i32
    return %c0_i32, %c0_i32_0 : i32, i32
  }
  func.func @transform_3(%arg0: i32) -> (i32, i32) {
    %c0_i32 = arith.constant 0 : i32
    %c0_i32_0 = arith.constant 0 : i32
    %c0_i32_1 = arith.constant 0 : i32
    return %c0_i32, %c0_i32_0 : i32, i32
  }
  func.func @transform_4(%arg0: i32) -> (i32, i32) {
    %c0_i32 = arith.constant 0 : i32
    %c0_i32_0 = arith.constant 0 : i32
    %c0_i32_1 = arith.constant 0 : i32
    return %c0_i32, %c0_i32_0 : i32, i32
  }
  func.func @transform_5(%arg0: i32) -> (i32, i32) {
    %c0_i32 = arith.constant 0 : i32
    %c0_i32_0 = arith.constant 0 : i32
    %c0_i32_1 = arith.constant 0 : i32
    return %c0_i32, %c0_i32_0 : i32, i32
  }
  func.func @transform_6(%arg0: i32) -> (i32, i32) {
    %c0_i32 = arith.constant 0 : i32
    %c0_i32_0 = arith.constant 0 : i32
    %c0_i32_1 = arith.constant 0 : i32
    return %c0_i32, %c0_i32_0 : i32, i32
  }
  func.func @transform_7(%arg0: i32) -> (i32, i32) {
    %c0_i32 = arith.constant 0 : i32
    %c0_i32_0 = arith.constant 0 : i32
    %c0_i32_1 = arith.constant 0 : i32
    return %c0_i32, %c0_i32_0 : i32, i32
  }
  func.func @transform_8(%arg0: i32) -> (i32, i32) {
    %c0_i32 = arith.constant 0 : i32
    %c0_i32_0 = arith.constant 0 : i32
    %c0_i32_1 = arith.constant 0 : i32
    return %c0_i32, %c0_i32_0 : i32, i32
  }
  func.func @transform_9(%arg0: i32) -> (i32, i32) {
    %c0_i32 = arith.constant 0 : i32
    %c0_i32_0 = arith.constant 0 : i32
    %c0_i32_1 = arith.constant 0 : i32
    return %c0_i32, %c0_i32_0 : i32, i32
  }
  func.func @transform_10(%arg0: i32) -> (i32, i32) {
    %c0_i32 = arith.constant 0 : i32
    %c0_i32_0 = arith.constant 0 : i32
    %c0_i32_1 = arith.constant 0 : i32
    return %c0_i32, %c0_i32_0 : i32, i32
  }
  func.func @transform_11(%arg0: i32) -> (i32, i32) {
    %c0_i32 = arith.constant 0 : i32
    %c0_i32_0 = arith.constant 0 : i32
    return %arg0, %c0_i32 : i32, i32
  }
  func.func @transform_12(%arg0: i32) -> (i32, i32, i32) {
    %c0_i32 = arith.constant 0 : i32
    %c0_i32_0 = arith.constant 0 : i32
    %c0_i32_1 = arith.constant 0 : i32
    return %arg0, %c0_i32, %c0_i32_0 : i32, i32, i32
  }
  func.func @transform_13(%arg0: i32) -> (i32, i32, i32) {
    %c0_i32 = arith.constant 0 : i32
    %c0_i32_0 = arith.constant 0 : i32
    %c0_i32_1 = arith.constant 0 : i32
    return %arg0, %c0_i32, %c0_i32_0 : i32, i32, i32
  }
}

</mosaic_0001>

<llo_original>
// kernel: tpu_custom_call.1
$region0: #{tpu_custom_call.1}
  #allocation0 [shape = 'u32[]', space=smem, size = 0x4, offset = 0x4, fixed_abs, tag = 'smem constant byte address 0x4 - core index']
  #allocation1 [shape = 'u32[72,128]{1,0:T(1,128)}', space=vmem, size = 0x9000, scoped, tag = 'internal scratch']
  %s0 = inlined_call_operand.hbm [shape: f32[24,784], index: 0, kind: input, shape index: {}]
  %s1 = inlined_call_operand.hbm [shape: bf16[784,512], index: 1, kind: input, shape index: {}]
  %s2 = inlined_call_operand.hbm [shape: f32[1,512], index: 2, kind: input, shape index: {}]
  %s3 = inlined_call_operand.hbm [shape: bf16[512,128], index: 3, kind: input, shape index: {}]
  %s4 = inlined_call_operand.hbm [shape: f32[1,128], index: 4, kind: input, shape index: {}]
  %s5 = inlined_call_operand.hbm [shape: bf16[128,512], index: 5, kind: input, shape index: {}]
  %s6 = inlined_call_operand.hbm [shape: f32[1,512], index: 6, kind: input, shape index: {}]
  %s7 = inlined_call_operand.hbm [shape: bf16[512,896], index: 7, kind: input, shape index: {}]
  %s8 = inlined_call_operand.vmem [shape: f32[1,896], index: 8, kind: input, shape index: {}]
  %s9 = inlined_call_operand.hbm [shape: f32[128,128], index: 9, kind: input, shape index: {}]
  %s10 = inlined_call_operand.vmem [shape: f32[1,128], index: 10, kind: input, shape index: {}]
  %s11 = inlined_call_operand.hbm [shape: f32[24,896], index: 11, kind: output, shape index: {0}]
  %s12 = inlined_call_operand.hbm [shape: f32[3,8,784], index: 12, kind: output, shape index: {1}]
  %s13 = inlined_call_operand.hbm [shape: f32[3,8,128], index: 13, kind: output, shape index: {2}]
  %14 = xla_tuple %s11, %s12, %s13
  %s15 = sld [smem:[#allocation0]]
  $region129: #{tpu_custom_call.1} parent=0
    _
  %s17 = ssub.s32 1, %s15
  %s18 = scalar_select 0, %s17, %s15
  $region1: #{tpu_custom_call.1} parent=0
    #allocation2 [shape = 'u8[57344]{0}', space=vmem, size = 0xe000, scoped, tag = 'input window, operand 0']
    #allocation3 [shape = 's32[2]{0}', space=sflag, size = 0x8, scoped, tag = 'scoped memory for tpu_custom_call.1']
    #allocation4 [shape = 's32[2]{0}', space=sflag, size = 0x8, scoped, tag = 'scoped memory for tpu_custom_call.1']
    #allocation5 [shape = 'u8[802816]{0}', space=vmem, size = 0xc4000, scoped, tag = 'input window, operand 1, single buffered']
    #allocation6 [shape = 's32[1]{0}', space=sflag, size = 0x4, scoped, tag = 'scoped memory for tpu_custom_call.1']
    #allocation7 [shape = 'u8[2048]{0}', space=vmem, size = 0x800, scoped, tag = 'input window, operand 2, single buffered']
    #allocation8 [shape = 'u8[131072]{0}', space=vmem, size = 0x20000, scoped, tag = 'input window, operand 3, single buffered']
    #allocation9 [shape = 's32[1]{0}', space=sflag, size = 0x4, scoped, tag = 'scoped memory for tpu_custom_call.1']
    #allocation10 [shape = 'u8[512]{0}', space=vmem, size = 0x400, scoped, tag = 'input window, operand 4, single buffered']
    #allocation11 [shape = 'u8[131072]{0}', space=vmem, size = 0x20000, scoped, tag = 'input window, operand 5, single buffered']
    #allocation12 [shape = 's32[1]{0}', space=sflag, size = 0x4, scoped, tag = 'scoped memory for tpu_custom_call.1']
    #allocation13 [shape = 'u8[2048]{0}', space=vmem, size = 0x800, scoped, tag = 'input window, operand 6, single buffered']
    #allocation14 [shape = 'u8[917504]{0}', space=vmem, size = 0xe0000, scoped, tag = 'input window, operand 7, single buffered']
    #allocation15 [shape = 's32[1]{0}', space=sflag, size = 0x4, scoped, tag = 'scoped memory for tpu_custom_call.1']
    #allocation16 [shape = 'u8[65536]{0}', space=vmem, size = 0x10000, scoped, tag = 'input window, operand 9, single buffered']
    #allocation17 [shape = 'u8[57344]{0}', space=vmem, size = 0xe000, scoped, tag = 'output window, operand 0']
    #allocation18 [shape = 'u8[57344]{0}', space=vmem, size = 0xe000, scoped, tag = 'output window, operand 1']
    #allocation19 [shape = 's32[2]{0}', space=sflag, size = 0x8, scoped, tag = 'scoped memory for tpu_custom_call.1']
    #allocation20 [shape = 'u8[8192]{0}', space=vmem, size = 0x2000, scoped, tag = 'output window, operand 2']
    %19 = vsyncpa [#allocation3], 0
    %s20 = scalar_lea.sflag [#allocation3], 1
    %21 = vsyncpa %s20, 0
    %22 = vsyncpa [#allocation6], 0
    %23 = vsyncpa [#allocation9], 0
    %24 = vsyncpa [#allocation12], 0
    %25 = vsyncpa [#allocation15], 0
    %26 = vsyncpa [#allocation4], 0
    %s27 = scalar_lea.sflag [#allocation4], 1
    %28 = vsyncpa %s27, 0
    %29 = vsyncpa [#allocation19], 0
    %s30 = scalar_lea.sflag [#allocation19], 1
    %31 = vsyncpa %s30, 0
    loop: start=0, step=1, limit=5
    $region2: #{tpu_custom_call.1} parent=1 // loop_pre_header
      _
    $region3: #{tpu_custom_call.1} parent=1 // loop_header
      %s33 = sphi 0, %s37
      %p34 = scmp.ge.s32.totalorder %s33, 5
      %s43 = sphi 0, %s45
      %s46 = sphi 0, %s43
      %s47 = sphi 0, %s46
      %s63 = sphi 0, %s47
      %s67 = sphi 0, %s67
      %s69 = sphi 0, %s67
      %s70 = sphi 0, %s69
      %s84 = sphi 0, %s70
      %s88 = sphi 0, %s88
      %s90 = sphi 0, %s88
      %s91 = sphi 0, %s90
      %s105 = sphi 0, %s91
      %s109 = sphi 0, %s109
      %s111 = sphi 0, %s109
      %s112 = sphi 0, %s111
      %s126 = sphi 0, %s112
      %s130 = sphi 0, %s130
      %s132 = sphi 0, %s130
      %s133 = sphi 0, %s132
      %s147 = sphi 0, %s133
      %s151 = sphi 0, %s151
      %s153 = sphi 0, %s151
      %s154 = sphi 0, %s153
      %s168 = sphi 0, %s154
      %s172 = sphi 0, %s172
      %s174 = sphi 0, %s172
      %s175 = sphi 0, %s174
      %s189 = sphi 0, %s175
      %s193 = sphi 0, %s193
      %s195 = sphi 0, %s193
      %s196 = sphi 0, %s195
      %s210 = sphi 0, %s196
      %s214 = sphi 0, %s214
      %s216 = sphi 0, %s214
      %s217 = sphi 0, %s216
      %s231 = sphi 0, %s217
      %s235 = sphi 0, %s235
      %s237 = sphi 0, %s235
      %s238 = sphi 0, %s237
      %s252 = sphi 0, %s238
      %s256 = sphi 0, %s256
      %s258 = sphi 0, %s256
      %s259 = sphi 0, %s258
      %s273 = sphi 0, %s259
      %s279 = sphi 0, %s281
      %s282 = sphi 0, %s279
      %s283 = sphi 0, %s282
      %s299 = sphi 0, %s283
      %s305 = sphi 0, %s307
      %s308 = sphi 0, %s305
      %s309 = sphi 0, %s308
      %s325 = sphi 0, %s309
      %s331 = sphi 0, %s333
      %s334 = sphi 0, %s331
      %s335 = sphi 0, %s334
      %s351 = sphi 0, %s335
    $region4: #{tpu_custom_call.1} parent=1 // loop_header_branch
      %36 = sbr.rel (%p34) target = $region8
    $region5: #{tpu_custom_call.1} parent=1 // loop_body
      %s38 = ssub.s32 %s33, 1
      %s39 = ssub.s32 %s33, 2
      %s40 = sadd.s32 %s33, 1
      %s41 = ssub.s32 %s33, %s40
      %p42 = scmp.eq.s32.totalorder %s41, 0
      %s44 = sadd.s32 %s43, 1
      %s45 = scalar_select %p42, %s43, %s44
      %p48 = pneg %p42
      %p49 = scmp.eq.s32.totalorder %s33, 2
      %p50 = por %p48, %p49
      %p51 = scmp.ne.s32.totalorder %s43, %s46
      %p52 = scmp.eq.s32.totalorder %s33, 0
      %p53 = por %p51, %p52
      %p54 = scmp.ne.s32.totalorder %s43, %s46
      %p55 = scmp.eq.s32.totalorder %s38, 2
      %p56 = por %p54, %p55
      %p57 = scmp.ne.s32.totalorder %s46, %s47
      %p58 = scmp.eq.s32.totalorder %s38, 0
      %p59 = por %p57, %p58
      %p60 = scmp.ne.s32.totalorder %s46, %s47
      %p61 = scmp.eq.s32.totalorder %s39, 2
      %p62 = por %p60, %p61
      %p64 = scmp.ne.s32.totalorder %s47, %s63
      %p65 = scmp.eq.s32.totalorder %s39, 0
      %p66 = por %p64, %p65
      %s68 = sadd.s32 %s67, 1
      %p71 = scmp.eq.s32.totalorder %s33, 2
      %p72 = scmp.ne.s32.totalorder %s67, %s69
      %p73 = scmp.eq.s32.totalorder %s33, 0
      %p74 = por %p72, %p73
      %p75 = scmp.ne.s32.totalorder %s67, %s69
      %p76 = scmp.eq.s32.totalorder %s38, 2
      %p77 = por %p75, %p76
      %p78 = scmp.ne.s32.totalorder %s69, %s70
      %p79 = scmp.eq.s32.totalorder %s38, 0
      %p80 = por %p78, %p79
      %p81 = scmp.ne.s32.totalorder %s69, %s70
      %p82 = scmp.eq.s32.totalorder %s39, 2
      %p83 = por %p81, %p82
      %p85 = scmp.ne.s32.totalorder %s70, %s84
      %p86 = scmp.eq.s32.totalorder %s39, 0
      %p87 = por %p85, %p86
      %s89 = sadd.s32 %s88, 1
      %p92 = scmp.eq.s32.totalorder %s33, 2
      %p93 = scmp.ne.s32.totalorder %s88, %s90
      %p94 = scmp.eq.s32.totalorder %s33, 0
      %p95 = por %p93, %p94
      %p96 = scmp.ne.s32.totalorder %s88, %s90
      %p97 = scmp.eq.s32.totalorder %s38, 2
      %p98 = por %p96, %p97
      %p99 = scmp.ne.s32.totalorder %s90, %s91
      %p100 = scmp.eq.s32.totalorder %s38, 0
      %p101 = por %p99, %p100
      %p102 = scmp.ne.s32.totalorder %s90, %s91
      %p103 = scmp.eq.s32.totalorder %s39, 2
      %p104 = por %p102, %p103
      %p106 = scmp.ne.s32.totalorder %s91, %s105
      %p107 = scmp.eq.s32.totalorder %s39, 0
      %p108 = por %p106, %p107
      %s110 = sadd.s32 %s109, 1
      %p113 = scmp.eq.s32.totalorder %s33, 2
      %p114 = scmp.ne.s32.totalorder %s109, %s111
      %p115 = scmp.eq.s32.totalorder %s33, 0
      %p116 = por %p114, %p115
      %p117 = scmp.ne.s32.totalorder %s109, %s111
      %p118 = scmp.eq.s32.totalorder %s38, 2
      %p119 = por %p117, %p118
      %p120 = scmp.ne.s32.totalorder %s111, %s112
      %p121 = scmp.eq.s32.totalorder %s38, 0
      %p122 = por %p120, %p121
      %p123 = scmp.ne.s32.totalorder %s111, %s112
      %p124 = scmp.eq.s32.totalorder %s39, 2
      %p125 = por %p123, %p124
      %p127 = scmp.ne.s32.totalorder %s112, %s126
      %p128 = scmp.eq.s32.totalorder %s39, 0
      %p129 = por %p127, %p128
      %s131 = sadd.s32 %s130, 1
      %p134 = scmp.eq.s32.totalorder %s33, 2
      %p135 = scmp.ne.s32.totalorder %s130, %s132
      %p136 = scmp.eq.s32.totalorder %s33, 0
      %p137 = por %p135, %p136
      %p138 = scmp.ne.s32.totalorder %s130, %s132
      %p139 = scmp.eq.s32.totalorder %s38, 2
      %p140 = por %p138, %p139
      %p141 = scmp.ne.s32.totalorder %s132, %s133
      %p142 = scmp.eq.s32.totalorder %s38, 0
      %p143 = por %p141, %p142
      %p144 = scmp.ne.s32.totalorder %s132, %s133
      %p145 = scmp.eq.s32.totalorder %s39, 2
      %p146 = por %p144, %p145
      %p148 = scmp.ne.s32.totalorder %s133, %s147
      %p149 = scmp.eq.s32.totalorder %s39, 0
      %p150 = por %p148, %p149
      %s152 = sadd.s32 %s151, 1
      %p155 = scmp.eq.s32.totalorder %s33, 2
      %p156 = scmp.ne.s32.totalorder %s151, %s153
      %p157 = scmp.eq.s32.totalorder %s33, 0
      %p158 = por %p156, %p157
      %p159 = scmp.ne.s32.totalorder %s151, %s153
      %p160 = scmp.eq.s32.totalorder %s38, 2
      %p161 = por %p159, %p160
      %p162 = scmp.ne.s32.totalorder %s153, %s154
      %p163 = scmp.eq.s32.totalorder %s38, 0
      %p164 = por %p162, %p163
      %p165 = scmp.ne.s32.totalorder %s153, %s154
      %p166 = scmp.eq.s32.totalorder %s39, 2
      %p167 = por %p165, %p166
      %p169 = scmp.ne.s32.totalorder %s154, %s168
      %p170 = scmp.eq.s32.totalorder %s39, 0
      %p171 = por %p169, %p170
      %s173 = sadd.s32 %s172, 1
      %p176 = scmp.eq.s32.totalorder %s33, 2
      %p177 = scmp.ne.s32.totalorder %s172, %s174
      %p178 = scmp.eq.s32.totalorder %s33, 0
      %p179 = por %p177, %p178
      %p180 = scmp.ne.s32.totalorder %s172, %s174
      %p181 = scmp.eq.s32.totalorder %s38, 2
      %p182 = por %p180, %p181
      %p183 = scmp.ne.s32.totalorder %s174, %s175
      %p184 = scmp.eq.s32.totalorder %s38, 0
      %p185 = por %p183, %p184
      %p186 = scmp.ne.s32.totalorder %s174, %s175
      %p187 = scmp.eq.s32.totalorder %s39, 2
      %p188 = por %p186, %p187
      %p190 = scmp.ne.s32.totalorder %s175, %s189
      %p191 = scmp.eq.s32.totalorder %s39, 0
      %p192 = por %p190, %p191
      %s194 = sadd.s32 %s193, 1
      %p197 = scmp.eq.s32.totalorder %s33, 2
      %p198 = scmp.ne.s32.totalorder %s193, %s195
      %p199 = scmp.eq.s32.totalorder %s33, 0
      %p200 = por %p198, %p199
      %p201 = scmp.ne.s32.totalorder %s193, %s195
      %p202 = scmp.eq.s32.totalorder %s38, 2
      %p203 = por %p201, %p202
      %p204 = scmp.ne.s32.totalorder %s195, %s196
      %p205 = scmp.eq.s32.totalorder %s38, 0
      %p206 = por %p204, %p205
      %p207 = scmp.ne.s32.totalorder %s195, %s196
      %p208 = scmp.eq.s32.totalorder %s39, 2
      %p209 = por %p207, %p208
      %p211 = scmp.ne.s32.totalorder %s196, %s210
      %p212 = scmp.eq.s32.totalorder %s39, 0
      %p213 = por %p211, %p212
      %s215 = sadd.s32 %s214, 1
      %p218 = scmp.eq.s32.totalorder %s33, 2
      %p219 = scmp.ne.s32.totalorder %s214, %s216
      %p220 = scmp.eq.s32.totalorder %s33, 0
      %p221 = por %p219, %p220
      %p222 = scmp.ne.s32.totalorder %s214, %s216
      %p223 = scmp.eq.s32.totalorder %s38, 2
      %p224 = por %p222, %p223
      %p225 = scmp.ne.s32.totalorder %s216, %s217
      %p226 = scmp.eq.s32.totalorder %s38, 0
      %p227 = por %p225, %p226
      %p228 = scmp.ne.s32.totalorder %s216, %s217
      %p229 = scmp.eq.s32.totalorder %s39, 2
      %p230 = por %p228, %p229
      %p232 = scmp.ne.s32.totalorder %s217, %s231
      %p233 = scmp.eq.s32.totalorder %s39, 0
      %p234 = por %p232, %p233
      %s236 = sadd.s32 %s235, 1
      %p239 = scmp.eq.s32.totalorder %s33, 2
      %p240 = scmp.ne.s32.totalorder %s235, %s237
      %p241 = scmp.eq.s32.totalorder %s33, 0
      %p242 = por %p240, %p241
      %p243 = scmp.ne.s32.totalorder %s235, %s237
      %p244 = scmp.eq.s32.totalorder %s38, 2
      %p245 = por %p243, %p244
      %p246 = scmp.ne.s32.totalorder %s237, %s238
      %p247 = scmp.eq.s32.totalorder %s38, 0
      %p248 = por %p246, %p247
      %p249 = scmp.ne.s32.totalorder %s237, %s238
      %p250 = scmp.eq.s32.totalorder %s39, 2
      %p251 = por %p249, %p250
      %p253 = scmp.ne.s32.totalorder %s238, %s252
      %p254 = scmp.eq.s32.totalorder %s39, 0
      %p255 = por %p253, %p254
      %s257 = sadd.s32 %s256, 1
      %p260 = scmp.eq.s32.totalorder %s33, 2
      %p261 = scmp.ne.s32.totalorder %s256, %s258
      %p262 = scmp.eq.s32.totalorder %s33, 0
      %p263 = por %p261, %p262
      %p264 = scmp.ne.s32.totalorder %s256, %s258
      %p265 = scmp.eq.s32.totalorder %s38, 2
      %p266 = por %p264, %p265
      %p267 = scmp.ne.s32.totalorder %s258, %s259
      %p268 = scmp.eq.s32.totalorder %s38, 0
      %p269 = por %p267, %p268
      %p270 = scmp.ne.s32.totalorder %s258, %s259
      %p271 = scmp.eq.s32.totalorder %s39, 2
      %p272 = por %p270, %p271
      %p274 = scmp.ne.s32.totalorder %s259, %s273
      %p275 = scmp.eq.s32.totalorder %s39, 0
      %p276 = por %p274, %p275
      %s277 = ssub.s32 %s33, %s40
      %p278 = scmp.eq.s32.totalorder %s277, 0
      %s280 = sadd.s32 %s279, 1
      %s281 = scalar_select %p278, %s279, %s280
      %p284 = pneg %p278
      %p285 = scmp.eq.s32.totalorder %s33, 2
      %p286 = por %p284, %p285
      %p287 = scmp.ne.s32.totalorder %s279, %s282
      %p288 = scmp.eq.s32.totalorder %s33, 0
      %p289 = por %p287, %p288
      %p290 = scmp.ne.s32.totalorder %s279, %s282
      %p291 = scmp.eq.s32.totalorder %s38, 2
      %p292 = por %p290, %p291
      %p293 = scmp.ne.s32.totalorder %s282, %s283
      %p294 = scmp.eq.s32.totalorder %s38, 0
      %p295 = por %p293, %p294
      %p296 = scmp.ne.s32.totalorder %s282, %s283
      %p297 = scmp.eq.s32.totalorder %s39, 2
      %p298 = por %p296, %p297
      %p300 = scmp.ne.s32.totalorder %s283, %s299
      %p301 = scmp.eq.s32.totalorder %s39, 0
      %p302 = por %p300, %p301
      %s303 = ssub.s32 %s33, %s40
      %p304 = scmp.eq.s32.totalorder %s303, 0
      %s306 = sadd.s32 %s305, 1
      %s307 = scalar_select %p304, %s305, %s306
      %p310 = pneg %p304
      %p311 = scmp.eq.s32.totalorder %s33, 2
      %p312 = por %p310, %p311
      %p313 = scmp.ne.s32.totalorder %s305, %s308
      %p314 = scmp.eq.s32.totalorder %s33, 0
      %p315 = por %p313, %p314
      %p316 = scmp.ne.s32.totalorder %s305, %s308
      %p317 = scmp.eq.s32.totalorder %s38, 2
      %p318 = por %p316, %p317
      %p319 = scmp.ne.s32.totalorder %s308, %s309
      %p320 = scmp.eq.s32.totalorder %s38, 0
      %p321 = por %p319, %p320
      %p322 = scmp.ne.s32.totalorder %s308, %s309
      %p323 = scmp.eq.s32.totalorder %s39, 2
      %p324 = por %p322, %p323
      %p326 = scmp.ne.s32.totalorder %s309, %s325
      %p327 = scmp.eq.s32.totalorder %s39, 0
      %p328 = por %p326, %p327
      %s329 = ssub.s32 %s33, %s40
      %p330 = scmp.eq.s32.totalorder %s329, 0
      %s332 = sadd.s32 %s331, 1
      %s333 = scalar_select %p330, %s331, %s332
      %p336 = pneg %p330
      %p337 = scmp.eq.s32.totalorder %s33, 2
      %p338 = por %p336, %p337
      %p339 = scmp.ne.s32.totalorder %s331, %s334
      %p340 = scmp.eq.s32.totalorder %s33, 0
      %p341 = por %p339, %p340
      %p342 = scmp.ne.s32.totalorder %s331, %s334
      %p343 = scmp.eq.s32.totalorder %s38, 2
      %p344 = por %p342, %p343
      %p345 = scmp.ne.s32.totalorder %s334, %s335
      %p346 = scmp.eq.s32.totalorder %s38, 0
      %p347 = por %p345, %p346
      %p348 = scmp.ne.s32.totalorder %s334, %s335
      %p349 = scmp.eq.s32.totalorder %s39, 2
      %p350 = por %p348, %p349
      %p352 = scmp.ne.s32.totalorder %s335, %s351
      %p353 = scmp.eq.s32.totalorder %s39, 0
      %p354 = por %p352, %p353
      %p355 = scmp.le.s32.totalorder 1, %s33
      %p356 = scmp.lt.s32.totalorder %s33, 4
      %p357 = pnand %p355, %p356
      %p358 = pneg %p357
      // Predicated region
      $region9: #{tpu_custom_call.1} parent=5 // pred_check
        _
      $region10: #{tpu_custom_call.1} parent=5 // pred_check_branch
        %360 = sbr.rel (%p357) target = $region12
      $region11: #{tpu_custom_call.1} parent=5 // pred_region
        %s361 = ssub.s32 %s33, 1
        // Predicated region
        $region13: #{tpu_custom_call.1} parent=11 // pred_check
          %p362 = pneg %p80
        $region14: #{tpu_custom_call.1} parent=11 // pred_check_branch
          %364 = sbr.rel (%p362) target = $region16
        $region15: #{tpu_custom_call.1} parent=11 // pred_region
          %366 = vsyncadd [#allocation6], 0
          %s367 = sshll.u32 %s1, 4
          %s368 = int_to_ptr.hbm [resolvable:$true] %s367
          %s369 = sshll.u32 [#allocation5], 4
          %s370 = int_to_ptr.vmem [resolvable:$true] %s369
          %375 = dma.hbm_to_vmem [thread:$0]  %s368, 25088, %s370, [#allocation6], 256, 256, 16
        $region16: #{tpu_custom_call.1} parent=11 // pred_fallthru
          _
        // Predicated region
        $region17: #{tpu_custom_call.1} parent=11 // pred_check
          %p376 = pneg %p101
        $region18: #{tpu_custom_call.1} parent=11 // pred_check_branch
          %378 = sbr.rel (%p376) target = $region20
        $region19: #{tpu_custom_call.1} parent=11 // pred_region
          %380 = vsyncadd [#allocation6], 0
          %s382 = sshll.u32 %s2, 4
          %s383 = int_to_ptr.hbm [resolvable:$true] %s382
          %s384 = sshll.u32 [#allocation7], 4
          %s385 = int_to_ptr.vmem [resolvable:$true] %s384
          %387 = dma.hbm_to_vmem [thread:$0]  %s383, 64, %s385, [#allocation6]
        $region20: #{tpu_custom_call.1} parent=11 // pred_fallthru
          _
        // Predicated region
        $region21: #{tpu_custom_call.1} parent=11 // pred_check
          %p388 = pneg %p122
        $region22: #{tpu_custom_call.1} parent=11 // pred_check_branch
          %390 = sbr.rel (%p388) target = $region24
        $region23: #{tpu_custom_call.1} parent=11 // pred_region
          %392 = vsyncadd [#allocation9], 0
          %s393 = sshll.u32 %s3, 4
          %s394 = int_to_ptr.hbm [resolvable:$true] %s393
          %s395 = sshll.u32 [#allocation8], 4
          %s396 = int_to_ptr.vmem [resolvable:$true] %s395
          %401 = dma.hbm_to_vmem [thread:$0]  %s394, 4096, %s396, [#allocation9], 64, 64, 4
        $region24: #{tpu_custom_call.1} parent=11 // pred_fallthru
          _
        // Predicated region
        $region25: #{tpu_custom_call.1} parent=11 // pred_check
          %p402 = pneg %p143
        $region26: #{tpu_custom_call.1} parent=11 // pred_check_branch
          %404 = sbr.rel (%p402) target = $region28
        $region27: #{tpu_custom_call.1} parent=11 // pred_region
          %406 = vsyncadd [#allocation9], 0
          %s408 = sshll.u32 %s4, 4
          %s409 = int_to_ptr.hbm [resolvable:$true] %s408
          %s410 = sshll.u32 [#allocation10], 4
          %s411 = int_to_ptr.vmem [resolvable:$true] %s410
          %413 = dma.hbm_to_vmem [thread:$0]  %s409, 16, %s411, [#allocation9]
        $region28: #{tpu_custom_call.1} parent=11 // pred_fallthru
          _
        // Predicated region
        $region29: #{tpu_custom_call.1} parent=11 // pred_check
          %p414 = pneg %p164
        $region30: #{tpu_custom_call.1} parent=11 // pred_check_branch
          %416 = sbr.rel (%p414) target = $region32
        $region31: #{tpu_custom_call.1} parent=11 // pred_region
          %418 = vsyncadd [#allocation12], 0
          %s419 = sshll.u32 %s5, 4
          %s420 = int_to_ptr.hbm [resolvable:$true] %s419
          %s421 = sshll.u32 [#allocation11], 4
          %s422 = int_to_ptr.vmem [resolvable:$true] %s421
          %427 = dma.hbm_to_vmem [thread:$0]  %s420, 4096, %s422, [#allocation12], 256, 256, 16
        $region32: #{tpu_custom_call.1} parent=11 // pred_fallthru
          _
        // Predicated region
        $region33: #{tpu_custom_call.1} parent=11 // pred_check
          %p428 = pneg %p185
        $region34: #{tpu_custom_call.1} parent=11 // pred_check_branch
          %430 = sbr.rel (%p428) target = $region36
        $region35: #{tpu_custom_call.1} parent=11 // pred_region
          %432 = vsyncadd [#allocation12], 0
          %s434 = sshll.u32 %s6, 4
          %s435 = int_to_ptr.hbm [resolvable:$true] %s434
          %s436 = sshll.u32 [#allocation13], 4
          %s437 = int_to_ptr.vmem [resolvable:$true] %s436
          %439 = dma.hbm_to_vmem [thread:$0]  %s435, 64, %s437, [#allocation12]
        $region36: #{tpu_custom_call.1} parent=11 // pred_fallthru
          _
        // Predicated region
        $region37: #{tpu_custom_call.1} parent=11 // pred_check
          %p440 = pneg %p206
        $region38: #{tpu_custom_call.1} parent=11 // pred_check_branch
          %442 = sbr.rel (%p440) target = $region40
        $region39: #{tpu_custom_call.1} parent=11 // pred_region
          %444 = vsyncadd [#allocation15], 0
          %s445 = sshll.u32 %s7, 4
          %s446 = int_to_ptr.hbm [resolvable:$true] %s445
          %s447 = sshll.u32 [#allocation14], 4
          %s448 = int_to_ptr.vmem [resolvable:$true] %s447
          %453 = dma.hbm_to_vmem [thread:$0]  %s446, 28672, %s448, [#allocation15], 448, 448, 28
        $region40: #{tpu_custom_call.1} parent=11 // pred_fallthru
          _
        // Predicated region
        $region41: #{tpu_custom_call.1} parent=11 // pred_check
          %p454 = pneg %p227
        $region42: #{tpu_custom_call.1} parent=11 // pred_check_branch
          %456 = sbr.rel (%p454) target = $region44
        $region43: #{tpu_custom_call.1} parent=11 // pred_region
          _
        $region44: #{tpu_custom_call.1} parent=11 // pred_fallthru
          _
        // Predicated region
        $region45: #{tpu_custom_call.1} parent=11 // pred_check
          %p457 = pneg %p248
        $region46: #{tpu_custom_call.1} parent=11 // pred_check_branch
          %459 = sbr.rel (%p457) target = $region48
        $region47: #{tpu_custom_call.1} parent=11 // pred_region
          %461 = vsyncadd [#allocation15], 0
          %s462 = sshll.u32 %s9, 4
          %s463 = int_to_ptr.hbm [resolvable:$true] %s462
          %s464 = sshll.u32 [#allocation16], 4
          %s465 = int_to_ptr.vmem [resolvable:$true] %s464
          %470 = dma.hbm_to_vmem [thread:$0]  %s463, 2048, %s465, [#allocation15], 128, 128, 8
        $region48: #{tpu_custom_call.1} parent=11 // pred_fallthru
          _
        // Predicated region
        $region49: #{tpu_custom_call.1} parent=11 // pred_check
          %p471 = pneg %p269
        $region50: #{tpu_custom_call.1} parent=11 // pred_check_branch
          %473 = sbr.rel (%p471) target = $region52
        $region51: #{tpu_custom_call.1} parent=11 // pred_region
          _
        $region52: #{tpu_custom_call.1} parent=11 // pred_fallthru
          _
      $region12: #{tpu_custom_call.1} parent=5 // pred_fallthru
        _
      %p474 = scmp.lt.s32.totalorder %s33, 3
      // Predicated region
      $region53: #{tpu_custom_call.1} parent=5 // pred_check
        %p475 = pneg %p474
      $region54: #{tpu_custom_call.1} parent=5 // pred_check_branch
        %477 = sbr.rel (%p475) target = $region56
      $region55: #{tpu_custom_call.1} parent=5 // pred_region
        // Predicated region
        $region57: #{tpu_custom_call.1} parent=55 // pred_check
          %p478 = pneg %p53
        $region58: #{tpu_custom_call.1} parent=55 // pred_check_branch
          %480 = sbr.rel (%p478) target = $region60
        $region59: #{tpu_custom_call.1} parent=55 // pred_region
          %s481 = sand.u32 %s43, 1
          %s482 = scalar_lea.sflag [#allocation3], %s481
          %s483 = sand.u32 %s43, 1
          %s484 = smul.addr %s483, 56
          %s485 = scalar_lea.vmem [#allocation2], %s484
          %487 = vsyncadd %s482, 0
          %s488 = smul.addr %s33, 7
          %s489 = smul.addr %s488, 8
          %s490 = scalar_lea.hbm %s0, %s489
          %s492 = sshll.u32 %s490, 4
          %s493 = int_to_ptr.hbm [resolvable:$true] %s492
          %s494 = sshll.u32 %s485, 4
          %s495 = int_to_ptr.vmem [resolvable:$true] %s494
          %497 = dma.hbm_to_vmem [thread:$0]  %s493, 896, %s495, %s482
        $region60: #{tpu_custom_call.1} parent=55 // pred_fallthru
          _
      $region56: #{tpu_custom_call.1} parent=5 // pred_fallthru
        _
      %p498 = scmp.le.s32.totalorder 1, %s33
      %p499 = scmp.lt.s32.totalorder %s33, 4
      %p500 = pnand %p498, %p499
      %p501 = pneg %p500
      // Predicated region
      $region61: #{tpu_custom_call.1} parent=5 // pred_check
        _
      $region62: #{tpu_custom_call.1} parent=5 // pred_check_branch
        %503 = sbr.rel (%p500) target = $region64
      $region63: #{tpu_custom_call.1} parent=5 // pred_region
        %s504 = ssub.s32 %s33, 1
        %s505 = sand.u32 %s46, 1
        %s506 = scalar_lea.sflag [#allocation3], %s505
        %s507 = sand.u32 %s46, 1
        %s508 = smul.addr %s507, 56
        %s509 = scalar_lea.vmem [#allocation2], %s508
        // Predicated region
        $region65: #{tpu_custom_call.1} parent=63 // pred_check
          %p510 = pneg %p59
        $region66: #{tpu_custom_call.1} parent=63 // pred_check_branch
          %512 = sbr.rel (%p510) target = $region68
        $region67: #{tpu_custom_call.1} parent=63 // pred_region
          %514 = dma.done %s506, 896
        $region68: #{tpu_custom_call.1} parent=63 // pred_fallthru
          _
        // Predicated region
        $region69: #{tpu_custom_call.1} parent=63 // pred_check
          %p515 = pneg %p80
        $region70: #{tpu_custom_call.1} parent=63 // pred_check_branch
          %517 = sbr.rel (%p515) target = $region72
        $region71: #{tpu_custom_call.1} parent=63 // pred_region
          %519 = dma.done [#allocation6], 25088
        $region72: #{tpu_custom_call.1} parent=63 // pred_fallthru
          _
        // Predicated region
        $region73: #{tpu_custom_call.1} parent=63 // pred_check
          %p520 = pneg %p101
        $region74: #{tpu_custom_call.1} parent=63 // pred_check_branch
          %522 = sbr.rel (%p520) target = $region76
        $region75: #{tpu_custom_call.1} parent=63 // pred_region
          %524 = dma.done [#allocation6], 64
        $region76: #{tpu_custom_call.1} parent=63 // pred_fallthru
          _
        // Predicated region
        $region77: #{tpu_custom_call.1} parent=63 // pred_check
          %p525 = pneg %p122
        $region78: #{tpu_custom_call.1} parent=63 // pred_check_branch
          %527 = sbr.rel (%p525) target = $region80
        $region79: #{tpu_custom_call.1} parent=63 // pred_region
          %529 = dma.done [#allocation9], 4096
        $region80: #{tpu_custom_call.1} parent=63 // pred_fallthru
          _
        // Predicated region
        $region81: #{tpu_custom_call.1} parent=63 // pred_check
          %p530 = pneg %p143
        $region82: #{tpu_custom_call.1} parent=63 // pred_check_branch
          %532 = sbr.rel (%p530) target = $region84
        $region83: #{tpu_custom_call.1} parent=63 // pred_region
          %534 = dma.done [#allocation9], 16
        $region84: #{tpu_custom_call.1} parent=63 // pred_fallthru
          _
        // Predicated region
        $region85: #{tpu_custom_call.1} parent=63 // pred_check
          %p535 = pneg %p164
        $region86: #{tpu_custom_call.1} parent=63 // pred_check_branch
          %537 = sbr.rel (%p535) target = $region88
        $region87: #{tpu_custom_call.1} parent=63 // pred_region
          %539 = dma.done [#allocation12], 4096
        $region88: #{tpu_custom_call.1} parent=63 // pred_fallthru
          _
        // Predicated region
        $region89: #{tpu_custom_call.1} parent=63 // pred_check
          %p540 = pneg %p185
        $region90: #{tpu_custom_call.1} parent=63 // pred_check_branch
          %542 = sbr.rel (%p540) target = $region92
        $region91: #{tpu_custom_call.1} parent=63 // pred_region
          %544 = dma.done [#allocation12], 64
        $region92: #{tpu_custom_call.1} parent=63 // pred_fallthru
          _
        // Predicated region
        $region93: #{tpu_custom_call.1} parent=63 // pred_check
          %p545 = pneg %p206
        $region94: #{tpu_custom_call.1} parent=63 // pred_check_branch
          %547 = sbr.rel (%p545) target = $region96
        $region95: #{tpu_custom_call.1} parent=63 // pred_region
          %549 = dma.done [#allocation15], 28672
        $region96: #{tpu_custom_call.1} parent=63 // pred_fallthru
          _
        // Predicated region
        $region97: #{tpu_custom_call.1} parent=63 // pred_check
          %p550 = pneg %p248
        $region98: #{tpu_custom_call.1} parent=63 // pred_check_branch
          %552 = sbr.rel (%p550) target = $region100
        $region99: #{tpu_custom_call.1} parent=63 // pred_region
          %554 = dma.done [#allocation15], 2048
        $region100: #{tpu_custom_call.1} parent=63 // pred_fallthru
          _
        %s555 = sand.u32 %s46, 1
        %s556 = scalar_lea.sflag [#allocation3], %s555
        %s557 = sand.u32 %s46, 1
        %s558 = smul.addr %s557, 56
        %s559 = scalar_lea.vmem [#allocation2], %s558
        %p560 = pneg %p59
        %p561 = pneg %p56
        %p562 = pneg %p80
        %p563 = pneg %p77
        %p564 = pneg %p101
        %p565 = pneg %p98
        %p566 = pneg %p122
        %p567 = pneg %p119
        %p568 = pneg %p143
        %p569 = pneg %p140
        %p570 = pneg %p164
        %p571 = pneg %p161
        %p572 = pneg %p185
        %p573 = pneg %p182
        %p574 = pneg %p206
        %p575 = pneg %p203
        %p576 = pneg %p227
        %p577 = pneg %p224
        %p578 = pneg %p248
        %p579 = pneg %p245
        %p580 = pneg %p269
        %p581 = pneg %p266
        %p582 = pneg %p295
        %p583 = pneg %p292
        %s584 = sand.u32 %s282, 1
        %s585 = scalar_lea.sflag [#allocation4], %s584
        %s586 = sand.u32 %s282, 1
        %s587 = smul.addr %s586, 56
        %s588 = scalar_lea.vmem [#allocation17], %s587
        %p589 = pneg %p321
        %p590 = pneg %p318
        %s591 = sand.u32 %s38, 1
        %s592 = scalar_lea.sflag [#allocation19], %s591
        %s593 = sand.u32 %s308, 1
        %s594 = smul.addr %s593, 56
        %s595 = scalar_lea.vmem [#allocation18], %s594
        %p596 = pneg %p347
        %p597 = pneg %p344
        %s598 = sand.u32 %s38, 1
        %s599 = scalar_lea.sflag [#allocation19], %s598
        %s600 = sand.u32 %s334, 1
        %s601 = smul.addr %s600, 8
        %s602 = scalar_lea.vmem [#allocation20], %s601
        %v604 = vld [vmem:[%s509] sm:$0xff]
        %v605 = vld [vmem:[%s509 + $0x8] sm:$0xff]
        %v606 = vld [vmem:[%s509 + $0x10] sm:$0xff]
        %v607 = vld [vmem:[%s509 + $0x18] sm:$0xff]
        %v608 = vld [vmem:[%s509 + $0x20] sm:$0xff]
        %v609 = vld [vmem:[%s509 + $0x28] sm:$0xff]
        %v610 = vld [vmem:[%s509 + $0x30] sm:$0xff]
        %v611 = vpack.c.bf16 %v604, %v604
        %v612 = vpack.c.bf16 %v605, %v605
        %v613 = vpack.c.bf16 %v606, %v606
        %v614 = vpack.c.bf16 %v607, %v607
        %v615 = vpack.c.bf16 %v608, %v608
        %v616 = vpack.c.bf16 %v609, %v609
        %v617 = vpack.c.bf16 %v610, %v610
        %v618 = vld [vmem:[#allocation5] sm:$0xff]
        %v619 = vld [vmem:[#allocation5 + $0x8] sm:$0xff]
        %v620 = vld [vmem:[#allocation5 + $0x10] sm:$0xff]
        %v621 = vld [vmem:[#allocation5 + $0x18] sm:$0xff]
        %v622 = vld [vmem:[#allocation5 + $0x20] sm:$0xff]
        %v623 = vld [vmem:[#allocation5 + $0x28] sm:$0xff]
        %v624 = vld [vmem:[#allocation5 + $0x30] sm:$0xff]
        %v625 = vld [vmem:[#allocation5 + $0x38] sm:$0xff]
        %v626 = vld [vmem:[#allocation5 + $0x40] sm:$0xff]
        %v627 = vld [vmem:[#allocation5 + $0x48] sm:$0xff]
        %v628 = vld [vmem:[#allocation5 + $0x50] sm:$0xff]
        %v629 = vld [vmem:[#allocation5 + $0x58] sm:$0xff]
        %v630 = vld [vmem:[#allocation5 + $0x60] sm:$0xff]
        %v631 = vld [vmem:[#allocation5 + $0x68] sm:$0xff]
        %v632 = vld [vmem:[#allocation5 + $0x70] sm:$0xff]
        %v633 = vld [vmem:[#allocation5 + $0x78] sm:$0xff]
        %v634 = vld [vmem:[#allocation5 + $0x80] sm:$0xff]
        %v635 = vld [vmem:[#allocation5 + $0x88] sm:$0xff]
        %v636 = vld [vmem:[#allocation5 + $0x90] sm:$0xff]
        %v637 = vld [vmem:[#allocation5 + $0x98] sm:$0xff]
        %v638 = vld [vmem:[#allocation5 + $0xa0] sm:$0xff]
        %v639 = vld [vmem:[#allocation5 + $0xa8] sm:$0xff]
        %v640 = vld [vmem:[#allocation5 + $0xb0] sm:$0xff]
        %v641 = vld [vmem:[#allocation5 + $0xb8] sm:$0xff]
        %v642 = vld [vmem:[#allocation5 + $0xc0] sm:$0xff]
        %v643 = vld [vmem:[#allocation5 + $0xc8] sm:$0xff]
        %v644 = vld [vmem:[#allocation5 + $0xd0] sm:$0xff]
        %v645 = vld [vmem:[#allocation5 + $0xd8] sm:$0xff]
        %v646 = vld [vmem:[#allocation5 + $0xe0] sm:$0xff]
        %v647 = vld [vmem:[#allocation5 + $0xe8] sm:$0xff]
        %v648 = vld [vmem:[#allocation5 + $0xf0] sm:$0xff]
        %v649 = vld [vmem:[#allocation5 + $0xf8] sm:$0xff]
        %v650 = vld [vmem:[#allocation5 + $0x100] sm:$0xff]
        %v651 = vld [vmem:[#allocation5 + $0x108] sm:$0xff]
        %v652 = vld [vmem:[#allocation5 + $0x110] sm:$0xff]
        %v653 = vld [vmem:[#allocation5 + $0x118] sm:$0xff]
        %v654 = vld [vmem:[#allocation5 + $0x120] sm:$0xff]
        %v655 = vld [vmem:[#allocation5 + $0x128] sm:$0xff]
        %v656 = vld [vmem:[#allocation5 + $0x130] sm:$0xff]
        %v657 = vld [vmem:[#allocation5 + $0x138] sm:$0xff]
        %v658 = vld [vmem:[#allocation5 + $0x140] sm:$0xff]
        %v659 = vld [vmem:[#allocation5 + $0x148] sm:$0xff]
        %v660 = vld [vmem:[#allocation5 + $0x150] sm:$0xff]
        %v661 = vld [vmem:[#allocation5 + $0x158] sm:$0xff]
        %v662 = vld [vmem:[#allocation5 + $0x160] sm:$0xff]
        %v663 = vld [vmem:[#allocation5 + $0x168] sm:$0xff]
        %v664 = vld [vmem:[#allocation5 + $0x170] sm:$0xff]
        %v665 = vld [vmem:[#allocation5 + $0x178] sm:$0xff]
        %v666 = vld [vmem:[#allocation5 + $0x180] sm:$0xff]
        %v667 = vld [vmem:[#allocation5 + $0x188] sm:$0xff]
        %v668 = vld [vmem:[#allocation5 + $0x190] sm:$0xff]
        %v669 = vld [vmem:[#allocation5 + $0x198] sm:$0xff]
        %v670 = vld [vmem:[#allocation5 + $0x1a0] sm:$0xff]
        %v671 = vld [vmem:[#allocation5 + $0x1a8] sm:$0xff]
        %v672 = vld [vmem:[#allocation5 + $0x1b0] sm:$0xff]
        %v673 = vld [vmem:[#allocation5 + $0x1b8] sm:$0xff]
        %v674 = vld [vmem:[#allocation5 + $0x1c0] sm:$0xff]
        %v675 = vld [vmem:[#allocation5 + $0x1c8] sm:$0xff]
        %v676 = vld [vmem:[#allocation5 + $0x1d0] sm:$0xff]
        %v677 = vld [vmem:[#allocation5 + $0x1d8] sm:$0xff]
        %v678 = vld [vmem:[#allocation5 + $0x1e0] sm:$0xff]
        %v679 = vld [vmem:[#allocation5 + $0x1e8] sm:$0xff]
        %v680 = vld [vmem:[#allocation5 + $0x1f0] sm:$0xff]
        %v681 = vld [vmem:[#allocation5 + $0x1f8] sm:$0xff]
        %v682 = vld [vmem:[#allocation5 + $0x200] sm:$0xff]
        %v683 = vld [vmem:[#allocation5 + $0x208] sm:$0xff]
        %v684 = vld [vmem:[#allocation5 + $0x210] sm:$0xff]
        %v685 = vld [vmem:[#allocation5 + $0x218] sm:$0xff]
        %v686 = vld [vmem:[#allocation5 + $0x220] sm:$0xff]
        %v687 = vld [vmem:[#allocation5 + $0x228] sm:$0xff]
        %v688 = vld [vmem:[#allocation5 + $0x230] sm:$0xff]
        %v689 = vld [vmem:[#allocation5 + $0x238] sm:$0xff]
        %v690 = vld [vmem:[#allocation5 + $0x240] sm:$0xff]
        %v691 = vld [vmem:[#allocation5 + $0x248] sm:$0xff]
        %v692 = vld [vmem:[#allocation5 + $0x250] sm:$0xff]
        %v693 = vld [vmem:[#allocation5 + $0x258] sm:$0xff]
        %v694 = vld [vmem:[#allocation5 + $0x260] sm:$0xff]
        %v695 = vld [vmem:[#allocation5 + $0x268] sm:$0xff]
        %v696 = vld [vmem:[#allocation5 + $0x270] sm:$0xff]
        %v697 = vld [vmem:[#allocation5 + $0x278] sm:$0xff]
        %v698 = vld [vmem:[#allocation5 + $0x280] sm:$0xff]
        %v699 = vld [vmem:[#allocation5 + $0x288] sm:$0xff]
        %v700 = vld [vmem:[#allocation5 + $0x290] sm:$0xff]
        %v701 = vld [vmem:[#allocation5 + $0x298] sm:$0xff]
        %v702 = vld [vmem:[#allocation5 + $0x2a0] sm:$0xff]
        %v703 = vld [vmem:[#allocation5 + $0x2a8] sm:$0xff]
        %v704 = vld [vmem:[#allocation5 + $0x2b0] sm:$0xff]
        %v705 = vld [vmem:[#allocation5 + $0x2b8] sm:$0xff]
        %v706 = vld [vmem:[#allocation5 + $0x2c0] sm:$0xff]
        %v707 = vld [vmem:[#allocation5 + $0x2c8] sm:$0xff]
        %v708 = vld [vmem:[#allocation5 + $0x2d0] sm:$0xff]
        %v709 = vld [vmem:[#allocation5 + $0x2d8] sm:$0xff]
        %v710 = vld [vmem:[#allocation5 + $0x2e0] sm:$0xff]
        %v711 = vld [vmem:[#allocation5 + $0x2e8] sm:$0xff]
        %v712 = vld [vmem:[#allocation5 + $0x2f0] sm:$0xff]
        %v713 = vld [vmem:[#allocation5 + $0x2f8] sm:$0xff]
        %v714 = vld [vmem:[#allocation5 + $0x300] sm:$0xff]
        %v715 = vld [vmem:[#allocation5 + $0x308] sm:$0xff]
        %v716 = vld [vmem:[#allocation5 + $0x310] sm:$0xff]
        %v717 = vld [vmem:[#allocation5 + $0x318] sm:$0xff]
        %v718 = vld [vmem:[#allocation5 + $0x320] sm:$0xff]
        %v719 = vld [vmem:[#allocation5 + $0x328] sm:$0xff]
        %v720 = vld [vmem:[#allocation5 + $0x330] sm:$0xff]
        %v721 = vld [vmem:[#allocation5 + $0x338] sm:$0xff]
        %v722 = vld [vmem:[#allocation5 + $0x340] sm:$0xff]
        %v723 = vld [vmem:[#allocation5 + $0x348] sm:$0xff]
        %v724 = vld [vmem:[#allocation5 + $0x350] sm:$0xff]
        %v725 = vld [vmem:[#allocation5 + $0x358] sm:$0xff]
        %v726 = vld [vmem:[#allocation5 + $0x360] sm:$0xff]
        %v727 = vld [vmem:[#allocation5 + $0x368] sm:$0xff]
        %v728 = vld [vmem:[#allocation5 + $0x370] sm:$0xff]
        %v729 = vld [vmem:[#allocation5 + $0x378] sm:$0xff]
        %v730 = vld [vmem:[#allocation5 + $0x380] sm:$0xff]
        %v731 = vld [vmem:[#allocation5 + $0x388] sm:$0xff]
        %v732 = vld [vmem:[#allocation5 + $0x390] sm:$0xff]
        %v733 = vld [vmem:[#allocation5 + $0x398] sm:$0xff]
        %v734 = vld [vmem:[#allocation5 + $0x3a0] sm:$0xff]
        %v735 = vld [vmem:[#allocation5 + $0x3a8] sm:$0xff]
        %v736 = vld [vmem:[#allocation5 + $0x3b0] sm:$0xff]
        %v737 = vld [vmem:[#allocation5 + $0x3b8] sm:$0xff]
        %v738 = vld [vmem:[#allocation5 + $0x3c0] sm:$0xff]
        %v739 = vld [vmem:[#allocation5 + $0x3c8] sm:$0xff]
        %v740 = vld [vmem:[#allocation5 + $0x3d0] sm:$0xff]
        %v741 = vld [vmem:[#allocation5 + $0x3d8] sm:$0xff]
        %v742 = vld [vmem:[#allocation5 + $0x3e0] sm:$0xff]
        %v743 = vld [vmem:[#allocation5 + $0x3e8] sm:$0xff]
        %v744 = vld [vmem:[#allocation5 + $0x3f0] sm:$0xff]
        %v745 = vld [vmem:[#allocation5 + $0x3f8] sm:$0xff]
        %v746 = vld [vmem:[#allocation5 + $0x400] sm:$0xff]
        %v747 = vld [vmem:[#allocation5 + $0x408] sm:$0xff]
        %v748 = vld [vmem:[#allocation5 + $0x410] sm:$0xff]
        %v749 = vld [vmem:[#allocation5 + $0x418] sm:$0xff]
        %v750 = vld [vmem:[#allocation5 + $0x420] sm:$0xff]
        %v751 = vld [vmem:[#allocation5 + $0x428] sm:$0xff]
        %v752 = vld [vmem:[#allocation5 + $0x430] sm:$0xff]
        %v753 = vld [vmem:[#allocation5 + $0x438] sm:$0xff]
        %v754 = vld [vmem:[#allocation5 + $0x440] sm:$0xff]
        %v755 = vld [vmem:[#allocation5 + $0x448] sm:$0xff]
        %v756 = vld [vmem:[#allocation5 + $0x450] sm:$0xff]
        %v757 = vld [vmem:[#allocation5 + $0x458] sm:$0xff]
        %v758 = vld [vmem:[#allocation5 + $0x460] sm:$0xff]
        %v759 = vld [vmem:[#allocation5 + $0x468] sm:$0xff]
        %v760 = vld [vmem:[#allocation5 + $0x470] sm:$0xff]
        %v761 = vld [vmem:[#allocation5 + $0x478] sm:$0xff]
        %v762 = vld [vmem:[#allocation5 + $0x480] sm:$0xff]
        %v763 = vld [vmem:[#allocation5 + $0x488] sm:$0xff]
        %v764 = vld [vmem:[#allocation5 + $0x490] sm:$0xff]
        %v765 = vld [vmem:[#allocation5 + $0x498] sm:$0xff]
        %v766 = vld [vmem:[#allocation5 + $0x4a0] sm:$0xff]
        %v767 = vld [vmem:[#allocation5 + $0x4a8] sm:$0xff]
        %v768 = vld [vmem:[#allocation5 + $0x4b0] sm:$0xff]
        %v769 = vld [vmem:[#allocation5 + $0x4b8] sm:$0xff]
        %v770 = vld [vmem:[#allocation5 + $0x4c0] sm:$0xff]
        %v771 = vld [vmem:[#allocation5 + $0x4c8] sm:$0xff]
        %v772 = vld [vmem:[#allocation5 + $0x4d0] sm:$0xff]
        %v773 = vld [vmem:[#allocation5 + $0x4d8] sm:$0xff]
        %v774 = vld [vmem:[#allocation5 + $0x4e0] sm:$0xff]
        %v775 = vld [vmem:[#allocation5 + $0x4e8] sm:$0xff]
        %v776 = vld [vmem:[#allocation5 + $0x4f0] sm:$0xff]
        %v777 = vld [vmem:[#allocation5 + $0x4f8] sm:$0xff]
        %v778 = vld [vmem:[#allocation5 + $0x500] sm:$0xff]
        %v779 = vld [vmem:[#allocation5 + $0x508] sm:$0xff]
        %v780 = vld [vmem:[#allocation5 + $0x510] sm:$0xff]
        %v781 = vld [vmem:[#allocation5 + $0x518] sm:$0xff]
        %v782 = vld [vmem:[#allocation5 + $0x520] sm:$0xff]
        %v783 = vld [vmem:[#allocation5 + $0x528] sm:$0xff]
        %v784 = vld [vmem:[#allocation5 + $0x530] sm:$0xff]
        %v785 = vld [vmem:[#allocation5 + $0x538] sm:$0xff]
        %v786 = vld [vmem:[#allocation5 + $0x540] sm:$0xff]
        %v787 = vld [vmem:[#allocation5 + $0x548] sm:$0xff]
        %v788 = vld [vmem:[#allocation5 + $0x550] sm:$0xff]
        %v789 = vld [vmem:[#allocation5 + $0x558] sm:$0xff]
        %v790 = vld [vmem:[#allocation5 + $0x560] sm:$0xff]
        %v791 = vld [vmem:[#allocation5 + $0x568] sm:$0xff]
        %v792 = vld [vmem:[#allocation5 + $0x570] sm:$0xff]
        %v793 = vld [vmem:[#allocation5 + $0x578] sm:$0xff]
        %v794 = vld [vmem:[#allocation5 + $0x580] sm:$0xff]
        %v795 = vld [vmem:[#allocation5 + $0x588] sm:$0xff]
        %v796 = vld [vmem:[#allocation5 + $0x590] sm:$0xff]
        %v797 = vld [vmem:[#allocation5 + $0x598] sm:$0xff]
        %v798 = vld [vmem:[#allocation5 + $0x5a0] sm:$0xff]
        %v799 = vld [vmem:[#allocation5 + $0x5a8] sm:$0xff]
        %v800 = vld [vmem:[#allocation5 + $0x5b0] sm:$0xff]
        %v801 = vld [vmem:[#allocation5 + $0x5b8] sm:$0xff]
        %v802 = vld [vmem:[#allocation5 + $0x5c0] sm:$0xff]
        %v803 = vld [vmem:[#allocation5 + $0x5c8] sm:$0xff]
        %v804 = vld [vmem:[#allocation5 + $0x5d0] sm:$0xff]
        %v805 = vld [vmem:[#allocation5 + $0x5d8] sm:$0xff]
        %v806 = vld [vmem:[#allocation5 + $0x5e0] sm:$0xff]
        %v807 = vld [vmem:[#allocation5 + $0x5e8] sm:$0xff]
        %v808 = vld [vmem:[#allocation5 + $0x5f0] sm:$0xff]
        %v809 = vld [vmem:[#allocation5 + $0x5f8] sm:$0xff]
        %v810 = vld [vmem:[#allocation5 + $0x600] sm:$0xff]
        %v811 = vld [vmem:[#allocation5 + $0x608] sm:$0xff]
        %v812 = vld [vmem:[#allocation5 + $0x610] sm:$0xff]
        %v813 = vld [vmem:[#allocation5 + $0x618] sm:$0xff]
        %v814 = vld [vmem:[#allocation7] sm:$0xf]
        %v816 = vperm.slane %v814, 0
        %v817 = vperm.slane %v814, 1
        %v818 = vperm.slane %v814, 2
        %v819 = vperm.slane %v814, 3
        %v1020 = vunpack.c.l.b16 %v618
        %v1021 = vunpack.c.h.b16 %v618
        %v1022 = vunpack.c.l.b16 %v619
        %v1023 = vunpack.c.h.b16 %v619
        %v1024 = vunpack.c.l.b16 %v620
        %v1025 = vunpack.c.h.b16 %v620
        %v1026 = vunpack.c.l.b16 %v621
        %v1027 = vunpack.c.h.b16 %v621
        %v1028 = vunpack.c.l.b16 %v622
        %v1029 = vunpack.c.h.b16 %v622
        %v1030 = vunpack.c.l.b16 %v623
        %v1031 = vunpack.c.h.b16 %v623
        %v1032 = vunpack.c.l.b16 %v624
        %v1033 = vunpack.c.h.b16 %v624
        %v1034 = vunpack.c.l.b16 %v625
        %v1035 = vunpack.c.h.b16 %v625
        %v1036 = vunpack.c.l.b16 %v626
        %v1037 = vunpack.c.h.b16 %v626
        %v1038 = vunpack.c.l.b16 %v627
        %v1039 = vunpack.c.h.b16 %v627
        %v1040 = vunpack.c.l.b16 %v628
        %v1041 = vunpack.c.h.b16 %v628
        %v1042 = vunpack.c.l.b16 %v629
        %v1043 = vunpack.c.h.b16 %v629
        %v1044 = vunpack.c.l.b16 %v630
        %v1045 = vunpack.c.h.b16 %v630
        %v1046 = vunpack.c.l.b16 %v631
        %v1047 = vunpack.c.h.b16 %v631
        %v1048 = vunpack.c.l.b16 %v632
        %v1049 = vunpack.c.h.b16 %v632
        %v1050 = vunpack.c.l.b16 %v633
        %v1051 = vunpack.c.h.b16 %v633
        %v1052 = vunpack.c.l.b16 %v634
        %v1053 = vunpack.c.h.b16 %v634
        %v1054 = vunpack.c.l.b16 %v635
        %v1055 = vunpack.c.h.b16 %v635
        %v1056 = vunpack.c.l.b16 %v636
        %v1057 = vunpack.c.h.b16 %v636
        %v1058 = vunpack.c.l.b16 %v637
        %v1059 = vunpack.c.h.b16 %v637
        %v1060 = vunpack.c.l.b16 %v638
        %v1061 = vunpack.c.h.b16 %v638
        %v1062 = vunpack.c.l.b16 %v639
        %v1063 = vunpack.c.h.b16 %v639
        %v1064 = vunpack.c.l.b16 %v640
        %v1065 = vunpack.c.h.b16 %v640
        %v1066 = vunpack.c.l.b16 %v641
        %v1067 = vunpack.c.h.b16 %v641
        %v1068 = vunpack.c.l.b16 %v642
        %v1069 = vunpack.c.h.b16 %v642
        %v1070 = vunpack.c.l.b16 %v643
        %v1071 = vunpack.c.h.b16 %v643
        %v1072 = vunpack.c.l.b16 %v644
        %v1073 = vunpack.c.h.b16 %v644
        %v1074 = vunpack.c.l.b16 %v645
        %v1075 = vunpack.c.h.b16 %v645
        %v1076 = vunpack.c.l.b16 %v646
        %v1077 = vunpack.c.h.b16 %v646
        %v1078 = vunpack.c.l.b16 %v647
        %v1079 = vunpack.c.h.b16 %v647
        %v1080 = vunpack.c.l.b16 %v648
        %v1081 = vunpack.c.h.b16 %v648
        %v1082 = vunpack.c.l.b16 %v649
        %v1083 = vunpack.c.h.b16 %v649
        %v1084 = vunpack.c.l.b16 %v650
        %v1085 = vunpack.c.h.b16 %v650
        %v1086 = vunpack.c.l.b16 %v651
        %v1087 = vunpack.c.h.b16 %v651
        %v1088 = vunpack.c.l.b16 %v652
        %v1089 = vunpack.c.h.b16 %v652
        %v1090 = vunpack.c.l.b16 %v653
        %v1091 = vunpack.c.h.b16 %v653
        %v1092 = vunpack.c.l.b16 %v654
        %v1093 = vunpack.c.h.b16 %v654
        %v1094 = vunpack.c.l.b16 %v655
        %v1095 = vunpack.c.h.b16 %v655
        %v1096 = vunpack.c.l.b16 %v656
        %v1097 = vunpack.c.h.b16 %v656
        %v1098 = vunpack.c.l.b16 %v657
        %v1099 = vunpack.c.h.b16 %v657
        %v1100 = vunpack.c.l.b16 %v658
        %v1101 = vunpack.c.h.b16 %v658
        %v1102 = vunpack.c.l.b16 %v659
        %v1103 = vunpack.c.h.b16 %v659
        %v1104 = vunpack.c.l.b16 %v660
        %v1105 = vunpack.c.h.b16 %v660
        %v1106 = vunpack.c.l.b16 %v661
        %v1107 = vunpack.c.h.b16 %v661
        %v1108 = vunpack.c.l.b16 %v662
        %v1109 = vunpack.c.h.b16 %v662
        %v1110 = vunpack.c.l.b16 %v663
        %v1111 = vunpack.c.h.b16 %v663
        %v1112 = vunpack.c.l.b16 %v664
        %v1113 = vunpack.c.h.b16 %v664
        %v1114 = vunpack.c.l.b16 %v665
        %v1115 = vunpack.c.h.b16 %v665
        %v1116 = vunpack.c.l.b16 %v666
        %v1117 = vunpack.c.h.b16 %v666
        %v1118 = vunpack.c.l.b16 %v667
        %v1119 = vunpack.c.h.b16 %v667
        %v1120 = vunpack.c.l.b16 %v668
        %v1121 = vunpack.c.h.b16 %v668
        %v1122 = vunpack.c.l.b16 %v669
        %v1123 = vunpack.c.h.b16 %v669
        %v1124 = vunpack.c.l.b16 %v670
        %v1125 = vunpack.c.h.b16 %v670
        %v1126 = vunpack.c.l.b16 %v671
        %v1127 = vunpack.c.h.b16 %v671
        %v1128 = vunpack.c.l.b16 %v672
        %v1129 = vunpack.c.h.b16 %v672
        %v1130 = vunpack.c.l.b16 %v673
        %v1131 = vunpack.c.h.b16 %v673
        %v1132 = vunpack.c.l.b16 %v674
        %v1133 = vunpack.c.h.b16 %v674
        %v1134 = vunpack.c.l.b16 %v675
        %v1135 = vunpack.c.h.b16 %v675
        %v1136 = vunpack.c.l.b16 %v676
        %v1137 = vunpack.c.h.b16 %v676
        %v1138 = vunpack.c.l.b16 %v677
        %v1139 = vunpack.c.h.b16 %v677
        %v1140 = vunpack.c.l.b16 %v678
        %v1141 = vunpack.c.h.b16 %v678
        %v1142 = vunpack.c.l.b16 %v679
        %v1143 = vunpack.c.h.b16 %v679
        %v1144 = vunpack.c.l.b16 %v680
        %v1145 = vunpack.c.h.b16 %v680
        %v1146 = vunpack.c.l.b16 %v681
        %v1147 = vunpack.c.h.b16 %v681
        %v1148 = vunpack.c.l.b16 %v682
        %v1149 = vunpack.c.h.b16 %v682
        %v1150 = vunpack.c.l.b16 %v683
        %v1151 = vunpack.c.h.b16 %v683
        %v1152 = vunpack.c.l.b16 %v684
        %v1153 = vunpack.c.h.b16 %v684
        %v1154 = vunpack.c.l.b16 %v685
        %v1155 = vunpack.c.h.b16 %v685
        %v1156 = vunpack.c.l.b16 %v686
        %v1157 = vunpack.c.h.b16 %v686
        %v1158 = vunpack.c.l.b16 %v687
        %v1159 = vunpack.c.h.b16 %v687
        %v1160 = vunpack.c.l.b16 %v688
        %v1161 = vunpack.c.h.b16 %v688
        %v1162 = vunpack.c.l.b16 %v689
        %v1163 = vunpack.c.h.b16 %v689
        %v1164 = vunpack.c.l.b16 %v690
        %v1165 = vunpack.c.h.b16 %v690
        %v1166 = vunpack.c.l.b16 %v691
        %v1167 = vunpack.c.h.b16 %v691
        %v1168 = vunpack.c.l.b16 %v692
        %v1169 = vunpack.c.h.b16 %v692
        %v1170 = vunpack.c.l.b16 %v693
        %v1171 = vunpack.c.h.b16 %v693
        %v1172 = vunpack.c.l.b16 %v694
        %v1173 = vunpack.c.h.b16 %v694
        %v1174 = vunpack.c.l.b16 %v695
        %v1175 = vunpack.c.h.b16 %v695
        %v1176 = vunpack.c.l.b16 %v696
        %v1177 = vunpack.c.h.b16 %v696
        %v1178 = vunpack.c.l.b16 %v697
        %v1179 = vunpack.c.h.b16 %v697
        %v1180 = vunpack.c.l.b16 %v698
        %v1181 = vunpack.c.h.b16 %v698
        %v1182 = vunpack.c.l.b16 %v699
        %v1183 = vunpack.c.h.b16 %v699
        %v1184 = vunpack.c.l.b16 %v700
        %v1185 = vunpack.c.h.b16 %v700
        %v1186 = vunpack.c.l.b16 %v701
        %v1187 = vunpack.c.h.b16 %v701
        %v1188 = vunpack.c.l.b16 %v702
        %v1189 = vunpack.c.h.b16 %v702
        %v1190 = vunpack.c.l.b16 %v703
        %v1191 = vunpack.c.h.b16 %v703
        %v1192 = vunpack.c.l.b16 %v704
        %v1193 = vunpack.c.h.b16 %v704
        %v1194 = vunpack.c.l.b16 %v705
        %v1195 = vunpack.c.h.b16 %v705
        %v1196 = vunpack.c.l.b16 %v706
        %v1197 = vunpack.c.h.b16 %v706
        %v1198 = vunpack.c.l.b16 %v707
        %v1199 = vunpack.c.h.b16 %v707
        %v1200 = vunpack.c.l.b16 %v708
        %v1201 = vunpack.c.h.b16 %v708
        %v1202 = vunpack.c.l.b16 %v709
        %v1203 = vunpack.c.h.b16 %v709
        %v1204 = vunpack.c.l.b16 %v710
        %v1205 = vunpack.c.h.b16 %v710
        %v1206 = vunpack.c.l.b16 %v711
        %v1207 = vunpack.c.h.b16 %v711
        %v1208 = vunpack.c.l.b16 %v712
        %v1209 = vunpack.c.h.b16 %v712
        %v1210 = vunpack.c.l.b16 %v713
        %v1211 = vunpack.c.h.b16 %v713
        %v1212 = vunpack.c.l.b16 %v714
        %v1213 = vunpack.c.h.b16 %v714
        %v1214 = vunpack.c.l.b16 %v715
        %v1215 = vunpack.c.h.b16 %v715
        %v1216 = vunpack.c.l.b16 %v716
        %v1217 = vunpack.c.h.b16 %v716
        %v1218 = vunpack.c.l.b16 %v717
        %v1219 = vunpack.c.h.b16 %v717
        %v1220 = vunpack.c.l.b16 %v718
        %v1221 = vunpack.c.h.b16 %v718
        %v1222 = vunpack.c.l.b16 %v719
        %v1223 = vunpack.c.h.b16 %v719
        %v1224 = vunpack.c.l.b16 %v720
        %v1225 = vunpack.c.h.b16 %v720
        %v1226 = vunpack.c.l.b16 %v721
        %v1227 = vunpack.c.h.b16 %v721
        %v1228 = vunpack.c.l.b16 %v722
        %v1229 = vunpack.c.h.b16 %v722
        %v1230 = vunpack.c.l.b16 %v723
        %v1231 = vunpack.c.h.b16 %v723
        %v1232 = vunpack.c.l.b16 %v724
        %v1233 = vunpack.c.h.b16 %v724
        %v1234 = vunpack.c.l.b16 %v725
        %v1235 = vunpack.c.h.b16 %v725
        %v1236 = vunpack.c.l.b16 %v726
        %v1237 = vunpack.c.h.b16 %v726
        %v1238 = vunpack.c.l.b16 %v727
        %v1239 = vunpack.c.h.b16 %v727
        %v1240 = vunpack.c.l.b16 %v728
        %v1241 = vunpack.c.h.b16 %v728
        %v1242 = vunpack.c.l.b16 %v729
        %v1243 = vunpack.c.h.b16 %v729
        %v1244 = vunpack.c.l.b16 %v730
        %v1245 = vunpack.c.h.b16 %v730
        %v1246 = vunpack.c.l.b16 %v731
        %v1247 = vunpack.c.h.b16 %v731
        %v1248 = vunpack.c.l.b16 %v732
        %v1249 = vunpack.c.h.b16 %v732
        %v1250 = vunpack.c.l.b16 %v733
        %v1251 = vunpack.c.h.b16 %v733
        %v1252 = vunpack.c.l.b16 %v734
        %v1253 = vunpack.c.h.b16 %v734
        %v1254 = vunpack.c.l.b16 %v735
        %v1255 = vunpack.c.h.b16 %v735
        %v1256 = vunpack.c.l.b16 %v736
        %v1257 = vunpack.c.h.b16 %v736
        %v1258 = vunpack.c.l.b16 %v737
        %v1259 = vunpack.c.h.b16 %v737
        %v1260 = vunpack.c.l.b16 %v738
        %v1261 = vunpack.c.h.b16 %v738
        %v1262 = vunpack.c.l.b16 %v739
        %v1263 = vunpack.c.h.b16 %v739
        %v1264 = vunpack.c.l.b16 %v740
        %v1265 = vunpack.c.h.b16 %v740
        %v1266 = vunpack.c.l.b16 %v741
        %v1267 = vunpack.c.h.b16 %v741
        %v1268 = vunpack.c.l.b16 %v742
        %v1269 = vunpack.c.h.b16 %v742
        %v1270 = vunpack.c.l.b16 %v743
        %v1271 = vunpack.c.h.b16 %v743
        %v1272 = vunpack.c.l.b16 %v744
        %v1273 = vunpack.c.h.b16 %v744
        %v1274 = vunpack.c.l.b16 %v745
        %v1275 = vunpack.c.h.b16 %v745
        %v1276 = vunpack.c.l.b16 %v746
        %v1277 = vunpack.c.h.b16 %v746
        %v1278 = vunpack.c.l.b16 %v747
        %v1279 = vunpack.c.h.b16 %v747
        %v1280 = vunpack.c.l.b16 %v748
        %v1281 = vunpack.c.h.b16 %v748
        %v1282 = vunpack.c.l.b16 %v749
        %v1283 = vunpack.c.h.b16 %v749
        %v1284 = vunpack.c.l.b16 %v750
        %v1285 = vunpack.c.h.b16 %v750
        %v1286 = vunpack.c.l.b16 %v751
        %v1287 = vunpack.c.h.b16 %v751
        %v1288 = vunpack.c.l.b16 %v752
        %v1289 = vunpack.c.h.b16 %v752
        %v1290 = vunpack.c.l.b16 %v753
        %v1291 = vunpack.c.h.b16 %v753
        %v1292 = vunpack.c.l.b16 %v754
        %v1293 = vunpack.c.h.b16 %v754
        %v1294 = vunpack.c.l.b16 %v755
        %v1295 = vunpack.c.h.b16 %v755
        %v1296 = vunpack.c.l.b16 %v756
        %v1297 = vunpack.c.h.b16 %v756
        %v1298 = vunpack.c.l.b16 %v757
        %v1299 = vunpack.c.h.b16 %v757
        %v1300 = vunpack.c.l.b16 %v758
        %v1301 = vunpack.c.h.b16 %v758
        %v1302 = vunpack.c.l.b16 %v759
        %v1303 = vunpack.c.h.b16 %v759
        %v1304 = vunpack.c.l.b16 %v760
        %v1305 = vunpack.c.h.b16 %v760
        %v1306 = vunpack.c.l.b16 %v761
        %v1307 = vunpack.c.h.b16 %v761
        %v1308 = vunpack.c.l.b16 %v762
        %v1309 = vunpack.c.h.b16 %v762
        %v1310 = vunpack.c.l.b16 %v763
        %v1311 = vunpack.c.h.b16 %v763
        %v1312 = vunpack.c.l.b16 %v764
        %v1313 = vunpack.c.h.b16 %v764
        %v1314 = vunpack.c.l.b16 %v765
        %v1315 = vunpack.c.h.b16 %v765
        %v1316 = vunpack.c.l.b16 %v766
        %v1317 = vunpack.c.h.b16 %v766
        %v1318 = vunpack.c.l.b16 %v767
        %v1319 = vunpack.c.h.b16 %v767
        %v1320 = vunpack.c.l.b16 %v768
        %v1321 = vunpack.c.h.b16 %v768
        %v1322 = vunpack.c.l.b16 %v769
        %v1323 = vunpack.c.h.b16 %v769
        %v1324 = vunpack.c.l.b16 %v770
        %v1325 = vunpack.c.h.b16 %v770
        %v1326 = vunpack.c.l.b16 %v771
        %v1327 = vunpack.c.h.b16 %v771
        %v1328 = vunpack.c.l.b16 %v772
        %v1329 = vunpack.c.h.b16 %v772
        %v1330 = vunpack.c.l.b16 %v773
        %v1331 = vunpack.c.h.b16 %v773
        %v1332 = vunpack.c.l.b16 %v774
        %v1333 = vunpack.c.h.b16 %v774
        %v1334 = vunpack.c.l.b16 %v775
        %v1335 = vunpack.c.h.b16 %v775
        %v1336 = vunpack.c.l.b16 %v776
        %v1337 = vunpack.c.h.b16 %v776
        %v1338 = vunpack.c.l.b16 %v777
        %v1339 = vunpack.c.h.b16 %v777
        %v1340 = vunpack.c.l.b16 %v778
        %v1341 = vunpack.c.h.b16 %v778
        %v1342 = vunpack.c.l.b16 %v779
        %v1343 = vunpack.c.h.b16 %v779
        %v1344 = vunpack.c.l.b16 %v780
        %v1345 = vunpack.c.h.b16 %v780
        %v1346 = vunpack.c.l.b16 %v781
        %v1347 = vunpack.c.h.b16 %v781
        %v1348 = vunpack.c.l.b16 %v782
        %v1349 = vunpack.c.h.b16 %v782
        %v1350 = vunpack.c.l.b16 %v783
        %v1351 = vunpack.c.h.b16 %v783
        %v1352 = vunpack.c.l.b16 %v784
        %v1353 = vunpack.c.h.b16 %v784
        %v1354 = vunpack.c.l.b16 %v785
        %v1355 = vunpack.c.h.b16 %v785
        %v1356 = vunpack.c.l.b16 %v786
        %v1357 = vunpack.c.h.b16 %v786
        %v1358 = vunpack.c.l.b16 %v787
        %v1359 = vunpack.c.h.b16 %v787
        %v1360 = vunpack.c.l.b16 %v788
        %v1361 = vunpack.c.h.b16 %v788
        %v1362 = vunpack.c.l.b16 %v789
        %v1363 = vunpack.c.h.b16 %v789
        %v1364 = vunpack.c.l.b16 %v790
        %v1365 = vunpack.c.h.b16 %v790
        %v1366 = vunpack.c.l.b16 %v791
        %v1367 = vunpack.c.h.b16 %v791
        %v1368 = vunpack.c.l.b16 %v792
        %v1369 = vunpack.c.h.b16 %v792
        %v1370 = vunpack.c.l.b16 %v793
        %v1371 = vunpack.c.h.b16 %v793
        %v1372 = vunpack.c.l.b16 %v794
        %v1373 = vunpack.c.h.b16 %v794
        %v1374 = vunpack.c.l.b16 %v795
        %v1375 = vunpack.c.h.b16 %v795
        %v1376 = vunpack.c.l.b16 %v796
        %v1377 = vunpack.c.h.b16 %v796
        %v1378 = vunpack.c.l.b16 %v797
        %v1379 = vunpack.c.h.b16 %v797
        %v1380 = vunpack.c.l.b16 %v798
        %v1381 = vunpack.c.h.b16 %v798
        %v1382 = vunpack.c.l.b16 %v799
        %v1383 = vunpack.c.h.b16 %v799
        %v1384 = vunpack.c.l.b16 %v800
        %v1385 = vunpack.c.h.b16 %v800
        %v1386 = vunpack.c.l.b16 %v801
        %v1387 = vunpack.c.h.b16 %v801
        %v1388 = vunpack.c.l.b16 %v802
        %v1389 = vunpack.c.h.b16 %v802
        %v1390 = vunpack.c.l.b16 %v803
        %v1391 = vunpack.c.h.b16 %v803
        %v1392 = vunpack.c.l.b16 %v804
        %v1393 = vunpack.c.h.b16 %v804
        %v1394 = vunpack.c.l.b16 %v805
        %v1395 = vunpack.c.h.b16 %v805
        %v1396 = vunpack.c.l.b16 %v806
        %v1397 = vunpack.c.h.b16 %v806
        %v1398 = vunpack.c.l.b16 %v807
        %v1399 = vunpack.c.h.b16 %v807
        %v1400 = vunpack.c.l.b16 %v808
        %v1401 = vunpack.c.h.b16 %v808
        %v1402 = vunpack.c.l.b16 %v809
        %v1403 = vunpack.c.h.b16 %v809
        %v1404 = vunpack.c.l.b16 %v810
        %v1405 = vunpack.c.h.b16 %v810
        %v1406 = vunpack.c.l.b16 %v811
        %v1407 = vunpack.c.h.b16 %v811
        %v1408 = vunpack.c.l.b16 %v812
        %v1409 = vunpack.c.h.b16 %v812
        %v1410 = vunpack.c.l.b16 %v813
        %v1411 = vunpack.c.h.b16 %v813
        %v1412 = vpack.c.b16 %v1024, %v1020
        %v1413 = vpack.c.b16 %v1025, %v1021
        %v1414 = vpack.c.b16 %v1026, %v1022
        %v1415 = vpack.c.b16 %v1027, %v1023
        %v1416 = vpack.c.b16 %v1032, %v1028
        %v1417 = vpack.c.b16 %v1033, %v1029
        %v1418 = vpack.c.b16 %v1034, %v1030
        %v1419 = vpack.c.b16 %v1035, %v1031
        %v1420 = vpack.c.b16 %v1040, %v1036
        %v1421 = vpack.c.b16 %v1041, %v1037
        %v1422 = vpack.c.b16 %v1042, %v1038
        %v1423 = vpack.c.b16 %v1043, %v1039
        %v1424 = vpack.c.b16 %v1048, %v1044
        %v1425 = vpack.c.b16 %v1049, %v1045
        %v1426 = vpack.c.b16 %v1050, %v1046
        %v1427 = vpack.c.b16 %v1051, %v1047
        %v1428 = vpack.c.b16 %v1056, %v1052
        %v1429 = vpack.c.b16 %v1057, %v1053
        %v1430 = vpack.c.b16 %v1058, %v1054
        %v1431 = vpack.c.b16 %v1059, %v1055
        %v1432 = vpack.c.b16 %v1064, %v1060
        %v1433 = vpack.c.b16 %v1065, %v1061
        %v1434 = vpack.c.b16 %v1066, %v1062
        %v1435 = vpack.c.b16 %v1067, %v1063
        %v1436 = vpack.c.b16 %v1072, %v1068
        %v1437 = vpack.c.b16 %v1073, %v1069
        %v1438 = vpack.c.b16 %v1074, %v1070
        %v1439 = vpack.c.b16 %v1075, %v1071
        %v1440 = vpack.c.b16 %v1080, %v1076
        %v1441 = vpack.c.b16 %v1081, %v1077
        %v1442 = vpack.c.b16 %v1082, %v1078
        %v1443 = vpack.c.b16 %v1083, %v1079
        %v1444 = vpack.c.b16 %v1088, %v1084
        %v1445 = vpack.c.b16 %v1089, %v1085
        %v1446 = vpack.c.b16 %v1090, %v1086
        %v1447 = vpack.c.b16 %v1091, %v1087
        %v1448 = vpack.c.b16 %v1096, %v1092
        %v1449 = vpack.c.b16 %v1097, %v1093
        %v1450 = vpack.c.b16 %v1098, %v1094
        %v1451 = vpack.c.b16 %v1099, %v1095
        %v1452 = vpack.c.b16 %v1104, %v1100
        %v1453 = vpack.c.b16 %v1105, %v1101
        %v1454 = vpack.c.b16 %v1106, %v1102
        %v1455 = vpack.c.b16 %v1107, %v1103
        %v1456 = vpack.c.b16 %v1112, %v1108
        %v1457 = vpack.c.b16 %v1113, %v1109
        %v1458 = vpack.c.b16 %v1114, %v1110
        %v1459 = vpack.c.b16 %v1115, %v1111
        %v1460 = vpack.c.b16 %v1120, %v1116
        %v1461 = vpack.c.b16 %v1121, %v1117
        %v1462 = vpack.c.b16 %v1122, %v1118
        %v1463 = vpack.c.b16 %v1123, %v1119
        %v1464 = vpack.c.b16 %v1128, %v1124
        %v1465 = vpack.c.b16 %v1129, %v1125
        %v1466 = vpack.c.b16 %v1130, %v1126
        %v1467 = vpack.c.b16 %v1131, %v1127
        %v1468 = vpack.c.b16 %v1136, %v1132
        %v1469 = vpack.c.b16 %v1137, %v1133
        %v1470 = vpack.c.b16 %v1138, %v1134
        %v1471 = vpack.c.b16 %v1139, %v1135
        %v1472 = vpack.c.b16 %v1144, %v1140
        %v1473 = vpack.c.b16 %v1145, %v1141
        %v1474 = vpack.c.b16 %v1146, %v1142
        %v1475 = vpack.c.b16 %v1147, %v1143
        %v1476 = vpack.c.b16 %v1152, %v1148
        %v1477 = vpack.c.b16 %v1153, %v1149
        %v1478 = vpack.c.b16 %v1154, %v1150
        %v1479 = vpack.c.b16 %v1155, %v1151
        %v1480 = vpack.c.b16 %v1160, %v1156
        %v1481 = vpack.c.b16 %v1161, %v1157
        %v1482 = vpack.c.b16 %v1162, %v1158
        %v1483 = vpack.c.b16 %v1163, %v1159
        %v1484 = vpack.c.b16 %v1168, %v1164
        %v1485 = vpack.c.b16 %v1169, %v1165
        %v1486 = vpack.c.b16 %v1170, %v1166
        %v1487 = vpack.c.b16 %v1171, %v1167
        %v1488 = vpack.c.b16 %v1176, %v1172
        %v1489 = vpack.c.b16 %v1177, %v1173
        %v1490 = vpack.c.b16 %v1178, %v1174
        %v1491 = vpack.c.b16 %v1179, %v1175
        %v1492 = vpack.c.b16 %v1184, %v1180
        %v1493 = vpack.c.b16 %v1185, %v1181
        %v1494 = vpack.c.b16 %v1186, %v1182
        %v1495 = vpack.c.b16 %v1187, %v1183
        %v1496 = vpack.c.b16 %v1192, %v1188
        %v1497 = vpack.c.b16 %v1193, %v1189
        %v1498 = vpack.c.b16 %v1194, %v1190
        %v1499 = vpack.c.b16 %v1195, %v1191
        %v1500 = vpack.c.b16 %v1200, %v1196
        %v1501 = vpack.c.b16 %v1201, %v1197
        %v1502 = vpack.c.b16 %v1202, %v1198
        %v1503 = vpack.c.b16 %v1203, %v1199
        %v1504 = vpack.c.b16 %v1208, %v1204
        %v1505 = vpack.c.b16 %v1209, %v1205
        %v1506 = vpack.c.b16 %v1210, %v1206
        %v1507 = vpack.c.b16 %v1211, %v1207
        %v1508 = vpack.c.b16 %v1216, %v1212
        %v1509 = vpack.c.b16 %v1217, %v1213
        %v1510 = vpack.c.b16 %v1218, %v1214
        %v1511 = vpack.c.b16 %v1219, %v1215
        %v1512 = vpack.c.b16 %v1224, %v1220
        %v1513 = vpack.c.b16 %v1225, %v1221
        %v1514 = vpack.c.b16 %v1226, %v1222
        %v1515 = vpack.c.b16 %v1227, %v1223
        %v1516 = vpack.c.b16 %v1232, %v1228
        %v1517 = vpack.c.b16 %v1233, %v1229
        %v1518 = vpack.c.b16 %v1234, %v1230
        %v1519 = vpack.c.b16 %v1235, %v1231
        %v1520 = vpack.c.b16 %v1240, %v1236
        %v1521 = vpack.c.b16 %v1241, %v1237
        %v1522 = vpack.c.b16 %v1242, %v1238
        %v1523 = vpack.c.b16 %v1243, %v1239
        %v1524 = vpack.c.b16 %v1248, %v1244
        %v1525 = vpack.c.b16 %v1249, %v1245
        %v1526 = vpack.c.b16 %v1250, %v1246
        %v1527 = vpack.c.b16 %v1251, %v1247
        %v1528 = vpack.c.b16 %v1256, %v1252
        %v1529 = vpack.c.b16 %v1257, %v1253
        %v1530 = vpack.c.b16 %v1258, %v1254
        %v1531 = vpack.c.b16 %v1259, %v1255
        %v1532 = vpack.c.b16 %v1264, %v1260
        %v1533 = vpack.c.b16 %v1265, %v1261
        %v1534 = vpack.c.b16 %v1266, %v1262
        %v1535 = vpack.c.b16 %v1267, %v1263
        %v1536 = vpack.c.b16 %v1272, %v1268
        %v1537 = vpack.c.b16 %v1273, %v1269
        %v1538 = vpack.c.b16 %v1274, %v1270
        %v1539 = vpack.c.b16 %v1275, %v1271
        %v1540 = vpack.c.b16 %v1280, %v1276
        %v1541 = vpack.c.b16 %v1281, %v1277
        %v1542 = vpack.c.b16 %v1282, %v1278
        %v1543 = vpack.c.b16 %v1283, %v1279
        %v1544 = vpack.c.b16 %v1288, %v1284
        %v1545 = vpack.c.b16 %v1289, %v1285
        %v1546 = vpack.c.b16 %v1290, %v1286
        %v1547 = vpack.c.b16 %v1291, %v1287
        %v1548 = vpack.c.b16 %v1296, %v1292
        %v1549 = vpack.c.b16 %v1297, %v1293
        %v1550 = vpack.c.b16 %v1298, %v1294
        %v1551 = vpack.c.b16 %v1299, %v1295
        %v1552 = vpack.c.b16 %v1304, %v1300
        %v1553 = vpack.c.b16 %v1305, %v1301
        %v1554 = vpack.c.b16 %v1306, %v1302
        %v1555 = vpack.c.b16 %v1307, %v1303
        %v1556 = vpack.c.b16 %v1312, %v1308
        %v1557 = vpack.c.b16 %v1313, %v1309
        %v1558 = vpack.c.b16 %v1314, %v1310
        %v1559 = vpack.c.b16 %v1315, %v1311
        %v1560 = vpack.c.b16 %v1320, %v1316
        %v1561 = vpack.c.b16 %v1321, %v1317
        %v1562 = vpack.c.b16 %v1322, %v1318
        %v1563 = vpack.c.b16 %v1323, %v1319
        %v1564 = vpack.c.b16 %v1328, %v1324
        %v1565 = vpack.c.b16 %v1329, %v1325
        %v1566 = vpack.c.b16 %v1330, %v1326
        %v1567 = vpack.c.b16 %v1331, %v1327
        %v1568 = vpack.c.b16 %v1336, %v1332
        %v1569 = vpack.c.b16 %v1337, %v1333
        %v1570 = vpack.c.b16 %v1338, %v1334
        %v1571 = vpack.c.b16 %v1339, %v1335
        %v1572 = vpack.c.b16 %v1344, %v1340
        %v1573 = vpack.c.b16 %v1345, %v1341
        %v1574 = vpack.c.b16 %v1346, %v1342
        %v1575 = vpack.c.b16 %v1347, %v1343
        %v1576 = vpack.c.b16 %v1352, %v1348
        %v1577 = vpack.c.b16 %v1353, %v1349
        %v1578 = vpack.c.b16 %v1354, %v1350
        %v1579 = vpack.c.b16 %v1355, %v1351
        %v1580 = vpack.c.b16 %v1360, %v1356
        %v1581 = vpack.c.b16 %v1361, %v1357
        %v1582 = vpack.c.b16 %v1362, %v1358
        %v1583 = vpack.c.b16 %v1363, %v1359
        %v1584 = vpack.c.b16 %v1368, %v1364
        %v1585 = vpack.c.b16 %v1369, %v1365
        %v1586 = vpack.c.b16 %v1370, %v1366
        %v1587 = vpack.c.b16 %v1371, %v1367
        %v1588 = vpack.c.b16 %v1376, %v1372
        %v1589 = vpack.c.b16 %v1377, %v1373
        %v1590 = vpack.c.b16 %v1378, %v1374
        %v1591 = vpack.c.b16 %v1379, %v1375
        %v1592 = vpack.c.b16 %v1384, %v1380
        %v1593 = vpack.c.b16 %v1385, %v1381
        %v1594 = vpack.c.b16 %v1386, %v1382
        %v1595 = vpack.c.b16 %v1387, %v1383
        %v1596 = vpack.c.b16 %v1392, %v1388
        %v1597 = vpack.c.b16 %v1393, %v1389
        %v1598 = vpack.c.b16 %v1394, %v1390
        %v1599 = vpack.c.b16 %v1395, %v1391
        %v1600 = vpack.c.b16 %v1400, %v1396
        %v1601 = vpack.c.b16 %v1401, %v1397
        %v1602 = vpack.c.b16 %v1402, %v1398
        %v1603 = vpack.c.b16 %v1403, %v1399
        %v1604 = vpack.c.b16 %v1408, %v1404
        %v1605 = vpack.c.b16 %v1409, %v1405
        %v1606 = vpack.c.b16 %v1410, %v1406
        %v1607 = vpack.c.b16 %v1411, %v1407
        %vm1804 = vcmask 130048
        %v1806 = vsel %vm1804, %v617, 0
        %1808 = vmatpush.bf16.msra.mxu0 %v1440
        %1809 = vmatpush.bf16.msra.mxu0 %v1436
        %1810 = vmatpush.bf16.msra.mxu0 %v1432
        %1811 = vmatpush.bf16.msra.mxu0 %v1428
        %1812 = vmatpush.bf16.msra.mxu0 %v1424
        %1813 = vmatpush.bf16.msra.mxu0 %v1420
        %1814 = vmatpush.bf16.msra.mxu0 %v1416
        %1815 = vmatpush.bf16.msra.mxu0 %v1412
        %1816 = vmatmul.bf16.gmra.mxu0 %v611
        %v1817 = vpop.f32.mrf.mxu0
        %v1818 = vadd.f32 %v816, %v1817
        %v1819 = vpop.f32.mrf.mxu0
        %1820 = vdwg.mxu0
        %1821 = vmatpush.bf16.msra.mxu0 %v1472
        %1822 = vmatpush.bf16.msra.mxu0 %v1468
        %1823 = vmatpush.bf16.msra.mxu0 %v1464
        %1824 = vmatpush.bf16.msra.mxu0 %v1460
        %1825 = vmatpush.bf16.msra.mxu0 %v1456
        %1826 = vmatpush.bf16.msra.mxu0 %v1452
        %1827 = vmatpush.bf16.msra.mxu0 %v1448
        %1828 = vmatpush.bf16.msra.mxu0 %v1444
        %1829 = vmatmul.bf16.gmra.mxu0 %v612
        %v1830 = vpop.f32.mrf.mxu0
        %v1831 = vadd.f32 %v1818, %v1830
        %v1832 = vpop.f32.mrf.mxu0
        %1833 = vdwg.mxu0
        %1834 = vmatpush.bf16.msra.mxu0 %v1504
        %1835 = vmatpush.bf16.msra.mxu0 %v1500
        %1836 = vmatpush.bf16.msra.mxu0 %v1496
        %1837 = vmatpush.bf16.msra.mxu0 %v1492
        %1838 = vmatpush.bf16.msra.mxu0 %v1488
        %1839 = vmatpush.bf16.msra.mxu0 %v1484
        %1840 = vmatpush.bf16.msra.mxu0 %v1480
        %1841 = vmatpush.bf16.msra.mxu0 %v1476
        %1842 = vmatmul.bf16.gmra.mxu0 %v613
        %v1843 = vpop.f32.mrf.mxu0
        %v1844 = vadd.f32 %v1831, %v1843
        %v1845 = vpop.f32.mrf.mxu0
        %1846 = vdwg.mxu0
        %1847 = vmatpush.bf16.msra.mxu0 %v1536
        %1848 = vmatpush.bf16.msra.mxu0 %v1532
        %1849 = vmatpush.bf16.msra.mxu0 %v1528
        %1850 = vmatpush.bf16.msra.mxu0 %v1524
        %1851 = vmatpush.bf16.msra.mxu0 %v1520
        %1852 = vmatpush.bf16.msra.mxu0 %v1516
        %1853 = vmatpush.bf16.msra.mxu0 %v1512
        %1854 = vmatpush.bf16.msra.mxu0 %v1508
        %1855 = vmatmul.bf16.gmra.mxu0 %v614
        %v1856 = vpop.f32.mrf.mxu0
        %v1857 = vadd.f32 %v1844, %v1856
        %v1858 = vpop.f32.mrf.mxu0
        %1859 = vdwg.mxu0
        %1860 = vmatpush.bf16.msra.mxu0 %v1568
        %1861 = vmatpush.bf16.msra.mxu0 %v1564
        %1862 = vmatpush.bf16.msra.mxu0 %v1560
        %1863 = vmatpush.bf16.msra.mxu0 %v1556
        %1864 = vmatpush.bf16.msra.mxu0 %v1552
        %1865 = vmatpush.bf16.msra.mxu0 %v1548
        %1866 = vmatpush.bf16.msra.mxu0 %v1544
        %1867 = vmatpush.bf16.msra.mxu0 %v1540
        %1868 = vmatmul.bf16.gmra.mxu0 %v615
        %v1869 = vpop.f32.mrf.mxu0
        %v1870 = vadd.f32 %v1857, %v1869
        %v1871 = vpop.f32.mrf.mxu0
        %1872 = vdwg.mxu0
        %1873 = vmatpush.bf16.msra.mxu0 %v1600
        %1874 = vmatpush.bf16.msra.mxu0 %v1596
        %1875 = vmatpush.bf16.msra.mxu0 %v1592
        %1876 = vmatpush.bf16.msra.mxu0 %v1588
        %1877 = vmatpush.bf16.msra.mxu0 %v1584
        %1878 = vmatpush.bf16.msra.mxu0 %v1580
        %1879 = vmatpush.bf16.msra.mxu0 %v1576
        %1880 = vmatpush.bf16.msra.mxu0 %v1572
        %1881 = vmatmul.bf16.gmra.mxu0 %v616
        %v1882 = vpop.f32.mrf.mxu0
        %v1883 = vadd.f32 %v1870, %v1882
        %v1884 = vpop.f32.mrf.mxu0
        %1885 = vdwg.mxu0
        %1886 = vmatpush.bf16.msra.mxu0 0
        %1887 = vmatpush.bf16.msra.mxu0 0
        %1888 = vmatpush.bf16.msra.mxu0 0
        %1889 = vmatpush.bf16.msra.mxu0 0
        %1890 = vmatpush.bf16.msra.mxu0 0
        %1891 = vmatpush.bf16.msra.mxu0 0
        %1892 = vmatpush.bf16.msra.mxu0 0
        %1893 = vmatpush.bf16.msra.mxu0 %v1604
        %1894 = vmatmul.bf16.gmra.mxu0 %v1806
        %v1895 = vpop.f32.mrf.mxu0
        %v1896 = vadd.f32 %v1883, %v1895
        %v1897 = vpop.f32.mrf.mxu0
        %1898 = vdwg.mxu0
        %1899 = vmatpush.bf16.msra.mxu0 %v1441
        %1900 = vmatpush.bf16.msra.mxu0 %v1437
        %1901 = vmatpush.bf16.msra.mxu0 %v1433
        %1902 = vmatpush.bf16.msra.mxu0 %v1429
        %1903 = vmatpush.bf16.msra.mxu0 %v1425
        %1904 = vmatpush.bf16.msra.mxu0 %v1421
        %1905 = vmatpush.bf16.msra.mxu0 %v1417
        %1906 = vmatpush.bf16.msra.mxu0 %v1413
        %1907 = vmatmul.bf16.gmra.mxu0 %v611
        %v1908 = vpop.f32.mrf.mxu0
        %v1909 = vadd.f32 %v817, %v1908
        %v1910 = vpop.f32.mrf.mxu0
        %1911 = vdwg.mxu0
        %1912 = vmatpush.bf16.msra.mxu0 %v1473
        %1913 = vmatpush.bf16.msra.mxu0 %v1469
        %1914 = vmatpush.bf16.msra.mxu0 %v1465
        %1915 = vmatpush.bf16.msra.mxu0 %v1461
        %1916 = vmatpush.bf16.msra.mxu0 %v1457
        %1917 = vmatpush.bf16.msra.mxu0 %v1453
        %1918 = vmatpush.bf16.msra.mxu0 %v1449
        %1919 = vmatpush.bf16.msra.mxu0 %v1445
        %1920 = vmatmul.bf16.gmra.mxu0 %v612
        %v1921 = vpop.f32.mrf.mxu0
        %v1922 = vadd.f32 %v1909, %v1921
        %v1923 = vpop.f32.mrf.mxu0
        %1924 = vdwg.mxu0
        %1925 = vmatpush.bf16.msra.mxu0 %v1505
        %1926 = vmatpush.bf16.msra.mxu0 %v1501
        %1927 = vmatpush.bf16.msra.mxu0 %v1497
        %1928 = vmatpush.bf16.msra.mxu0 %v1493
        %1929 = vmatpush.bf16.msra.mxu0 %v1489
        %1930 = vmatpush.bf16.msra.mxu0 %v1485
        %1931 = vmatpush.bf16.msra.mxu0 %v1481
        %1932 = vmatpush.bf16.msra.mxu0 %v1477
        %1933 = vmatmul.bf16.gmra.mxu0 %v613
        %v1934 = vpop.f32.mrf.mxu0
        %v1935 = vadd.f32 %v1922, %v1934
        %v1936 = vpop.f32.mrf.mxu0
        %1937 = vdwg.mxu0
        %1938 = vmatpush.bf16.msra.mxu0 %v1537
        %1939 = vmatpush.bf16.msra.mxu0 %v1533
        %1940 = vmatpush.bf16.msra.mxu0 %v1529
        %1941 = vmatpush.bf16.msra.mxu0 %v1525
        %1942 = vmatpush.bf16.msra.mxu0 %v1521
        %1943 = vmatpush.bf16.msra.mxu0 %v1517
        %1944 = vmatpush.bf16.msra.mxu0 %v1513
        %1945 = vmatpush.bf16.msra.mxu0 %v1509
        %1946 = vmatmul.bf16.gmra.mxu0 %v614
        %v1947 = vpop.f32.mrf.mxu0
        %v1948 = vadd.f32 %v1935, %v1947
        %v1949 = vpop.f32.mrf.mxu0
        %1950 = vdwg.mxu0
        %1951 = vmatpush.bf16.msra.mxu0 %v1569
        %1952 = vmatpush.bf16.msra.mxu0 %v1565
        %1953 = vmatpush.bf16.msra.mxu0 %v1561
        %1954 = vmatpush.bf16.msra.mxu0 %v1557
        %1955 = vmatpush.bf16.msra.mxu0 %v1553
        %1956 = vmatpush.bf16.msra.mxu0 %v1549
        %1957 = vmatpush.bf16.msra.mxu0 %v1545
        %1958 = vmatpush.bf16.msra.mxu0 %v1541
        %1959 = vmatmul.bf16.gmra.mxu0 %v615
        %v1960 = vpop.f32.mrf.mxu0
        %v1961 = vadd.f32 %v1948, %v1960
        %v1962 = vpop.f32.mrf.mxu0
        %1963 = vdwg.mxu0
        %1964 = vmatpush.bf16.msra.mxu0 %v1601
        %1965 = vmatpush.bf16.msra.mxu0 %v1597
        %1966 = vmatpush.bf16.msra.mxu0 %v1593
        %1967 = vmatpush.bf16.msra.mxu0 %v1589
        %1968 = vmatpush.bf16.msra.mxu0 %v1585
        %1969 = vmatpush.bf16.msra.mxu0 %v1581
        %1970 = vmatpush.bf16.msra.mxu0 %v1577
        %1971 = vmatpush.bf16.msra.mxu0 %v1573
        %1972 = vmatmul.bf16.gmra.mxu0 %v616
        %v1973 = vpop.f32.mrf.mxu0
        %v1974 = vadd.f32 %v1961, %v1973
        %v1975 = vpop.f32.mrf.mxu0
        %1976 = vdwg.mxu0
        %1977 = vmatpush.bf16.msra.mxu0 0
        %1978 = vmatpush.bf16.msra.mxu0 0
        %1979 = vmatpush.bf16.msra.mxu0 0
        %1980 = vmatpush.bf16.msra.mxu0 0
        %1981 = vmatpush.bf16.msra.mxu0 0
        %1982 = vmatpush.bf16.msra.mxu0 0
        %1983 = vmatpush.bf16.msra.mxu0 0
        %1984 = vmatpush.bf16.msra.mxu0 %v1605
        %1985 = vmatmul.bf16.gmra.mxu0 %v1806
        %v1986 = vpop.f32.mrf.mxu0
        %v1987 = vadd.f32 %v1974, %v1986
        %v1988 = vpop.f32.mrf.mxu0
        %1989 = vdwg.mxu0
        %1990 = vmatpush.bf16.msra.mxu0 %v1442
        %1991 = vmatpush.bf16.msra.mxu0 %v1438
        %1992 = vmatpush.bf16.msra.mxu0 %v1434
        %1993 = vmatpush.bf16.msra.mxu0 %v1430
        %1994 = vmatpush.bf16.msra.mxu0 %v1426
        %1995 = vmatpush.bf16.msra.mxu0 %v1422
        %1996 = vmatpush.bf16.msra.mxu0 %v1418
        %1997 = vmatpush.bf16.msra.mxu0 %v1414
        %1998 = vmatmul.bf16.gmra.mxu0 %v611
        %v1999 = vpop.f32.mrf.mxu0
        %v2000 = vadd.f32 %v818, %v1999
        %v2001 = vpop.f32.mrf.mxu0
        %2002 = vdwg.mxu0
        %2003 = vmatpush.bf16.msra.mxu0 %v1474
        %2004 = vmatpush.bf16.msra.mxu0 %v1470
        %2005 = vmatpush.bf16.msra.mxu0 %v1466
        %2006 = vmatpush.bf16.msra.mxu0 %v1462
        %2007 = vmatpush.bf16.msra.mxu0 %v1458
        %2008 = vmatpush.bf16.msra.mxu0 %v1454
        %2009 = vmatpush.bf16.msra.mxu0 %v1450
        %2010 = vmatpush.bf16.msra.mxu0 %v1446
        %2011 = vmatmul.bf16.gmra.mxu0 %v612
        %v2012 = vpop.f32.mrf.mxu0
        %v2013 = vadd.f32 %v2000, %v2012
        %v2014 = vpop.f32.mrf.mxu0
        %2015 = vdwg.mxu0
        %2016 = vmatpush.bf16.msra.mxu0 %v1506
        %2017 = vmatpush.bf16.msra.mxu0 %v1502
        %2018 = vmatpush.bf16.msra.mxu0 %v1498
        %2019 = vmatpush.bf16.msra.mxu0 %v1494
        %2020 = vmatpush.bf16.msra.mxu0 %v1490
        %2021 = vmatpush.bf16.msra.mxu0 %v1486
        %2022 = vmatpush.bf16.msra.mxu0 %v1482
        %2023 = vmatpush.bf16.msra.mxu0 %v1478
        %2024 = vmatmul.bf16.gmra.mxu0 %v613
        %v2025 = vpop.f32.mrf.mxu0
        %v2026 = vadd.f32 %v2013, %v2025
        %v2027 = vpop.f32.mrf.mxu0
        %2028 = vdwg.mxu0
        %2029 = vmatpush.bf16.msra.mxu0 %v1538
        %2030 = vmatpush.bf16.msra.mxu0 %v1534
        %2031 = vmatpush.bf16.msra.mxu0 %v1530
        %2032 = vmatpush.bf16.msra.mxu0 %v1526
        %2033 = vmatpush.bf16.msra.mxu0 %v1522
        %2034 = vmatpush.bf16.msra.mxu0 %v1518
        %2035 = vmatpush.bf16.msra.mxu0 %v1514
        %2036 = vmatpush.bf16.msra.mxu0 %v1510
        %2037 = vmatmul.bf16.gmra.mxu0 %v614
        %v2038 = vpop.f32.mrf.mxu0
        %v2039 = vadd.f32 %v2026, %v2038
        %v2040 = vpop.f32.mrf.mxu0
        %2041 = vdwg.mxu0
        %2042 = vmatpush.bf16.msra.mxu0 %v1570
        %2043 = vmatpush.bf16.msra.mxu0 %v1566
        %2044 = vmatpush.bf16.msra.mxu0 %v1562
        %2045 = vmatpush.bf16.msra.mxu0 %v1558
        %2046 = vmatpush.bf16.msra.mxu0 %v1554
        %2047 = vmatpush.bf16.msra.mxu0 %v1550
        %2048 = vmatpush.bf16.msra.mxu0 %v1546
        %2049 = vmatpush.bf16.msra.mxu0 %v1542
        %2050 = vmatmul.bf16.gmra.mxu0 %v615
        %v2051 = vpop.f32.mrf.mxu0
        %v2052 = vadd.f32 %v2039, %v2051
        %v2053 = vpop.f32.mrf.mxu0
        %2054 = vdwg.mxu0
        %2055 = vmatpush.bf16.msra.mxu0 %v1602
        %2056 = vmatpush.bf16.msra.mxu0 %v1598
        %2057 = vmatpush.bf16.msra.mxu0 %v1594
        %2058 = vmatpush.bf16.msra.mxu0 %v1590
        %2059 = vmatpush.bf16.msra.mxu0 %v1586
        %2060 = vmatpush.bf16.msra.mxu0 %v1582
        %2061 = vmatpush.bf16.msra.mxu0 %v1578
        %2062 = vmatpush.bf16.msra.mxu0 %v1574
        %2063 = vmatmul.bf16.gmra.mxu0 %v616
        %v2064 = vpop.f32.mrf.mxu0
        %v2065 = vadd.f32 %v2052, %v2064
        %v2066 = vpop.f32.mrf.mxu0
        %2067 = vdwg.mxu0
        %2068 = vmatpush.bf16.msra.mxu0 0
        %2069 = vmatpush.bf16.msra.mxu0 0
        %2070 = vmatpush.bf16.msra.mxu0 0
        %2071 = vmatpush.bf16.msra.mxu0 0
        %2072 = vmatpush.bf16.msra.mxu0 0
        %2073 = vmatpush.bf16.msra.mxu0 0
        %2074 = vmatpush.bf16.msra.mxu0 0
        %2075 = vmatpush.bf16.msra.mxu0 %v1606
        %2076 = vmatmul.bf16.gmra.mxu0 %v1806
        %v2077 = vpop.f32.mrf.mxu0
        %v2078 = vadd.f32 %v2065, %v2077
        %v2079 = vpop.f32.mrf.mxu0
        %2080 = vdwg.mxu0
        %2081 = vmatpush.bf16.msra.mxu0 %v1443
        %2082 = vmatpush.bf16.msra.mxu0 %v1439
        %2083 = vmatpush.bf16.msra.mxu0 %v1435
        %2084 = vmatpush.bf16.msra.mxu0 %v1431
        %2085 = vmatpush.bf16.msra.mxu0 %v1427
        %2086 = vmatpush.bf16.msra.mxu0 %v1423
        %2087 = vmatpush.bf16.msra.mxu0 %v1419
        %2088 = vmatpush.bf16.msra.mxu0 %v1415
        %2089 = vmatmul.bf16.gmra.mxu0 %v611
        %v2090 = vpop.f32.mrf.mxu0
        %v2091 = vadd.f32 %v819, %v2090
        %v2092 = vpop.f32.mrf.mxu0
        %2093 = vdwg.mxu0
        %2094 = vmatpush.bf16.msra.mxu0 %v1475
        %2095 = vmatpush.bf16.msra.mxu0 %v1471
        %2096 = vmatpush.bf16.msra.mxu0 %v1467
        %2097 = vmatpush.bf16.msra.mxu0 %v1463
        %2098 = vmatpush.bf16.msra.mxu0 %v1459
        %2099 = vmatpush.bf16.msra.mxu0 %v1455
        %2100 = vmatpush.bf16.msra.mxu0 %v1451
        %2101 = vmatpush.bf16.msra.mxu0 %v1447
        %2102 = vmatmul.bf16.gmra.mxu0 %v612
        %v2103 = vpop.f32.mrf.mxu0
        %v2104 = vadd.f32 %v2091, %v2103
        %v2105 = vpop.f32.mrf.mxu0
        %2106 = vdwg.mxu0
        %2107 = vmatpush.bf16.msra.mxu0 %v1507
        %2108 = vmatpush.bf16.msra.mxu0 %v1503
        %2109 = vmatpush.bf16.msra.mxu0 %v1499
        %2110 = vmatpush.bf16.msra.mxu0 %v1495
        %2111 = vmatpush.bf16.msra.mxu0 %v1491
        %2112 = vmatpush.bf16.msra.mxu0 %v1487
        %2113 = vmatpush.bf16.msra.mxu0 %v1483
        %2114 = vmatpush.bf16.msra.mxu0 %v1479
        %2115 = vmatmul.bf16.gmra.mxu0 %v613
        %v2116 = vpop.f32.mrf.mxu0
        %v2117 = vadd.f32 %v2104, %v2116
        %v2118 = vpop.f32.mrf.mxu0
        %2119 = vdwg.mxu0
        %2120 = vmatpush.bf16.msra.mxu0 %v1539
        %2121 = vmatpush.bf16.msra.mxu0 %v1535
        %2122 = vmatpush.bf16.msra.mxu0 %v1531
        %2123 = vmatpush.bf16.msra.mxu0 %v1527
        %2124 = vmatpush.bf16.msra.mxu0 %v1523
        %2125 = vmatpush.bf16.msra.mxu0 %v1519
        %2126 = vmatpush.bf16.msra.mxu0 %v1515
        %2127 = vmatpush.bf16.msra.mxu0 %v1511
        %2128 = vmatmul.bf16.gmra.mxu0 %v614
        %v2129 = vpop.f32.mrf.mxu0
        %v2130 = vadd.f32 %v2117, %v2129
        %v2131 = vpop.f32.mrf.mxu0
        %2132 = vdwg.mxu0
        %2133 = vmatpush.bf16.msra.mxu0 %v1571
        %2134 = vmatpush.bf16.msra.mxu0 %v1567
        %2135 = vmatpush.bf16.msra.mxu0 %v1563
        %2136 = vmatpush.bf16.msra.mxu0 %v1559
        %2137 = vmatpush.bf16.msra.mxu0 %v1555
        %2138 = vmatpush.bf16.msra.mxu0 %v1551
        %2139 = vmatpush.bf16.msra.mxu0 %v1547
        %2140 = vmatpush.bf16.msra.mxu0 %v1543
        %2141 = vmatmul.bf16.gmra.mxu0 %v615
        %v2142 = vpop.f32.mrf.mxu0
        %v2143 = vadd.f32 %v2130, %v2142
        %v2144 = vpop.f32.mrf.mxu0
        %2145 = vdwg.mxu0
        %2146 = vmatpush.bf16.msra.mxu0 %v1603
        %2147 = vmatpush.bf16.msra.mxu0 %v1599
        %2148 = vmatpush.bf16.msra.mxu0 %v1595
        %2149 = vmatpush.bf16.msra.mxu0 %v1591
        %2150 = vmatpush.bf16.msra.mxu0 %v1587
        %2151 = vmatpush.bf16.msra.mxu0 %v1583
        %2152 = vmatpush.bf16.msra.mxu0 %v1579
        %2153 = vmatpush.bf16.msra.mxu0 %v1575
        %2154 = vmatmul.bf16.gmra.mxu0 %v616
        %v2155 = vpop.f32.mrf.mxu0
        %v2156 = vadd.f32 %v2143, %v2155
        %v2157 = vpop.f32.mrf.mxu0
        %2158 = vdwg.mxu0
        %2159 = vmatpush.bf16.msra.mxu0 0
        %2160 = vmatpush.bf16.msra.mxu0 0
        %2161 = vmatpush.bf16.msra.mxu0 0
        %2162 = vmatpush.bf16.msra.mxu0 0
        %2163 = vmatpush.bf16.msra.mxu0 0
        %2164 = vmatpush.bf16.msra.mxu0 0
        %2165 = vmatpush.bf16.msra.mxu0 0
        %2166 = vmatpush.bf16.msra.mxu0 %v1607
        %2167 = vmatmul.bf16.gmra.mxu0 %v1806
        %v2168 = vpop.f32.mrf.mxu0
        %v2169 = vadd.f32 %v2156, %v2168
        %v2170 = vpop.f32.mrf.mxu0
        %2171 = vdwg.mxu0
        %v2172 = vmax.f32 %v1896, 0.0
        %v2173 = vmax.f32 %v1987, 0.0
        %v2174 = vmax.f32 %v2078, 0.0
        %v2175 = vmax.f32 %v2169, 0.0
        %v2176 = vpack.c.bf16 %v2172, %v2172
        %v2177 = vpack.c.bf16 %v2173, %v2173
        %v2178 = vpack.c.bf16 %v2174, %v2174
        %v2179 = vpack.c.bf16 %v2175, %v2175
        %v2180 = vld [vmem:[#allocation8] sm:$0xf]
        %v2181 = vld [vmem:[#allocation8 + $0x4] sm:$0xf]
        %v2182 = vld [vmem:[#allocation8 + $0x8] sm:$0xf]
        %v2183 = vld [vmem:[#allocation8 + $0xc] sm:$0xf]
        %v2184 = vld [vmem:[#allocation8 + $0x10] sm:$0xf]
        %v2185 = vld [vmem:[#allocation8 + $0x14] sm:$0xf]
        %v2186 = vld [vmem:[#allocation8 + $0x18] sm:$0xf]
        %v2187 = vld [vmem:[#allocation8 + $0x1c] sm:$0xf]
        %v2188 = vld [vmem:[#allocation8 + $0x20] sm:$0xf]
        %v2189 = vld [vmem:[#allocation8 + $0x24] sm:$0xf]
        %v2190 = vld [vmem:[#allocation8 + $0x28] sm:$0xf]
        %v2191 = vld [vmem:[#allocation8 + $0x2c] sm:$0xf]
        %v2192 = vld [vmem:[#allocation8 + $0x30] sm:$0xf]
        %v2193 = vld [vmem:[#allocation8 + $0x34] sm:$0xf]
        %v2194 = vld [vmem:[#allocation8 + $0x38] sm:$0xf]
        %v2195 = vld [vmem:[#allocation8 + $0x3c] sm:$0xf]
        %v2196 = vld [vmem:[#allocation8 + $0x40] sm:$0xf]
        %v2197 = vld [vmem:[#allocation8 + $0x44] sm:$0xf]
        %v2198 = vld [vmem:[#allocation8 + $0x48] sm:$0xf]
        %v2199 = vld [vmem:[#allocation8 + $0x4c] sm:$0xf]
        %v2200 = vld [vmem:[#allocation8 + $0x50] sm:$0xf]
        %v2201 = vld [vmem:[#allocation8 + $0x54] sm:$0xf]
        %v2202 = vld [vmem:[#allocation8 + $0x58] sm:$0xf]
        %v2203 = vld [vmem:[#allocation8 + $0x5c] sm:$0xf]
        %v2204 = vld [vmem:[#allocation8 + $0x60] sm:$0xf]
        %v2205 = vld [vmem:[#allocation8 + $0x64] sm:$0xf]
        %v2206 = vld [vmem:[#allocation8 + $0x68] sm:$0xf]
        %v2207 = vld [vmem:[#allocation8 + $0x6c] sm:$0xf]
        %v2208 = vld [vmem:[#allocation8 + $0x70] sm:$0xf]
        %v2209 = vld [vmem:[#allocation8 + $0x74] sm:$0xf]
        %v2210 = vld [vmem:[#allocation8 + $0x78] sm:$0xf]
        %v2211 = vld [vmem:[#allocation8 + $0x7c] sm:$0xf]
        %v2212 = vld [vmem:[#allocation8 + $0x80] sm:$0xf]
        %v2213 = vld [vmem:[#allocation8 + $0x84] sm:$0xf]
        %v2214 = vld [vmem:[#allocation8 + $0x88] sm:$0xf]
        %v2215 = vld [vmem:[#allocation8 + $0x8c] sm:$0xf]
        %v2216 = vld [vmem:[#allocation8 + $0x90] sm:$0xf]
        %v2217 = vld [vmem:[#allocation8 + $0x94] sm:$0xf]
        %v2218 = vld [vmem:[#allocation8 + $0x98] sm:$0xf]
        %v2219 = vld [vmem:[#allocation8 + $0x9c] sm:$0xf]
        %v2220 = vld [vmem:[#allocation8 + $0xa0] sm:$0xf]
        %v2221 = vld [vmem:[#allocation8 + $0xa4] sm:$0xf]
        %v2222 = vld [vmem:[#allocation8 + $0xa8] sm:$0xf]
        %v2223 = vld [vmem:[#allocation8 + $0xac] sm:$0xf]
        %v2224 = vld [vmem:[#allocation8 + $0xb0] sm:$0xf]
        %v2225 = vld [vmem:[#allocation8 + $0xb4] sm:$0xf]
        %v2226 = vld [vmem:[#allocation8 + $0xb8] sm:$0xf]
        %v2227 = vld [vmem:[#allocation8 + $0xbc] sm:$0xf]
        %v2228 = vld [vmem:[#allocation8 + $0xc0] sm:$0xf]
        %v2229 = vld [vmem:[#allocation8 + $0xc4] sm:$0xf]
        %v2230 = vld [vmem:[#allocation8 + $0xc8] sm:$0xf]
        %v2231 = vld [vmem:[#allocation8 + $0xcc] sm:$0xf]
        %v2232 = vld [vmem:[#allocation8 + $0xd0] sm:$0xf]
        %v2233 = vld [vmem:[#allocation8 + $0xd4] sm:$0xf]
        %v2234 = vld [vmem:[#allocation8 + $0xd8] sm:$0xf]
        %v2235 = vld [vmem:[#allocation8 + $0xdc] sm:$0xf]
        %v2236 = vld [vmem:[#allocation8 + $0xe0] sm:$0xf]
        %v2237 = vld [vmem:[#allocation8 + $0xe4] sm:$0xf]
        %v2238 = vld [vmem:[#allocation8 + $0xe8] sm:$0xf]
        %v2239 = vld [vmem:[#allocation8 + $0xec] sm:$0xf]
        %v2240 = vld [vmem:[#allocation8 + $0xf0] sm:$0xf]
        %v2241 = vld [vmem:[#allocation8 + $0xf4] sm:$0xf]
        %v2242 = vld [vmem:[#allocation8 + $0xf8] sm:$0xf]
        %v2243 = vld [vmem:[#allocation8 + $0xfc] sm:$0xf]
        %v2244 = vld [vmem:[#allocation10] sm:$0x1]
        %v2246 = vperm.slane %v2244, 0
        %v2312 = vunpack.c.l.b16 %v2180
        %v2313 = vunpack.c.l.b16 %v2181
        %v2314 = vunpack.c.l.b16 %v2182
        %v2315 = vunpack.c.l.b16 %v2183
        %v2316 = vunpack.c.l.b16 %v2184
        %v2317 = vunpack.c.l.b16 %v2185
        %v2318 = vunpack.c.l.b16 %v2186
        %v2319 = vunpack.c.l.b16 %v2187
        %v2320 = vunpack.c.l.b16 %v2188
        %v2321 = vunpack.c.l.b16 %v2189
        %v2322 = vunpack.c.l.b16 %v2190
        %v2323 = vunpack.c.l.b16 %v2191
        %v2324 = vunpack.c.l.b16 %v2192
        %v2325 = vunpack.c.l.b16 %v2193
        %v2326 = vunpack.c.l.b16 %v2194
        %v2327 = vunpack.c.l.b16 %v2195
        %v2328 = vunpack.c.l.b16 %v2196
        %v2329 = vunpack.c.l.b16 %v2197
        %v2330 = vunpack.c.l.b16 %v2198
        %v2331 = vunpack.c.l.b16 %v2199
        %v2332 = vunpack.c.l.b16 %v2200
        %v2333 = vunpack.c.l.b16 %v2201
        %v2334 = vunpack.c.l.b16 %v2202
        %v2335 = vunpack.c.l.b16 %v2203
        %v2336 = vunpack.c.l.b16 %v2204
        %v2337 = vunpack.c.l.b16 %v2205
        %v2338 = vunpack.c.l.b16 %v2206
        %v2339 = vunpack.c.l.b16 %v2207
        %v2340 = vunpack.c.l.b16 %v2208
        %v2341 = vunpack.c.l.b16 %v2209
        %v2342 = vunpack.c.l.b16 %v2210
        %v2343 = vunpack.c.l.b16 %v2211
        %v2344 = vunpack.c.l.b16 %v2212
        %v2345 = vunpack.c.l.b16 %v2213
        %v2346 = vunpack.c.l.b16 %v2214
        %v2347 = vunpack.c.l.b16 %v2215
        %v2348 = vunpack.c.l.b16 %v2216
        %v2349 = vunpack.c.l.b16 %v2217
        %v2350 = vunpack.c.l.b16 %v2218
        %v2351 = vunpack.c.l.b16 %v2219
        %v2352 = vunpack.c.l.b16 %v2220
        %v2353 = vunpack.c.l.b16 %v2221
        %v2354 = vunpack.c.l.b16 %v2222
        %v2355 = vunpack.c.l.b16 %v2223
        %v2356 = vunpack.c.l.b16 %v2224
        %v2357 = vunpack.c.l.b16 %v2225
        %v2358 = vunpack.c.l.b16 %v2226
        %v2359 = vunpack.c.l.b16 %v2227
        %v2360 = vunpack.c.l.b16 %v2228
        %v2361 = vunpack.c.l.b16 %v2229
        %v2362 = vunpack.c.l.b16 %v2230
        %v2363 = vunpack.c.l.b16 %v2231
        %v2364 = vunpack.c.l.b16 %v2232
        %v2365 = vunpack.c.l.b16 %v2233
        %v2366 = vunpack.c.l.b16 %v2234
        %v2367 = vunpack.c.l.b16 %v2235
        %v2368 = vunpack.c.l.b16 %v2236
        %v2369 = vunpack.c.l.b16 %v2237
        %v2370 = vunpack.c.l.b16 %v2238
        %v2371 = vunpack.c.l.b16 %v2239
        %v2372 = vunpack.c.l.b16 %v2240
        %v2373 = vunpack.c.l.b16 %v2241
        %v2374 = vunpack.c.l.b16 %v2242
        %v2375 = vunpack.c.l.b16 %v2243
        %v2376 = vpack.c.b16 %v2313, %v2312
        %v2377 = vpack.c.b16 %v2315, %v2314
        %v2378 = vpack.c.b16 %v2317, %v2316
        %v2379 = vpack.c.b16 %v2319, %v2318
        %v2380 = vpack.c.b16 %v2321, %v2320
        %v2381 = vpack.c.b16 %v2323, %v2322
        %v2382 = vpack.c.b16 %v2325, %v2324
        %v2383 = vpack.c.b16 %v2327, %v2326
        %v2384 = vpack.c.b16 %v2329, %v2328
        %v2385 = vpack.c.b16 %v2331, %v2330
        %v2386 = vpack.c.b16 %v2333, %v2332
        %v2387 = vpack.c.b16 %v2335, %v2334
        %v2388 = vpack.c.b16 %v2337, %v2336
        %v2389 = vpack.c.b16 %v2339, %v2338
        %v2390 = vpack.c.b16 %v2341, %v2340
        %v2391 = vpack.c.b16 %v2343, %v2342
        %v2392 = vpack.c.b16 %v2345, %v2344
        %v2393 = vpack.c.b16 %v2347, %v2346
        %v2394 = vpack.c.b16 %v2349, %v2348
        %v2395 = vpack.c.b16 %v2351, %v2350
        %v2396 = vpack.c.b16 %v2353, %v2352
        %v2397 = vpack.c.b16 %v2355, %v2354
        %v2398 = vpack.c.b16 %v2357, %v2356
        %v2399 = vpack.c.b16 %v2359, %v2358
        %v2400 = vpack.c.b16 %v2361, %v2360
        %v2401 = vpack.c.b16 %v2363, %v2362
        %v2402 = vpack.c.b16 %v2365, %v2364
        %v2403 = vpack.c.b16 %v2367, %v2366
        %v2404 = vpack.c.b16 %v2369, %v2368
        %v2405 = vpack.c.b16 %v2371, %v2370
        %v2406 = vpack.c.b16 %v2373, %v2372
        %v2407 = vpack.c.b16 %v2375, %v2374
        %2440 = vmatpush.bf16.msra.mxu0 %v2383
        %2441 = vmatpush.bf16.msra.mxu0 %v2382
        %2442 = vmatpush.bf16.msra.mxu0 %v2381
        %2443 = vmatpush.bf16.msra.mxu0 %v2380
        %2444 = vmatpush.bf16.msra.mxu0 %v2379
        %2445 = vmatpush.bf16.msra.mxu0 %v2378
        %2446 = vmatpush.bf16.msra.mxu0 %v2377
        %2447 = vmatpush.bf16.msra.mxu0 %v2376
        %2448 = vmatmul.bf16.gmra.mxu0 %v2176
        %v2449 = vpop.f32.mrf.mxu0
        %v2450 = vadd.f32 %v2246, %v2449
        %v2451 = vpop.f32.mrf.mxu0
        %2452 = vdwg.mxu0
        %2453 = vmatpush.bf16.msra.mxu0 %v2391
        %2454 = vmatpush.bf16.msra.mxu0 %v2390
        %2455 = vmatpush.bf16.msra.mxu0 %v2389
        %2456 = vmatpush.bf16.msra.mxu0 %v2388
        %2457 = vmatpush.bf16.msra.mxu0 %v2387
        %2458 = vmatpush.bf16.msra.mxu0 %v2386
        %2459 = vmatpush.bf16.msra.mxu0 %v2385
        %2460 = vmatpush.bf16.msra.mxu0 %v2384
        %2461 = vmatmul.bf16.gmra.mxu0 %v2177
        %v2462 = vpop.f32.mrf.mxu0
        %v2463 = vadd.f32 %v2450, %v2462
        %v2464 = vpop.f32.mrf.mxu0
        %2465 = vdwg.mxu0
        %2466 = vmatpush.bf16.msra.mxu0 %v2399
        %2467 = vmatpush.bf16.msra.mxu0 %v2398
        %2468 = vmatpush.bf16.msra.mxu0 %v2397
        %2469 = vmatpush.bf16.msra.mxu0 %v2396
        %2470 = vmatpush.bf16.msra.mxu0 %v2395
        %2471 = vmatpush.bf16.msra.mxu0 %v2394
        %2472 = vmatpush.bf16.msra.mxu0 %v2393
        %2473 = vmatpush.bf16.msra.mxu0 %v2392
        %2474 = vmatmul.bf16.gmra.mxu0 %v2178
        %v2475 = vpop.f32.mrf.mxu0
        %v2476 = vadd.f32 %v2463, %v2475
        %v2477 = vpop.f32.mrf.mxu0
        %2478 = vdwg.mxu0
        %2479 = vmatpush.bf16.msra.mxu0 %v2407
        %2480 = vmatpush.bf16.msra.mxu0 %v2406
        %2481 = vmatpush.bf16.msra.mxu0 %v2405
        %2482 = vmatpush.bf16.msra.mxu0 %v2404
        %2483 = vmatpush.bf16.msra.mxu0 %v2403
        %2484 = vmatpush.bf16.msra.mxu0 %v2402
        %2485 = vmatpush.bf16.msra.mxu0 %v2401
        %2486 = vmatpush.bf16.msra.mxu0 %v2400
        %2487 = vmatmul.bf16.gmra.mxu0 %v2179
        %v2488 = vpop.f32.mrf.mxu0
        %v2489 = vadd.f32 %v2476, %v2488
        %v2490 = vpop.f32.mrf.mxu0
        %2491 = vdwg.mxu0
        %v2492 = vld [vmem:[#allocation16] sm:$0xff]
        %v2493 = vld [vmem:[#allocation16 + $0x8] sm:$0xff]
        %v2494 = vld [vmem:[#allocation16 + $0x10] sm:$0xff]
        %v2495 = vld [vmem:[#allocation16 + $0x18] sm:$0xff]
        %v2496 = vld [vmem:[#allocation16 + $0x20] sm:$0xff]
        %v2497 = vld [vmem:[#allocation16 + $0x28] sm:$0xff]
        %v2498 = vld [vmem:[#allocation16 + $0x30] sm:$0xff]
        %v2499 = vld [vmem:[#allocation16 + $0x38] sm:$0xff]
        %v2500 = vld [vmem:[#allocation16 + $0x40] sm:$0xff]
        %v2501 = vld [vmem:[#allocation16 + $0x48] sm:$0xff]
        %v2502 = vld [vmem:[#allocation16 + $0x50] sm:$0xff]
        %v2503 = vld [vmem:[#allocation16 + $0x58] sm:$0xff]
        %v2504 = vld [vmem:[#allocation16 + $0x60] sm:$0xff]
        %v2505 = vld [vmem:[#allocation16 + $0x68] sm:$0xff]
        %v2506 = vld [vmem:[#allocation16 + $0x70] sm:$0xff]
        %v2507 = vld [vmem:[#allocation16 + $0x78] sm:$0xff]
        %v2508 = vmul.f32 %v2489, %v2489
        %2509 = vadd.xlane.f32.xlu0 %v2508
        %v2510 = vpop.xlane.xlu0 %2509
        %2511 = vmatpush.xpose.msra.mxu0 %v2507
        %2512 = vmatpush.xpose.msra.mxu0 %v2506
        %2513 = vmatpush.xpose.msra.mxu0 %v2505
        %2514 = vmatpush.xpose.msra.mxu0 %v2504
        %2515 = vmatpush.xpose.msra.mxu0 %v2503
        %2516 = vmatpush.xpose.msra.mxu0 %v2502
        %2517 = vmatpush.xpose.msra.mxu0 %v2501
        %2518 = vmatpush.xpose.msra.mxu0 %v2500
        %2519 = vmatpush.xpose.msra.mxu0 %v2499
        %2520 = vmatpush.xpose.msra.mxu0 %v2498
        %2521 = vmatpush.xpose.msra.mxu0 %v2497
        %2522 = vmatpush.xpose.msra.mxu0 %v2496
        %2523 = vmatpush.xpose.msra.mxu0 %v2495
        %2524 = vmatpush.xpose.msra.mxu0 %v2494
        %2525 = vmatpush.xpose.msra.mxu0 %v2493
        %2526 = vmatpush.xpose.msra.mxu0 %v2492
        %2527 = vmatmul.f32.gmra.mxu0 %v2489
        %v2528 = vpop.f32.mrf.mxu0
        %v2529 = vadd.f32 0.0, %v2528
        %2530 = vdwg.mxu0
        %v2531 = vld [vmem:[%s10] sm:$0x1]
        %v2533 = vperm.slane %v2531, 0
        %v2535 = vadd.f32 %v2510, %v2533
        %v2536 = vmul.f32 %v2529, 2.0
        %v2537 = vsub.f32 %v2535, %v2536
        %v2538 = vlaneseq
        %v2539 = vand.u32 %v2538, 127
        %vm2540 = vcmp.lt.s32.totalorder %v2539, 16
        %v2541 = vsel %vm2540, %v2537, 1e+30
        %2542 = vmin.xlane.f32.xlu0 %v2541
        %v2543 = vpop.xlane.xlu0 %2542
        %vm2544 = vcmp.le.f32.partialorder %v2541, %v2543
        %v2545 = vsel %vm2544, %v2539, 128
        %v2546 = vand.u32 %v2545, 65535
        %v2547 = vshra.s32 %v2545, 16
        %v2548 = vcvt.s32.f32 %v2546
        %v2549 = vcvt.s32.f32 %v2547
        %2550 = vmin.xlane.f32.xlu0 %v2549
        %v2551 = vpop.xlane.xlu0 %2550
        %vm2552 = vcmp.eq.f32.partialorder %v2549, %v2551
        %v2553 = vsel %vm2552, %v2548, inf
        %2554 = vmin.xlane.f32.xlu0 %v2553
        %v2555 = vpop.xlane.xlu0 %2554
        %v2556 = vcvt.f32.s32 %v2555
        %v2557 = vcvt.f32.s32 %v2551
        %v2558 = vshll.u32 %v2557, 16
        %v2559 = vadd.s32 %v2558, %v2556
        %vm2560 = vcmp.eq.s32.totalorder %v2539, %v2559
        %v2561 = vsel %vm2560, 1, 0
        %v2562 = vcvt.s32.f32 %v2561
        %2563 = vmatpush.msra.mxu0 %v2507
        %2564 = vmatpush.msra.mxu0 %v2506
        %2565 = vmatpush.msra.mxu0 %v2505
        %2566 = vmatpush.msra.mxu0 %v2504
        %2567 = vmatpush.msra.mxu0 %v2503
        %2568 = vmatpush.msra.mxu0 %v2502
        %2569 = vmatpush.msra.mxu0 %v2501
        %2570 = vmatpush.msra.mxu0 %v2500
        %2571 = vmatpush.msra.mxu0 %v2499
        %2572 = vmatpush.msra.mxu0 %v2498
        %2573 = vmatpush.msra.mxu0 %v2497
        %2574 = vmatpush.msra.mxu0 %v2496
        %2575 = vmatpush.msra.mxu0 %v2495
        %2576 = vmatpush.msra.mxu0 %v2494
        %2577 = vmatpush.msra.mxu0 %v2493
        %2578 = vmatpush.msra.mxu0 %v2492
        %2579 = vmatmul.f32.gmra.mxu0 %v2562
        %v2580 = vpop.f32.mrf.mxu0
        %v2581 = vadd.f32 0.0, %v2580
        %2582 = vdwg.mxu0
        %v2583 = vpack.c.bf16 %v2581, %v2581
        %v2584 = vld [vmem:[#allocation11] sm:$0xff]
        %v2585 = vld [vmem:[#allocation11 + $0x8] sm:$0xff]
        %v2586 = vld [vmem:[#allocation11 + $0x10] sm:$0xff]
        %v2587 = vld [vmem:[#allocation11 + $0x18] sm:$0xff]
        %v2588 = vld [vmem:[#allocation11 + $0x20] sm:$0xff]
        %v2589 = vld [vmem:[#allocation11 + $0x28] sm:$0xff]
        %v2590 = vld [vmem:[#allocation11 + $0x30] sm:$0xff]
        %v2591 = vld [vmem:[#allocation11 + $0x38] sm:$0xff]
        %v2592 = vld [vmem:[#allocation11 + $0x40] sm:$0xff]
        %v2593 = vld [vmem:[#allocation11 + $0x48] sm:$0xff]
        %v2594 = vld [vmem:[#allocation11 + $0x50] sm:$0xff]
        %v2595 = vld [vmem:[#allocation11 + $0x58] sm:$0xff]
        %v2596 = vld [vmem:[#allocation11 + $0x60] sm:$0xff]
        %v2597 = vld [vmem:[#allocation11 + $0x68] sm:$0xff]
        %v2598 = vld [vmem:[#allocation11 + $0x70] sm:$0xff]
        %v2599 = vld [vmem:[#allocation11 + $0x78] sm:$0xff]
        %v2600 = vld [vmem:[#allocation11 + $0x80] sm:$0xff]
        %v2601 = vld [vmem:[#allocation11 + $0x88] sm:$0xff]
        %v2602 = vld [vmem:[#allocation11 + $0x90] sm:$0xff]
        %v2603 = vld [vmem:[#allocation11 + $0x98] sm:$0xff]
        %v2604 = vld [vmem:[#allocation11 + $0xa0] sm:$0xff]
        %v2605 = vld [vmem:[#allocation11 + $0xa8] sm:$0xff]
        %v2606 = vld [vmem:[#allocation11 + $0xb0] sm:$0xff]
        %v2607 = vld [vmem:[#allocation11 + $0xb8] sm:$0xff]
        %v2608 = vld [vmem:[#allocation11 + $0xc0] sm:$0xff]
        %v2609 = vld [vmem:[#allocation11 + $0xc8] sm:$0xff]
        %v2610 = vld [vmem:[#allocation11 + $0xd0] sm:$0xff]
        %v2611 = vld [vmem:[#allocation11 + $0xd8] sm:$0xff]
        %v2612 = vld [vmem:[#allocation11 + $0xe0] sm:$0xff]
        %v2613 = vld [vmem:[#allocation11 + $0xe8] sm:$0xff]
        %v2614 = vld [vmem:[#allocation11 + $0xf0] sm:$0xff]
        %v2615 = vld [vmem:[#allocation11 + $0xf8] sm:$0xff]
        %v2616 = vld [vmem:[#allocation13] sm:$0xf]
        %v2618 = vperm.slane %v2616, 0
        %v2619 = vperm.slane %v2616, 1
        %v2620 = vperm.slane %v2616, 2
        %v2621 = vperm.slane %v2616, 3
        %v2658 = vunpack.c.l.b16 %v2584
        %v2659 = vunpack.c.h.b16 %v2584
        %v2660 = vunpack.c.l.b16 %v2585
        %v2661 = vunpack.c.h.b16 %v2585
        %v2662 = vunpack.c.l.b16 %v2586
        %v2663 = vunpack.c.h.b16 %v2586
        %v2664 = vunpack.c.l.b16 %v2587
        %v2665 = vunpack.c.h.b16 %v2587
        %v2666 = vunpack.c.l.b16 %v2588
        %v2667 = vunpack.c.h.b16 %v2588
        %v2668 = vunpack.c.l.b16 %v2589
        %v2669 = vunpack.c.h.b16 %v2589
        %v2670 = vunpack.c.l.b16 %v2590
        %v2671 = vunpack.c.h.b16 %v2590
        %v2672 = vunpack.c.l.b16 %v2591
        %v2673 = vunpack.c.h.b16 %v2591
        %v2674 = vunpack.c.l.b16 %v2592
        %v2675 = vunpack.c.h.b16 %v2592
        %v2676 = vunpack.c.l.b16 %v2593
        %v2677 = vunpack.c.h.b16 %v2593
        %v2678 = vunpack.c.l.b16 %v2594
        %v2679 = vunpack.c.h.b16 %v2594
        %v2680 = vunpack.c.l.b16 %v2595
        %v2681 = vunpack.c.h.b16 %v2595
        %v2682 = vunpack.c.l.b16 %v2596
        %v2683 = vunpack.c.h.b16 %v2596
        %v2684 = vunpack.c.l.b16 %v2597
        %v2685 = vunpack.c.h.b16 %v2597
        %v2686 = vunpack.c.l.b16 %v2598
        %v2687 = vunpack.c.h.b16 %v2598
        %v2688 = vunpack.c.l.b16 %v2599
        %v2689 = vunpack.c.h.b16 %v2599
        %v2690 = vunpack.c.l.b16 %v2600
        %v2691 = vunpack.c.h.b16 %v2600
        %v2692 = vunpack.c.l.b16 %v2601
        %v2693 = vunpack.c.h.b16 %v2601
        %v2694 = vunpack.c.l.b16 %v2602
        %v2695 = vunpack.c.h.b16 %v2602
        %v2696 = vunpack.c.l.b16 %v2603
        %v2697 = vunpack.c.h.b16 %v2603
        %v2698 = vunpack.c.l.b16 %v2604
        %v2699 = vunpack.c.h.b16 %v2604
        %v2700 = vunpack.c.l.b16 %v2605
        %v2701 = vunpack.c.h.b16 %v2605
        %v2702 = vunpack.c.l.b16 %v2606
        %v2703 = vunpack.c.h.b16 %v2606
        %v2704 = vunpack.c.l.b16 %v2607
        %v2705 = vunpack.c.h.b16 %v2607
        %v2706 = vunpack.c.l.b16 %v2608
        %v2707 = vunpack.c.h.b16 %v2608
        %v2708 = vunpack.c.l.b16 %v2609
        %v2709 = vunpack.c.h.b16 %v2609
        %v2710 = vunpack.c.l.b16 %v2610
        %v2711 = vunpack.c.h.b16 %v2610
        %v2712 = vunpack.c.l.b16 %v2611
        %v2713 = vunpack.c.h.b16 %v2611
        %v2714 = vunpack.c.l.b16 %v2612
        %v2715 = vunpack.c.h.b16 %v2612
        %v2716 = vunpack.c.l.b16 %v2613
        %v2717 = vunpack.c.h.b16 %v2613
        %v2718 = vunpack.c.l.b16 %v2614
        %v2719 = vunpack.c.h.b16 %v2614
        %v2720 = vunpack.c.l.b16 %v2615
        %v2721 = vunpack.c.h.b16 %v2615
        %v2722 = vpack.c.b16 %v2662, %v2658
        %v2723 = vpack.c.b16 %v2663, %v2659
        %v2724 = vpack.c.b16 %v2664, %v2660
        %v2725 = vpack.c.b16 %v2665, %v2661
        %v2726 = vpack.c.b16 %v2670, %v2666
        %v2727 = vpack.c.b16 %v2671, %v2667
        %v2728 = vpack.c.b16 %v2672, %v2668
        %v2729 = vpack.c.b16 %v2673, %v2669
        %v2730 = vpack.c.b16 %v2678, %v2674
        %v2731 = vpack.c.b16 %v2679, %v2675
        %v2732 = vpack.c.b16 %v2680, %v2676
        %v2733 = vpack.c.b16 %v2681, %v2677
        %v2734 = vpack.c.b16 %v2686, %v2682
        %v2735 = vpack.c.b16 %v2687, %v2683
        %v2736 = vpack.c.b16 %v2688, %v2684
        %v2737 = vpack.c.b16 %v2689, %v2685
        %v2738 = vpack.c.b16 %v2694, %v2690
        %v2739 = vpack.c.b16 %v2695, %v2691
        %v2740 = vpack.c.b16 %v2696, %v2692
        %v2741 = vpack.c.b16 %v2697, %v2693
        %v2742 = vpack.c.b16 %v2702, %v2698
        %v2743 = vpack.c.b16 %v2703, %v2699
        %v2744 = vpack.c.b16 %v2704, %v2700
        %v2745 = vpack.c.b16 %v2705, %v2701
        %v2746 = vpack.c.b16 %v2710, %v2706
        %v2747 = vpack.c.b16 %v2711, %v2707
        %v2748 = vpack.c.b16 %v2712, %v2708
        %v2749 = vpack.c.b16 %v2713, %v2709
        %v2750 = vpack.c.b16 %v2718, %v2714
        %v2751 = vpack.c.b16 %v2719, %v2715
        %v2752 = vpack.c.b16 %v2720, %v2716
        %v2753 = vpack.c.b16 %v2721, %v2717
        %2786 = vmatpush.bf16.msra.mxu0 %v2750
        %2787 = vmatpush.bf16.msra.mxu0 %v2746
        %2788 = vmatpush.bf16.msra.mxu0 %v2742
        %2789 = vmatpush.bf16.msra.mxu0 %v2738
        %2790 = vmatpush.bf16.msra.mxu0 %v2734
        %2791 = vmatpush.bf16.msra.mxu0 %v2730
        %2792 = vmatpush.bf16.msra.mxu0 %v2726
        %2793 = vmatpush.bf16.msra.mxu0 %v2722
        %2794 = vmatmul.bf16.gmra.mxu0 %v2583
        %v2795 = vpop.f32.mrf.mxu0
        %v2796 = vadd.f32 %v2618, %v2795
        %v2797 = vpop.f32.mrf.mxu0
        %2798 = vdwg.mxu0
        %2799 = vmatpush.bf16.msra.mxu0 %v2751
        %2800 = vmatpush.bf16.msra.mxu0 %v2747
        %2801 = vmatpush.bf16.msra.mxu0 %v2743
        %2802 = vmatpush.bf16.msra.mxu0 %v2739
        %2803 = vmatpush.bf16.msra.mxu0 %v2735
        %2804 = vmatpush.bf16.msra.mxu0 %v2731
        %2805 = vmatpush.bf16.msra.mxu0 %v2727
        %2806 = vmatpush.bf16.msra.mxu0 %v2723
        %2807 = vmatmul.bf16.gmra.mxu0 %v2583
        %v2808 = vpop.f32.mrf.mxu0
        %v2809 = vadd.f32 %v2619, %v2808
        %v2810 = vpop.f32.mrf.mxu0
        %2811 = vdwg.mxu0
        %2812 = vmatpush.bf16.msra.mxu0 %v2752
        %2813 = vmatpush.bf16.msra.mxu0 %v2748
        %2814 = vmatpush.bf16.msra.mxu0 %v2744
        %2815 = vmatpush.bf16.msra.mxu0 %v2740
        %2816 = vmatpush.bf16.msra.mxu0 %v2736
        %2817 = vmatpush.bf16.msra.mxu0 %v2732
        %2818 = vmatpush.bf16.msra.mxu0 %v2728
        %2819 = vmatpush.bf16.msra.mxu0 %v2724
        %2820 = vmatmul.bf16.gmra.mxu0 %v2583
        %v2821 = vpop.f32.mrf.mxu0
        %v2822 = vadd.f32 %v2620, %v2821
        %v2823 = vpop.f32.mrf.mxu0
        %2824 = vdwg.mxu0
        %2825 = vmatpush.bf16.msra.mxu0 %v2753
        %2826 = vmatpush.bf16.msra.mxu0 %v2749
        %2827 = vmatpush.bf16.msra.mxu0 %v2745
        %2828 = vmatpush.bf16.msra.mxu0 %v2741
        %2829 = vmatpush.bf16.msra.mxu0 %v2737
        %2830 = vmatpush.bf16.msra.mxu0 %v2733
        %2831 = vmatpush.bf16.msra.mxu0 %v2729
        %2832 = vmatpush.bf16.msra.mxu0 %v2725
        %2833 = vmatmul.bf16.gmra.mxu0 %v2583
        %v2834 = vpop.f32.mrf.mxu0
        %v2835 = vadd.f32 %v2621, %v2834
        %v2836 = vpop.f32.mrf.mxu0
        %2837 = vdwg.mxu0
        %v2838 = vmax.f32 %v2796, 0.0
        %v2839 = vmax.f32 %v2809, 0.0
        %v2840 = vmax.f32 %v2822, 0.0
        %v2841 = vmax.f32 %v2835, 0.0
        %v2842 = vpack.c.bf16 %v2838, %v2838
        %v2843 = vpack.c.bf16 %v2839, %v2839
        %v2844 = vpack.c.bf16 %v2840, %v2840
        %v2845 = vpack.c.bf16 %v2841, %v2841
        %v2846 = vld [vmem:[#allocation14] sm:$0xff]
        %v2847 = vld [vmem:[#allocation14 + $0x8] sm:$0xff]
        %v2848 = vld [vmem:[#allocation14 + $0x10] sm:$0xff]
        %v2849 = vld [vmem:[#allocation14 + $0x18] sm:$0xf]
        %v2850 = vld [vmem:[#allocation14 + $0x1c] sm:$0xff]
        %v2851 = vld [vmem:[#allocation14 + $0x24] sm:$0xff]
        %v2852 = vld [vmem:[#allocation14 + $0x2c] sm:$0xff]
        %v2853 = vld [vmem:[#allocation14 + $0x34] sm:$0xf]
        %v2854 = vld [vmem:[#allocation14 + $0x38] sm:$0xff]
        %v2855 = vld [vmem:[#allocation14 + $0x40] sm:$0xff]
        %v2856 = vld [vmem:[#allocation14 + $0x48] sm:$0xff]
        %v2857 = vld [vmem:[#allocation14 + $0x50] sm:$0xf]
        %v2858 = vld [vmem:[#allocation14 + $0x54] sm:$0xff]
        %v2859 = vld [vmem:[#allocation14 + $0x5c] sm:$0xff]
        %v2860 = vld [vmem:[#allocation14 + $0x64] sm:$0xff]
        %v2861 = vld [vmem:[#allocation14 + $0x6c] sm:$0xf]
        %v2862 = vld [vmem:[#allocation14 + $0x70] sm:$0xff]
        %v2863 = vld [vmem:[#allocation14 + $0x78] sm:$0xff]
        %v2864 = vld [vmem:[#allocation14 + $0x80] sm:$0xff]
        %v2865 = vld [vmem:[#allocation14 + $0x88] sm:$0xf]
        %v2866 = vld [vmem:[#allocation14 + $0x8c] sm:$0xff]
        %v2867 = vld [vmem:[#allocation14 + $0x94] sm:$0xff]
        %v2868 = vld [vmem:[#allocation14 + $0x9c] sm:$0xff]
        %v2869 = vld [vmem:[#allocation14 + $0xa4] sm:$0xf]
        %v2870 = vld [vmem:[#allocation14 + $0xa8] sm:$0xff]
        %v2871 = vld [vmem:[#allocation14 + $0xb0] sm:$0xff]
        %v2872 = vld [vmem:[#allocation14 + $0xb8] sm:$0xff]
        %v2873 = vld [vmem:[#allocation14 + $0xc0] sm:$0xf]
        %v2874 = vld [vmem:[#allocation14 + $0xc4] sm:$0xff]
        %v2875 = vld [vmem:[#allocation14 + $0xcc] sm:$0xff]
        %v2876 = vld [vmem:[#allocation14 + $0xd4] sm:$0xff]
        %v2877 = vld [vmem:[#allocation14 + $0xdc] sm:$0xf]
        %v2878 = vld [vmem:[#allocation14 + $0xe0] sm:$0xff]
        %v2879 = vld [vmem:[#allocation14 + $0xe8] sm:$0xff]
        %v2880 = vld [vmem:[#allocation14 + $0xf0] sm:$0xff]
        %v2881 = vld [vmem:[#allocation14 + $0xf8] sm:$0xf]
        %v2882 = vld [vmem:[#allocation14 + $0xfc] sm:$0xff]
        %v2883 = vld [vmem:[#allocation14 + $0x104] sm:$0xff]
        %v2884 = vld [vmem:[#allocation14 + $0x10c] sm:$0xff]
        %v2885 = vld [vmem:[#allocation14 + $0x114] sm:$0xf]
        %v2886 = vld [vmem:[#allocation14 + $0x118] sm:$0xff]
        %v2887 = vld [vmem:[#allocation14 + $0x120] sm:$0xff]
        %v2888 = vld [vmem:[#allocation14 + $0x128] sm:$0xff]
        %v2889 = vld [vmem:[#allocation14 + $0x130] sm:$0xf]
        %v2890 = vld [vmem:[#allocation14 + $0x134] sm:$0xff]
        %v2891 = vld [vmem:[#allocation14 + $0x13c] sm:$0xff]
        %v2892 = vld [vmem:[#allocation14 + $0x144] sm:$0xff]
        %v2893 = vld [vmem:[#allocation14 + $0x14c] sm:$0xf]
        %v2894 = vld [vmem:[#allocation14 + $0x150] sm:$0xff]
        %v2895 = vld [vmem:[#allocation14 + $0x158] sm:$0xff]
        %v2896 = vld [vmem:[#allocation14 + $0x160] sm:$0xff]
        %v2897 = vld [vmem:[#allocation14 + $0x168] sm:$0xf]
        %v2898 = vld [vmem:[#allocation14 + $0x16c] sm:$0xff]
        %v2899 = vld [vmem:[#allocation14 + $0x174] sm:$0xff]
        %v2900 = vld [vmem:[#allocation14 + $0x17c] sm:$0xff]
        %v2901 = vld [vmem:[#allocation14 + $0x184] sm:$0xf]
        %v2902 = vld [vmem:[#allocation14 + $0x188] sm:$0xff]
        %v2903 = vld [vmem:[#allocation14 + $0x190] sm:$0xff]
        %v2904 = vld [vmem:[#allocation14 + $0x198] sm:$0xff]
        %v2905 = vld [vmem:[#allocation14 + $0x1a0] sm:$0xf]
        %v2906 = vld [vmem:[#allocation14 + $0x1a4] sm:$0xff]
        %v2907 = vld [vmem:[#allocation14 + $0x1ac] sm:$0xff]
        %v2908 = vld [vmem:[#allocation14 + $0x1b4] sm:$0xff]
        %v2909 = vld [vmem:[#allocation14 + $0x1bc] sm:$0xf]
        %v2910 = vld [vmem:[#allocation14 + $0x1c0] sm:$0xff]
        %v2911 = vld [vmem:[#allocation14 + $0x1c8] sm:$0xff]
        %v2912 = vld [vmem:[#allocation14 + $0x1d0] sm:$0xff]
        %v2913 = vld [vmem:[#allocation14 + $0x1d8] sm:$0xf]
        %v2914 = vld [vmem:[#allocation14 + $0x1dc] sm:$0xff]
        %v2915 = vld [vmem:[#allocation14 + $0x1e4] sm:$0xff]
        %v2916 = vld [vmem:[#allocation14 + $0x1ec] sm:$0xff]
        %v2917 = vld [vmem:[#allocation14 + $0x1f4] sm:$0xf]
        %v2918 = vld [vmem:[#allocation14 + $0x1f8] sm:$0xff]
        %v2919 = vld [vmem:[#allocation14 + $0x200] sm:$0xff]
        %v2920 = vld [vmem:[#allocation14 + $0x208] sm:$0xff]
        %v2921 = vld [vmem:[#allocation14 + $0x210] sm:$0xf]
        %v2922 = vld [vmem:[#allocation14 + $0x214] sm:$0xff]
        %v2923 = vld [vmem:[#allocation14 + $0x21c] sm:$0xff]
        %v2924 = vld [vmem:[#allocation14 + $0x224] sm:$0xff]
        %v2925 = vld [vmem:[#allocation14 + $0x22c] sm:$0xf]
        %v2926 = vld [vmem:[#allocation14 + $0x230] sm:$0xff]
        %v2927 = vld [vmem:[#allocation14 + $0x238] sm:$0xff]
        %v2928 = vld [vmem:[#allocation14 + $0x240] sm:$0xff]
        %v2929 = vld [vmem:[#allocation14 + $0x248] sm:$0xf]
        %v2930 = vld [vmem:[#allocation14 + $0x24c] sm:$0xff]
        %v2931 = vld [vmem:[#allocation14 + $0x254] sm:$0xff]
        %v2932 = vld [vmem:[#allocation14 + $0x25c] sm:$0xff]
        %v2933 = vld [vmem:[#allocation14 + $0x264] sm:$0xf]
        %v2934 = vld [vmem:[#allocation14 + $0x268] sm:$0xff]
        %v2935 = vld [vmem:[#allocation14 + $0x270] sm:$0xff]
        %v2936 = vld [vmem:[#allocation14 + $0x278] sm:$0xff]
        %v2937 = vld [vmem:[#allocation14 + $0x280] sm:$0xf]
        %v2938 = vld [vmem:[#allocation14 + $0x284] sm:$0xff]
        %v2939 = vld [vmem:[#allocation14 + $0x28c] sm:$0xff]
        %v2940 = vld [vmem:[#allocation14 + $0x294] sm:$0xff]
        %v2941 = vld [vmem:[#allocation14 + $0x29c] sm:$0xf]
        %v2942 = vld [vmem:[#allocation14 + $0x2a0] sm:$0xff]
        %v2943 = vld [vmem:[#allocation14 + $0x2a8] sm:$0xff]
        %v2944 = vld [vmem:[#allocation14 + $0x2b0] sm:$0xff]
        %v2945 = vld [vmem:[#allocation14 + $0x2b8] sm:$0xf]
        %v2946 = vld [vmem:[#allocation14 + $0x2bc] sm:$0xff]
        %v2947 = vld [vmem:[#allocation14 + $0x2c4] sm:$0xff]
        %v2948 = vld [vmem:[#allocation14 + $0x2cc] sm:$0xff]
        %v2949 = vld [vmem:[#allocation14 + $0x2d4] sm:$0xf]
        %v2950 = vld [vmem:[#allocation14 + $0x2d8] sm:$0xff]
        %v2951 = vld [vmem:[#allocation14 + $0x2e0] sm:$0xff]
        %v2952 = vld [vmem:[#allocation14 + $0x2e8] sm:$0xff]
        %v2953 = vld [vmem:[#allocation14 + $0x2f0] sm:$0xf]
        %v2954 = vld [vmem:[#allocation14 + $0x2f4] sm:$0xff]
        %v2955 = vld [vmem:[#allocation14 + $0x2fc] sm:$0xff]
        %v2956 = vld [vmem:[#allocation14 + $0x304] sm:$0xff]
        %v2957 = vld [vmem:[#allocation14 + $0x30c] sm:$0xf]
        %v2958 = vld [vmem:[#allocation14 + $0x310] sm:$0xff]
        %v2959 = vld [vmem:[#allocation14 + $0x318] sm:$0xff]
        %v2960 = vld [vmem:[#allocation14 + $0x320] sm:$0xff]
        %v2961 = vld [vmem:[#allocation14 + $0x328] sm:$0xf]
        %v2962 = vld [vmem:[#allocation14 + $0x32c] sm:$0xff]
        %v2963 = vld [vmem:[#allocation14 + $0x334] sm:$0xff]
        %v2964 = vld [vmem:[#allocation14 + $0x33c] sm:$0xff]
        %v2965 = vld [vmem:[#allocation14 + $0x344] sm:$0xf]
        %v2966 = vld [vmem:[#allocation14 + $0x348] sm:$0xff]
        %v2967 = vld [vmem:[#allocation14 + $0x350] sm:$0xff]
        %v2968 = vld [vmem:[#allocation14 + $0x358] sm:$0xff]
        %v2969 = vld [vmem:[#allocation14 + $0x360] sm:$0xf]
        %v2970 = vld [vmem:[#allocation14 + $0x364] sm:$0xff]
        %v2971 = vld [vmem:[#allocation14 + $0x36c] sm:$0xff]
        %v2972 = vld [vmem:[#allocation14 + $0x374] sm:$0xff]
        %v2973 = vld [vmem:[#allocation14 + $0x37c] sm:$0xf]
        %v2974 = vld [vmem:[#allocation14 + $0x380] sm:$0xff]
        %v2975 = vld [vmem:[#allocation14 + $0x388] sm:$0xff]
        %v2976 = vld [vmem:[#allocation14 + $0x390] sm:$0xff]
        %v2977 = vld [vmem:[#allocation14 + $0x398] sm:$0xf]
        %v2978 = vld [vmem:[#allocation14 + $0x39c] sm:$0xff]
        %v2979 = vld [vmem:[#allocation14 + $0x3a4] sm:$0xff]
        %v2980 = vld [vmem:[#allocation14 + $0x3ac] sm:$0xff]
        %v2981 = vld [vmem:[#allocation14 + $0x3b4] sm:$0xf]
        %v2982 = vld [vmem:[#allocation14 + $0x3b8] sm:$0xff]
        %v2983 = vld [vmem:[#allocation14 + $0x3c0] sm:$0xff]
        %v2984 = vld [vmem:[#allocation14 + $0x3c8] sm:$0xff]
        %v2985 = vld [vmem:[#allocation14 + $0x3d0] sm:$0xf]
        %v2986 = vld [vmem:[#allocation14 + $0x3d4] sm:$0xff]
        %v2987 = vld [vmem:[#allocation14 + $0x3dc] sm:$0xff]
        %v2988 = vld [vmem:[#allocation14 + $0x3e4] sm:$0xff]
        %v2989 = vld [vmem:[#allocation14 + $0x3ec] sm:$0xf]
        %v2990 = vld [vmem:[#allocation14 + $0x3f0] sm:$0xff]
        %v2991 = vld [vmem:[#allocation14 + $0x3f8] sm:$0xff]
        %v2992 = vld [vmem:[#allocation14 + $0x400] sm:$0xff]
        %v2993 = vld [vmem:[#allocation14 + $0x408] sm:$0xf]
        %v2994 = vld [vmem:[#allocation14 + $0x40c] sm:$0xff]
        %v2995 = vld [vmem:[#allocation14 + $0x414] sm:$0xff]
        %v2996 = vld [vmem:[#allocation14 + $0x41c] sm:$0xff]
        %v2997 = vld [vmem:[#allocation14 + $0x424] sm:$0xf]
        %v2998 = vld [vmem:[#allocation14 + $0x428] sm:$0xff]
        %v2999 = vld [vmem:[#allocation14 + $0x430] sm:$0xff]
        %v3000 = vld [vmem:[#allocation14 + $0x438] sm:$0xff]
        %v3001 = vld [vmem:[#allocation14 + $0x440] sm:$0xf]
        %v3002 = vld [vmem:[#allocation14 + $0x444] sm:$0xff]
        %v3003 = vld [vmem:[#allocation14 + $0x44c] sm:$0xff]
        %v3004 = vld [vmem:[#allocation14 + $0x454] sm:$0xff]
        %v3005 = vld [vmem:[#allocation14 + $0x45c] sm:$0xf]
        %v3006 = vld [vmem:[#allocation14 + $0x460] sm:$0xff]
        %v3007 = vld [vmem:[#allocation14 + $0x468] sm:$0xff]
        %v3008 = vld [vmem:[#allocation14 + $0x470] sm:$0xff]
        %v3009 = vld [vmem:[#allocation14 + $0x478] sm:$0xf]
        %v3010 = vld [vmem:[#allocation14 + $0x47c] sm:$0xff]
        %v3011 = vld [vmem:[#allocation14 + $0x484] sm:$0xff]
        %v3012 = vld [vmem:[#allocation14 + $0x48c] sm:$0xff]
        %v3013 = vld [vmem:[#allocation14 + $0x494] sm:$0xf]
        %v3014 = vld [vmem:[#allocation14 + $0x498] sm:$0xff]
        %v3015 = vld [vmem:[#allocation14 + $0x4a0] sm:$0xff]
        %v3016 = vld [vmem:[#allocation14 + $0x4a8] sm:$0xff]
        %v3017 = vld [vmem:[#allocation14 + $0x4b0] sm:$0xf]
        %v3018 = vld [vmem:[#allocation14 + $0x4b4] sm:$0xff]
        %v3019 = vld [vmem:[#allocation14 + $0x4bc] sm:$0xff]
        %v3020 = vld [vmem:[#allocation14 + $0x4c4] sm:$0xff]
        %v3021 = vld [vmem:[#allocation14 + $0x4cc] sm:$0xf]
        %v3022 = vld [vmem:[#allocation14 + $0x4d0] sm:$0xff]
        %v3023 = vld [vmem:[#allocation14 + $0x4d8] sm:$0xff]
        %v3024 = vld [vmem:[#allocation14 + $0x4e0] sm:$0xff]
        %v3025 = vld [vmem:[#allocation14 + $0x4e8] sm:$0xf]
        %v3026 = vld [vmem:[#allocation14 + $0x4ec] sm:$0xff]
        %v3027 = vld [vmem:[#allocation14 + $0x4f4] sm:$0xff]
        %v3028 = vld [vmem:[#allocation14 + $0x4fc] sm:$0xff]
        %v3029 = vld [vmem:[#allocation14 + $0x504] sm:$0xf]
        %v3030 = vld [vmem:[#allocation14 + $0x508] sm:$0xff]
        %v3031 = vld [vmem:[#allocation14 + $0x510] sm:$0xff]
        %v3032 = vld [vmem:[#allocation14 + $0x518] sm:$0xff]
        %v3033 = vld [vmem:[#allocation14 + $0x520] sm:$0xf]
        %v3034 = vld [vmem:[#allocation14 + $0x524] sm:$0xff]
        %v3035 = vld [vmem:[#allocation14 + $0x52c] sm:$0xff]
        %v3036 = vld [vmem:[#allocation14 + $0x534] sm:$0xff]
        %v3037 = vld [vmem:[#allocation14 + $0x53c] sm:$0xf]
        %v3038 = vld [vmem:[#allocation14 + $0x540] sm:$0xff]
        %v3039 = vld [vmem:[#allocation14 + $0x548] sm:$0xff]
        %v3040 = vld [vmem:[#allocation14 + $0x550] sm:$0xff]
        %v3041 = vld [vmem:[#allocation14 + $0x558] sm:$0xf]
        %v3042 = vld [vmem:[#allocation14 + $0x55c] sm:$0xff]
        %v3043 = vld [vmem:[#allocation14 + $0x564] sm:$0xff]
        %v3044 = vld [vmem:[#allocation14 + $0x56c] sm:$0xff]
        %v3045 = vld [vmem:[#allocation14 + $0x574] sm:$0xf]
        %v3046 = vld [vmem:[#allocation14 + $0x578] sm:$0xff]
        %v3047 = vld [vmem:[#allocation14 + $0x580] sm:$0xff]
        %v3048 = vld [vmem:[#allocation14 + $0x588] sm:$0xff]
        %v3049 = vld [vmem:[#allocation14 + $0x590] sm:$0xf]
        %v3050 = vld [vmem:[#allocation14 + $0x594] sm:$0xff]
        %v3051 = vld [vmem:[#allocation14 + $0x59c] sm:$0xff]
        %v3052 = vld [vmem:[#allocation14 + $0x5a4] sm:$0xff]
        %v3053 = vld [vmem:[#allocation14 + $0x5ac] sm:$0xf]
        %v3054 = vld [vmem:[#allocation14 + $0x5b0] sm:$0xff]
        %v3055 = vld [vmem:[#allocation14 + $0x5b8] sm:$0xff]
        %v3056 = vld [vmem:[#allocation14 + $0x5c0] sm:$0xff]
        %v3057 = vld [vmem:[#allocation14 + $0x5c8] sm:$0xf]
        %v3058 = vld [vmem:[#allocation14 + $0x5cc] sm:$0xff]
        %v3059 = vld [vmem:[#allocation14 + $0x5d4] sm:$0xff]
        %v3060 = vld [vmem:[#allocation14 + $0x5dc] sm:$0xff]
        %v3061 = vld [vmem:[#allocation14 + $0x5e4] sm:$0xf]
        %v3062 = vld [vmem:[#allocation14 + $0x5e8] sm:$0xff]
        %v3063 = vld [vmem:[#allocation14 + $0x5f0] sm:$0xff]
        %v3064 = vld [vmem:[#allocation14 + $0x5f8] sm:$0xff]
        %v3065 = vld [vmem:[#allocation14 + $0x600] sm:$0xf]
        %v3066 = vld [vmem:[#allocation14 + $0x604] sm:$0xff]
        %v3067 = vld [vmem:[#allocation14 + $0x60c] sm:$0xff]
        %v3068 = vld [vmem:[#allocation14 + $0x614] sm:$0xff]
        %v3069 = vld [vmem:[#allocation14 + $0x61c] sm:$0xf]
        %v3070 = vld [vmem:[#allocation14 + $0x620] sm:$0xff]
        %v3071 = vld [vmem:[#allocation14 + $0x628] sm:$0xff]
        %v3072 = vld [vmem:[#allocation14 + $0x630] sm:$0xff]
        %v3073 = vld [vmem:[#allocation14 + $0x638] sm:$0xf]
        %v3074 = vld [vmem:[#allocation14 + $0x63c] sm:$0xff]
        %v3075 = vld [vmem:[#allocation14 + $0x644] sm:$0xff]
        %v3076 = vld [vmem:[#allocation14 + $0x64c] sm:$0xff]
        %v3077 = vld [vmem:[#allocation14 + $0x654] sm:$0xf]
        %v3078 = vld [vmem:[#allocation14 + $0x658] sm:$0xff]
        %v3079 = vld [vmem:[#allocation14 + $0x660] sm:$0xff]
        %v3080 = vld [vmem:[#allocation14 + $0x668] sm:$0xff]
        %v3081 = vld [vmem:[#allocation14 + $0x670] sm:$0xf]
        %v3082 = vld [vmem:[#allocation14 + $0x674] sm:$0xff]
        %v3083 = vld [vmem:[#allocation14 + $0x67c] sm:$0xff]
        %v3084 = vld [vmem:[#allocation14 + $0x684] sm:$0xff]
        %v3085 = vld [vmem:[#allocation14 + $0x68c] sm:$0xf]
        %v3086 = vld [vmem:[#allocation14 + $0x690] sm:$0xff]
        %v3087 = vld [vmem:[#allocation14 + $0x698] sm:$0xff]
        %v3088 = vld [vmem:[#allocation14 + $0x6a0] sm:$0xff]
        %v3089 = vld [vmem:[#allocation14 + $0x6a8] sm:$0xf]
        %v3090 = vld [vmem:[#allocation14 + $0x6ac] sm:$0xff]
        %v3091 = vld [vmem:[#allocation14 + $0x6b4] sm:$0xff]
        %v3092 = vld [vmem:[#allocation14 + $0x6bc] sm:$0xff]
        %v3093 = vld [vmem:[#allocation14 + $0x6c4] sm:$0xf]
        %v3094 = vld [vmem:[#allocation14 + $0x6c8] sm:$0xff]
        %v3095 = vld [vmem:[#allocation14 + $0x6d0] sm:$0xff]
        %v3096 = vld [vmem:[#allocation14 + $0x6d8] sm:$0xff]
        %v3097 = vld [vmem:[#allocation14 + $0x6e0] sm:$0xf]
        %v3098 = vld [vmem:[#allocation14 + $0x6e4] sm:$0xff]
        %v3099 = vld [vmem:[#allocation14 + $0x6ec] sm:$0xff]
        %v3100 = vld [vmem:[#allocation14 + $0x6f4] sm:$0xff]
        %v3101 = vld [vmem:[#allocation14 + $0x6fc] sm:$0xf]
        %v3102 = vld [vmem:[%s8] sm:$0xff]
        %v3104 = vperm.slane %v3102, 0
        %v3105 = vperm.slane %v3102, 1
        %v3106 = vperm.slane %v3102, 2
        %v3107 = vperm.slane %v3102, 3
        %v3108 = vperm.slane %v3102, 4
        %v3109 = vperm.slane %v3102, 5
        %v3110 = vperm.slane %v3102, 6
        %v3374 = vunpack.c.l.b16 %v2846
        %v3375 = vunpack.c.h.b16 %v2846
        %v3376 = vunpack.c.l.b16 %v2847
        %v3377 = vunpack.c.h.b16 %v2847
        %v3378 = vunpack.c.l.b16 %v2848
        %v3379 = vunpack.c.h.b16 %v2848
        %v3380 = vunpack.c.l.b16 %v2849
        %v3381 = vunpack.c.l.b16 %v2850
        %v3382 = vunpack.c.h.b16 %v2850
        %v3383 = vunpack.c.l.b16 %v2851
        %v3384 = vunpack.c.h.b16 %v2851
        %v3385 = vunpack.c.l.b16 %v2852
        %v3386 = vunpack.c.h.b16 %v2852
        %v3387 = vunpack.c.l.b16 %v2853
        %v3388 = vunpack.c.l.b16 %v2854
        %v3389 = vunpack.c.h.b16 %v2854
        %v3390 = vunpack.c.l.b16 %v2855
        %v3391 = vunpack.c.h.b16 %v2855
        %v3392 = vunpack.c.l.b16 %v2856
        %v3393 = vunpack.c.h.b16 %v2856
        %v3394 = vunpack.c.l.b16 %v2857
        %v3395 = vunpack.c.l.b16 %v2858
        %v3396 = vunpack.c.h.b16 %v2858
        %v3397 = vunpack.c.l.b16 %v2859
        %v3398 = vunpack.c.h.b16 %v2859
        %v3399 = vunpack.c.l.b16 %v2860
        %v3400 = vunpack.c.h.b16 %v2860
        %v3401 = vunpack.c.l.b16 %v2861
        %v3402 = vunpack.c.l.b16 %v2862
        %v3403 = vunpack.c.h.b16 %v2862
        %v3404 = vunpack.c.l.b16 %v2863
        %v3405 = vunpack.c.h.b16 %v2863
        %v3406 = vunpack.c.l.b16 %v2864
        %v3407 = vunpack.c.h.b16 %v2864
        %v3408 = vunpack.c.l.b16 %v2865
        %v3409 = vunpack.c.l.b16 %v2866
        %v3410 = vunpack.c.h.b16 %v2866
        %v3411 = vunpack.c.l.b16 %v2867
        %v3412 = vunpack.c.h.b16 %v2867
        %v3413 = vunpack.c.l.b16 %v2868
        %v3414 = vunpack.c.h.b16 %v2868
        %v3415 = vunpack.c.l.b16 %v2869
        %v3416 = vunpack.c.l.b16 %v2870
        %v3417 = vunpack.c.h.b16 %v2870
        %v3418 = vunpack.c.l.b16 %v2871
        %v3419 = vunpack.c.h.b16 %v2871
        %v3420 = vunpack.c.l.b16 %v2872
        %v3421 = vunpack.c.h.b16 %v2872
        %v3422 = vunpack.c.l.b16 %v2873
        %v3423 = vunpack.c.l.b16 %v2874
        %v3424 = vunpack.c.h.b16 %v2874
        %v3425 = vunpack.c.l.b16 %v2875
        %v3426 = vunpack.c.h.b16 %v2875
        %v3427 = vunpack.c.l.b16 %v2876
        %v3428 = vunpack.c.h.b16 %v2876
        %v3429 = vunpack.c.l.b16 %v2877
        %v3430 = vunpack.c.l.b16 %v2878
        %v3431 = vunpack.c.h.b16 %v2878
        %v3432 = vunpack.c.l.b16 %v2879
        %v3433 = vunpack.c.h.b16 %v2879
        %v3434 = vunpack.c.l.b16 %v2880
        %v3435 = vunpack.c.h.b16 %v2880
        %v3436 = vunpack.c.l.b16 %v2881
        %v3437 = vunpack.c.l.b16 %v2882
        %v3438 = vunpack.c.h.b16 %v2882
        %v3439 = vunpack.c.l.b16 %v2883
        %v3440 = vunpack.c.h.b16 %v2883
        %v3441 = vunpack.c.l.b16 %v2884
        %v3442 = vunpack.c.h.b16 %v2884
        %v3443 = vunpack.c.l.b16 %v2885
        %v3444 = vunpack.c.l.b16 %v2886
        %v3445 = vunpack.c.h.b16 %v2886
        %v3446 = vunpack.c.l.b16 %v2887
        %v3447 = vunpack.c.h.b16 %v2887
        %v3448 = vunpack.c.l.b16 %v2888
        %v3449 = vunpack.c.h.b16 %v2888
        %v3450 = vunpack.c.l.b16 %v2889
        %v3451 = vunpack.c.l.b16 %v2890
        %v3452 = vunpack.c.h.b16 %v2890
        %v3453 = vunpack.c.l.b16 %v2891
        %v3454 = vunpack.c.h.b16 %v2891
        %v3455 = vunpack.c.l.b16 %v2892
        %v3456 = vunpack.c.h.b16 %v2892
        %v3457 = vunpack.c.l.b16 %v2893
        %v3458 = vunpack.c.l.b16 %v2894
        %v3459 = vunpack.c.h.b16 %v2894
        %v3460 = vunpack.c.l.b16 %v2895
        %v3461 = vunpack.c.h.b16 %v2895
        %v3462 = vunpack.c.l.b16 %v2896
        %v3463 = vunpack.c.h.b16 %v2896
        %v3464 = vunpack.c.l.b16 %v2897
        %v3465 = vunpack.c.l.b16 %v2898
        %v3466 = vunpack.c.h.b16 %v2898
        %v3467 = vunpack.c.l.b16 %v2899
        %v3468 = vunpack.c.h.b16 %v2899
        %v3469 = vunpack.c.l.b16 %v2900
        %v3470 = vunpack.c.h.b16 %v2900
        %v3471 = vunpack.c.l.b16 %v2901
        %v3472 = vunpack.c.l.b16 %v2902
        %v3473 = vunpack.c.h.b16 %v2902
        %v3474 = vunpack.c.l.b16 %v2903
        %v3475 = vunpack.c.h.b16 %v2903
        %v3476 = vunpack.c.l.b16 %v2904
        %v3477 = vunpack.c.h.b16 %v2904
        %v3478 = vunpack.c.l.b16 %v2905
        %v3479 = vunpack.c.l.b16 %v2906
        %v3480 = vunpack.c.h.b16 %v2906
        %v3481 = vunpack.c.l.b16 %v2907
        %v3482 = vunpack.c.h.b16 %v2907
        %v3483 = vunpack.c.l.b16 %v2908
        %v3484 = vunpack.c.h.b16 %v2908
        %v3485 = vunpack.c.l.b16 %v2909
        %v3486 = vunpack.c.l.b16 %v2910
        %v3487 = vunpack.c.h.b16 %v2910
        %v3488 = vunpack.c.l.b16 %v2911
        %v3489 = vunpack.c.h.b16 %v2911
        %v3490 = vunpack.c.l.b16 %v2912
        %v3491 = vunpack.c.h.b16 %v2912
        %v3492 = vunpack.c.l.b16 %v2913
        %v3493 = vunpack.c.l.b16 %v2914
        %v3494 = vunpack.c.h.b16 %v2914
        %v3495 = vunpack.c.l.b16 %v2915
        %v3496 = vunpack.c.h.b16 %v2915
        %v3497 = vunpack.c.l.b16 %v2916
        %v3498 = vunpack.c.h.b16 %v2916
        %v3499 = vunpack.c.l.b16 %v2917
        %v3500 = vunpack.c.l.b16 %v2918
        %v3501 = vunpack.c.h.b16 %v2918
        %v3502 = vunpack.c.l.b16 %v2919
        %v3503 = vunpack.c.h.b16 %v2919
        %v3504 = vunpack.c.l.b16 %v2920
        %v3505 = vunpack.c.h.b16 %v2920
        %v3506 = vunpack.c.l.b16 %v2921
        %v3507 = vunpack.c.l.b16 %v2922
        %v3508 = vunpack.c.h.b16 %v2922
        %v3509 = vunpack.c.l.b16 %v2923
        %v3510 = vunpack.c.h.b16 %v2923
        %v3511 = vunpack.c.l.b16 %v2924
        %v3512 = vunpack.c.h.b16 %v2924
        %v3513 = vunpack.c.l.b16 %v2925
        %v3514 = vunpack.c.l.b16 %v2926
        %v3515 = vunpack.c.h.b16 %v2926
        %v3516 = vunpack.c.l.b16 %v2927
        %v3517 = vunpack.c.h.b16 %v2927
        %v3518 = vunpack.c.l.b16 %v2928
        %v3519 = vunpack.c.h.b16 %v2928
        %v3520 = vunpack.c.l.b16 %v2929
        %v3521 = vunpack.c.l.b16 %v2930
        %v3522 = vunpack.c.h.b16 %v2930
        %v3523 = vunpack.c.l.b16 %v2931
        %v3524 = vunpack.c.h.b16 %v2931
        %v3525 = vunpack.c.l.b16 %v2932
        %v3526 = vunpack.c.h.b16 %v2932
        %v3527 = vunpack.c.l.b16 %v2933
        %v3528 = vunpack.c.l.b16 %v2934
        %v3529 = vunpack.c.h.b16 %v2934
        %v3530 = vunpack.c.l.b16 %v2935
        %v3531 = vunpack.c.h.b16 %v2935
        %v3532 = vunpack.c.l.b16 %v2936
        %v3533 = vunpack.c.h.b16 %v2936
        %v3534 = vunpack.c.l.b16 %v2937
        %v3535 = vunpack.c.l.b16 %v2938
        %v3536 = vunpack.c.h.b16 %v2938
        %v3537 = vunpack.c.l.b16 %v2939
        %v3538 = vunpack.c.h.b16 %v2939
        %v3539 = vunpack.c.l.b16 %v2940
        %v3540 = vunpack.c.h.b16 %v2940
        %v3541 = vunpack.c.l.b16 %v2941
        %v3542 = vunpack.c.l.b16 %v2942
        %v3543 = vunpack.c.h.b16 %v2942
        %v3544 = vunpack.c.l.b16 %v2943
        %v3545 = vunpack.c.h.b16 %v2943
        %v3546 = vunpack.c.l.b16 %v2944
        %v3547 = vunpack.c.h.b16 %v2944
        %v3548 = vunpack.c.l.b16 %v2945
        %v3549 = vunpack.c.l.b16 %v2946
        %v3550 = vunpack.c.h.b16 %v2946
        %v3551 = vunpack.c.l.b16 %v2947
        %v3552 = vunpack.c.h.b16 %v2947
        %v3553 = vunpack.c.l.b16 %v2948
        %v3554 = vunpack.c.h.b16 %v2948
        %v3555 = vunpack.c.l.b16 %v2949
        %v3556 = vunpack.c.l.b16 %v2950
        %v3557 = vunpack.c.h.b16 %v2950
        %v3558 = vunpack.c.l.b16 %v2951
        %v3559 = vunpack.c.h.b16 %v2951
        %v3560 = vunpack.c.l.b16 %v2952
        %v3561 = vunpack.c.h.b16 %v2952
        %v3562 = vunpack.c.l.b16 %v2953
        %v3563 = vunpack.c.l.b16 %v2954
        %v3564 = vunpack.c.h.b16 %v2954
        %v3565 = vunpack.c.l.b16 %v2955
        %v3566 = vunpack.c.h.b16 %v2955
        %v3567 = vunpack.c.l.b16 %v2956
        %v3568 = vunpack.c.h.b16 %v2956
        %v3569 = vunpack.c.l.b16 %v2957
        %v3570 = vunpack.c.l.b16 %v2958
        %v3571 = vunpack.c.h.b16 %v2958
        %v3572 = vunpack.c.l.b16 %v2959
        %v3573 = vunpack.c.h.b16 %v2959
        %v3574 = vunpack.c.l.b16 %v2960
        %v3575 = vunpack.c.h.b16 %v2960
        %v3576 = vunpack.c.l.b16 %v2961
        %v3577 = vunpack.c.l.b16 %v2962
        %v3578 = vunpack.c.h.b16 %v2962
        %v3579 = vunpack.c.l.b16 %v2963
        %v3580 = vunpack.c.h.b16 %v2963
        %v3581 = vunpack.c.l.b16 %v2964
        %v3582 = vunpack.c.h.b16 %v2964
        %v3583 = vunpack.c.l.b16 %v2965
        %v3584 = vunpack.c.l.b16 %v2966
        %v3585 = vunpack.c.h.b16 %v2966
        %v3586 = vunpack.c.l.b16 %v2967
        %v3587 = vunpack.c.h.b16 %v2967
        %v3588 = vunpack.c.l.b16 %v2968
        %v3589 = vunpack.c.h.b16 %v2968
        %v3590 = vunpack.c.l.b16 %v2969
        %v3591 = vunpack.c.l.b16 %v2970
        %v3592 = vunpack.c.h.b16 %v2970
        %v3593 = vunpack.c.l.b16 %v2971
        %v3594 = vunpack.c.h.b16 %v2971
        %v3595 = vunpack.c.l.b16 %v2972
        %v3596 = vunpack.c.h.b16 %v2972
        %v3597 = vunpack.c.l.b16 %v2973
        %v3598 = vunpack.c.l.b16 %v2974
        %v3599 = vunpack.c.h.b16 %v2974
        %v3600 = vunpack.c.l.b16 %v2975
        %v3601 = vunpack.c.h.b16 %v2975
        %v3602 = vunpack.c.l.b16 %v2976
        %v3603 = vunpack.c.h.b16 %v2976
        %v3604 = vunpack.c.l.b16 %v2977
        %v3605 = vunpack.c.l.b16 %v2978
        %v3606 = vunpack.c.h.b16 %v2978
        %v3607 = vunpack.c.l.b16 %v2979
        %v3608 = vunpack.c.h.b16 %v2979
        %v3609 = vunpack.c.l.b16 %v2980
        %v3610 = vunpack.c.h.b16 %v2980
        %v3611 = vunpack.c.l.b16 %v2981
        %v3612 = vunpack.c.l.b16 %v2982
        %v3613 = vunpack.c.h.b16 %v2982
        %v3614 = vunpack.c.l.b16 %v2983
        %v3615 = vunpack.c.h.b16 %v2983
        %v3616 = vunpack.c.l.b16 %v2984
        %v3617 = vunpack.c.h.b16 %v2984
        %v3618 = vunpack.c.l.b16 %v2985
        %v3619 = vunpack.c.l.b16 %v2986
        %v3620 = vunpack.c.h.b16 %v2986
        %v3621 = vunpack.c.l.b16 %v2987
        %v3622 = vunpack.c.h.b16 %v2987
        %v3623 = vunpack.c.l.b16 %v2988
        %v3624 = vunpack.c.h.b16 %v2988
        %v3625 = vunpack.c.l.b16 %v2989
        %v3626 = vunpack.c.l.b16 %v2990
        %v3627 = vunpack.c.h.b16 %v2990
        %v3628 = vunpack.c.l.b16 %v2991
        %v3629 = vunpack.c.h.b16 %v2991
        %v3630 = vunpack.c.l.b16 %v2992
        %v3631 = vunpack.c.h.b16 %v2992
        %v3632 = vunpack.c.l.b16 %v2993
        %v3633 = vunpack.c.l.b16 %v2994
        %v3634 = vunpack.c.h.b16 %v2994
        %v3635 = vunpack.c.l.b16 %v2995
        %v3636 = vunpack.c.h.b16 %v2995
        %v3637 = vunpack.c.l.b16 %v2996
        %v3638 = vunpack.c.h.b16 %v2996
        %v3639 = vunpack.c.l.b16 %v2997
        %v3640 = vunpack.c.l.b16 %v2998
        %v3641 = vunpack.c.h.b16 %v2998
        %v3642 = vunpack.c.l.b16 %v2999
        %v3643 = vunpack.c.h.b16 %v2999
        %v3644 = vunpack.c.l.b16 %v3000
        %v3645 = vunpack.c.h.b16 %v3000
        %v3646 = vunpack.c.l.b16 %v3001
        %v3647 = vunpack.c.l.b16 %v3002
        %v3648 = vunpack.c.h.b16 %v3002
        %v3649 = vunpack.c.l.b16 %v3003
        %v3650 = vunpack.c.h.b16 %v3003
        %v3651 = vunpack.c.l.b16 %v3004
        %v3652 = vunpack.c.h.b16 %v3004
        %v3653 = vunpack.c.l.b16 %v3005
        %v3654 = vunpack.c.l.b16 %v3006
        %v3655 = vunpack.c.h.b16 %v3006
        %v3656 = vunpack.c.l.b16 %v3007
        %v3657 = vunpack.c.h.b16 %v3007
        %v3658 = vunpack.c.l.b16 %v3008
        %v3659 = vunpack.c.h.b16 %v3008
        %v3660 = vunpack.c.l.b16 %v3009
        %v3661 = vunpack.c.l.b16 %v3010
        %v3662 = vunpack.c.h.b16 %v3010
        %v3663 = vunpack.c.l.b16 %v3011
        %v3664 = vunpack.c.h.b16 %v3011
        %v3665 = vunpack.c.l.b16 %v3012
        %v3666 = vunpack.c.h.b16 %v3012
        %v3667 = vunpack.c.l.b16 %v3013
        %v3668 = vunpack.c.l.b16 %v3014
        %v3669 = vunpack.c.h.b16 %v3014
        %v3670 = vunpack.c.l.b16 %v3015
        %v3671 = vunpack.c.h.b16 %v3015
        %v3672 = vunpack.c.l.b16 %v3016
        %v3673 = vunpack.c.h.b16 %v3016
        %v3674 = vunpack.c.l.b16 %v3017
        %v3675 = vunpack.c.l.b16 %v3018
        %v3676 = vunpack.c.h.b16 %v3018
        %v3677 = vunpack.c.l.b16 %v3019
        %v3678 = vunpack.c.h.b16 %v3019
        %v3679 = vunpack.c.l.b16 %v3020
        %v3680 = vunpack.c.h.b16 %v3020
        %v3681 = vunpack.c.l.b16 %v3021
        %v3682 = vunpack.c.l.b16 %v3022
        %v3683 = vunpack.c.h.b16 %v3022
        %v3684 = vunpack.c.l.b16 %v3023
        %v3685 = vunpack.c.h.b16 %v3023
        %v3686 = vunpack.c.l.b16 %v3024
        %v3687 = vunpack.c.h.b16 %v3024
        %v3688 = vunpack.c.l.b16 %v3025
        %v3689 = vunpack.c.l.b16 %v3026
        %v3690 = vunpack.c.h.b16 %v3026
        %v3691 = vunpack.c.l.b16 %v3027
        %v3692 = vunpack.c.h.b16 %v3027
        %v3693 = vunpack.c.l.b16 %v3028
        %v3694 = vunpack.c.h.b16 %v3028
        %v3695 = vunpack.c.l.b16 %v3029
        %v3696 = vunpack.c.l.b16 %v3030
        %v3697 = vunpack.c.h.b16 %v3030
        %v3698 = vunpack.c.l.b16 %v3031
        %v3699 = vunpack.c.h.b16 %v3031
        %v3700 = vunpack.c.l.b16 %v3032
        %v3701 = vunpack.c.h.b16 %v3032
        %v3702 = vunpack.c.l.b16 %v3033
        %v3703 = vunpack.c.l.b16 %v3034
        %v3704 = vunpack.c.h.b16 %v3034
        %v3705 = vunpack.c.l.b16 %v3035
        %v3706 = vunpack.c.h.b16 %v3035
        %v3707 = vunpack.c.l.b16 %v3036
        %v3708 = vunpack.c.h.b16 %v3036
        %v3709 = vunpack.c.l.b16 %v3037
        %v3710 = vunpack.c.l.b16 %v3038
        %v3711 = vunpack.c.h.b16 %v3038
        %v3712 = vunpack.c.l.b16 %v3039
        %v3713 = vunpack.c.h.b16 %v3039
        %v3714 = vunpack.c.l.b16 %v3040
        %v3715 = vunpack.c.h.b16 %v3040
        %v3716 = vunpack.c.l.b16 %v3041
        %v3717 = vunpack.c.l.b16 %v3042
        %v3718 = vunpack.c.h.b16 %v3042
        %v3719 = vunpack.c.l.b16 %v3043
        %v3720 = vunpack.c.h.b16 %v3043
        %v3721 = vunpack.c.l.b16 %v3044
        %v3722 = vunpack.c.h.b16 %v3044
        %v3723 = vunpack.c.l.b16 %v3045
        %v3724 = vunpack.c.l.b16 %v3046
        %v3725 = vunpack.c.h.b16 %v3046
        %v3726 = vunpack.c.l.b16 %v3047
        %v3727 = vunpack.c.h.b16 %v3047
        %v3728 = vunpack.c.l.b16 %v3048
        %v3729 = vunpack.c.h.b16 %v3048
        %v3730 = vunpack.c.l.b16 %v3049
        %v3731 = vunpack.c.l.b16 %v3050
        %v3732 = vunpack.c.h.b16 %v3050
        %v3733 = vunpack.c.l.b16 %v3051
        %v3734 = vunpack.c.h.b16 %v3051
        %v3735 = vunpack.c.l.b16 %v3052
        %v3736 = vunpack.c.h.b16 %v3052
        %v3737 = vunpack.c.l.b16 %v3053
        %v3738 = vunpack.c.l.b16 %v3054
        %v3739 = vunpack.c.h.b16 %v3054
        %v3740 = vunpack.c.l.b16 %v3055
        %v3741 = vunpack.c.h.b16 %v3055
        %v3742 = vunpack.c.l.b16 %v3056
        %v3743 = vunpack.c.h.b16 %v3056
        %v3744 = vunpack.c.l.b16 %v3057
        %v3745 = vunpack.c.l.b16 %v3058
        %v3746 = vunpack.c.h.b16 %v3058
        %v3747 = vunpack.c.l.b16 %v3059
        %v3748 = vunpack.c.h.b16 %v3059
        %v3749 = vunpack.c.l.b16 %v3060
        %v3750 = vunpack.c.h.b16 %v3060
        %v3751 = vunpack.c.l.b16 %v3061
        %v3752 = vunpack.c.l.b16 %v3062
        %v3753 = vunpack.c.h.b16 %v3062
        %v3754 = vunpack.c.l.b16 %v3063
        %v3755 = vunpack.c.h.b16 %v3063
        %v3756 = vunpack.c.l.b16 %v3064
        %v3757 = vunpack.c.h.b16 %v3064
        %v3758 = vunpack.c.l.b16 %v3065
        %v3759 = vunpack.c.l.b16 %v3066
        %v3760 = vunpack.c.h.b16 %v3066
        %v3761 = vunpack.c.l.b16 %v3067
        %v3762 = vunpack.c.h.b16 %v3067
        %v3763 = vunpack.c.l.b16 %v3068
        %v3764 = vunpack.c.h.b16 %v3068
        %v3765 = vunpack.c.l.b16 %v3069
        %v3766 = vunpack.c.l.b16 %v3070
        %v3767 = vunpack.c.h.b16 %v3070
        %v3768 = vunpack.c.l.b16 %v3071
        %v3769 = vunpack.c.h.b16 %v3071
        %v3770 = vunpack.c.l.b16 %v3072
        %v3771 = vunpack.c.h.b16 %v3072
        %v3772 = vunpack.c.l.b16 %v3073
        %v3773 = vunpack.c.l.b16 %v3074
        %v3774 = vunpack.c.h.b16 %v3074
        %v3775 = vunpack.c.l.b16 %v3075
        %v3776 = vunpack.c.h.b16 %v3075
        %v3777 = vunpack.c.l.b16 %v3076
        %v3778 = vunpack.c.h.b16 %v3076
        %v3779 = vunpack.c.l.b16 %v3077
        %v3780 = vunpack.c.l.b16 %v3078
        %v3781 = vunpack.c.h.b16 %v3078
        %v3782 = vunpack.c.l.b16 %v3079
        %v3783 = vunpack.c.h.b16 %v3079
        %v3784 = vunpack.c.l.b16 %v3080
        %v3785 = vunpack.c.h.b16 %v3080
        %v3786 = vunpack.c.l.b16 %v3081
        %v3787 = vunpack.c.l.b16 %v3082
        %v3788 = vunpack.c.h.b16 %v3082
        %v3789 = vunpack.c.l.b16 %v3083
        %v3790 = vunpack.c.h.b16 %v3083
        %v3791 = vunpack.c.l.b16 %v3084
        %v3792 = vunpack.c.h.b16 %v3084
        %v3793 = vunpack.c.l.b16 %v3085
        %v3794 = vunpack.c.l.b16 %v3086
        %v3795 = vunpack.c.h.b16 %v3086
        %v3796 = vunpack.c.l.b16 %v3087
        %v3797 = vunpack.c.h.b16 %v3087
        %v3798 = vunpack.c.l.b16 %v3088
        %v3799 = vunpack.c.h.b16 %v3088
        %v3800 = vunpack.c.l.b16 %v3089
        %v3801 = vunpack.c.l.b16 %v3090
        %v3802 = vunpack.c.h.b16 %v3090
        %v3803 = vunpack.c.l.b16 %v3091
        %v3804 = vunpack.c.h.b16 %v3091
        %v3805 = vunpack.c.l.b16 %v3092
        %v3806 = vunpack.c.h.b16 %v3092
        %v3807 = vunpack.c.l.b16 %v3093
        %v3808 = vunpack.c.l.b16 %v3094
        %v3809 = vunpack.c.h.b16 %v3094
        %v3810 = vunpack.c.l.b16 %v3095
        %v3811 = vunpack.c.h.b16 %v3095
        %v3812 = vunpack.c.l.b16 %v3096
        %v3813 = vunpack.c.h.b16 %v3096
        %v3814 = vunpack.c.l.b16 %v3097
        %v3815 = vunpack.c.l.b16 %v3098
        %v3816 = vunpack.c.h.b16 %v3098
        %v3817 = vunpack.c.l.b16 %v3099
        %v3818 = vunpack.c.h.b16 %v3099
        %v3819 = vunpack.c.l.b16 %v3100
        %v3820 = vunpack.c.h.b16 %v3100
        %v3821 = vunpack.c.l.b16 %v3101
        %v3822 = vpack.c.b16 %v3381, %v3374
        %v3823 = vpack.c.b16 %v3382, %v3375
        %v3824 = vpack.c.b16 %v3383, %v3376
        %v3825 = vpack.c.b16 %v3384, %v3377
        %v3826 = vpack.c.b16 %v3385, %v3378
        %v3827 = vpack.c.b16 %v3386, %v3379
        %v3828 = vpack.c.b16 %v3387, %v3380
        %v3829 = vpack.c.b16 %v3395, %v3388
        %v3830 = vpack.c.b16 %v3396, %v3389
        %v3831 = vpack.c.b16 %v3397, %v3390
        %v3832 = vpack.c.b16 %v3398, %v3391
        %v3833 = vpack.c.b16 %v3399, %v3392
        %v3834 = vpack.c.b16 %v3400, %v3393
        %v3835 = vpack.c.b16 %v3401, %v3394
        %v3836 = vpack.c.b16 %v3409, %v3402
        %v3837 = vpack.c.b16 %v3410, %v3403
        %v3838 = vpack.c.b16 %v3411, %v3404
        %v3839 = vpack.c.b16 %v3412, %v3405
        %v3840 = vpack.c.b16 %v3413, %v3406
        %v3841 = vpack.c.b16 %v3414, %v3407
        %v3842 = vpack.c.b16 %v3415, %v3408
        %v3843 = vpack.c.b16 %v3423, %v3416
        %v3844 = vpack.c.b16 %v3424, %v3417
        %v3845 = vpack.c.b16 %v3425, %v3418
        %v3846 = vpack.c.b16 %v3426, %v3419
        %v3847 = vpack.c.b16 %v3427, %v3420
        %v3848 = vpack.c.b16 %v3428, %v3421
        %v3849 = vpack.c.b16 %v3429, %v3422
        %v3850 = vpack.c.b16 %v3437, %v3430
        %v3851 = vpack.c.b16 %v3438, %v3431
        %v3852 = vpack.c.b16 %v3439, %v3432
        %v3853 = vpack.c.b16 %v3440, %v3433
        %v3854 = vpack.c.b16 %v3441, %v3434
        %v3855 = vpack.c.b16 %v3442, %v3435
        %v3856 = vpack.c.b16 %v3443, %v3436
        %v3857 = vpack.c.b16 %v3451, %v3444
        %v3858 = vpack.c.b16 %v3452, %v3445
        %v3859 = vpack.c.b16 %v3453, %v3446
        %v3860 = vpack.c.b16 %v3454, %v3447
        %v3861 = vpack.c.b16 %v3455, %v3448
        %v3862 = vpack.c.b16 %v3456, %v3449
        %v3863 = vpack.c.b16 %v3457, %v3450
        %v3864 = vpack.c.b16 %v3465, %v3458
        %v3865 = vpack.c.b16 %v3466, %v3459
        %v3866 = vpack.c.b16 %v3467, %v3460
        %v3867 = vpack.c.b16 %v3468, %v3461
        %v3868 = vpack.c.b16 %v3469, %v3462
        %v3869 = vpack.c.b16 %v3470, %v3463
        %v3870 = vpack.c.b16 %v3471, %v3464
        %v3871 = vpack.c.b16 %v3479, %v3472
        %v3872 = vpack.c.b16 %v3480, %v3473
        %v3873 = vpack.c.b16 %v3481, %v3474
        %v3874 = vpack.c.b16 %v3482, %v3475
        %v3875 = vpack.c.b16 %v3483, %v3476
        %v3876 = vpack.c.b16 %v3484, %v3477
        %v3877 = vpack.c.b16 %v3485, %v3478
        %v3878 = vpack.c.b16 %v3493, %v3486
        %v3879 = vpack.c.b16 %v3494, %v3487
        %v3880 = vpack.c.b16 %v3495, %v3488
        %v3881 = vpack.c.b16 %v3496, %v3489
        %v3882 = vpack.c.b16 %v3497, %v3490
        %v3883 = vpack.c.b16 %v3498, %v3491
        %v3884 = vpack.c.b16 %v3499, %v3492
        %v3885 = vpack.c.b16 %v3507, %v3500
        %v3886 = vpack.c.b16 %v3508, %v3501
        %v3887 = vpack.c.b16 %v3509, %v3502
        %v3888 = vpack.c.b16 %v3510, %v3503
        %v3889 = vpack.c.b16 %v3511, %v3504
        %v3890 = vpack.c.b16 %v3512, %v3505
        %v3891 = vpack.c.b16 %v3513, %v3506
        %v3892 = vpack.c.b16 %v3521, %v3514
        %v3893 = vpack.c.b16 %v3522, %v3515
        %v3894 = vpack.c.b16 %v3523, %v3516
        %v3895 = vpack.c.b16 %v3524, %v3517
        %v3896 = vpack.c.b16 %v3525, %v3518
        %v3897 = vpack.c.b16 %v3526, %v3519
        %v3898 = vpack.c.b16 %v3527, %v3520
        %v3899 = vpack.c.b16 %v3535, %v3528
        %v3900 = vpack.c.b16 %v3536, %v3529
        %v3901 = vpack.c.b16 %v3537, %v3530
        %v3902 = vpack.c.b16 %v3538, %v3531
        %v3903 = vpack.c.b16 %v3539, %v3532
        %v3904 = vpack.c.b16 %v3540, %v3533
        %v3905 = vpack.c.b16 %v3541, %v3534
        %v3906 = vpack.c.b16 %v3549, %v3542
        %v3907 = vpack.c.b16 %v3550, %v3543
        %v3908 = vpack.c.b16 %v3551, %v3544
        %v3909 = vpack.c.b16 %v3552, %v3545
        %v3910 = vpack.c.b16 %v3553, %v3546
        %v3911 = vpack.c.b16 %v3554, %v3547
        %v3912 = vpack.c.b16 %v3555, %v3548
        %v3913 = vpack.c.b16 %v3563, %v3556
        %v3914 = vpack.c.b16 %v3564, %v3557
        %v3915 = vpack.c.b16 %v3565, %v3558
        %v3916 = vpack.c.b16 %v3566, %v3559
        %v3917 = vpack.c.b16 %v3567, %v3560
        %v3918 = vpack.c.b16 %v3568, %v3561
        %v3919 = vpack.c.b16 %v3569, %v3562
        %v3920 = vpack.c.b16 %v3577, %v3570
        %v3921 = vpack.c.b16 %v3578, %v3571
        %v3922 = vpack.c.b16 %v3579, %v3572
        %v3923 = vpack.c.b16 %v3580, %v3573
        %v3924 = vpack.c.b16 %v3581, %v3574
        %v3925 = vpack.c.b16 %v3582, %v3575
        %v3926 = vpack.c.b16 %v3583, %v3576
        %v3927 = vpack.c.b16 %v3591, %v3584
        %v3928 = vpack.c.b16 %v3592, %v3585
        %v3929 = vpack.c.b16 %v3593, %v3586
        %v3930 = vpack.c.b16 %v3594, %v3587
        %v3931 = vpack.c.b16 %v3595, %v3588
        %v3932 = vpack.c.b16 %v3596, %v3589
        %v3933 = vpack.c.b16 %v3597, %v3590
        %v3934 = vpack.c.b16 %v3605, %v3598
        %v3935 = vpack.c.b16 %v3606, %v3599
        %v3936 = vpack.c.b16 %v3607, %v3600
        %v3937 = vpack.c.b16 %v3608, %v3601
        %v3938 = vpack.c.b16 %v3609, %v3602
        %v3939 = vpack.c.b16 %v3610, %v3603
        %v3940 = vpack.c.b16 %v3611, %v3604
        %v3941 = vpack.c.b16 %v3619, %v3612
        %v3942 = vpack.c.b16 %v3620, %v3613
        %v3943 = vpack.c.b16 %v3621, %v3614
        %v3944 = vpack.c.b16 %v3622, %v3615
        %v3945 = vpack.c.b16 %v3623, %v3616
        %v3946 = vpack.c.b16 %v3624, %v3617
        %v3947 = vpack.c.b16 %v3625, %v3618
        %v3948 = vpack.c.b16 %v3633, %v3626
        %v3949 = vpack.c.b16 %v3634, %v3627
        %v3950 = vpack.c.b16 %v3635, %v3628
        %v3951 = vpack.c.b16 %v3636, %v3629
        %v3952 = vpack.c.b16 %v3637, %v3630
        %v3953 = vpack.c.b16 %v3638, %v3631
        %v3954 = vpack.c.b16 %v3639, %v3632
        %v3955 = vpack.c.b16 %v3647, %v3640
        %v3956 = vpack.c.b16 %v3648, %v3641
        %v3957 = vpack.c.b16 %v3649, %v3642
        %v3958 = vpack.c.b16 %v3650, %v3643
        %v3959 = vpack.c.b16 %v3651, %v3644
        %v3960 = vpack.c.b16 %v3652, %v3645
        %v3961 = vpack.c.b16 %v3653, %v3646
        %v3962 = vpack.c.b16 %v3661, %v3654
        %v3963 = vpack.c.b16 %v3662, %v3655
        %v3964 = vpack.c.b16 %v3663, %v3656
        %v3965 = vpack.c.b16 %v3664, %v3657
        %v3966 = vpack.c.b16 %v3665, %v3658
        %v3967 = vpack.c.b16 %v3666, %v3659
        %v3968 = vpack.c.b16 %v3667, %v3660
        %v3969 = vpack.c.b16 %v3675, %v3668
        %v3970 = vpack.c.b16 %v3676, %v3669
        %v3971 = vpack.c.b16 %v3677, %v3670
        %v3972 = vpack.c.b16 %v3678, %v3671
        %v3973 = vpack.c.b16 %v3679, %v3672
        %v3974 = vpack.c.b16 %v3680, %v3673
        %v3975 = vpack.c.b16 %v3681, %v3674
        %v3976 = vpack.c.b16 %v3689, %v3682
        %v3977 = vpack.c.b16 %v3690, %v3683
        %v3978 = vpack.c.b16 %v3691, %v3684
        %v3979 = vpack.c.b16 %v3692, %v3685
        %v3980 = vpack.c.b16 %v3693, %v3686
        %v3981 = vpack.c.b16 %v3694, %v3687
        %v3982 = vpack.c.b16 %v3695, %v3688
        %v3983 = vpack.c.b16 %v3703, %v3696
        %v3984 = vpack.c.b16 %v3704, %v3697
        %v3985 = vpack.c.b16 %v3705, %v3698
        %v3986 = vpack.c.b16 %v3706, %v3699
        %v3987 = vpack.c.b16 %v3707, %v3700
        %v3988 = vpack.c.b16 %v3708, %v3701
        %v3989 = vpack.c.b16 %v3709, %v3702
        %v3990 = vpack.c.b16 %v3717, %v3710
        %v3991 = vpack.c.b16 %v3718, %v3711
        %v3992 = vpack.c.b16 %v3719, %v3712
        %v3993 = vpack.c.b16 %v3720, %v3713
        %v3994 = vpack.c.b16 %v3721, %v3714
        %v3995 = vpack.c.b16 %v3722, %v3715
        %v3996 = vpack.c.b16 %v3723, %v3716
        %v3997 = vpack.c.b16 %v3731, %v3724
        %v3998 = vpack.c.b16 %v3732, %v3725
        %v3999 = vpack.c.b16 %v3733, %v3726
        %v4000 = vpack.c.b16 %v3734, %v3727
        %v4001 = vpack.c.b16 %v3735, %v3728
        %v4002 = vpack.c.b16 %v3736, %v3729
        %v4003 = vpack.c.b16 %v3737, %v3730
        %v4004 = vpack.c.b16 %v3745, %v3738
        %v4005 = vpack.c.b16 %v3746, %v3739
        %v4006 = vpack.c.b16 %v3747, %v3740
        %v4007 = vpack.c.b16 %v3748, %v3741
        %v4008 = vpack.c.b16 %v3749, %v3742
        %v4009 = vpack.c.b16 %v3750, %v3743
        %v4010 = vpack.c.b16 %v3751, %v3744
        %v4011 = vpack.c.b16 %v3759, %v3752
        %v4012 = vpack.c.b16 %v3760, %v3753
        %v4013 = vpack.c.b16 %v3761, %v3754
        %v4014 = vpack.c.b16 %v3762, %v3755
        %v4015 = vpack.c.b16 %v3763, %v3756
        %v4016 = vpack.c.b16 %v3764, %v3757
        %v4017 = vpack.c.b16 %v3765, %v3758
        %v4018 = vpack.c.b16 %v3773, %v3766
        %v4019 = vpack.c.b16 %v3774, %v3767
        %v4020 = vpack.c.b16 %v3775, %v3768
        %v4021 = vpack.c.b16 %v3776, %v3769
        %v4022 = vpack.c.b16 %v3777, %v3770
        %v4023 = vpack.c.b16 %v3778, %v3771
        %v4024 = vpack.c.b16 %v3779, %v3772
        %v4025 = vpack.c.b16 %v3787, %v3780
        %v4026 = vpack.c.b16 %v3788, %v3781
        %v4027 = vpack.c.b16 %v3789, %v3782
        %v4028 = vpack.c.b16 %v3790, %v3783
        %v4029 = vpack.c.b16 %v3791, %v3784
        %v4030 = vpack.c.b16 %v3792, %v3785
        %v4031 = vpack.c.b16 %v3793, %v3786
        %v4032 = vpack.c.b16 %v3801, %v3794
        %v4033 = vpack.c.b16 %v3802, %v3795
        %v4034 = vpack.c.b16 %v3803, %v3796
        %v4035 = vpack.c.b16 %v3804, %v3797
        %v4036 = vpack.c.b16 %v3805, %v3798
        %v4037 = vpack.c.b16 %v3806, %v3799
        %v4038 = vpack.c.b16 %v3807, %v3800
        %v4039 = vpack.c.b16 %v3815, %v3808
        %v4040 = vpack.c.b16 %v3816, %v3809
        %v4041 = vpack.c.b16 %v3817, %v3810
        %v4042 = vpack.c.b16 %v3818, %v3811
        %v4043 = vpack.c.b16 %v3819, %v3812
        %v4044 = vpack.c.b16 %v3820, %v3813
        %v4045 = vpack.c.b16 %v3821, %v3814
        %4270 = vmatpush.bf16.msra.mxu0 %v3871
        %4271 = vmatpush.bf16.msra.mxu0 %v3864
        %4272 = vmatpush.bf16.msra.mxu0 %v3857
        %4273 = vmatpush.bf16.msra.mxu0 %v3850
        %4274 = vmatpush.bf16.msra.mxu0 %v3843
        %4275 = vmatpush.bf16.msra.mxu0 %v3836
        %4276 = vmatpush.bf16.msra.mxu0 %v3829
        %4277 = vmatpush.bf16.msra.mxu0 %v3822
        %4278 = vmatmul.bf16.gmra.mxu0 %v2842
        %v4279 = vpop.f32.mrf.mxu0
        %v4280 = vadd.f32 %v3104, %v4279
        %v4281 = vpop.f32.mrf.mxu0
        %4282 = vdwg.mxu0
        %4283 = vmatpush.bf16.msra.mxu0 %v3927
        %4284 = vmatpush.bf16.msra.mxu0 %v3920
        %4285 = vmatpush.bf16.msra.mxu0 %v3913
        %4286 = vmatpush.bf16.msra.mxu0 %v3906
        %4287 = vmatpush.bf16.msra.mxu0 %v3899
        %4288 = vmatpush.bf16.msra.mxu0 %v3892
        %4289 = vmatpush.bf16.msra.mxu0 %v3885
        %4290 = vmatpush.bf16.msra.mxu0 %v3878
        %4291 = vmatmul.bf16.gmra.mxu0 %v2843
        %v4292 = vpop.f32.mrf.mxu0
        %v4293 = vadd.f32 %v4280, %v4292
        %v4294 = vpop.f32.mrf.mxu0
        %4295 = vdwg.mxu0
        %4296 = vmatpush.bf16.msra.mxu0 %v3983
        %4297 = vmatpush.bf16.msra.mxu0 %v3976
        %4298 = vmatpush.bf16.msra.mxu0 %v3969
        %4299 = vmatpush.bf16.msra.mxu0 %v3962
        %4300 = vmatpush.bf16.msra.mxu0 %v3955
        %4301 = vmatpush.bf16.msra.mxu0 %v3948
        %4302 = vmatpush.bf16.msra.mxu0 %v3941
        %4303 = vmatpush.bf16.msra.mxu0 %v3934
        %4304 = vmatmul.bf16.gmra.mxu0 %v2844
        %v4305 = vpop.f32.mrf.mxu0
        %v4306 = vadd.f32 %v4293, %v4305
        %v4307 = vpop.f32.mrf.mxu0
        %4308 = vdwg.mxu0
        %4309 = vmatpush.bf16.msra.mxu0 %v4039
        %4310 = vmatpush.bf16.msra.mxu0 %v4032
        %4311 = vmatpush.bf16.msra.mxu0 %v4025
        %4312 = vmatpush.bf16.msra.mxu0 %v4018
        %4313 = vmatpush.bf16.msra.mxu0 %v4011
        %4314 = vmatpush.bf16.msra.mxu0 %v4004
        %4315 = vmatpush.bf16.msra.mxu0 %v3997
        %4316 = vmatpush.bf16.msra.mxu0 %v3990
        %4317 = vmatmul.bf16.gmra.mxu0 %v2845
        %v4318 = vpop.f32.mrf.mxu0
        %v4319 = vadd.f32 %v4306, %v4318
        %v4320 = vpop.f32.mrf.mxu0
        %4321 = vdwg.mxu0
        %4322 = vmatpush.bf16.msra.mxu0 %v3872
        %4323 = vmatpush.bf16.msra.mxu0 %v3865
        %4324 = vmatpush.bf16.msra.mxu0 %v3858
        %4325 = vmatpush.bf16.msra.mxu0 %v3851
        %4326 = vmatpush.bf16.msra.mxu0 %v3844
        %4327 = vmatpush.bf16.msra.mxu0 %v3837
        %4328 = vmatpush.bf16.msra.mxu0 %v3830
        %4329 = vmatpush.bf16.msra.mxu0 %v3823
        %4330 = vmatmul.bf16.gmra.mxu0 %v2842
        %v4331 = vpop.f32.mrf.mxu0
        %v4332 = vadd.f32 %v3105, %v4331
        %v4333 = vpop.f32.mrf.mxu0
        %4334 = vdwg.mxu0
        %4335 = vmatpush.bf16.msra.mxu0 %v3928
        %4336 = vmatpush.bf16.msra.mxu0 %v3921
        %4337 = vmatpush.bf16.msra.mxu0 %v3914
        %4338 = vmatpush.bf16.msra.mxu0 %v3907
        %4339 = vmatpush.bf16.msra.mxu0 %v3900
        %4340 = vmatpush.bf16.msra.mxu0 %v3893
        %4341 = vmatpush.bf16.msra.mxu0 %v3886
        %4342 = vmatpush.bf16.msra.mxu0 %v3879
        %4343 = vmatmul.bf16.gmra.mxu0 %v2843
        %v4344 = vpop.f32.mrf.mxu0
        %v4345 = vadd.f32 %v4332, %v4344
        %v4346 = vpop.f32.mrf.mxu0
        %4347 = vdwg.mxu0
        %4348 = vmatpush.bf16.msra.mxu0 %v3984
        %4349 = vmatpush.bf16.msra.mxu0 %v3977
        %4350 = vmatpush.bf16.msra.mxu0 %v3970
        %4351 = vmatpush.bf16.msra.mxu0 %v3963
        %4352 = vmatpush.bf16.msra.mxu0 %v3956
        %4353 = vmatpush.bf16.msra.mxu0 %v3949
        %4354 = vmatpush.bf16.msra.mxu0 %v3942
        %4355 = vmatpush.bf16.msra.mxu0 %v3935
        %4356 = vmatmul.bf16.gmra.mxu0 %v2844
        %v4357 = vpop.f32.mrf.mxu0
        %v4358 = vadd.f32 %v4345, %v4357
        %v4359 = vpop.f32.mrf.mxu0
        %4360 = vdwg.mxu0
        %4361 = vmatpush.bf16.msra.mxu0 %v4040
        %4362 = vmatpush.bf16.msra.mxu0 %v4033
        %4363 = vmatpush.bf16.msra.mxu0 %v4026
        %4364 = vmatpush.bf16.msra.mxu0 %v4019
        %4365 = vmatpush.bf16.msra.mxu0 %v4012
        %4366 = vmatpush.bf16.msra.mxu0 %v4005
        %4367 = vmatpush.bf16.msra.mxu0 %v3998
        %4368 = vmatpush.bf16.msra.mxu0 %v3991
        %4369 = vmatmul.bf16.gmra.mxu0 %v2845
        %v4370 = vpop.f32.mrf.mxu0
        %v4371 = vadd.f32 %v4358, %v4370
        %v4372 = vpop.f32.mrf.mxu0
        %4373 = vdwg.mxu0
        %4374 = vmatpush.bf16.msra.mxu0 %v3873
        %4375 = vmatpush.bf16.msra.mxu0 %v3866
        %4376 = vmatpush.bf16.msra.mxu0 %v3859
        %4377 = vmatpush.bf16.msra.mxu0 %v3852
        %4378 = vmatpush.bf16.msra.mxu0 %v3845
        %4379 = vmatpush.bf16.msra.mxu0 %v3838
        %4380 = vmatpush.bf16.msra.mxu0 %v3831
        %4381 = vmatpush.bf16.msra.mxu0 %v3824
        %4382 = vmatmul.bf16.gmra.mxu0 %v2842
        %v4383 = vpop.f32.mrf.mxu0
        %v4384 = vadd.f32 %v3106, %v4383
        %v4385 = vpop.f32.mrf.mxu0
        %4386 = vdwg.mxu0
        %4387 = vmatpush.bf16.msra.mxu0 %v3929
        %4388 = vmatpush.bf16.msra.mxu0 %v3922
        %4389 = vmatpush.bf16.msra.mxu0 %v3915
        %4390 = vmatpush.bf16.msra.mxu0 %v3908
        %4391 = vmatpush.bf16.msra.mxu0 %v3901
        %4392 = vmatpush.bf16.msra.mxu0 %v3894
        %4393 = vmatpush.bf16.msra.mxu0 %v3887
        %4394 = vmatpush.bf16.msra.mxu0 %v3880
        %4395 = vmatmul.bf16.gmra.mxu0 %v2843
        %v4396 = vpop.f32.mrf.mxu0
        %v4397 = vadd.f32 %v4384, %v4396
        %v4398 = vpop.f32.mrf.mxu0
        %4399 = vdwg.mxu0
        %4400 = vmatpush.bf16.msra.mxu0 %v3985
        %4401 = vmatpush.bf16.msra.mxu0 %v3978
        %4402 = vmatpush.bf16.msra.mxu0 %v3971
        %4403 = vmatpush.bf16.msra.mxu0 %v3964
        %4404 = vmatpush.bf16.msra.mxu0 %v3957
        %4405 = vmatpush.bf16.msra.mxu0 %v3950
        %4406 = vmatpush.bf16.msra.mxu0 %v3943
        %4407 = vmatpush.bf16.msra.mxu0 %v3936
        %4408 = vmatmul.bf16.gmra.mxu0 %v2844
        %v4409 = vpop.f32.mrf.mxu0
        %v4410 = vadd.f32 %v4397, %v4409
        %v4411 = vpop.f32.mrf.mxu0
        %4412 = vdwg.mxu0
        %4413 = vmatpush.bf16.msra.mxu0 %v4041
        %4414 = vmatpush.bf16.msra.mxu0 %v4034
        %4415 = vmatpush.bf16.msra.mxu0 %v4027
        %4416 = vmatpush.bf16.msra.mxu0 %v4020
        %4417 = vmatpush.bf16.msra.mxu0 %v4013
        %4418 = vmatpush.bf16.msra.mxu0 %v4006
        %4419 = vmatpush.bf16.msra.mxu0 %v3999
        %4420 = vmatpush.bf16.msra.mxu0 %v3992
        %4421 = vmatmul.bf16.gmra.mxu0 %v2845
        %v4422 = vpop.f32.mrf.mxu0
        %v4423 = vadd.f32 %v4410, %v4422
        %v4424 = vpop.f32.mrf.mxu0
        %4425 = vdwg.mxu0
        %4426 = vmatpush.bf16.msra.mxu0 %v3874
        %4427 = vmatpush.bf16.msra.mxu0 %v3867
        %4428 = vmatpush.bf16.msra.mxu0 %v3860
        %4429 = vmatpush.bf16.msra.mxu0 %v3853
        %4430 = vmatpush.bf16.msra.mxu0 %v3846
        %4431 = vmatpush.bf16.msra.mxu0 %v3839
        %4432 = vmatpush.bf16.msra.mxu0 %v3832
        %4433 = vmatpush.bf16.msra.mxu0 %v3825
        %4434 = vmatmul.bf16.gmra.mxu0 %v2842
        %v4435 = vpop.f32.mrf.mxu0
        %v4436 = vadd.f32 %v3107, %v4435
        %v4437 = vpop.f32.mrf.mxu0
        %4438 = vdwg.mxu0
        %4439 = vmatpush.bf16.msra.mxu0 %v3930
        %4440 = vmatpush.bf16.msra.mxu0 %v3923
        %4441 = vmatpush.bf16.msra.mxu0 %v3916
        %4442 = vmatpush.bf16.msra.mxu0 %v3909
        %4443 = vmatpush.bf16.msra.mxu0 %v3902
        %4444 = vmatpush.bf16.msra.mxu0 %v3895
        %4445 = vmatpush.bf16.msra.mxu0 %v3888
        %4446 = vmatpush.bf16.msra.mxu0 %v3881
        %4447 = vmatmul.bf16.gmra.mxu0 %v2843
        %v4448 = vpop.f32.mrf.mxu0
        %v4449 = vadd.f32 %v4436, %v4448
        %v4450 = vpop.f32.mrf.mxu0
        %4451 = vdwg.mxu0
        %4452 = vmatpush.bf16.msra.mxu0 %v3986
        %4453 = vmatpush.bf16.msra.mxu0 %v3979
        %4454 = vmatpush.bf16.msra.mxu0 %v3972
        %4455 = vmatpush.bf16.msra.mxu0 %v3965
        %4456 = vmatpush.bf16.msra.mxu0 %v3958
        %4457 = vmatpush.bf16.msra.mxu0 %v3951
        %4458 = vmatpush.bf16.msra.mxu0 %v3944
        %4459 = vmatpush.bf16.msra.mxu0 %v3937
        %4460 = vmatmul.bf16.gmra.mxu0 %v2844
        %v4461 = vpop.f32.mrf.mxu0
        %v4462 = vadd.f32 %v4449, %v4461
        %v4463 = vpop.f32.mrf.mxu0
        %4464 = vdwg.mxu0
        %4465 = vmatpush.bf16.msra.mxu0 %v4042
        %4466 = vmatpush.bf16.msra.mxu0 %v4035
        %4467 = vmatpush.bf16.msra.mxu0 %v4028
        %4468 = vmatpush.bf16.msra.mxu0 %v4021
        %4469 = vmatpush.bf16.msra.mxu0 %v4014
        %4470 = vmatpush.bf16.msra.mxu0 %v4007
        %4471 = vmatpush.bf16.msra.mxu0 %v4000
        %4472 = vmatpush.bf16.msra.mxu0 %v3993
        %4473 = vmatmul.bf16.gmra.mxu0 %v2845
        %v4474 = vpop.f32.mrf.mxu0
        %v4475 = vadd.f32 %v4462, %v4474
        %v4476 = vpop.f32.mrf.mxu0
        %4477 = vdwg.mxu0
        %4478 = vmatpush.bf16.msra.mxu0 %v3875
        %4479 = vmatpush.bf16.msra.mxu0 %v3868
        %4480 = vmatpush.bf16.msra.mxu0 %v3861
        %4481 = vmatpush.bf16.msra.mxu0 %v3854
        %4482 = vmatpush.bf16.msra.mxu0 %v3847
        %4483 = vmatpush.bf16.msra.mxu0 %v3840
        %4484 = vmatpush.bf16.msra.mxu0 %v3833
        %4485 = vmatpush.bf16.msra.mxu0 %v3826
        %4486 = vmatmul.bf16.gmra.mxu0 %v2842
        %v4487 = vpop.f32.mrf.mxu0
        %v4488 = vadd.f32 %v3108, %v4487
        %v4489 = vpop.f32.mrf.mxu0
        %4490 = vdwg.mxu0
        %4491 = vmatpush.bf16.msra.mxu0 %v3931
        %4492 = vmatpush.bf16.msra.mxu0 %v3924
        %4493 = vmatpush.bf16.msra.mxu0 %v3917
        %4494 = vmatpush.bf16.msra.mxu0 %v3910
        %4495 = vmatpush.bf16.msra.mxu0 %v3903
        %4496 = vmatpush.bf16.msra.mxu0 %v3896
        %4497 = vmatpush.bf16.msra.mxu0 %v3889
        %4498 = vmatpush.bf16.msra.mxu0 %v3882
        %4499 = vmatmul.bf16.gmra.mxu0 %v2843
        %v4500 = vpop.f32.mrf.mxu0
        %v4501 = vadd.f32 %v4488, %v4500
        %v4502 = vpop.f32.mrf.mxu0
        %4503 = vdwg.mxu0
        %4504 = vmatpush.bf16.msra.mxu0 %v3987
        %4505 = vmatpush.bf16.msra.mxu0 %v3980
        %4506 = vmatpush.bf16.msra.mxu0 %v3973
        %4507 = vmatpush.bf16.msra.mxu0 %v3966
        %4508 = vmatpush.bf16.msra.mxu0 %v3959
        %4509 = vmatpush.bf16.msra.mxu0 %v3952
        %4510 = vmatpush.bf16.msra.mxu0 %v3945
        %4511 = vmatpush.bf16.msra.mxu0 %v3938
        %4512 = vmatmul.bf16.gmra.mxu0 %v2844
        %v4513 = vpop.f32.mrf.mxu0
        %v4514 = vadd.f32 %v4501, %v4513
        %v4515 = vpop.f32.mrf.mxu0
        %4516 = vdwg.mxu0
        %4517 = vmatpush.bf16.msra.mxu0 %v4043
        %4518 = vmatpush.bf16.msra.mxu0 %v4036
        %4519 = vmatpush.bf16.msra.mxu0 %v4029
        %4520 = vmatpush.bf16.msra.mxu0 %v4022
        %4521 = vmatpush.bf16.msra.mxu0 %v4015
        %4522 = vmatpush.bf16.msra.mxu0 %v4008
        %4523 = vmatpush.bf16.msra.mxu0 %v4001
        %4524 = vmatpush.bf16.msra.mxu0 %v3994
        %4525 = vmatmul.bf16.gmra.mxu0 %v2845
        %v4526 = vpop.f32.mrf.mxu0
        %v4527 = vadd.f32 %v4514, %v4526
        %v4528 = vpop.f32.mrf.mxu0
        %4529 = vdwg.mxu0
        %4530 = vmatpush.bf16.msra.mxu0 %v3876
        %4531 = vmatpush.bf16.msra.mxu0 %v3869
        %4532 = vmatpush.bf16.msra.mxu0 %v3862
        %4533 = vmatpush.bf16.msra.mxu0 %v3855
        %4534 = vmatpush.bf16.msra.mxu0 %v3848
        %4535 = vmatpush.bf16.msra.mxu0 %v3841
        %4536 = vmatpush.bf16.msra.mxu0 %v3834
        %4537 = vmatpush.bf16.msra.mxu0 %v3827
        %4538 = vmatmul.bf16.gmra.mxu0 %v2842
        %v4539 = vpop.f32.mrf.mxu0
        %v4540 = vadd.f32 %v3109, %v4539
        %v4541 = vpop.f32.mrf.mxu0
        %4542 = vdwg.mxu0
        %4543 = vmatpush.bf16.msra.mxu0 %v3932
        %4544 = vmatpush.bf16.msra.mxu0 %v3925
        %4545 = vmatpush.bf16.msra.mxu0 %v3918
        %4546 = vmatpush.bf16.msra.mxu0 %v3911
        %4547 = vmatpush.bf16.msra.mxu0 %v3904
        %4548 = vmatpush.bf16.msra.mxu0 %v3897
        %4549 = vmatpush.bf16.msra.mxu0 %v3890
        %4550 = vmatpush.bf16.msra.mxu0 %v3883
        %4551 = vmatmul.bf16.gmra.mxu0 %v2843
        %v4552 = vpop.f32.mrf.mxu0
        %v4553 = vadd.f32 %v4540, %v4552
        %v4554 = vpop.f32.mrf.mxu0
        %4555 = vdwg.mxu0
        %4556 = vmatpush.bf16.msra.mxu0 %v3988
        %4557 = vmatpush.bf16.msra.mxu0 %v3981
        %4558 = vmatpush.bf16.msra.mxu0 %v3974
        %4559 = vmatpush.bf16.msra.mxu0 %v3967
        %4560 = vmatpush.bf16.msra.mxu0 %v3960
        %4561 = vmatpush.bf16.msra.mxu0 %v3953
        %4562 = vmatpush.bf16.msra.mxu0 %v3946
        %4563 = vmatpush.bf16.msra.mxu0 %v3939
        %4564 = vmatmul.bf16.gmra.mxu0 %v2844
        %v4565 = vpop.f32.mrf.mxu0
        %v4566 = vadd.f32 %v4553, %v4565
        %v4567 = vpop.f32.mrf.mxu0
        %4568 = vdwg.mxu0
        %4569 = vmatpush.bf16.msra.mxu0 %v4044
        %4570 = vmatpush.bf16.msra.mxu0 %v4037
        %4571 = vmatpush.bf16.msra.mxu0 %v4030
        %4572 = vmatpush.bf16.msra.mxu0 %v4023
        %4573 = vmatpush.bf16.msra.mxu0 %v4016
        %4574 = vmatpush.bf16.msra.mxu0 %v4009
        %4575 = vmatpush.bf16.msra.mxu0 %v4002
        %4576 = vmatpush.bf16.msra.mxu0 %v3995
        %4577 = vmatmul.bf16.gmra.mxu0 %v2845
        %v4578 = vpop.f32.mrf.mxu0
        %v4579 = vadd.f32 %v4566, %v4578
        %v4580 = vpop.f32.mrf.mxu0
        %4581 = vdwg.mxu0
        %4582 = vmatpush.bf16.msra.mxu0 %v3877
        %4583 = vmatpush.bf16.msra.mxu0 %v3870
        %4584 = vmatpush.bf16.msra.mxu0 %v3863
        %4585 = vmatpush.bf16.msra.mxu0 %v3856
        %4586 = vmatpush.bf16.msra.mxu0 %v3849
        %4587 = vmatpush.bf16.msra.mxu0 %v3842
        %4588 = vmatpush.bf16.msra.mxu0 %v3835
        %4589 = vmatpush.bf16.msra.mxu0 %v3828
        %4590 = vmatmul.bf16.gmra.mxu0 %v2842
        %v4591 = vpop.f32.mrf.mxu0
        %v4592 = vadd.f32 %v3110, %v4591
        %v4593 = vpop.f32.mrf.mxu0
        %4594 = vdwg.mxu0
        %4595 = vmatpush.bf16.msra.mxu0 %v3933
        %4596 = vmatpush.bf16.msra.mxu0 %v3926
        %4597 = vmatpush.bf16.msra.mxu0 %v3919
        %4598 = vmatpush.bf16.msra.mxu0 %v3912
        %4599 = vmatpush.bf16.msra.mxu0 %v3905
        %4600 = vmatpush.bf16.msra.mxu0 %v3898
        %4601 = vmatpush.bf16.msra.mxu0 %v3891
        %4602 = vmatpush.bf16.msra.mxu0 %v3884
        %4603 = vmatmul.bf16.gmra.mxu0 %v2843
        %v4604 = vpop.f32.mrf.mxu0
        %v4605 = vadd.f32 %v4592, %v4604
        %v4606 = vpop.f32.mrf.mxu0
        %4607 = vdwg.mxu0
        %4608 = vmatpush.bf16.msra.mxu0 %v3989
        %4609 = vmatpush.bf16.msra.mxu0 %v3982
        %4610 = vmatpush.bf16.msra.mxu0 %v3975
        %4611 = vmatpush.bf16.msra.mxu0 %v3968
        %4612 = vmatpush.bf16.msra.mxu0 %v3961
        %4613 = vmatpush.bf16.msra.mxu0 %v3954
        %4614 = vmatpush.bf16.msra.mxu0 %v3947
        %4615 = vmatpush.bf16.msra.mxu0 %v3940
        %4616 = vmatmul.bf16.gmra.mxu0 %v2844
        %v4617 = vpop.f32.mrf.mxu0
        %v4618 = vadd.f32 %v4605, %v4617
        %v4619 = vpop.f32.mrf.mxu0
        %4620 = vdwg.mxu0
        %4621 = vmatpush.bf16.msra.mxu0 %v4045
        %4622 = vmatpush.bf16.msra.mxu0 %v4038
        %4623 = vmatpush.bf16.msra.mxu0 %v4031
        %4624 = vmatpush.bf16.msra.mxu0 %v4024
        %4625 = vmatpush.bf16.msra.mxu0 %v4017
        %4626 = vmatpush.bf16.msra.mxu0 %v4010
        %4627 = vmatpush.bf16.msra.mxu0 %v4003
        %4628 = vmatpush.bf16.msra.mxu0 %v3996
        %4629 = vmatmul.bf16.gmra.mxu0 %v2845
        %v4630 = vpop.f32.mrf.mxu0
        %v4631 = vadd.f32 %v4618, %v4630
        %v4632 = vpop.f32.mrf.mxu0
        %4633 = vdwg.mxu0
        %v4634 = vand.u32 2147483647, %v4319
        %v4635 = vand.u32 2147483647, %v4371
        %v4636 = vand.u32 2147483647, %v4423
        %v4637 = vand.u32 2147483647, %v4475
        %v4638 = vand.u32 2147483647, %v4527
        %v4639 = vand.u32 2147483647, %v4579
        %v4640 = vand.u32 2147483647, %v4631
        %v4641 = vsub.f32 0.0, %v4634
        %v4642 = vsub.f32 0.0, %v4635
        %v4643 = vsub.f32 0.0, %v4636
        %v4644 = vsub.f32 0.0, %v4637
        %v4645 = vsub.f32 0.0, %v4638
        %v4646 = vsub.f32 0.0, %v4639
        %v4647 = vsub.f32 0.0, %v4640
        %v4648 = vmul.f32 %v4641, 1.442695
        %v4649 = vpow.pop %v4648
        %v4650 = vmul.f32 %v4642, 1.442695
        %v4651 = vpow.pop %v4650
        %v4652 = vmul.f32 %v4643, 1.442695
        %v4653 = vpow.pop %v4652
        %v4654 = vmul.f32 %v4644, 1.442695
        %v4655 = vpow.pop %v4654
        %v4656 = vmul.f32 %v4645, 1.442695
        %v4657 = vpow.pop %v4656
        %v4658 = vmul.f32 %v4646, 1.442695
        %v4659 = vpow.pop %v4658
        %v4660 = vmul.f32 %v4647, 1.442695
        %v4661 = vpow.pop %v4660
        %v4662 = vadd.f32 %v4649, 1.0
        %v4663 = vadd.f32 %v4651, 1.0
        %v4664 = vadd.f32 %v4653, 1.0
        %v4665 = vadd.f32 %v4655, 1.0
        %v4666 = vadd.f32 %v4657, 1.0
        %v4667 = vadd.f32 %v4659, 1.0
        %v4668 = vadd.f32 %v4661, 1.0
        %v4669 = vrcp.pop %v4662
        %v4670 = vrcp.pop %v4663
        %v4671 = vrcp.pop %v4664
        %v4672 = vrcp.pop %v4665
        %v4673 = vrcp.pop %v4666
        %v4674 = vrcp.pop %v4667
        %v4675 = vrcp.pop %v4668
        %vm4676 = vcmp.ge.f32.partialorder %v4319, 0.0
        %vm4677 = vcmp.ge.f32.partialorder %v4371, 0.0
        %vm4678 = vcmp.ge.f32.partialorder %v4423, 0.0
        %vm4679 = vcmp.ge.f32.partialorder %v4475, 0.0
        %vm4680 = vcmp.ge.f32.partialorder %v4527, 0.0
        %vm4681 = vcmp.ge.f32.partialorder %v4579, 0.0
        %vm4682 = vcmp.ge.f32.partialorder %v4631, 0.0
        %v4683 = vmul.f32 %v4649, %v4669
        %v4684 = vmul.f32 %v4651, %v4670
        %v4685 = vmul.f32 %v4653, %v4671
        %v4686 = vmul.f32 %v4655, %v4672
        %v4687 = vmul.f32 %v4657, %v4673
        %v4688 = vmul.f32 %v4659, %v4674
        %v4689 = vmul.f32 %v4661, %v4675
        %v4690 = vsel %vm4676, %v4669, %v4683
        %v4691 = vsel %vm4677, %v4670, %v4684
        %v4692 = vsel %vm4678, %v4671, %v4685
        %v4693 = vsel %vm4679, %v4672, %v4686
        %v4694 = vsel %vm4680, %v4673, %v4687
        %v4695 = vsel %vm4681, %v4674, %v4688
        %v4696 = vsel %vm4682, %v4675, %v4689
        %4697 = vst [vmem:[%s588] sm:$0xff] %v4690
        %4698 = vst [vmem:[%s588 + $0x8] sm:$0xff] %v4691
        %4699 = vst [vmem:[%s588 + $0x10] sm:$0xff] %v4692
        %4700 = vst [vmem:[%s588 + $0x18] sm:$0xff] %v4693
        %4701 = vst [vmem:[%s588 + $0x20] sm:$0xff] %v4694
        %4702 = vst [vmem:[%s588 + $0x28] sm:$0xff] %v4695
        %4703 = vst [vmem:[%s588 + $0x30] sm:$0xff] %v4696
        %s4704 = smul.u32 %s38, 8
        %v4705 = vlaneseq
        %v4706 = vshrl.u32 %v4705, 7
        %v4707 = vstv %s4704
        %v4708 = vadd.s32 %v4707, %v4706
        %vm4709 = vcmp.lt.s32.totalorder %v4708, 18
        %v4710 = vld [vmem:[%s509] sm:$0xff]
        %v4711 = vld [vmem:[%s509 + $0x8] sm:$0xff]
        %v4712 = vld [vmem:[%s509 + $0x10] sm:$0xff]
        %v4713 = vld [vmem:[%s509 + $0x18] sm:$0xff]
        %v4714 = vld [vmem:[%s509 + $0x20] sm:$0xff]
        %v4715 = vld [vmem:[%s509 + $0x28] sm:$0xff]
        %v4716 = vld [vmem:[%s509 + $0x30] sm:$0xff]
        %v4717 = vmax.f32 %v4319, 0.0
        %v4718 = vmax.f32 %v4371, 0.0
        %v4719 = vmax.f32 %v4423, 0.0
        %v4720 = vmax.f32 %v4475, 0.0
        %v4721 = vmax.f32 %v4527, 0.0
        %v4722 = vmax.f32 %v4579, 0.0
        %v4723 = vmax.f32 %v4631, 0.0
        %v4724 = vlog2.pop %v4662
        %v4725 = vmul.f32 %v4724, 0.6931472
        %v4726 = vlog2.pop %v4663
        %v4727 = vmul.f32 %v4726, 0.6931472
        %v4728 = vlog2.pop %v4664
        %v4729 = vmul.f32 %v4728, 0.6931472
        %v4730 = vlog2.pop %v4665
        %v4731 = vmul.f32 %v4730, 0.6931472
        %v4732 = vlog2.pop %v4666
        %v4733 = vmul.f32 %v4732, 0.6931472
        %v4734 = vlog2.pop %v4667
        %v4735 = vmul.f32 %v4734, 0.6931472
        %v4736 = vlog2.pop %v4668
        %v4737 = vmul.f32 %v4736, 0.6931472
        %v4738 = vadd.f32 %v4717, %v4725
        %v4739 = vadd.f32 %v4718, %v4727
        %v4740 = vadd.f32 %v4719, %v4729
        %v4741 = vadd.f32 %v4720, %v4731
        %v4742 = vadd.f32 %v4721, %v4733
        %v4743 = vadd.f32 %v4722, %v4735
        %v4744 = vadd.f32 %v4723, %v4737
        %v4745 = vmul.f32 %v4710, %v4319
        %v4746 = vmul.f32 %v4711, %v4371
        %v4747 = vmul.f32 %v4712, %v4423
        %v4748 = vmul.f32 %v4713, %v4475
        %v4749 = vmul.f32 %v4714, %v4527
        %v4750 = vmul.f32 %v4715, %v4579
        %v4751 = vmul.f32 %v4716, %v4631
        %v4752 = vsub.f32 %v4738, %v4745
        %v4753 = vsub.f32 %v4739, %v4746
        %v4754 = vsub.f32 %v4740, %v4747
        %v4755 = vsub.f32 %v4741, %v4748
        %v4756 = vsub.f32 %v4742, %v4749
        %v4757 = vsub.f32 %v4743, %v4750
        %v4758 = vsub.f32 %v4744, %v4751
        %v4759 = vsel %vm4709, 1, 0
        %vm4760 = vcmp.eq.s32.totalorder %v4759, 1
        %v4761 = vsel %vm4760, %v4752, 0.0
        %v4762 = vsel %vm4760, %v4753, 0.0
        %v4763 = vsel %vm4760, %v4754, 0.0
        %v4764 = vsel %vm4760, %v4755, 0.0
        %v4765 = vsel %vm4760, %v4756, 0.0
        %v4766 = vsel %vm4760, %v4757, 0.0
        %v4767 = vsel %vm4760, %v4758, 0.0
        %v4768 = vrot.slane %v4761, 4
        %v4769 = vadd.f32 %v4761, %v4768
        %v4770 = vrot.slane %v4769, 2
        %v4771 = vadd.f32 %v4769, %v4770
        %v4772 = vrot.slane %v4771, 1
        %v4773 = vadd.f32 %v4771, %v4772
        %v4774 = vrot.slane %v4762, 4
        %v4775 = vadd.f32 %v4762, %v4774
        %v4776 = vrot.slane %v4775, 2
        %v4777 = vadd.f32 %v4775, %v4776
        %v4778 = vrot.slane %v4777, 1
        %v4779 = vadd.f32 %v4777, %v4778
        %v4780 = vrot.slane %v4763, 4
        %v4781 = vadd.f32 %v4763, %v4780
        %v4782 = vrot.slane %v4781, 2
        %v4783 = vadd.f32 %v4781, %v4782
        %v4784 = vrot.slane %v4783, 1
        %v4785 = vadd.f32 %v4783, %v4784
        %v4786 = vrot.slane %v4764, 4
        %v4787 = vadd.f32 %v4764, %v4786
        %v4788 = vrot.slane %v4787, 2
        %v4789 = vadd.f32 %v4787, %v4788
        %v4790 = vrot.slane %v4789, 1
        %v4791 = vadd.f32 %v4789, %v4790
        %v4792 = vrot.slane %v4765, 4
        %v4793 = vadd.f32 %v4765, %v4792
        %v4794 = vrot.slane %v4793, 2
        %v4795 = vadd.f32 %v4793, %v4794
        %v4796 = vrot.slane %v4795, 1
        %v4797 = vadd.f32 %v4795, %v4796
        %v4798 = vrot.slane %v4766, 4
        %v4799 = vadd.f32 %v4766, %v4798
        %v4800 = vrot.slane %v4799, 2
        %v4801 = vadd.f32 %v4799, %v4800
        %v4802 = vrot.slane %v4801, 1
        %v4803 = vadd.f32 %v4801, %v4802
        %v4804 = vsel %vm1804, %v4767, 0.0
        %v4805 = vrot.slane %v4804, 4
        %v4806 = vadd.f32 %v4804, %v4805
        %v4807 = vrot.slane %v4806, 2
        %v4808 = vadd.f32 %v4806, %v4807
        %v4809 = vrot.slane %v4808, 1
        %v4810 = vadd.f32 %v4808, %v4809
        %4811 = vst [vmem:[%s595] sm:$0xff] %v4773
        %4812 = vst [vmem:[%s595 + $0x8] sm:$0xff] %v4779
        %4813 = vst [vmem:[%s595 + $0x10] sm:$0xff] %v4785
        %4814 = vst [vmem:[%s595 + $0x18] sm:$0xff] %v4791
        %4815 = vst [vmem:[%s595 + $0x20] sm:$0xff] %v4797
        %4816 = vst [vmem:[%s595 + $0x28] sm:$0xff] %v4803
        %4817 = vst.msk [vmem:[%s595 + $0x30] sm:$0xff] %vm1804, %v4810
        %v4818 = vsub.f32 %v2489, %v2581
        %v4819 = vsel %vm4760, %v4818, 0.0
        %v4820 = vmul.f32 %v4819, %v4819
        %v4821 = vrot.slane %v4820, 4
        %v4822 = vadd.f32 %v4820, %v4821
        %v4823 = vrot.slane %v4822, 2
        %v4824 = vadd.f32 %v4822, %v4823
        %v4825 = vrot.slane %v4824, 1
        %v4826 = vadd.f32 %v4824, %v4825
        %4827 = vst [vmem:[%s602] sm:$0xff] %v4826
        %s4828 = sand.u32 %s282, 1
        %s4829 = scalar_lea.sflag [#allocation4], %s4828
        %s4830 = sand.u32 %s282, 1
        %s4831 = smul.addr %s4830, 56
        %s4832 = scalar_lea.vmem [#allocation17], %s4831
        %s4833 = sand.u32 %s38, 1
        %s4834 = scalar_lea.sflag [#allocation19], %s4833
        %s4835 = sand.u32 %s308, 1
        %s4836 = smul.addr %s4835, 56
        %s4837 = scalar_lea.vmem [#allocation18], %s4836
        %s4838 = sand.u32 %s38, 1
        %s4839 = scalar_lea.sflag [#allocation19], %s4838
        %s4840 = sand.u32 %s334, 1
        %s4841 = smul.addr %s4840, 8
        %s4842 = scalar_lea.vmem [#allocation20], %s4841
        // Predicated region
        $region101: #{tpu_custom_call.1} parent=63 // pred_check
          %p4843 = pneg %p292
        $region102: #{tpu_custom_call.1} parent=63 // pred_check_branch
          %4845 = sbr.rel (%p4843) target = $region104
        $region103: #{tpu_custom_call.1} parent=63 // pred_region
          %4847 = vsyncadd %s4829, 0
          %s4848 = smul.addr %s38, 7
          %s4849 = smul.addr %s4848, 8
          %s4850 = scalar_lea.hbm %s11, %s4849
          %s4852 = sshll.u32 %s4832, 4
          %s4853 = int_to_ptr.vmem [resolvable:$true] %s4852
          %s4854 = sshll.u32 %s4850, 4
          %s4855 = int_to_ptr.hbm [resolvable:$true] %s4854
          %4857 = dma.vmem_to_hbm [thread:$0]  %s4853, 896, %s4855, %s4829
        $region104: #{tpu_custom_call.1} parent=63 // pred_fallthru
          _
        // Predicated region
        $region105: #{tpu_custom_call.1} parent=63 // pred_check
          %p4858 = pneg %p318
        $region106: #{tpu_custom_call.1} parent=63 // pred_check_branch
          %4860 = sbr.rel (%p4858) target = $region108
        $region107: #{tpu_custom_call.1} parent=63 // pred_region
          %4862 = vsyncadd %s4834, 0
          %s4863 = smul.addr %s38, 7
          %s4864 = smul.addr %s4863, 8
          %s4865 = scalar_lea.hbm %s12, %s4864
          %s4867 = sshll.u32 %s4837, 4
          %s4868 = int_to_ptr.vmem [resolvable:$true] %s4867
          %s4869 = sshll.u32 %s4865, 4
          %s4870 = int_to_ptr.hbm [resolvable:$true] %s4869
          %4872 = dma.vmem_to_hbm [thread:$0]  %s4868, 896, %s4870, %s4834
        $region108: #{tpu_custom_call.1} parent=63 // pred_fallthru
          _
        // Predicated region
        $region109: #{tpu_custom_call.1} parent=63 // pred_check
          %p4873 = pneg %p344
        $region110: #{tpu_custom_call.1} parent=63 // pred_check_branch
          %4875 = sbr.rel (%p4873) target = $region112
        $region111: #{tpu_custom_call.1} parent=63 // pred_region
          %4877 = vsyncadd %s4839, 0
          %s4878 = smul.addr %s38, 8
          %s4879 = scalar_lea.hbm %s13, %s4878
          %s4881 = sshll.u32 %s4842, 4
          %s4882 = int_to_ptr.vmem [resolvable:$true] %s4881
          %s4883 = sshll.u32 %s4879, 4
          %s4884 = int_to_ptr.hbm [resolvable:$true] %s4883
          %4886 = dma.vmem_to_hbm [thread:$0]  %s4882, 128, %s4884, %s4839
        $region112: #{tpu_custom_call.1} parent=63 // pred_fallthru
          _
      $region64: #{tpu_custom_call.1} parent=5 // pred_fallthru
        _
      %p4887 = scmp.le.s32.totalorder 2, %s33
      // Predicated region
      $region113: #{tpu_custom_call.1} parent=5 // pred_check
        %p4888 = pneg %p4887
      $region114: #{tpu_custom_call.1} parent=5 // pred_check_branch
        %4890 = sbr.rel (%p4888) target = $region116
      $region115: #{tpu_custom_call.1} parent=5 // pred_region
        %s4891 = ssub.s32 %s33, 2
        // Predicated region
        $region117: #{tpu_custom_call.1} parent=115 // pred_check
          %p4892 = pneg %p298
        $region118: #{tpu_custom_call.1} parent=115 // pred_check_branch
          %4894 = sbr.rel (%p4892) target = $region120
        $region119: #{tpu_custom_call.1} parent=115 // pred_region
          %s4895 = sand.u32 %s283, 1
          %s4896 = scalar_lea.sflag [#allocation4], %s4895
          %s4897 = sand.u32 %s283, 1
          %s4898 = smul.addr %s4897, 56
          %s4899 = scalar_lea.vmem [#allocation17], %s4898
          %4901 = dma.done %s4896, 896
        $region120: #{tpu_custom_call.1} parent=115 // pred_fallthru
          _
        // Predicated region
        $region121: #{tpu_custom_call.1} parent=115 // pred_check
          %p4902 = pneg %p324
        $region122: #{tpu_custom_call.1} parent=115 // pred_check_branch
          %4904 = sbr.rel (%p4902) target = $region124
        $region123: #{tpu_custom_call.1} parent=115 // pred_region
          %s4905 = sand.u32 %s39, 1
          %s4906 = scalar_lea.sflag [#allocation19], %s4905
          %s4907 = sand.u32 %s309, 1
          %s4908 = smul.addr %s4907, 56
          %s4909 = scalar_lea.vmem [#allocation18], %s4908
          %4911 = dma.done %s4906, 896
        $region124: #{tpu_custom_call.1} parent=115 // pred_fallthru
          _
        // Predicated region
        $region125: #{tpu_custom_call.1} parent=115 // pred_check
          %p4912 = pneg %p350
        $region126: #{tpu_custom_call.1} parent=115 // pred_check_branch
          %4914 = sbr.rel (%p4912) target = $region128
        $region127: #{tpu_custom_call.1} parent=115 // pred_region
          %s4915 = sand.u32 %s39, 1
          %s4916 = scalar_lea.sflag [#allocation19], %s4915
          %s4917 = sand.u32 %s335, 1
          %s4918 = smul.addr %s4917, 8
          %s4919 = scalar_lea.vmem [#allocation20], %s4918
          %4921 = dma.done %s4916, 128
        $region128: #{tpu_custom_call.1} parent=115 // pred_fallthru
          _
      $region116: #{tpu_custom_call.1} parent=5 // pred_fallthru
        _
    $region6: #{tpu_custom_call.1} parent=1 // loop_footer
      %s37 = sadd.s32 1, %s33
    $region7: #{tpu_custom_call.1} parent=1 // loop_footer_branch
      %32 = sbr.rel target = $region3
    $region8: #{tpu_custom_call.1} parent=1 // loop_exit
      _
    %4922 = vsyncpa [#allocation3], 1
    %s4923 = scalar_lea.sflag [#allocation3], 1
    %4924 = vsyncpa %s4923, 1
    %4925 = vsyncpa [#allocation6], 1
    %4926 = vsyncpa [#allocation9], 1
    %4927 = vsyncpa [#allocation12], 1
    %4928 = vsyncpa [#allocation15], 1
    %4929 = vsyncpa [#allocation4], 1
    %s4930 = scalar_lea.sflag [#allocation4], 1
    %4931 = vsyncpa %s4930, 1
    %4932 = vsyncpa [#allocation19], 1
    %s4933 = scalar_lea.sflag [#allocation19], 1
    %4934 = vsyncpa %s4933, 1

// kernel: tpu_custom_call.1
$region0: #{tpu_custom_call.1}
  #allocation0 [shape = 'u32[]', space=smem, size = 0x4, offset = 0x4, fixed_abs, tag = 'smem constant byte address 0x4 - core index']
  #allocation1 [shape = 'u32[72,128]{1,0:T(1,128)}', space=vmem, size = 0x9000, scoped, tag = 'internal scratch']
  %s0 = inlined_call_operand.hbm [shape: f32[24,784], index: 0, kind: input, shape index: {}]
  %s1 = inlined_call_operand.hbm [shape: bf16[784,512], index: 1, kind: input, shape index: {}]
  %s2 = inlined_call_operand.hbm [shape: f32[1,512], index: 2, kind: input, shape index: {}]
  %s3 = inlined_call_operand.hbm [shape: bf16[512,128], index: 3, kind: input, shape index: {}]
  %s4 = inlined_call_operand.hbm [shape: f32[1,128], index: 4, kind: input, shape index: {}]
  %s5 = inlined_call_operand.hbm [shape: bf16[128,512], index: 5, kind: input, shape index: {}]
  %s6 = inlined_call_operand.hbm [shape: f32[1,512], index: 6, kind: input, shape index: {}]
  %s7 = inlined_call_operand.hbm [shape: bf16[512,896], index: 7, kind: input, shape index: {}]
  %s8 = inlined_call_operand.vmem [shape: f32[1,896], index: 8, kind: input, shape index: {}]
  %s9 = inlined_call_operand.hbm [shape: f32[128,128], index: 9, kind: input, shape index: {}]
  %s10 = inlined_call_operand.vmem [shape: f32[1,128], index: 10, kind: input, shape index: {}]
  %s11 = inlined_call_operand.hbm [shape: f32[24,896], index: 11, kind: output, shape index: {0}]
  %s12 = inlined_call_operand.hbm [shape: f32[3,8,784], index: 12, kind: output, shape index: {1}]
  %s13 = inlined_call_operand.hbm [shape: f32[3,8,128], index: 13, kind: output, shape index: {2}]
  %14 = xla_tuple %s11, %s12, %s13
  %s15 = sld [smem:[#allocation0]]
  $region129: #{tpu_custom_call.1} parent=0
    _
  %s17 = ssub.s32 1, %s15
  %s18 = scalar_select 0, %s17, %s15
  $region1: #{tpu_custom_call.1} parent=0
    #allocation2 [shape = 'u8[57344]{0}', space=vmem, size = 0xe000, scoped, tag = 'input window, operand 0']
    #allocation3 [shape = 's32[2]{0}', space=sflag, size = 0x8, scoped, tag = 'scoped memory for tpu_custom_call.1']
    #allocation4 [shape = 's32[2]{0}', space=sflag, size = 0x8, scoped, tag = 'scoped memory for tpu_custom_call.1']
    #allocation5 [shape = 'u8[802816]{0}', space=vmem, size = 0xc4000, scoped, tag = 'input window, operand 1, single buffered']
    #allocation6 [shape = 's32[1]{0}', space=sflag, size = 0x4, scoped, tag = 'scoped memory for tpu_custom_call.1']
    #allocation7 [shape = 'u8[2048]{0}', space=vmem, size = 0x800, scoped, tag = 'input window, operand 2, single buffered']
    #allocation8 [shape = 'u8[131072]{0}', space=vmem, size = 0x20000, scoped, tag = 'input window, operand 3, single buffered']
    #allocation9 [shape = 's32[1]{0}', space=sflag, size = 0x4, scoped, tag = 'scoped memory for tpu_custom_call.1']
    #allocation10 [shape = 'u8[512]{0}', space=vmem, size = 0x400, scoped, tag = 'input window, operand 4, single buffered']
    #allocation11 [shape = 'u8[131072]{0}', space=vmem, size = 0x20000, scoped, tag = 'input window, operand 5, single buffered']
    #allocation12 [shape = 's32[1]{0}', space=sflag, size = 0x4, scoped, tag = 'scoped memory for tpu_custom_call.1']
    #allocation13 [shape = 'u8[2048]{0}', space=vmem, size = 0x800, scoped, tag = 'input window, operand 6, single buffered']
    #allocation14 [shape = 'u8[917504]{0}', space=vmem, size = 0xe0000, scoped, tag = 'input window, operand 7, single buffered']
    #allocation15 [shape = 's32[1]{0}', space=sflag, size = 0x4, scoped, tag = 'scoped memory for tpu_custom_call.1']
    #allocation16 [shape = 'u8[65536]{0}', space=vmem, size = 0x10000, scoped, tag = 'input window, operand 9, single buffered']
    #allocation17 [shape = 'u8[57344]{0}', space=vmem, size = 0xe000, scoped, tag = 'output window, operand 0']
    #allocation18 [shape = 'u8[57344]{0}', space=vmem, size = 0xe000, scoped, tag = 'output window, operand 1']
    #allocation19 [shape = 's32[2]{0}', space=sflag, size = 0x8, scoped, tag = 'scoped memory for tpu_custom_call.1']
    #allocation20 [shape = 'u8[8192]{0}', space=vmem, size = 0x2000, scoped, tag = 'output window, operand 2']
    %19 = vsyncpa [#allocation3], 0
    %s20 = scalar_lea.sflag [#allocation3], 1
    %21 = vsyncpa %s20, 0
    %22 = vsyncpa [#allocation6], 0
    %23 = vsyncpa [#allocation9], 0
    %24 = vsyncpa [#allocation12], 0
    %25 = vsyncpa [#allocation15], 0
    %26 = vsyncpa [#allocation4], 0
    %s27 = scalar_lea.sflag [#allocation4], 1
    %28 = vsyncpa %s27, 0
    %29 = vsyncpa [#allocation19], 0
    %s30 = scalar_lea.sflag [#allocation19], 1
    %31 = vsyncpa %s30, 0
    loop: start=0, step=1, limit=5
    $region2: #{tpu_custom_call.1} parent=1 // loop_pre_header
      _
    $region3: #{tpu_custom_call.1} parent=1 // loop_header
      %s33 = sphi 0, %s37
      %p34 = scmp.ge.s32.totalorder %s33, 5
      %s43 = sphi 0, %s45
      %s46 = sphi 0, %s43
      %s47 = sphi 0, %s46
      %s63 = sphi 0, %s47
      %s67 = sphi 0, %s67
      %s69 = sphi 0, %s67
      %s70 = sphi 0, %s69
      %s84 = sphi 0, %s70
      %s88 = sphi 0, %s88
      %s90 = sphi 0, %s88
      %s91 = sphi 0, %s90
      %s105 = sphi 0, %s91
      %s109 = sphi 0, %s109
      %s111 = sphi 0, %s109
      %s112 = sphi 0, %s111
      %s126 = sphi 0, %s112
      %s130 = sphi 0, %s130
      %s132 = sphi 0, %s130
      %s133 = sphi 0, %s132
      %s147 = sphi 0, %s133
      %s151 = sphi 0, %s151
      %s153 = sphi 0, %s151
      %s154 = sphi 0, %s153
      %s168 = sphi 0, %s154
      %s172 = sphi 0, %s172
      %s174 = sphi 0, %s172
      %s175 = sphi 0, %s174
      %s189 = sphi 0, %s175
      %s193 = sphi 0, %s193
      %s195 = sphi 0, %s193
      %s196 = sphi 0, %s195
      %s210 = sphi 0, %s196
      %s214 = sphi 0, %s214
      %s216 = sphi 0, %s214
      %s217 = sphi 0, %s216
      %s231 = sphi 0, %s217
      %s235 = sphi 0, %s235
      %s237 = sphi 0, %s235
      %s238 = sphi 0, %s237
      %s252 = sphi 0, %s238
      %s256 = sphi 0, %s256
      %s258 = sphi 0, %s256
      %s259 = sphi 0, %s258
      %s273 = sphi 0, %s259
      %s279 = sphi 0, %s281
      %s282 = sphi 0, %s279
      %s283 = sphi 0, %s282
      %s299 = sphi 0, %s283
      %s305 = sphi 0, %s307
      %s308 = sphi 0, %s305
      %s309 = sphi 0, %s308
      %s325 = sphi 0, %s309
      %s331 = sphi 0, %s333
      %s334 = sphi 0, %s331
      %s335 = sphi 0, %s334
      %s351 = sphi 0, %s335
    $region4: #{tpu_custom_call.1} parent=1 // loop_header_branch
      %36 = sbr.rel (%p34) target = $region8
    $region5: #{tpu_custom_call.1} parent=1 // loop_body
      %s38 = ssub.s32 %s33, 1
      %s39 = ssub.s32 %s33, 2
      %s40 = sadd.s32 %s33, 1
      %s41 = ssub.s32 %s33, %s40
      %p42 = scmp.eq.s32.totalorder %s41, 0
      %s44 = sadd.s32 %s43, 1
      %s45 = scalar_select %p42, %s43, %s44
      %p48 = pneg %p42
      %p49 = scmp.eq.s32.totalorder %s33, 2
      %p50 = por %p48, %p49
      %p51 = scmp.ne.s32.totalorder %s43, %s46
      %p52 = scmp.eq.s32.totalorder %s33, 0
      %p53 = por %p51, %p52
      %p54 = scmp.ne.s32.totalorder %s43, %s46
      %p55 = scmp.eq.s32.totalorder %s38, 2
      %p56 = por %p54, %p55
      %p57 = scmp.ne.s32.totalorder %s46, %s47
      %p58 = scmp.eq.s32.totalorder %s38, 0
      %p59 = por %p57, %p58
      %p60 = scmp.ne.s32.totalorder %s46, %s47
      %p61 = scmp.eq.s32.totalorder %s39, 2
      %p62 = por %p60, %p61
      %p64 = scmp.ne.s32.totalorder %s47, %s63
      %p65 = scmp.eq.s32.totalorder %s39, 0
      %p66 = por %p64, %p65
      %s68 = sadd.s32 %s67, 1
      %p71 = scmp.eq.s32.totalorder %s33, 2
      %p72 = scmp.ne.s32.totalorder %s67, %s69
      %p73 = scmp.eq.s32.totalorder %s33, 0
      %p74 = por %p72, %p73
      %p75 = scmp.ne.s32.totalorder %s67, %s69
      %p76 = scmp.eq.s32.totalorder %s38, 2
      %p77 = por %p75, %p76
      %p78 = scmp.ne.s32.totalorder %s69, %s70
      %p79 = scmp.eq.s32.totalorder %s38, 0
      %p80 = por %p78, %p79
      %p81 = scmp.ne.s32.totalorder %s69, %s70
      %p82 = scmp.eq.s32.totalorder %s39, 2
      %p83 = por %p81, %p82
      %p85 = scmp.ne.s32.totalorder %s70, %s84
      %p86 = scmp.eq.s32.totalorder %s39, 0
      %p87 = por %p85, %p86
      %s89 = sadd.s32 %s88, 1
      %p92 = scmp.eq.s32.totalorder %s33, 2
      %p93 = scmp.ne.s32.totalorder %s88, %s90
      %p94 = scmp.eq.s32.totalorder %s33, 0
      %p95 = por %p93, %p94
      %p96 = scmp.ne.s32.totalorder %s88, %s90
      %p97 = scmp.eq.s32.totalorder %s38, 2
      %p98 = por %p96, %p97
      %p99 = scmp.ne.s32.totalorder %s90, %s91
      %p100 = scmp.eq.s32.totalorder %s38, 0
      %p101 = por %p99, %p100
      %p102 = scmp.ne.s32.totalorder %s90, %s91
      %p103 = scmp.eq.s32.totalorder %s39, 2
      %p104 = por %p102, %p103
      %p106 = scmp.ne.s32.totalorder %s91, %s105
      %p107 = scmp.eq.s32.totalorder %s39, 0
      %p108 = por %p106, %p107
      %s110 = sadd.s32 %s109, 1
      %p113 = scmp.eq.s32.totalorder %s33, 2
      %p114 = scmp.ne.s32.totalorder %s109, %s111
      %p115 = scmp.eq.s32.totalorder %s33, 0
      %p116 = por %p114, %p115
      %p117 = scmp.ne.s32.totalorder %s109, %s111
      %p118 = scmp.eq.s32.totalorder %s38, 2
      %p119 = por %p117, %p118
      %p120 = scmp.ne.s32.totalorder %s111, %s112
      %p121 = scmp.eq.s32.totalorder %s38, 0
      %p122 = por %p120, %p121
      %p123 = scmp.ne.s32.totalorder %s111, %s112
      %p124 = scmp.eq.s32.totalorder %s39, 2
      %p125 = por %p123, %p124
      %p127 = scmp.ne.s32.totalorder %s112, %s126
      %p128 = scmp.eq.s32.totalorder %s39, 0
      %p129 = por %p127, %p128
      %s131 = sadd.s32 %s130, 1
      %p134 = scmp.eq.s32.totalorder %s33, 2
      %p135 = scmp.ne.s32.totalorder %s130, %s132
      %p136 = scmp.eq.s32.totalorder %s33, 0
      %p137 = por %p135, %p136
      %p138 = scmp.ne.s32.totalorder %s130, %s132
      %p139 = scmp.eq.s32.totalorder %s38, 2
      %p140 = por %p138, %p139
      %p141 = scmp.ne.s32.totalorder %s132, %s133
      %p142 = scmp.eq.s32.totalorder %s38, 0
      %p143 = por %p141, %p142
      %p144 = scmp.ne.s32.totalorder %s132, %s133
      %p145 = scmp.eq.s32.totalorder %s39, 2
      %p146 = por %p144, %p145
      %p148 = scmp.ne.s32.totalorder %s133, %s147
      %p149 = scmp.eq.s32.totalorder %s39, 0
      %p150 = por %p148, %p149
      %s152 = sadd.s32 %s151, 1
      %p155 = scmp.eq.s32.totalorder %s33, 2
      %p156 = scmp.ne.s32.totalorder %s151, %s153
      %p157 = scmp.eq.s32.totalorder %s33, 0
      %p158 = por %p156, %p157
      %p159 = scmp.ne.s32.totalorder %s151, %s153
      %p160 = scmp.eq.s32.totalorder %s38, 2
      %p161 = por %p159, %p160
      %p162 = scmp.ne.s32.totalorder %s153, %s154
      %p163 = scmp.eq.s32.totalorder %s38, 0
      %p164 = por %p162, %p163
      %p165 = scmp.ne.s32.totalorder %s153, %s154
      %p166 = scmp.eq.s32.totalorder %s39, 2
      %p167 = por %p165, %p166
      %p169 = scmp.ne.s32.totalorder %s154, %s168
      %p170 = scmp.eq.s32.totalorder %s39, 0
      %p171 = por %p169, %p170
      %s173 = sadd.s32 %s172, 1
      %p176 = scmp.eq.s32.totalorder %s33, 2
      %p177 = scmp.ne.s32.totalorder %s172, %s174
      %p178 = scmp.eq.s32.totalorder %s33, 0
      %p179 = por %p177, %p178
      %p180 = scmp.ne.s32.totalorder %s172, %s174
      %p181 = scmp.eq.s32.totalorder %s38, 2
      %p182 = por %p180, %p181
      %p183 = scmp.ne.s32.totalorder %s174, %s175
      %p184 = scmp.eq.s32.totalorder %s38, 0
      %p185 = por %p183, %p184
      %p186 = scmp.ne.s32.totalorder %s174, %s175
      %p187 = scmp.eq.s32.totalorder %s39, 2
      %p188 = por %p186, %p187
      %p190 = scmp.ne.s32.totalorder %s175, %s189
      %p191 = scmp.eq.s32.totalorder %s39, 0
      %p192 = por %p190, %p191
      %s194 = sadd.s32 %s193, 1
      %p197 = scmp.eq.s32.totalorder %s33, 2
      %p198 = scmp.ne.s32.totalorder %s193, %s195
      %p199 = scmp.eq.s32.totalorder %s33, 0
      %p200 = por %p198, %p199
      %p201 = scmp.ne.s32.totalorder %s193, %s195
      %p202 = scmp.eq.s32.totalorder %s38, 2
      %p203 = por %p201, %p202
      %p204 = scmp.ne.s32.totalorder %s195, %s196
      %p205 = scmp.eq.s32.totalorder %s38, 0
      %p206 = por %p204, %p205
      %p207 = scmp.ne.s32.totalorder %s195, %s196
      %p208 = scmp.eq.s32.totalorder %s39, 2
      %p209 = por %p207, %p208
      %p211 = scmp.ne.s32.totalorder %s196, %s210
      %p212 = scmp.eq.s32.totalorder %s39, 0
      %p213 = por %p211, %p212
      %s215 = sadd.s32 %s214, 1
      %p218 = scmp.eq.s32.totalorder %s33, 2
      %p219 = scmp.ne.s32.totalorder %s214, %s216
      %p220 = scmp.eq.s32.totalorder %s33, 0
      %p221 = por %p219, %p220
      %p222 = scmp.ne.s32.totalorder %s214, %s216
      %p223 = scmp.eq.s32.totalorder %s38, 2
      %p224 = por %p222, %p223
      %p225 = scmp.ne.s32.totalorder %s216, %s217
      %p226 = scmp.eq.s32.totalorder %s38, 0
      %p227 = por %p225, %p226
      %p228 = scmp.ne.s32.totalorder %s216, %s217
      %p229 = scmp.eq.s32.totalorder %s39, 2
      %p230 = por %p228, %p229
      %p232 = scmp.ne.s32.totalorder %s217, %s231
      %p233 = scmp.eq.s32.totalorder %s39, 0
      %p234 = por %p232, %p233
      %s236 = sadd.s32 %s235, 1
      %p239 = scmp.eq.s32.totalorder %s33, 2
      %p240 = scmp.ne.s32.totalorder %s235, %s237
      %p241 = scmp.eq.s32.totalorder %s33, 0
      %p242 = por %p240, %p241
      %p243 = scmp.ne.s32.totalorder %s235, %s237
      %p244 = scmp.eq.s32.totalorder %s38, 2
      %p245 = por %p243, %p244
      %p246 = scmp.ne.s32.totalorder %s237, %s238
      %p247 = scmp.eq.s32.totalorder %s38, 0
      %p248 = por %p246, %p247
      %p249 = scmp.ne.s32.totalorder %s237, %s238
      %p250 = scmp.eq.s32.totalorder %s39, 2
      %p251 = por %p249, %p250
      %p253 = scmp.ne.s32.totalorder %s238, %s252
      %p254 = scmp.eq.s32.totalorder %s39, 0
      %p255 = por %p253, %p254
      %s257 = sadd.s32 %s256, 1
      %p260 = scmp.eq.s32.totalorder %s33, 2
      %p261 = scmp.ne.s32.totalorder %s256, %s258
      %p262 = scmp.eq.s32.totalorder %s33, 0
      %p263 = por %p261, %p262
      %p264 = scmp.ne.s32.totalorder %s256, %s258
      %p265 = scmp.eq.s32.totalorder %s38, 2
      %p266 = por %p264, %p265
      %p267 = scmp.ne.s32.totalorder %s258, %s259
      %p268 = scmp.eq.s32.totalorder %s38, 0
      %p269 = por %p267, %p268
      %p270 = scmp.ne.s32.totalorder %s258, %s259
      %p271 = scmp.eq.s32.totalorder %s39, 2
      %p272 = por %p270, %p271
      %p274 = scmp.ne.s32.totalorder %s259, %s273
      %p275 = scmp.eq.s32.totalorder %s39, 0
      %p276 = por %p274, %p275
      %s277 = ssub.s32 %s33, %s40
      %p278 = scmp.eq.s32.totalorder %s277, 0
      %s280 = sadd.s32 %s279, 1
      %s281 = scalar_select %p278, %s279, %s280
      %p284 = pneg %p278
      %p285 = scmp.eq.s32.totalorder %s33, 2
      %p286 = por %p284, %p285
      %p287 = scmp.ne.s32.totalorder %s279, %s282
      %p288 = scmp.eq.s32.totalorder %s33, 0
      %p289 = por %p287, %p288
      %p290 = scmp.ne.s32.totalorder %s279, %s282
      %p291 = scmp.eq.s32.totalorder %s38, 2
      %p292 = por %p290, %p291
      %p293 = scmp.ne.s32.totalorder %s282, %s283
      %p294 = scmp.eq.s32.totalorder %s38, 0
      %p295 = por %p293, %p294
      %p296 = scmp.ne.s32.totalorder %s282, %s283
      %p297 = scmp.eq.s32.totalorder %s39, 2
      %p298 = por %p296, %p297
      %p300 = scmp.ne.s32.totalorder %s283, %s299
      %p301 = scmp.eq.s32.totalorder %s39, 0
      %p302 = por %p300, %p301
      %s303 = ssub.s32 %s33, %s40
      %p304 = scmp.eq.s32.totalorder %s303, 0
      %s306 = sadd.s32 %s305, 1
      %s307 = scalar_select %p304, %s305, %s306
      %p310 = pneg %p304
      %p311 = scmp.eq.s32.totalorder %s33, 2
      %p312 = por %p310, %p311
      %p313 = scmp.ne.s32.totalorder %s305, %s308
      %p314 = scmp.eq.s32.totalorder %s33, 0
      %p315 = por %p313, %p314
      %p316 = scmp.ne.s32.totalorder %s305, %s308
      %p317 = scmp.eq.s32.totalorder %s38, 2
      %p318 = por %p316, %p317
      %p319 = scmp.ne.s32.totalorder %s308, %s309
      %p320 = scmp.eq.s32.totalorder %s38, 0
      %p321 = por %p319, %p320
      %p322 = scmp.ne.s32.totalorder %s308, %s309
      %p323 = scmp.eq.s32.totalorder %s39, 2
      %p324 = por %p322, %p323
      %p326 = scmp.ne.s32.totalorder %s309, %s325
      %p327 = scmp.eq.s32.totalorder %s39, 0
      %p328 = por %p326, %p327
      %s329 = ssub.s32 %s33, %s40
      %p330 = scmp.eq.s32.totalorder %s329, 0
      %s332 = sadd.s32 %s331, 1
      %s333 = scalar_select %p330, %s331, %s332
      %p336 = pneg %p330
      %p337 = scmp.eq.s32.totalorder %s33, 2
      %p338 = por %p336, %p337
      %p339 = scmp.ne.s32.totalorder %s331, %s334
      %p340 = scmp.eq.s32.totalorder %s33, 0
      %p341 = por %p339, %p340
      %p342 = scmp.ne.s32.totalorder %s331, %s334
      %p343 = scmp.eq.s32.totalorder %s38, 2
      %p344 = por %p342, %p343
      %p345 = scmp.ne.s32.totalorder %s334, %s335
      %p346 = scmp.eq.s32.totalorder %s38, 0
      %p347 = por %p345, %p346
      %p348 = scmp.ne.s32.totalorder %s334, %s335
      %p349 = scmp.eq.s32.totalorder %s39, 2
      %p350 = por %p348, %p349
      %p352 = scmp.ne.s32.totalorder %s335, %s351
      %p353 = scmp.eq.s32.totalorder %s39, 0
      %p354 = por %p352, %p353
      %p355 = scmp.le.s32.totalorder 1, %s33
      %p356 = scmp.lt.s32.totalorder %s33, 4
      %p357 = pnand %p355, %p356
      %p358 = pneg %p357
      // Predicated region
      $region9: #{tpu_custom_call.1} parent=5 // pred_check
        _
      $region10: #{tpu_custom_call.1} parent=5 // pred_check_branch
        %360 = sbr.rel (%p357) target = $region12
      $region11: #{tpu_custom_call.1} parent=5 // pred_region
        %s361 = ssub.s32 %s33, 1
        // Predicated region
        $region13: #{tpu_custom_call.1} parent=11 // pred_check
          %p362 = pneg %p80
        $region14: #{tpu_custom_call.1} parent=11 // pred_check_branch
          %364 = sbr.rel (%p362) target = $region16
        $region15: #{tpu_custom_call.1} parent=11 // pred_region
          %366 = vsyncadd [#allocation6], 0
          %s367 = sshll.u32 %s1, 4
          %s368 = int_to_ptr.hbm [resolvable:$true] %s367
          %s369 = sshll.u32 [#allocation5], 4
          %s370 = int_to_ptr.vmem [resolvable:$true] %s369
          %375 = dma.hbm_to_vmem [thread:$0]  %s368, 25088, %s370, [#allocation6], 256, 256, 16
        $region16: #{tpu_custom_call.1} parent=11 // pred_fallthru
          _
        // Predicated region
        $region17: #{tpu_custom_call.1} parent=11 // pred_check
          %p376 = pneg %p101
        $region18: #{tpu_custom_call.1} parent=11 // pred_check_branch
          %378 = sbr.rel (%p376) target = $region20
        $region19: #{tpu_custom_call.1} parent=11 // pred_region
          %380 = vsyncadd [#allocation6], 0
          %s382 = sshll.u32 %s2, 4
          %s383 = int_to_ptr.hbm [resolvable:$true] %s382
          %s384 = sshll.u32 [#allocation7], 4
          %s385 = int_to_ptr.vmem [resolvable:$true] %s384
          %387 = dma.hbm_to_vmem [thread:$0]  %s383, 64, %s385, [#allocation6]
        $region20: #{tpu_custom_call.1} parent=11 // pred_fallthru
          _
        // Predicated region
        $region21: #{tpu_custom_call.1} parent=11 // pred_check
          %p388 = pneg %p122
        $region22: #{tpu_custom_call.1} parent=11 // pred_check_branch
          %390 = sbr.rel (%p388) target = $region24
        $region23: #{tpu_custom_call.1} parent=11 // pred_region
          %392 = vsyncadd [#allocation9], 0
          %s393 = sshll.u32 %s3, 4
          %s394 = int_to_ptr.hbm [resolvable:$true] %s393
          %s395 = sshll.u32 [#allocation8], 4
          %s396 = int_to_ptr.vmem [resolvable:$true] %s395
          %401 = dma.hbm_to_vmem [thread:$0]  %s394, 4096, %s396, [#allocation9], 64, 64, 4
        $region24: #{tpu_custom_call.1} parent=11 // pred_fallthru
          _
        // Predicated region
        $region25: #{tpu_custom_call.1} parent=11 // pred_check
          %p402 = pneg %p143
        $region26: #{tpu_custom_call.1} parent=11 // pred_check_branch
          %404 = sbr.rel (%p402) target = $region28
        $region27: #{tpu_custom_call.1} parent=11 // pred_region
          %406 = vsyncadd [#allocation9], 0
          %s408 = sshll.u32 %s4, 4
          %s409 = int_to_ptr.hbm [resolvable:$true] %s408
          %s410 = sshll.u32 [#allocation10], 4
          %s411 = int_to_ptr.vmem [resolvable:$true] %s410
          %413 = dma.hbm_to_vmem [thread:$0]  %s409, 16, %s411, [#allocation9]
        $region28: #{tpu_custom_call.1} parent=11 // pred_fallthru
          _
        // Predicated region
        $region29: #{tpu_custom_call.1} parent=11 // pred_check
          %p414 = pneg %p164
        $region30: #{tpu_custom_call.1} parent=11 // pred_check_branch
          %416 = sbr.rel (%p414) target = $region32
        $region31: #{tpu_custom_call.1} parent=11 // pred_region
          %418 = vsyncadd [#allocation12], 0
          %s419 = sshll.u32 %s5, 4
          %s420 = int_to_ptr.hbm [resolvable:$true] %s419
          %s421 = sshll.u32 [#allocation11], 4
          %s422 = int_to_ptr.vmem [resolvable:$true] %s421
          %427 = dma.hbm_to_vmem [thread:$0]  %s420, 4096, %s422, [#allocation12], 256, 256, 16
        $region32: #{tpu_custom_call.1} parent=11 // pred_fallthru
          _
        // Predicated region
        $region33: #{tpu_custom_call.1} parent=11 // pred_check
          %p428 = pneg %p185
        $region34: #{tpu_custom_call.1} parent=11 // pred_check_branch
          %430 = sbr.rel (%p428) target = $region36
        $region35: #{tpu_custom_call.1} parent=11 // pred_region
          %432 = vsyncadd [#allocation12], 0
          %s434 = sshll.u32 %s6, 4
          %s435 = int_to_ptr.hbm [resolvable:$true] %s434
          %s436 = sshll.u32 [#allocation13], 4
          %s437 = int_to_ptr.vmem [resolvable:$true] %s436
          %439 = dma.hbm_to_vmem [thread:$0]  %s435, 64, %s437, [#allocation12]
        $region36: #{tpu_custom_call.1} parent=11 // pred_fallthru
          _
        // Predicated region
        $region37: #{tpu_custom_call.1} parent=11 // pred_check
          %p440 = pneg %p206
        $region38: #{tpu_custom_call.1} parent=11 // pred_check_branch
          %442 = sbr.rel (%p440) target = $region40
        $region39: #{tpu_custom_call.1} parent=11 // pred_region
          %444 = vsyncadd [#allocation15], 0
          %s445 = sshll.u32 %s7, 4
          %s446 = int_to_ptr.hbm [resolvable:$true] %s445
          %s447 = sshll.u32 [#allocation14], 4
          %s448 = int_to_ptr.vmem [resolvable:$true] %s447
          %453 = dma.hbm_to_vmem [thread:$0]  %s446, 28672, %s448, [#allocation15], 448, 448, 28
        $region40: #{tpu_custom_call.1} parent=11 // pred_fallthru
          _
        // Predicated region
        $region41: #{tpu_custom_call.1} parent=11 // pred_check
          %p454 = pneg %p227
        $region42: #{tpu_custom_call.1} parent=11 // pred_check_branch
          %456 = sbr.rel (%p454) target = $region44
        $region43: #{tpu_custom_call.1} parent=11 // pred_region
          _
        $region44: #{tpu_custom_call.1} parent=11 // pred_fallthru
          _
        // Predicated region
        $region45: #{tpu_custom_call.1} parent=11 // pred_check
          %p457 = pneg %p248
        $region46: #{tpu_custom_call.1} parent=11 // pred_check_branch
          %459 = sbr.rel (%p457) target = $region48
        $region47: #{tpu_custom_call.1} parent=11 // pred_region
          %461 = vsyncadd [#allocation15], 0
          %s462 = sshll.u32 %s9, 4
          %s463 = int_to_ptr.hbm [resolvable:$true] %s462
          %s464 = sshll.u32 [#allocation16], 4
          %s465 = int_to_ptr.vmem [resolvable:$true] %s464
          %470 = dma.hbm_to_vmem [thread:$0]  %s463, 2048, %s465, [#allocation15], 128, 128, 8
        $region48: #{tpu_custom_call.1} parent=11 // pred_fallthru
          _
        // Predicated region
        $region49: #{tpu_custom_call.1} parent=11 // pred_check
          %p471 = pneg %p269
        $region50: #{tpu_custom_call.1} parent=11 // pred_check_branch
          %473 = sbr.rel (%p471) target = $region52
        $region51: #{tpu_custom_call.1} parent=11 // pred_region
          _
        $region52: #{tpu_custom_call.1} parent=11 // pred_fallthru
          _
      $region12: #{tpu_custom_call.1} parent=5 // pred_fallthru
        _
      %p474 = scmp.lt.s32.totalorder %s33, 3
      // Predicated region
      $region53: #{tpu_custom_call.1} parent=5 // pred_check
        %p475 = pneg %p474
      $region54: #{tpu_custom_call.1} parent=5 // pred_check_branch
        %477 = sbr.rel (%p475) target = $region56
      $region55: #{tpu_custom_call.1} parent=5 // pred_region
        // Predicated region
        $region57: #{tpu_custom_call.1} parent=55 // pred_check
          %p478 = pneg %p53
        $region58: #{tpu_custom_call.1} parent=55 // pred_check_branch
          %480 = sbr.rel (%p478) target = $region60
        $region59: #{tpu_custom_call.1} parent=55 // pred_region
          %s481 = sand.u32 %s43, 1
          %s482 = scalar_lea.sflag [#allocation3], %s481
          %s483 = sand.u32 %s43, 1
          %s484 = smul.addr %s483, 56
          %s485 = scalar_lea.vmem [#allocation2], %s484
          %487 = vsyncadd %s482, 0
          %s488 = smul.addr %s33, 7
          %s489 = smul.addr %s488, 8
          %s490 = scalar_lea.hbm %s0, %s489
          %s492 = sshll.u32 %s490, 4
          %s493 = int_to_ptr.hbm [resolvable:$true] %s492
          %s494 = sshll.u32 %s485, 4
          %s495 = int_to_ptr.vmem [resolvable:$true] %s494
          %497 = dma.hbm_to_vmem [thread:$0]  %s493, 896, %s495, %s482
        $region60: #{tpu_custom_call.1} parent=55 // pred_fallthru
          _
      $region56: #{tpu_custom_call.1} parent=5 // pred_fallthru
        _
      %p498 = scmp.le.s32.totalorder 1, %s33
      %p499 = scmp.lt.s32.totalorder %s33, 4
      %p500 = pnand %p498, %p499
      %p501 = pneg %p500
      // Predicated region
      $region61: #{tpu_custom_call.1} parent=5 // pred_check
        _
      $region62: #{tpu_custom_call.1} parent=5 // pred_check_branch
        %503 = sbr.rel (%p500) target = $region64
      $region63: #{tpu_custom_call.1} parent=5 // pred_region
        %s504 = ssub.s32 %s33, 1
        %s505 = sand.u32 %s46, 1
        %s506 = scalar_lea.sflag [#allocation3], %s505
        %s507 = sand.u32 %s46, 1
        %s508 = smul.addr %s507, 56
        %s509 = scalar_lea.vmem [#allocation2], %s508
        // Predicated region
        $region65: #{tpu_custom_call.1} parent=63 // pred_check
          %p510 = pneg %p59
        $region66: #{tpu_custom_call.1} parent=63 // pred_check_branch
          %512 = sbr.rel (%p510) target = $region68
        $region67: #{tpu_custom_call.1} parent=63 // pred_region
          %514 = dma.done %s506, 896
        $region68: #{tpu_custom_call.1} parent=63 // pred_fallthru
          _
        // Predicated region
        $region69: #{tpu_custom_call.1} parent=63 // pred_check
          %p515 = pneg %p80
        $region70: #{tpu_custom_call.1} parent=63 // pred_check_branch
          %517 = sbr.rel (%p515) target = $region72
        $region71: #{tpu_custom_call.1} parent=63 // pred_region
          %519 = dma.done [#allocation6], 25088
        $region72: #{tpu_custom_call.1} parent=63 // pred_fallthru
          _
        // Predicated region
        $region73: #{tpu_custom_call.1} parent=63 // pred_check
          %p520 = pneg %p101
        $region74: #{tpu_custom_call.1} parent=63 // pred_check_branch
          %522 = sbr.rel (%p520) target = $region76
        $region75: #{tpu_custom_call.1} parent=63 // pred_region
          %524 = dma.done [#allocation6], 64
        $region76: #{tpu_custom_call.1} parent=63 // pred_fallthru
          _
        // Predicated region
        $region77: #{tpu_custom_call.1} parent=63 // pred_check
          %p525 = pneg %p122
        $region78: #{tpu_custom_call.1} parent=63 // pred_check_branch
          %527 = sbr.rel (%p525) target = $region80
        $region79: #{tpu_custom_call.1} parent=63 // pred_region
          %529 = dma.done [#allocation9], 4096
        $region80: #{tpu_custom_call.1} parent=63 // pred_fallthru
          _
        // Predicated region
        $region81: #{tpu_custom_call.1} parent=63 // pred_check
          %p530 = pneg %p143
        $region82: #{tpu_custom_call.1} parent=63 // pred_check_branch
          %532 = sbr.rel (%p530) target = $region84
        $region83: #{tpu_custom_call.1} parent=63 // pred_region
          %534 = dma.done [#allocation9], 16
        $region84: #{tpu_custom_call.1} parent=63 // pred_fallthru
          _
        // Predicated region
        $region85: #{tpu_custom_call.1} parent=63 // pred_check
          %p535 = pneg %p164
        $region86: #{tpu_custom_call.1} parent=63 // pred_check_branch
          %537 = sbr.rel (%p535) target = $region88
        $region87: #{tpu_custom_call.1} parent=63 // pred_region
          %539 = dma.done [#allocation12], 4096
        $region88: #{tpu_custom_call.1} parent=63 // pred_fallthru
          _
        // Predicated region
        $region89: #{tpu_custom_call.1} parent=63 // pred_check
          %p540 = pneg %p185
        $region90: #{tpu_custom_call.1} parent=63 // pred_check_branch
          %542 = sbr.rel (%p540) target = $region92
        $region91: #{tpu_custom_call.1} parent=63 // pred_region
          %544 = dma.done [#allocation12], 64
        $region92: #{tpu_custom_call.1} parent=63 // pred_fallthru
          _
        // Predicated region
        $region93: #{tpu_custom_call.1} parent=63 // pred_check
          %p545 = pneg %p206
        $region94: #{tpu_custom_call.1} parent=63 // pred_check_branch
          %547 = sbr.rel (%p545) target = $region96
        $region95: #{tpu_custom_call.1} parent=63 // pred_region
          %549 = dma.done [#allocation15], 28672
        $region96: #{tpu_custom_call.1} parent=63 // pred_fallthru
          _
        // Predicated region
        $region97: #{tpu_custom_call.1} parent=63 // pred_check
          %p550 = pneg %p248
        $region98: #{tpu_custom_call.1} parent=63 // pred_check_branch
          %552 = sbr.rel (%p550) target = $region100
        $region99: #{tpu_custom_call.1} parent=63 // pred_region
          %554 = dma.done [#allocation15], 2048
        $region100: #{tpu_custom_call.1} parent=63 // pred_fallthru
          _
        %s555 = sand.u32 %s46, 1
        %s556 = scalar_lea.sflag [#allocation3], %s555
        %s557 = sand.u32 %s46, 1
        %s558 = smul.addr %s557, 56
        %s559 = scalar_lea.vmem [#allocation2], %s558
        %p560 = pneg %p59
        %p561 = pneg %p56
        %p562 = pneg %p80
        %p563 = pneg %p77
        %p564 = pneg %p101
        %p565 = pneg %p98
        %p566 = pneg %p122
        %p567 = pneg %p119
        %p568 = pneg %p143
        %p569 = pneg %p140
        %p570 = pneg %p164
        %p571 = pneg %p161
        %p572 = pneg %p185
        %p573 = pneg %p182
        %p574 = pneg %p206
        %p575 = pneg %p203
        %p576 = pneg %p227
        %p577 = pneg %p224
        %p578 = pneg %p248
        %p579 = pneg %p245
        %p580 = pneg %p269
        %p581 = pneg %p266
        %p582 = pneg %p295
        %p583 = pneg %p292
        %s584 = sand.u32 %s282, 1
        %s585 = scalar_lea.sflag [#allocation4], %s584
        %s586 = sand.u32 %s282, 1
        %s587 = smul.addr %s586, 56
        %s588 = scalar_lea.vmem [#allocation17], %s587
        %p589 = pneg %p321
        %p590 = pneg %p318
        %s591 = sand.u32 %s38, 1
        %s592 = scalar_lea.sflag [#allocation19], %s591
        %s593 = sand.u32 %s308, 1
        %s594 = smul.addr %s593, 56
        %s595 = scalar_lea.vmem [#allocation18], %s594
        %p596 = pneg %p347
        %p597 = pneg %p344
        %s598 = sand.u32 %s38, 1
        %s599 = scalar_lea.sflag [#allocation19], %s598
        %s600 = sand.u32 %s334, 1
        %s601 = smul.addr %s600, 8
        %s602 = scalar_lea.vmem [#allocation20], %s601
        %v604 = vld [vmem:[%s509] sm:$0xff]
        %v605 = vld [vmem:[%s509 + $0x8] sm:$0xff]
        %v606 = vld [vmem:[%s509 + $0x10] sm:$0xff]
        %v607 = vld [vmem:[%s509 + $0x18] sm:$0xff]
        %v608 = vld [vmem:[%s509 + $0x20] sm:$0xff]
        %v609 = vld [vmem:[%s509 + $0x28] sm:$0xff]
        %v610 = vld [vmem:[%s509 + $0x30] sm:$0xff]
        %v611 = vpack.c.bf16 %v604, %v604
        %v612 = vpack.c.bf16 %v605, %v605
        %v613 = vpack.c.bf16 %v606, %v606
        %v614 = vpack.c.bf16 %v607, %v607
        %v615 = vpack.c.bf16 %v608, %v608
        %v616 = vpack.c.bf16 %v609, %v609
        %v617 = vpack.c.bf16 %v610, %v610
        %v618 = vld [vmem:[#allocation5] sm:$0xff]
        %v619 = vld [vmem:[#allocation5 + $0x8] sm:$0xff]
        %v620 = vld [vmem:[#allocation5 + $0x10] sm:$0xff]
        %v621 = vld [vmem:[#allocation5 + $0x18] sm:$0xff]
        %v622 = vld [vmem:[#allocation5 + $0x20] sm:$0xff]
        %v623 = vld [vmem:[#allocation5 + $0x28] sm:$0xff]
        %v624 = vld [vmem:[#allocation5 + $0x30] sm:$0xff]
        %v625 = vld [vmem:[#allocation5 + $0x38] sm:$0xff]
        %v626 = vld [vmem:[#allocation5 + $0x40] sm:$0xff]
        %v627 = vld [vmem:[#allocation5 + $0x48] sm:$0xff]
        %v628 = vld [vmem:[#allocation5 + $0x50] sm:$0xff]
        %v629 = vld [vmem:[#allocation5 + $0x58] sm:$0xff]
        %v630 = vld [vmem:[#allocation5 + $0x60] sm:$0xff]
        %v631 = vld [vmem:[#allocation5 + $0x68] sm:$0xff]
        %v632 = vld [vmem:[#allocation5 + $0x70] sm:$0xff]
        %v633 = vld [vmem:[#allocation5 + $0x78] sm:$0xff]
        %v634 = vld [vmem:[#allocation5 + $0x80] sm:$0xff]
        %v635 = vld [vmem:[#allocation5 + $0x88] sm:$0xff]
        %v636 = vld [vmem:[#allocation5 + $0x90] sm:$0xff]
        %v637 = vld [vmem:[#allocation5 + $0x98] sm:$0xff]
        %v638 = vld [vmem:[#allocation5 + $0xa0] sm:$0xff]
        %v639 = vld [vmem:[#allocation5 + $0xa8] sm:$0xff]
        %v640 = vld [vmem:[#allocation5 + $0xb0] sm:$0xff]
        %v641 = vld [vmem:[#allocation5 + $0xb8] sm:$0xff]
        %v642 = vld [vmem:[#allocation5 + $0xc0] sm:$0xff]
        %v643 = vld [vmem:[#allocation5 + $0xc8] sm:$0xff]
        %v644 = vld [vmem:[#allocation5 + $0xd0] sm:$0xff]
        %v645 = vld [vmem:[#allocation5 + $0xd8] sm:$0xff]
        %v646 = vld [vmem:[#allocation5 + $0xe0] sm:$0xff]
        %v647 = vld [vmem:[#allocation5 + $0xe8] sm:$0xff]
        %v648 = vld [vmem:[#allocation5 + $0xf0] sm:$0xff]
        %v649 = vld [vmem:[#allocation5 + $0xf8] sm:$0xff]
        %v650 = vld [vmem:[#allocation5 + $0x100] sm:$0xff]
        %v651 = vld [vmem:[#allocation5 + $0x108] sm:$0xff]
        %v652 = vld [vmem:[#allocation5 + $0x110] sm:$0xff]
        %v653 = vld [vmem:[#allocation5 + $0x118] sm:$0xff]
        %v654 = vld [vmem:[#allocation5 + $0x120] sm:$0xff]
        %v655 = vld [vmem:[#allocation5 + $0x128] sm:$0xff]
        %v656 = vld [vmem:[#allocation5 + $0x130] sm:$0xff]
        %v657 = vld [vmem:[#allocation5 + $0x138] sm:$0xff]
        %v658 = vld [vmem:[#allocation5 + $0x140] sm:$0xff]
        %v659 = vld [vmem:[#allocation5 + $0x148] sm:$0xff]
        %v660 = vld [vmem:[#allocation5 + $0x150] sm:$0xff]
        %v661 = vld [vmem:[#allocation5 + $0x158] sm:$0xff]
        %v662 = vld [vmem:[#allocation5 + $0x160] sm:$0xff]
        %v663 = vld [vmem:[#allocation5 + $0x168] sm:$0xff]
        %v664 = vld [vmem:[#allocation5 + $0x170] sm:$0xff]
        %v665 = vld [vmem:[#allocation5 + $0x178] sm:$0xff]
        %v666 = vld [vmem:[#allocation5 + $0x180] sm:$0xff]
        %v667 = vld [vmem:[#allocation5 + $0x188] sm:$0xff]
        %v668 = vld [vmem:[#allocation5 + $0x190] sm:$0xff]
        %v669 = vld [vmem:[#allocation5 + $0x198] sm:$0xff]
        %v670 = vld [vmem:[#allocation5 + $0x1a0] sm:$0xff]
        %v671 = vld [vmem:[#allocation5 + $0x1a8] sm:$0xff]
        %v672 = vld [vmem:[#allocation5 + $0x1b0] sm:$0xff]
        %v673 = vld [vmem:[#allocation5 + $0x1b8] sm:$0xff]
        %v674 = vld [vmem:[#allocation5 + $0x1c0] sm:$0xff]
        %v675 = vld [vmem:[#allocation5 + $0x1c8] sm:$0xff]
        %v676 = vld [vmem:[#allocation5 + $0x1d0] sm:$0xff]
        %v677 = vld [vmem:[#allocation5 + $0x1d8] sm:$0xff]
        %v678 = vld [vmem:[#allocation5 + $0x1e0] sm:$0xff]
        %v679 = vld [vmem:[#allocation5 + $0x1e8] sm:$0xff]
        %v680 = vld [vmem:[#allocation5 + $0x1f0] sm:$0xff]
        %v681 = vld [vmem:[#allocation5 + $0x1f8] sm:$0xff]
        %v682 = vld [vmem:[#allocation5 + $0x200] sm:$0xff]
        %v683 = vld [vmem:[#allocation5 + $0x208] sm:$0xff]
        %v684 = vld [vmem:[#allocation5 + $0x210] sm:$0xff]
        %v685 = vld [vmem:[#allocation5 + $0x218] sm:$0xff]
        %v686 = vld [vmem:[#allocation5 + $0x220] sm:$0xff]
        %v687 = vld [vmem:[#allocation5 + $0x228] sm:$0xff]
        %v688 = vld [vmem:[#allocation5 + $0x230] sm:$0xff]
        %v689 = vld [vmem:[#allocation5 + $0x238] sm:$0xff]
        %v690 = vld [vmem:[#allocation5 + $0x240] sm:$0xff]
        %v691 = vld [vmem:[#allocation5 + $0x248] sm:$0xff]
        %v692 = vld [vmem:[#allocation5 + $0x250] sm:$0xff]
        %v693 = vld [vmem:[#allocation5 + $0x258] sm:$0xff]
        %v694 = vld [vmem:[#allocation5 + $0x260] sm:$0xff]
        %v695 = vld [vmem:[#allocation5 + $0x268] sm:$0xff]
        %v696 = vld [vmem:[#allocation5 + $0x270] sm:$0xff]
        %v697 = vld [vmem:[#allocation5 + $0x278] sm:$0xff]
        %v698 = vld [vmem:[#allocation5 + $0x280] sm:$0xff]
        %v699 = vld [vmem:[#allocation5 + $0x288] sm:$0xff]
        %v700 = vld [vmem:[#allocation5 + $0x290] sm:$0xff]
        %v701 = vld [vmem:[#allocation5 + $0x298] sm:$0xff]
        %v702 = vld [vmem:[#allocation5 + $0x2a0] sm:$0xff]
        %v703 = vld [vmem:[#allocation5 + $0x2a8] sm:$0xff]
        %v704 = vld [vmem:[#allocation5 + $0x2b0] sm:$0xff]
        %v705 = vld [vmem:[#allocation5 + $0x2b8] sm:$0xff]
        %v706 = vld [vmem:[#allocation5 + $0x2c0] sm:$0xff]
        %v707 = vld [vmem:[#allocation5 + $0x2c8] sm:$0xff]
        %v708 = vld [vmem:[#allocation5 + $0x2d0] sm:$0xff]
        %v709 = vld [vmem:[#allocation5 + $0x2d8] sm:$0xff]
        %v710 = vld [vmem:[#allocation5 + $0x2e0] sm:$0xff]
        %v711 = vld [vmem:[#allocation5 + $0x2e8] sm:$0xff]
        %v712 = vld [vmem:[#allocation5 + $0x2f0] sm:$0xff]
        %v713 = vld [vmem:[#allocation5 + $0x2f8] sm:$0xff]
        %v714 = vld [vmem:[#allocation5 + $0x300] sm:$0xff]
        %v715 = vld [vmem:[#allocation5 + $0x308] sm:$0xff]
        %v716 = vld [vmem:[#allocation5 + $0x310] sm:$0xff]
        %v717 = vld [vmem:[#allocation5 + $0x318] sm:$0xff]
        %v718 = vld [vmem:[#allocation5 + $0x320] sm:$0xff]
        %v719 = vld [vmem:[#allocation5 + $0x328] sm:$0xff]
        %v720 = vld [vmem:[#allocation5 + $0x330] sm:$0xff]
        %v721 = vld [vmem:[#allocation5 + $0x338] sm:$0xff]
        %v722 = vld [vmem:[#allocation5 + $0x340] sm:$0xff]
        %v723 = vld [vmem:[#allocation5 + $0x348] sm:$0xff]
        %v724 = vld [vmem:[#allocation5 + $0x350] sm:$0xff]
        %v725 = vld [vmem:[#allocation5 + $0x358] sm:$0xff]
        %v726 = vld [vmem:[#allocation5 + $0x360] sm:$0xff]
        %v727 = vld [vmem:[#allocation5 + $0x368] sm:$0xff]
        %v728 = vld [vmem:[#allocation5 + $0x370] sm:$0xff]
        %v729 = vld [vmem:[#allocation5 + $0x378] sm:$0xff]
        %v730 = vld [vmem:[#allocation5 + $0x380] sm:$0xff]
        %v731 = vld [vmem:[#allocation5 + $0x388] sm:$0xff]
        %v732 = vld [vmem:[#allocation5 + $0x390] sm:$0xff]
        %v733 = vld [vmem:[#allocation5 + $0x398] sm:$0xff]
        %v734 = vld [vmem:[#allocation5 + $0x3a0] sm:$0xff]
        %v735 = vld [vmem:[#allocation5 + $0x3a8] sm:$0xff]
        %v736 = vld [vmem:[#allocation5 + $0x3b0] sm:$0xff]
        %v737 = vld [vmem:[#allocation5 + $0x3b8] sm:$0xff]
        %v738 = vld [vmem:[#allocation5 + $0x3c0] sm:$0xff]
        %v739 = vld [vmem:[#allocation5 + $0x3c8] sm:$0xff]
        %v740 = vld [vmem:[#allocation5 + $0x3d0] sm:$0xff]
        %v741 = vld [vmem:[#allocation5 + $0x3d8] sm:$0xff]
        %v742 = vld [vmem:[#allocation5 + $0x3e0] sm:$0xff]
        %v743 = vld [vmem:[#allocation5 + $0x3e8] sm:$0xff]
        %v744 = vld [vmem:[#allocation5 + $0x3f0] sm:$0xff]
        %v745 = vld [vmem:[#allocation5 + $0x3f8] sm:$0xff]
        %v746 = vld [vmem:[#allocation5 + $0x400] sm:$0xff]
        %v747 = vld [vmem:[#allocation5 + $0x408] sm:$0xff]
        %v748 = vld [vmem:[#allocation5 + $0x410] sm:$0xff]
        %v749 = vld [vmem:[#allocation5 + $0x418] sm:$0xff]
        %v750 = vld [vmem:[#allocation5 + $0x420] sm:$0xff]
        %v751 = vld [vmem:[#allocation5 + $0x428] sm:$0xff]
        %v752 = vld [vmem:[#allocation5 + $0x430] sm:$0xff]
        %v753 = vld [vmem:[#allocation5 + $0x438] sm:$0xff]
        %v754 = vld [vmem:[#allocation5 + $0x440] sm:$0xff]
        %v755 = vld [vmem:[#allocation5 + $0x448] sm:$0xff]
        %v756 = vld [vmem:[#allocation5 + $0x450] sm:$0xff]
        %v757 = vld [vmem:[#allocation5 + $0x458] sm:$0xff]
        %v758 = vld [vmem:[#allocation5 + $0x460] sm:$0xff]
        %v759 = vld [vmem:[#allocation5 + $0x468] sm:$0xff]
        %v760 = vld [vmem:[#allocation5 + $0x470] sm:$0xff]
        %v761 = vld [vmem:[#allocation5 + $0x478] sm:$0xff]
        %v762 = vld [vmem:[#allocation5 + $0x480] sm:$0xff]
        %v763 = vld [vmem:[#allocation5 + $0x488] sm:$0xff]
        %v764 = vld [vmem:[#allocation5 + $0x490] sm:$0xff]
        %v765 = vld [vmem:[#allocation5 + $0x498] sm:$0xff]
        %v766 = vld [vmem:[#allocation5 + $0x4a0] sm:$0xff]
        %v767 = vld [vmem:[#allocation5 + $0x4a8] sm:$0xff]
        %v768 = vld [vmem:[#allocation5 + $0x4b0] sm:$0xff]
        %v769 = vld [vmem:[#allocation5 + $0x4b8] sm:$0xff]
        %v770 = vld [vmem:[#allocation5 + $0x4c0] sm:$0xff]
        %v771 = vld [vmem:[#allocation5 + $0x4c8] sm:$0xff]
        %v772 = vld [vmem:[#allocation5 + $0x4d0] sm:$0xff]
        %v773 = vld [vmem:[#allocation5 + $0x4d8] sm:$0xff]
        %v774 = vld [vmem:[#allocation5 + $0x4e0] sm:$0xff]
        %v775 = vld [vmem:[#allocation5 + $0x4e8] sm:$0xff]
        %v776 = vld [vmem:[#allocation5 + $0x4f0] sm:$0xff]
        %v777 = vld [vmem:[#allocation5 + $0x4f8] sm:$0xff]
        %v778 = vld [vmem:[#allocation5 + $0x500] sm:$0xff]
        %v779 = vld [vmem:[#allocation5 + $0x508] sm:$0xff]
        %v780 = vld [vmem:[#allocation5 + $0x510] sm:$0xff]
        %v781 = vld [vmem:[#allocation5 + $0x518] sm:$0xff]
        %v782 = vld [vmem:[#allocation5 + $0x520] sm:$0xff]
        %v783 = vld [vmem:[#allocation5 + $0x528] sm:$0xff]
        %v784 = vld [vmem:[#allocation5 + $0x530] sm:$0xff]
        %v785 = vld [vmem:[#allocation5 + $0x538] sm:$0xff]
        %v786 = vld [vmem:[#allocation5 + $0x540] sm:$0xff]
        %v787 = vld [vmem:[#allocation5 + $0x548] sm:$0xff]
        %v788 = vld [vmem:[#allocation5 + $0x550] sm:$0xff]
        %v789 = vld [vmem:[#allocation5 + $0x558] sm:$0xff]
        %v790 = vld [vmem:[#allocation5 + $0x560] sm:$0xff]
        %v791 = vld [vmem:[#allocation5 + $0x568] sm:$0xff]
        %v792 = vld [vmem:[#allocation5 + $0x570] sm:$0xff]
        %v793 = vld [vmem:[#allocation5 + $0x578] sm:$0xff]
        %v794 = vld [vmem:[#allocation5 + $0x580] sm:$0xff]
        %v795 = vld [vmem:[#allocation5 + $0x588] sm:$0xff]
        %v796 = vld [vmem:[#allocation5 + $0x590] sm:$0xff]
        %v797 = vld [vmem:[#allocation5 + $0x598] sm:$0xff]
        %v798 = vld [vmem:[#allocation5 + $0x5a0] sm:$0xff]
        %v799 = vld [vmem:[#allocation5 + $0x5a8] sm:$0xff]
        %v800 = vld [vmem:[#allocation5 + $0x5b0] sm:$0xff]
        %v801 = vld [vmem:[#allocation5 + $0x5b8] sm:$0xff]
        %v802 = vld [vmem:[#allocation5 + $0x5c0] sm:$0xff]
        %v803 = vld [vmem:[#allocation5 + $0x5c8] sm:$0xff]
        %v804 = vld [vmem:[#allocation5 + $0x5d0] sm:$0xff]
        %v805 = vld [vmem:[#allocation5 + $0x5d8] sm:$0xff]
        %v806 = vld [vmem:[#allocation5 + $0x5e0] sm:$0xff]
        %v807 = vld [vmem:[#allocation5 + $0x5e8] sm:$0xff]
        %v808 = vld [vmem:[#allocation5 + $0x5f0] sm:$0xff]
        %v809 = vld [vmem:[#allocation5 + $0x5f8] sm:$0xff]
        %v810 = vld [vmem:[#allocation5 + $0x600] sm:$0xff]
        %v811 = vld [vmem:[#allocation5 + $0x608] sm:$0xff]
        %v812 = vld [vmem:[#allocation5 + $0x610] sm:$0xff]
        %v813 = vld [vmem:[#allocation5 + $0x618] sm:$0xff]
        %v814 = vld [vmem:[#allocation7] sm:$0xf]
        %v816 = vperm.slane %v814, 0
        %v817 = vperm.slane %v814, 1
        %v818 = vperm.slane %v814, 2
        %v819 = vperm.slane %v814, 3
        %v1020 = vunpack.c.l.b16 %v618
        %v1021 = vunpack.c.h.b16 %v618
        %v1022 = vunpack.c.l.b16 %v619
        %v1023 = vunpack.c.h.b16 %v619
        %v1024 = vunpack.c.l.b16 %v620
        %v1025 = vunpack.c.h.b16 %v620
        %v1026 = vunpack.c.l.b16 %v621
        %v1027 = vunpack.c.h.b16 %v621
        %v1028 = vunpack.c.l.b16 %v622
        %v1029 = vunpack.c.h.b16 %v622
        %v1030 = vunpack.c.l.b16 %v623
        %v1031 = vunpack.c.h.b16 %v623
        %v1032 = vunpack.c.l.b16 %v624
        %v1033 = vunpack.c.h.b16 %v624
        %v1034 = vunpack.c.l.b16 %v625
        %v1035 = vunpack.c.h.b16 %v625
        %v1036 = vunpack.c.l.b16 %v626
        %v1037 = vunpack.c.h.b16 %v626
        %v1038 = vunpack.c.l.b16 %v627
        %v1039 = vunpack.c.h.b16 %v627
        %v1040 = vunpack.c.l.b16 %v628
        %v1041 = vunpack.c.h.b16 %v628
        %v1042 = vunpack.c.l.b16 %v629
        %v1043 = vunpack.c.h.b16 %v629
        %v1044 = vunpack.c.l.b16 %v630
        %v1045 = vunpack.c.h.b16 %v630
        %v1046 = vunpack.c.l.b16 %v631
        %v1047 = vunpack.c.h.b16 %v631
        %v1048 = vunpack.c.l.b16 %v632
        %v1049 = vunpack.c.h.b16 %v632
        %v1050 = vunpack.c.l.b16 %v633
        %v1051 = vunpack.c.h.b16 %v633
        %v1052 = vunpack.c.l.b16 %v634
        %v1053 = vunpack.c.h.b16 %v634
        %v1054 = vunpack.c.l.b16 %v635
        %v1055 = vunpack.c.h.b16 %v635
        %v1056 = vunpack.c.l.b16 %v636
        %v1057 = vunpack.c.h.b16 %v636
        %v1058 = vunpack.c.l.b16 %v637
        %v1059 = vunpack.c.h.b16 %v637
        %v1060 = vunpack.c.l.b16 %v638
        %v1061 = vunpack.c.h.b16 %v638
        %v1062 = vunpack.c.l.b16 %v639
        %v1063 = vunpack.c.h.b16 %v639
        %v1064 = vunpack.c.l.b16 %v640
        %v1065 = vunpack.c.h.b16 %v640
        %v1066 = vunpack.c.l.b16 %v641
        %v1067 = vunpack.c.h.b16 %v641
        %v1068 = vunpack.c.l.b16 %v642
        %v1069 = vunpack.c.h.b16 %v642
        %v1070 = vunpack.c.l.b16 %v643
        %v1071 = vunpack.c.h.b16 %v643
        %v1072 = vunpack.c.l.b16 %v644
        %v1073 = vunpack.c.h.b16 %v644
        %v1074 = vunpack.c.l.b16 %v645
        %v1075 = vunpack.c.h.b16 %v645
        %v1076 = vunpack.c.l.b16 %v646
        %v1077 = vunpack.c.h.b16 %v646
        %v1078 = vunpack.c.l.b16 %v647
        %v1079 = vunpack.c.h.b16 %v647
        %v1080 = vunpack.c.l.b16 %v648
        %v1081 = vunpack.c.h.b16 %v648
        %v1082 = vunpack.c.l.b16 %v649
        %v1083 = vunpack.c.h.b16 %v649
        %v1084 = vunpack.c.l.b16 %v650
        %v1085 = vunpack.c.h.b16 %v650
        %v1086 = vunpack.c.l.b16 %v651
        %v1087 = vunpack.c.h.b16 %v651
        %v1088 = vunpack.c.l.b16 %v652
        %v1089 = vunpack.c.h.b16 %v652
        %v1090 = vunpack.c.l.b16 %v653
        %v1091 = vunpack.c.h.b16 %v653
        %v1092 = vunpack.c.l.b16 %v654
        %v1093 = vunpack.c.h.b16 %v654
        %v1094 = vunpack.c.l.b16 %v655
        %v1095 = vunpack.c.h.b16 %v655
        %v1096 = vunpack.c.l.b16 %v656
        %v1097 = vunpack.c.h.b16 %v656
        %v1098 = vunpack.c.l.b16 %v657
        %v1099 = vunpack.c.h.b16 %v657
        %v1100 = vunpack.c.l.b16 %v658
        %v1101 = vunpack.c.h.b16 %v658
        %v1102 = vunpack.c.l.b16 %v659
        %v1103 = vunpack.c.h.b16 %v659
        %v1104 = vunpack.c.l.b16 %v660
        %v1105 = vunpack.c.h.b16 %v660
        %v1106 = vunpack.c.l.b16 %v661
        %v1107 = vunpack.c.h.b16 %v661
        %v1108 = vunpack.c.l.b16 %v662
        %v1109 = vunpack.c.h.b16 %v662
        %v1110 = vunpack.c.l.b16 %v663
        %v1111 = vunpack.c.h.b16 %v663
        %v1112 = vunpack.c.l.b16 %v664
        %v1113 = vunpack.c.h.b16 %v664
        %v1114 = vunpack.c.l.b16 %v665
        %v1115 = vunpack.c.h.b16 %v665
        %v1116 = vunpack.c.l.b16 %v666
        %v1117 = vunpack.c.h.b16 %v666
        %v1118 = vunpack.c.l.b16 %v667
        %v1119 = vunpack.c.h.b16 %v667
        %v1120 = vunpack.c.l.b16 %v668
        %v1121 = vunpack.c.h.b16 %v668
        %v1122 = vunpack.c.l.b16 %v669
        %v1123 = vunpack.c.h.b16 %v669
        %v1124 = vunpack.c.l.b16 %v670
        %v1125 = vunpack.c.h.b16 %v670
        %v1126 = vunpack.c.l.b16 %v671
        %v1127 = vunpack.c.h.b16 %v671
        %v1128 = vunpack.c.l.b16 %v672
        %v1129 = vunpack.c.h.b16 %v672
        %v1130 = vunpack.c.l.b16 %v673
        %v1131 = vunpack.c.h.b16 %v673
        %v1132 = vunpack.c.l.b16 %v674
        %v1133 = vunpack.c.h.b16 %v674
        %v1134 = vunpack.c.l.b16 %v675
        %v1135 = vunpack.c.h.b16 %v675
        %v1136 = vunpack.c.l.b16 %v676
        %v1137 = vunpack.c.h.b16 %v676
        %v1138 = vunpack.c.l.b16 %v677
        %v1139 = vunpack.c.h.b16 %v677
        %v1140 = vunpack.c.l.b16 %v678
        %v1141 = vunpack.c.h.b16 %v678
        %v1142 = vunpack.c.l.b16 %v679
        %v1143 = vunpack.c.h.b16 %v679
        %v1144 = vunpack.c.l.b16 %v680
        %v1145 = vunpack.c.h.b16 %v680
        %v1146 = vunpack.c.l.b16 %v681
        %v1147 = vunpack.c.h.b16 %v681
        %v1148 = vunpack.c.l.b16 %v682
        %v1149 = vunpack.c.h.b16 %v682
        %v1150 = vunpack.c.l.b16 %v683
        %v1151 = vunpack.c.h.b16 %v683
        %v1152 = vunpack.c.l.b16 %v684
        %v1153 = vunpack.c.h.b16 %v684
        %v1154 = vunpack.c.l.b16 %v685
        %v1155 = vunpack.c.h.b16 %v685
        %v1156 = vunpack.c.l.b16 %v686
        %v1157 = vunpack.c.h.b16 %v686
        %v1158 = vunpack.c.l.b16 %v687
        %v1159 = vunpack.c.h.b16 %v687
        %v1160 = vunpack.c.l.b16 %v688
        %v1161 = vunpack.c.h.b16 %v688
        %v1162 = vunpack.c.l.b16 %v689
        %v1163 = vunpack.c.h.b16 %v689
        %v1164 = vunpack.c.l.b16 %v690
        %v1165 = vunpack.c.h.b16 %v690
        %v1166 = vunpack.c.l.b16 %v691
        %v1167 = vunpack.c.h.b16 %v691
        %v1168 = vunpack.c.l.b16 %v692
        %v1169 = vunpack.c.h.b16 %v692
        %v1170 = vunpack.c.l.b16 %v693
        %v1171 = vunpack.c.h.b16 %v693
        %v1172 = vunpack.c.l.b16 %v694
        %v1173 = vunpack.c.h.b16 %v694
        %v1174 = vunpack.c.l.b16 %v695
        %v1175 = vunpack.c.h.b16 %v695
        %v1176 = vunpack.c.l.b16 %v696
        %v1177 = vunpack.c.h.b16 %v696
        %v1178 = vunpack.c.l.b16 %v697
        %v1179 = vunpack.c.h.b16 %v697
        %v1180 = vunpack.c.l.b16 %v698
        %v1181 = vunpack.c.h.b16 %v698
        %v1182 = vunpack.c.l.b16 %v699
        %v1183 = vunpack.c.h.b16 %v699
        %v1184 = vunpack.c.l.b16 %v700
        %v1185 = vunpack.c.h.b16 %v700
        %v1186 = vunpack.c.l.b16 %v701
        %v1187 = vunpack.c.h.b16 %v701
        %v1188 = vunpack.c.l.b16 %v702
        %v1189 = vunpack.c.h.b16 %v702
        %v1190 = vunpack.c.l.b16 %v703
        %v1191 = vunpack.c.h.b16 %v703
        %v1192 = vunpack.c.l.b16 %v704
        %v1193 = vunpack.c.h.b16 %v704
        %v1194 = vunpack.c.l.b16 %v705
        %v1195 = vunpack.c.h.b16 %v705
        %v1196 = vunpack.c.l.b16 %v706
        %v1197 = vunpack.c.h.b16 %v706
        %v1198 = vunpack.c.l.b16 %v707
        %v1199 = vunpack.c.h.b16 %v707
        %v1200 = vunpack.c.l.b16 %v708
        %v1201 = vunpack.c.h.b16 %v708
        %v1202 = vunpack.c.l.b16 %v709
        %v1203 = vunpack.c.h.b16 %v709
        %v1204 = vunpack.c.l.b16 %v710
        %v1205 = vunpack.c.h.b16 %v710
        %v1206 = vunpack.c.l.b16 %v711
        %v1207 = vunpack.c.h.b16 %v711
        %v1208 = vunpack.c.l.b16 %v712
        %v1209 = vunpack.c.h.b16 %v712
        %v1210 = vunpack.c.l.b16 %v713
        %v1211 = vunpack.c.h.b16 %v713
        %v1212 = vunpack.c.l.b16 %v714
        %v1213 = vunpack.c.h.b16 %v714
        %v1214 = vunpack.c.l.b16 %v715
        %v1215 = vunpack.c.h.b16 %v715
        %v1216 = vunpack.c.l.b16 %v716
        %v1217 = vunpack.c.h.b16 %v716
        %v1218 = vunpack.c.l.b16 %v717
        %v1219 = vunpack.c.h.b16 %v717
        %v1220 = vunpack.c.l.b16 %v718
        %v1221 = vunpack.c.h.b16 %v718
        %v1222 = vunpack.c.l.b16 %v719
        %v1223 = vunpack.c.h.b16 %v719
        %v1224 = vunpack.c.l.b16 %v720
        %v1225 = vunpack.c.h.b16 %v720
        %v1226 = vunpack.c.l.b16 %v721
        %v1227 = vunpack.c.h.b16 %v721
        %v1228 = vunpack.c.l.b16 %v722
        %v1229 = vunpack.c.h.b16 %v722
        %v1230 = vunpack.c.l.b16 %v723
        %v1231 = vunpack.c.h.b16 %v723
        %v1232 = vunpack.c.l.b16 %v724
        %v1233 = vunpack.c.h.b16 %v724
        %v1234 = vunpack.c.l.b16 %v725
        %v1235 = vunpack.c.h.b16 %v725
        %v1236 = vunpack.c.l.b16 %v726
        %v1237 = vunpack.c.h.b16 %v726
        %v1238 = vunpack.c.l.b16 %v727
        %v1239 = vunpack.c.h.b16 %v727
        %v1240 = vunpack.c.l.b16 %v728
        %v1241 = vunpack.c.h.b16 %v728
        %v1242 = vunpack.c.l.b16 %v729
        %v1243 = vunpack.c.h.b16 %v729
        %v1244 = vunpack.c.l.b16 %v730
        %v1245 = vunpack.c.h.b16 %v730
        %v1246 = vunpack.c.l.b16 %v731
        %v1247 = vunpack.c.h.b16 %v731
        %v1248 = vunpack.c.l.b16 %v732
        %v1249 = vunpack.c.h.b16 %v732
        %v1250 = vunpack.c.l.b16 %v733
        %v1251 = vunpack.c.h.b16 %v733
        %v1252 = vunpack.c.l.b16 %v734
        %v1253 = vunpack.c.h.b16 %v734
        %v1254 = vunpack.c.l.b16 %v735
        %v1255 = vunpack.c.h.b16 %v735
        %v1256 = vunpack.c.l.b16 %v736
        %v1257 = vunpack.c.h.b16 %v736
        %v1258 = vunpack.c.l.b16 %v737
        %v1259 = vunpack.c.h.b16 %v737
        %v1260 = vunpack.c.l.b16 %v738
        %v1261 = vunpack.c.h.b16 %v738
        %v1262 = vunpack.c.l.b16 %v739
        %v1263 = vunpack.c.h.b16 %v739
        %v1264 = vunpack.c.l.b16 %v740
        %v1265 = vunpack.c.h.b16 %v740
        %v1266 = vunpack.c.l.b16 %v741
        %v1267 = vunpack.c.h.b16 %v741
        %v1268 = vunpack.c.l.b16 %v742
        %v1269 = vunpack.c.h.b16 %v742
        %v1270 = vunpack.c.l.b16 %v743
        %v1271 = vunpack.c.h.b16 %v743
        %v1272 = vunpack.c.l.b16 %v744
        %v1273 = vunpack.c.h.b16 %v744
        %v1274 = vunpack.c.l.b16 %v745
        %v1275 = vunpack.c.h.b16 %v745
        %v1276 = vunpack.c.l.b16 %v746
        %v1277 = vunpack.c.h.b16 %v746
        %v1278 = vunpack.c.l.b16 %v747
        %v1279 = vunpack.c.h.b16 %v747
        %v1280 = vunpack.c.l.b16 %v748
        %v1281 = vunpack.c.h.b16 %v748
        %v1282 = vunpack.c.l.b16 %v749
        %v1283 = vunpack.c.h.b16 %v749
        %v1284 = vunpack.c.l.b16 %v750
        %v1285 = vunpack.c.h.b16 %v750
        %v1286 = vunpack.c.l.b16 %v751
        %v1287 = vunpack.c.h.b16 %v751
        %v1288 = vunpack.c.l.b16 %v752
        %v1289 = vunpack.c.h.b16 %v752
        %v1290 = vunpack.c.l.b16 %v753
        %v1291 = vunpack.c.h.b16 %v753
        %v1292 = vunpack.c.l.b16 %v754
        %v1293 = vunpack.c.h.b16 %v754
        %v1294 = vunpack.c.l.b16 %v755
        %v1295 = vunpack.c.h.b16 %v755
        %v1296 = vunpack.c.l.b16 %v756
        %v1297 = vunpack.c.h.b16 %v756
        %v1298 = vunpack.c.l.b16 %v757
        %v1299 = vunpack.c.h.b16 %v757
        %v1300 = vunpack.c.l.b16 %v758
        %v1301 = vunpack.c.h.b16 %v758
        %v1302 = vunpack.c.l.b16 %v759
        %v1303 = vunpack.c.h.b16 %v759
        %v1304 = vunpack.c.l.b16 %v760
        %v1305 = vunpack.c.h.b16 %v760
        %v1306 = vunpack.c.l.b16 %v761
        %v1307 = vunpack.c.h.b16 %v761
        %v1308 = vunpack.c.l.b16 %v762
        %v1309 = vunpack.c.h.b16 %v762
        %v1310 = vunpack.c.l.b16 %v763
        %v1311 = vunpack.c.h.b16 %v763
        %v1312 = vunpack.c.l.b16 %v764
        %v1313 = vunpack.c.h.b16 %v764
        %v1314 = vunpack.c.l.b16 %v765
        %v1315 = vunpack.c.h.b16 %v765
        %v1316 = vunpack.c.l.b16 %v766
        %v1317 = vunpack.c.h.b16 %v766
        %v1318 = vunpack.c.l.b16 %v767
        %v1319 = vunpack.c.h.b16 %v767
        %v1320 = vunpack.c.l.b16 %v768
        %v1321 = vunpack.c.h.b16 %v768
        %v1322 = vunpack.c.l.b16 %v769
        %v1323 = vunpack.c.h.b16 %v769
        %v1324 = vunpack.c.l.b16 %v770
        %v1325 = vunpack.c.h.b16 %v770
        %v1326 = vunpack.c.l.b16 %v771
        %v1327 = vunpack.c.h.b16 %v771
        %v1328 = vunpack.c.l.b16 %v772
        %v1329 = vunpack.c.h.b16 %v772
        %v1330 = vunpack.c.l.b16 %v773
        %v1331 = vunpack.c.h.b16 %v773
        %v1332 = vunpack.c.l.b16 %v774
        %v1333 = vunpack.c.h.b16 %v774
        %v1334 = vunpack.c.l.b16 %v775
        %v1335 = vunpack.c.h.b16 %v775
        %v1336 = vunpack.c.l.b16 %v776
        %v1337 = vunpack.c.h.b16 %v776
        %v1338 = vunpack.c.l.b16 %v777
        %v1339 = vunpack.c.h.b16 %v777
        %v1340 = vunpack.c.l.b16 %v778
        %v1341 = vunpack.c.h.b16 %v778
        %v1342 = vunpack.c.l.b16 %v779
        %v1343 = vunpack.c.h.b16 %v779
        %v1344 = vunpack.c.l.b16 %v780
        %v1345 = vunpack.c.h.b16 %v780
        %v1346 = vunpack.c.l.b16 %v781
        %v1347 = vunpack.c.h.b16 %v781
        %v1348 = vunpack.c.l.b16 %v782
        %v1349 = vunpack.c.h.b16 %v782
        %v1350 = vunpack.c.l.b16 %v783
        %v1351 = vunpack.c.h.b16 %v783
        %v1352 = vunpack.c.l.b16 %v784
        %v1353 = vunpack.c.h.b16 %v784
        %v1354 = vunpack.c.l.b16 %v785
        %v1355 = vunpack.c.h.b16 %v785
        %v1356 = vunpack.c.l.b16 %v786
        %v1357 = vunpack.c.h.b16 %v786
        %v1358 = vunpack.c.l.b16 %v787
        %v1359 = vunpack.c.h.b16 %v787
        %v1360 = vunpack.c.l.b16 %v788
        %v1361 = vunpack.c.h.b16 %v788
        %v1362 = vunpack.c.l.b16 %v789
        %v1363 = vunpack.c.h.b16 %v789
        %v1364 = vunpack.c.l.b16 %v790
        %v1365 = vunpack.c.h.b16 %v790
        %v1366 = vunpack.c.l.b16 %v791
        %v1367 = vunpack.c.h.b16 %v791
        %v1368 = vunpack.c.l.b16 %v792
        %v1369 = vunpack.c.h.b16 %v792
        %v1370 = vunpack.c.l.b16 %v793
        %v1371 = vunpack.c.h.b16 %v793
        %v1372 = vunpack.c.l.b16 %v794
        %v1373 = vunpack.c.h.b16 %v794
        %v1374 = vunpack.c.l.b16 %v795
        %v1375 = vunpack.c.h.b16 %v795
        %v1376 = vunpack.c.l.b16 %v796
        %v1377 = vunpack.c.h.b16 %v796
        %v1378 = vunpack.c.l.b16 %v797
        %v1379 = vunpack.c.h.b16 %v797
        %v1380 = vunpack.c.l.b16 %v798
        %v1381 = vunpack.c.h.b16 %v798
        %v1382 = vunpack.c.l.b16 %v799
        %v1383 = vunpack.c.h.b16 %v799
        %v1384 = vunpack.c.l.b16 %v800
        %v1385 = vunpack.c.h.b16 %v800
        %v1386 = vunpack.c.l.b16 %v801
        %v1387 = vunpack.c.h.b16 %v801
        %v1388 = vunpack.c.l.b16 %v802
        %v1389 = vunpack.c.h.b16 %v802
        %v1390 = vunpack.c.l.b16 %v803
        %v1391 = vunpack.c.h.b16 %v803
        %v1392 = vunpack.c.l.b16 %v804
        %v1393 = vunpack.c.h.b16 %v804
        %v1394 = vunpack.c.l.b16 %v805
        %v1395 = vunpack.c.h.b16 %v805
        %v1396 = vunpack.c.l.b16 %v806
        %v1397 = vunpack.c.h.b16 %v806
        %v1398 = vunpack.c.l.b16 %v807
        %v1399 = vunpack.c.h.b16 %v807
        %v1400 = vunpack.c.l.b16 %v808
        %v1401 = vunpack.c.h.b16 %v808
        %v1402 = vunpack.c.l.b16 %v809
        %v1403 = vunpack.c.h.b16 %v809
        %v1404 = vunpack.c.l.b16 %v810
        %v1405 = vunpack.c.h.b16 %v810
        %v1406 = vunpack.c.l.b16 %v811
        %v1407 = vunpack.c.h.b16 %v811
        %v1408 = vunpack.c.l.b16 %v812
        %v1409 = vunpack.c.h.b16 %v812
        %v1410 = vunpack.c.l.b16 %v813
        %v1411 = vunpack.c.h.b16 %v813
        %v1412 = vpack.c.b16 %v1024, %v1020
        %v1413 = vpack.c.b16 %v1025, %v1021
        %v1414 = vpack.c.b16 %v1026, %v1022
        %v1415 = vpack.c.b16 %v1027, %v1023
        %v1416 = vpack.c.b16 %v1032, %v1028
        %v1417 = vpack.c.b16 %v1033, %v1029
        %v1418 = vpack.c.b16 %v1034, %v1030
        %v1419 = vpack.c.b16 %v1035, %v1031
        %v1420 = vpack.c.b16 %v1040, %v1036
        %v1421 = vpack.c.b16 %v1041, %v1037
        %v1422 = vpack.c.b16 %v1042, %v1038
        %v1423 = vpack.c.b16 %v1043, %v1039
        %v1424 = vpack.c.b16 %v1048, %v1044
        %v1425 = vpack.c.b16 %v1049, %v1045
        %v1426 = vpack.c.b16 %v1050, %v1046
        %v1427 = vpack.c.b16 %v1051, %v1047
        %v1428 = vpack.c.b16 %v1056, %v1052
        %v1429 = vpack.c.b16 %v1057, %v1053
        %v1430 = vpack.c.b16 %v1058, %v1054
        %v1431 = vpack.c.b16 %v1059, %v1055
        %v1432 = vpack.c.b16 %v1064, %v1060
        %v1433 = vpack.c.b16 %v1065, %v1061
        %v1434 = vpack.c.b16 %v1066, %v1062
        %v1435 = vpack.c.b16 %v1067, %v1063
        %v1436 = vpack.c.b16 %v1072, %v1068
        %v1437 = vpack.c.b16 %v1073, %v1069
        %v1438 = vpack.c.b16 %v1074, %v1070
        %v1439 = vpack.c.b16 %v1075, %v1071
        %v1440 = vpack.c.b16 %v1080, %v1076
        %v1441 = vpack.c.b16 %v1081, %v1077
        %v1442 = vpack.c.b16 %v1082, %v1078
        %v1443 = vpack.c.b16 %v1083, %v1079
        %v1444 = vpack.c.b16 %v1088, %v1084
        %v1445 = vpack.c.b16 %v1089, %v1085
        %v1446 = vpack.c.b16 %v1090, %v1086
        %v1447 = vpack.c.b16 %v1091, %v1087
        %v1448 = vpack.c.b16 %v1096, %v1092
        %v1449 = vpack.c.b16 %v1097, %v1093
        %v1450 = vpack.c.b16 %v1098, %v1094
        %v1451 = vpack.c.b16 %v1099, %v1095
        %v1452 = vpack.c.b16 %v1104, %v1100
        %v1453 = vpack.c.b16 %v1105, %v1101
        %v1454 = vpack.c.b16 %v1106, %v1102
        %v1455 = vpack.c.b16 %v1107, %v1103
        %v1456 = vpack.c.b16 %v1112, %v1108
        %v1457 = vpack.c.b16 %v1113, %v1109
        %v1458 = vpack.c.b16 %v1114, %v1110
        %v1459 = vpack.c.b16 %v1115, %v1111
        %v1460 = vpack.c.b16 %v1120, %v1116
        %v1461 = vpack.c.b16 %v1121, %v1117
        %v1462 = vpack.c.b16 %v1122, %v1118
        %v1463 = vpack.c.b16 %v1123, %v1119
        %v1464 = vpack.c.b16 %v1128, %v1124
        %v1465 = vpack.c.b16 %v1129, %v1125
        %v1466 = vpack.c.b16 %v1130, %v1126
        %v1467 = vpack.c.b16 %v1131, %v1127
        %v1468 = vpack.c.b16 %v1136, %v1132
        %v1469 = vpack.c.b16 %v1137, %v1133
        %v1470 = vpack.c.b16 %v1138, %v1134
        %v1471 = vpack.c.b16 %v1139, %v1135
        %v1472 = vpack.c.b16 %v1144, %v1140
        %v1473 = vpack.c.b16 %v1145, %v1141
        %v1474 = vpack.c.b16 %v1146, %v1142
        %v1475 = vpack.c.b16 %v1147, %v1143
        %v1476 = vpack.c.b16 %v1152, %v1148
        %v1477 = vpack.c.b16 %v1153, %v1149
        %v1478 = vpack.c.b16 %v1154, %v1150
        %v1479 = vpack.c.b16 %v1155, %v1151
        %v1480 = vpack.c.b16 %v1160, %v1156
        %v1481 = vpack.c.b16 %v1161, %v1157
        %v1482 = vpack.c.b16 %v1162, %v1158
        %v1483 = vpack.c.b16 %v1163, %v1159
        %v1484 = vpack.c.b16 %v1168, %v1164
        %v1485 = vpack.c.b16 %v1169, %v1165
        %v1486 = vpack.c.b16 %v1170, %v1166
        %v1487 = vpack.c.b16 %v1171, %v1167
        %v1488 = vpack.c.b16 %v1176, %v1172
        %v1489 = vpack.c.b16 %v1177, %v1173
        %v1490 = vpack.c.b16 %v1178, %v1174
        %v1491 = vpack.c.b16 %v1179, %v1175
        %v1492 = vpack.c.b16 %v1184, %v1180
        %v1493 = vpack.c.b16 %v1185, %v1181
        %v1494 = vpack.c.b16 %v1186, %v1182
        %v1495 = vpack.c.b16 %v1187, %v1183
        %v1496 = vpack.c.b16 %v1192, %v1188
        %v1497 = vpack.c.b16 %v1193, %v1189
        %v1498 = vpack.c.b16 %v1194, %v1190
        %v1499 = vpack.c.b16 %v1195, %v1191
        %v1500 = vpack.c.b16 %v1200, %v1196
        %v1501 = vpack.c.b16 %v1201, %v1197
        %v1502 = vpack.c.b16 %v1202, %v1198
        %v1503 = vpack.c.b16 %v1203, %v1199
        %v1504 = vpack.c.b16 %v1208, %v1204
        %v1505 = vpack.c.b16 %v1209, %v1205
        %v1506 = vpack.c.b16 %v1210, %v1206
        %v1507 = vpack.c.b16 %v1211, %v1207
        %v1508 = vpack.c.b16 %v1216, %v1212
        %v1509 = vpack.c.b16 %v1217, %v1213
        %v1510 = vpack.c.b16 %v1218, %v1214
        %v1511 = vpack.c.b16 %v1219, %v1215
        %v1512 = vpack.c.b16 %v1224, %v1220
        %v1513 = vpack.c.b16 %v1225, %v1221
        %v1514 = vpack.c.b16 %v1226, %v1222
        %v1515 = vpack.c.b16 %v1227, %v1223
        %v1516 = vpack.c.b16 %v1232, %v1228
        %v1517 = vpack.c.b16 %v1233, %v1229
        %v1518 = vpack.c.b16 %v1234, %v1230
        %v1519 = vpack.c.b16 %v1235, %v1231
        %v1520 = vpack.c.b16 %v1240, %v1236
        %v1521 = vpack.c.b16 %v1241, %v1237
        %v1522 = vpack.c.b16 %v1242, %v1238
        %v1523 = vpack.c.b16 %v1243, %v1239
        %v1524 = vpack.c.b16 %v1248, %v1244
        %v1525 = vpack.c.b16 %v1249, %v1245
        %v1526 = vpack.c.b16 %v1250, %v1246
        %v1527 = vpack.c.b16 %v1251, %v1247
        %v1528 = vpack.c.b16 %v1256, %v1252
        %v1529 = vpack.c.b16 %v1257, %v1253
        %v1530 = vpack.c.b16 %v1258, %v1254
        %v1531 = vpack.c.b16 %v1259, %v1255
        %v1532 = vpack.c.b16 %v1264, %v1260
        %v1533 = vpack.c.b16 %v1265, %v1261
        %v1534 = vpack.c.b16 %v1266, %v1262
        %v1535 = vpack.c.b16 %v1267, %v1263
        %v1536 = vpack.c.b16 %v1272, %v1268
        %v1537 = vpack.c.b16 %v1273, %v1269
        %v1538 = vpack.c.b16 %v1274, %v1270
        %v1539 = vpack.c.b16 %v1275, %v1271
        %v1540 = vpack.c.b16 %v1280, %v1276
        %v1541 = vpack.c.b16 %v1281, %v1277
        %v1542 = vpack.c.b16 %v1282, %v1278
        %v1543 = vpack.c.b16 %v1283, %v1279
        %v1544 = vpack.c.b16 %v1288, %v1284
        %v1545 = vpack.c.b16 %v1289, %v1285
        %v1546 = vpack.c.b16 %v1290, %v1286
        %v1547 = vpack.c.b16 %v1291, %v1287
        %v1548 = vpack.c.b16 %v1296, %v1292
        %v1549 = vpack.c.b16 %v1297, %v1293
        %v1550 = vpack.c.b16 %v1298, %v1294
        %v1551 = vpack.c.b16 %v1299, %v1295
        %v1552 = vpack.c.b16 %v1304, %v1300
        %v1553 = vpack.c.b16 %v1305, %v1301
        %v1554 = vpack.c.b16 %v1306, %v1302
        %v1555 = vpack.c.b16 %v1307, %v1303
        %v1556 = vpack.c.b16 %v1312, %v1308
        %v1557 = vpack.c.b16 %v1313, %v1309
        %v1558 = vpack.c.b16 %v1314, %v1310
        %v1559 = vpack.c.b16 %v1315, %v1311
        %v1560 = vpack.c.b16 %v1320, %v1316
        %v1561 = vpack.c.b16 %v1321, %v1317
        %v1562 = vpack.c.b16 %v1322, %v1318
        %v1563 = vpack.c.b16 %v1323, %v1319
        %v1564 = vpack.c.b16 %v1328, %v1324
        %v1565 = vpack.c.b16 %v1329, %v1325
        %v1566 = vpack.c.b16 %v1330, %v1326
        %v1567 = vpack.c.b16 %v1331, %v1327
        %v1568 = vpack.c.b16 %v1336, %v1332
        %v1569 = vpack.c.b16 %v1337, %v1333
        %v1570 = vpack.c.b16 %v1338, %v1334
        %v1571 = vpack.c.b16 %v1339, %v1335
        %v1572 = vpack.c.b16 %v1344, %v1340
        %v1573 = vpack.c.b16 %v1345, %v1341
        %v1574 = vpack.c.b16 %v1346, %v1342
        %v1575 = vpack.c.b16 %v1347, %v1343
        %v1576 = vpack.c.b16 %v1352, %v1348
        %v1577 = vpack.c.b16 %v1353, %v1349
        %v1578 = vpack.c.b16 %v1354, %v1350
        %v1579 = vpack.c.b16 %v1355, %v1351
        %v1580 = vpack.c.b16 %v1360, %v1356
        %v1581 = vpack.c.b16 %v1361, %v1357
        %v1582 = vpack.c.b16 %v1362, %v1358
        %v1583 = vpack.c.b16 %v1363, %v1359
        %v1584 = vpack.c.b16 %v1368, %v1364
        %v1585 = vpack.c.b16 %v1369, %v1365
        %v1586 = vpack.c.b16 %v1370, %v1366
        %v1587 = vpack.c.b16 %v1371, %v1367
        %v1588 = vpack.c.b16 %v1376, %v1372
        %v1589 = vpack.c.b16 %v1377, %v1373
        %v1590 = vpack.c.b16 %v1378, %v1374
        %v1591 = vpack.c.b16 %v1379, %v1375
        %v1592 = vpack.c.b16 %v1384, %v1380
        %v1593 = vpack.c.b16 %v1385, %v1381
        %v1594 = vpack.c.b16 %v1386, %v1382
        %v1595 = vpack.c.b16 %v1387, %v1383
        %v1596 = vpack.c.b16 %v1392, %v1388
        %v1597 = vpack.c.b16 %v1393, %v1389
        %v1598 = vpack.c.b16 %v1394, %v1390
        %v1599 = vpack.c.b16 %v1395, %v1391
        %v1600 = vpack.c.b16 %v1400, %v1396
        %v1601 = vpack.c.b16 %v1401, %v1397
        %v1602 = vpack.c.b16 %v1402, %v1398
        %v1603 = vpack.c.b16 %v1403, %v1399
        %v1604 = vpack.c.b16 %v1408, %v1404
        %v1605 = vpack.c.b16 %v1409, %v1405
        %v1606 = vpack.c.b16 %v1410, %v1406
        %v1607 = vpack.c.b16 %v1411, %v1407
        %vm1804 = vcmask 130048
        %v1806 = vsel %vm1804, %v617, 0
        %1808 = vmatpush.bf16.msra.mxu0 %v1440
        %1809 = vmatpush.bf16.msra.mxu0 %v1436
        %1810 = vmatpush.bf16.msra.mxu0 %v1432
        %1811 = vmatpush.bf16.msra.mxu0 %v1428
        %1812 = vmatpush.bf16.msra.mxu0 %v1424
        %1813 = vmatpush.bf16.msra.mxu0 %v1420
        %1814 = vmatpush.bf16.msra.mxu0 %v1416
        %1815 = vmatpush.bf16.msra.mxu0 %v1412
        %1816 = vmatmul.bf16.gmra.mxu0 %v611
        %v1817 = vpop.f32.mrf.mxu0
        %v1818 = vadd.f32 %v816, %v1817
        %v1819 = vpop.f32.mrf.mxu0
        %1820 = vdwg.mxu0
        %1821 = vmatpush.bf16.msra.mxu0 %v1472
        %1822 = vmatpush.bf16.msra.mxu0 %v1468
        %1823 = vmatpush.bf16.msra.mxu0 %v1464
        %1824 = vmatpush.bf16.msra.mxu0 %v1460
        %1825 = vmatpush.bf16.msra.mxu0 %v1456
        %1826 = vmatpush.bf16.msra.mxu0 %v1452
        %1827 = vmatpush.bf16.msra.mxu0 %v1448
        %1828 = vmatpush.bf16.msra.mxu0 %v1444
        %1829 = vmatmul.bf16.gmra.mxu0 %v612
        %v1830 = vpop.f32.mrf.mxu0
        %v1831 = vadd.f32 %v1818, %v1830
        %v1832 = vpop.f32.mrf.mxu0
        %1833 = vdwg.mxu0
        %1834 = vmatpush.bf16.msra.mxu0 %v1504
        %1835 = vmatpush.bf16.msra.mxu0 %v1500
        %1836 = vmatpush.bf16.msra.mxu0 %v1496
        %1837 = vmatpush.bf16.msra.mxu0 %v1492
        %1838 = vmatpush.bf16.msra.mxu0 %v1488
        %1839 = vmatpush.bf16.msra.mxu0 %v1484
        %1840 = vmatpush.bf16.msra.mxu0 %v1480
        %1841 = vmatpush.bf16.msra.mxu0 %v1476
        %1842 = vmatmul.bf16.gmra.mxu0 %v613
        %v1843 = vpop.f32.mrf.mxu0
        %v1844 = vadd.f32 %v1831, %v1843
        %v1845 = vpop.f32.mrf.mxu0
        %1846 = vdwg.mxu0
        %1847 = vmatpush.bf16.msra.mxu0 %v1536
        %1848 = vmatpush.bf16.msra.mxu0 %v1532
        %1849 = vmatpush.bf16.msra.mxu0 %v1528
        %1850 = vmatpush.bf16.msra.mxu0 %v1524
        %1851 = vmatpush.bf16.msra.mxu0 %v1520
        %1852 = vmatpush.bf16.msra.mxu0 %v1516
        %1853 = vmatpush.bf16.msra.mxu0 %v1512
        %1854 = vmatpush.bf16.msra.mxu0 %v1508
        %1855 = vmatmul.bf16.gmra.mxu0 %v614
        %v1856 = vpop.f32.mrf.mxu0
        %v1857 = vadd.f32 %v1844, %v1856
        %v1858 = vpop.f32.mrf.mxu0
        %1859 = vdwg.mxu0
        %1860 = vmatpush.bf16.msra.mxu0 %v1568
        %1861 = vmatpush.bf16.msra.mxu0 %v1564
        %1862 = vmatpush.bf16.msra.mxu0 %v1560
        %1863 = vmatpush.bf16.msra.mxu0 %v1556
        %1864 = vmatpush.bf16.msra.mxu0 %v1552
        %1865 = vmatpush.bf16.msra.mxu0 %v1548
        %1866 = vmatpush.bf16.msra.mxu0 %v1544
        %1867 = vmatpush.bf16.msra.mxu0 %v1540
        %1868 = vmatmul.bf16.gmra.mxu0 %v615
        %v1869 = vpop.f32.mrf.mxu0
        %v1870 = vadd.f32 %v1857, %v1869
        %v1871 = vpop.f32.mrf.mxu0
        %1872 = vdwg.mxu0
        %1873 = vmatpush.bf16.msra.mxu0 %v1600
        %1874 = vmatpush.bf16.msra.mxu0 %v1596
        %1875 = vmatpush.bf16.msra.mxu0 %v1592
        %1876 = vmatpush.bf16.msra.mxu0 %v1588
        %1877 = vmatpush.bf16.msra.mxu0 %v1584
        %1878 = vmatpush.bf16.msra.mxu0 %v1580
        %1879 = vmatpush.bf16.msra.mxu0 %v1576
        %1880 = vmatpush.bf16.msra.mxu0 %v1572
        %1881 = vmatmul.bf16.gmra.mxu0 %v616
        %v1882 = vpop.f32.mrf.mxu0
        %v1883 = vadd.f32 %v1870, %v1882
        %v1884 = vpop.f32.mrf.mxu0
        %1885 = vdwg.mxu0
        %1886 = vmatpush.bf16.msra.mxu0 0
        %1887 = vmatpush.bf16.msra.mxu0 0
        %1888 = vmatpush.bf16.msra.mxu0 0
        %1889 = vmatpush.bf16.msra.mxu0 0
        %1890 = vmatpush.bf16.msra.mxu0 0
        %1891 = vmatpush.bf16.msra.mxu0 0
        %1892 = vmatpush.bf16.msra.mxu0 0
        %1893 = vmatpush.bf16.msra.mxu0 %v1604
        %1894 = vmatmul.bf16.gmra.mxu0 %v1806
        %v1895 = vpop.f32.mrf.mxu0
        %v1896 = vadd.f32 %v1883, %v1895
        %v1897 = vpop.f32.mrf.mxu0
        %1898 = vdwg.mxu0
        %1899 = vmatpush.bf16.msra.mxu0 %v1441
        %1900 = vmatpush.bf16.msra.mxu0 %v1437
        %1901 = vmatpush.bf16.msra.mxu0 %v1433
        %1902 = vmatpush.bf16.msra.mxu0 %v1429
        %1903 = vmatpush.bf16.msra.mxu0 %v1425
        %1904 = vmatpush.bf16.msra.mxu0 %v1421
        %1905 = vmatpush.bf16.msra.mxu0 %v1417
        %1906 = vmatpush.bf16.msra.mxu0 %v1413
        %1907 = vmatmul.bf16.gmra.mxu0 %v611
        %v1908 = vpop.f32.mrf.mxu0
        %v1909 = vadd.f32 %v817, %v1908
        %v1910 = vpop.f32.mrf.mxu0
        %1911 = vdwg.mxu0
        %1912 = vmatpush.bf16.msra.mxu0 %v1473
        %1913 = vmatpush.bf16.msra.mxu0 %v1469
        %1914 = vmatpush.bf16.msra.mxu0 %v1465
        %1915 = vmatpush.bf16.msra.mxu0 %v1461
        %1916 = vmatpush.bf16.msra.mxu0 %v1457
        %1917 = vmatpush.bf16.msra.mxu0 %v1453
        %1918 = vmatpush.bf16.msra.mxu0 %v1449
        %1919 = vmatpush.bf16.msra.mxu0 %v1445
        %1920 = vmatmul.bf16.gmra.mxu0 %v612
        %v1921 = vpop.f32.mrf.mxu0
        %v1922 = vadd.f32 %v1909, %v1921
        %v1923 = vpop.f32.mrf.mxu0
        %1924 = vdwg.mxu0
        %1925 = vmatpush.bf16.msra.mxu0 %v1505
        %1926 = vmatpush.bf16.msra.mxu0 %v1501
        %1927 = vmatpush.bf16.msra.mxu0 %v1497
        %1928 = vmatpush.bf16.msra.mxu0 %v1493
        %1929 = vmatpush.bf16.msra.mxu0 %v1489
        %1930 = vmatpush.bf16.msra.mxu0 %v1485
        %1931 = vmatpush.bf16.msra.mxu0 %v1481
        %1932 = vmatpush.bf16.msra.mxu0 %v1477
        %1933 = vmatmul.bf16.gmra.mxu0 %v613
        %v1934 = vpop.f32.mrf.mxu0
        %v1935 = vadd.f32 %v1922, %v1934
        %v1936 = vpop.f32.mrf.mxu0
        %1937 = vdwg.mxu0
        %1938 = vmatpush.bf16.msra.mxu0 %v1537
        %1939 = vmatpush.bf16.msra.mxu0 %v1533
        %1940 = vmatpush.bf16.msra.mxu0 %v1529
        %1941 = vmatpush.bf16.msra.mxu0 %v1525
        %1942 = vmatpush.bf16.msra.mxu0 %v1521
        %1943 = vmatpush.bf16.msra.mxu0 %v1517
        %1944 = vmatpush.bf16.msra.mxu0 %v1513
        %1945 = vmatpush.bf16.msra.mxu0 %v1509
        %1946 = vmatmul.bf16.gmra.mxu0 %v614
        %v1947 = vpop.f32.mrf.mxu0
        %v1948 = vadd.f32 %v1935, %v1947
        %v1949 = vpop.f32.mrf.mxu0
        %1950 = vdwg.mxu0
        %1951 = vmatpush.bf16.msra.mxu0 %v1569
        %1952 = vmatpush.bf16.msra.mxu0 %v1565
        %1953 = vmatpush.bf16.msra.mxu0 %v1561
        %1954 = vmatpush.bf16.msra.mxu0 %v1557
        %1955 = vmatpush.bf16.msra.mxu0 %v1553
        %1956 = vmatpush.bf16.msra.mxu0 %v1549
        %1957 = vmatpush.bf16.msra.mxu0 %v1545
        %1958 = vmatpush.bf16.msra.mxu0 %v1541
        %1959 = vmatmul.bf16.gmra.mxu0 %v615
        %v1960 = vpop.f32.mrf.mxu0
        %v1961 = vadd.f32 %v1948, %v1960
        %v1962 = vpop.f32.mrf.mxu0
        %1963 = vdwg.mxu0
        %1964 = vmatpush.bf16.msra.mxu0 %v1601
        %1965 = vmatpush.bf16.msra.mxu0 %v1597
        %1966 = vmatpush.bf16.msra.mxu0 %v1593
        %1967 = vmatpush.bf16.msra.mxu0 %v1589
        %1968 = vmatpush.bf16.msra.mxu0 %v1585
        %1969 = vmatpush.bf16.msra.mxu0 %v1581
        %1970 = vmatpush.bf16.msra.mxu0 %v1577
        %1971 = vmatpush.bf16.msra.mxu0 %v1573
        %1972 = vmatmul.bf16.gmra.mxu0 %v616
        %v1973 = vpop.f32.mrf.mxu0
        %v1974 = vadd.f32 %v1961, %v1973
        %v1975 = vpop.f32.mrf.mxu0
        %1976 = vdwg.mxu0
        %1977 = vmatpush.bf16.msra.mxu0 0
        %1978 = vmatpush.bf16.msra.mxu0 0
        %1979 = vmatpush.bf16.msra.mxu0 0
        %1980 = vmatpush.bf16.msra.mxu0 0
        %1981 = vmatpush.bf16.msra.mxu0 0
        %1982 = vmatpush.bf16.msra.mxu0 0
        %1983 = vmatpush.bf16.msra.mxu0 0
        %1984 = vmatpush.bf16.msra.mxu0 %v1605
        %1985 = vmatmul.bf16.gmra.mxu0 %v1806
        %v1986 = vpop.f32.mrf.mxu0
        %v1987 = vadd.f32 %v1974, %v1986
        %v1988 = vpop.f32.mrf.mxu0
        %1989 = vdwg.mxu0
        %1990 = vmatpush.bf16.msra.mxu0 %v1442
        %1991 = vmatpush.bf16.msra.mxu0 %v1438
        %1992 = vmatpush.bf16.msra.mxu0 %v1434
        %1993 = vmatpush.bf16.msra.mxu0 %v1430
        %1994 = vmatpush.bf16.msra.mxu0 %v1426
        %1995 = vmatpush.bf16.msra.mxu0 %v1422
        %1996 = vmatpush.bf16.msra.mxu0 %v1418
        %1997 = vmatpush.bf16.msra.mxu0 %v1414
        %1998 = vmatmul.bf16.gmra.mxu0 %v611
        %v1999 = vpop.f32.mrf.mxu0
        %v2000 = vadd.f32 %v818, %v1999
        %v2001 = vpop.f32.mrf.mxu0
        %2002 = vdwg.mxu0
        %2003 = vmatpush.bf16.msra.mxu0 %v1474
        %2004 = vmatpush.bf16.msra.mxu0 %v1470
        %2005 = vmatpush.bf16.msra.mxu0 %v1466
        %2006 = vmatpush.bf16.msra.mxu0 %v1462
        %2007 = vmatpush.bf16.msra.mxu0 %v1458
        %2008 = vmatpush.bf16.msra.mxu0 %v1454
        %2009 = vmatpush.bf16.msra.mxu0 %v1450
        %2010 = vmatpush.bf16.msra.mxu0 %v1446
        %2011 = vmatmul.bf16.gmra.mxu0 %v612
        %v2012 = vpop.f32.mrf.mxu0
        %v2013 = vadd.f32 %v2000, %v2012
        %v2014 = vpop.f32.mrf.mxu0
        %2015 = vdwg.mxu0
        %2016 = vmatpush.bf16.msra.mxu0 %v1506
        %2017 = vmatpush.bf16.msra.mxu0 %v1502
        %2018 = vmatpush.bf16.msra.mxu0 %v1498
        %2019 = vmatpush.bf16.msra.mxu0 %v1494
        %2020 = vmatpush.bf16.msra.mxu0 %v1490
        %2021 = vmatpush.bf16.msra.mxu0 %v1486
        %2022 = vmatpush.bf16.msra.mxu0 %v1482
        %2023 = vmatpush.bf16.msra.mxu0 %v1478
        %2024 = vmatmul.bf16.gmra.mxu0 %v613
        %v2025 = vpop.f32.mrf.mxu0
        %v2026 = vadd.f32 %v2013, %v2025
        %v2027 = vpop.f32.mrf.mxu0
        %2028 = vdwg.mxu0
        %2029 = vmatpush.bf16.msra.mxu0 %v1538
        %2030 = vmatpush.bf16.msra.mxu0 %v1534
        %2031 = vmatpush.bf16.msra.mxu0 %v1530
        %2032 = vmatpush.bf16.msra.mxu0 %v1526
        %2033 = vmatpush.bf16.msra.mxu0 %v1522
        %2034 = vmatpush.bf16.msra.mxu0 %v1518
        %2035 = vmatpush.bf16.msra.mxu0 %v1514
        %2036 = vmatpush.bf16.msra.mxu0 %v1510
        %2037 = vmatmul.bf16.gmra.mxu0 %v614
        %v2038 = vpop.f32.mrf.mxu0
        %v2039 = vadd.f32 %v2026, %v2038
        %v2040 = vpop.f32.mrf.mxu0
        %2041 = vdwg.mxu0
        %2042 = vmatpush.bf16.msra.mxu0 %v1570
        %2043 = vmatpush.bf16.msra.mxu0 %v1566
        %2044 = vmatpush.bf16.msra.mxu0 %v1562
        %2045 = vmatpush.bf16.msra.mxu0 %v1558
        %2046 = vmatpush.bf16.msra.mxu0 %v1554
        %2047 = vmatpush.bf16.msra.mxu0 %v1550
        %2048 = vmatpush.bf16.msra.mxu0 %v1546
        %2049 = vmatpush.bf16.msra.mxu0 %v1542
        %2050 = vmatmul.bf16.gmra.mxu0 %v615
        %v2051 = vpop.f32.mrf.mxu0
        %v2052 = vadd.f32 %v2039, %v2051
        %v2053 = vpop.f32.mrf.mxu0
        %2054 = vdwg.mxu0
        %2055 = vmatpush.bf16.msra.mxu0 %v1602
        %2056 = vmatpush.bf16.msra.mxu0 %v1598
        %2057 = vmatpush.bf16.msra.mxu0 %v1594
        %2058 = vmatpush.bf16.msra.mxu0 %v1590
        %2059 = vmatpush.bf16.msra.mxu0 %v1586
        %2060 = vmatpush.bf16.msra.mxu0 %v1582
        %2061 = vmatpush.bf16.msra.mxu0 %v1578
        %2062 = vmatpush.bf16.msra.mxu0 %v1574
        %2063 = vmatmul.bf16.gmra.mxu0 %v616
        %v2064 = vpop.f32.mrf.mxu0
        %v2065 = vadd.f32 %v2052, %v2064
        %v2066 = vpop.f32.mrf.mxu0
        %2067 = vdwg.mxu0
        %2068 = vmatpush.bf16.msra.mxu0 0
        %2069 = vmatpush.bf16.msra.mxu0 0
        %2070 = vmatpush.bf16.msra.mxu0 0
        %2071 = vmatpush.bf16.msra.mxu0 0
        %2072 = vmatpush.bf16.msra.mxu0 0
        %2073 = vmatpush.bf16.msra.mxu0 0
        %2074 = vmatpush.bf16.msra.mxu0 0
        %2075 = vmatpush.bf16.msra.mxu0 %v1606
        %2076 = vmatmul.bf16.gmra.mxu0 %v1806
        %v2077 = vpop.f32.mrf.mxu0
        %v2078 = vadd.f32 %v2065, %v2077
        %v2079 = vpop.f32.mrf.mxu0
        %2080 = vdwg.mxu0
        %2081 = vmatpush.bf16.msra.mxu0 %v1443
        %2082 = vmatpush.bf16.msra.mxu0 %v1439
        %2083 = vmatpush.bf16.msra.mxu0 %v1435
        %2084 = vmatpush.bf16.msra.mxu0 %v1431
        %2085 = vmatpush.bf16.msra.mxu0 %v1427
        %2086 = vmatpush.bf16.msra.mxu0 %v1423
        %2087 = vmatpush.bf16.msra.mxu0 %v1419
        %2088 = vmatpush.bf16.msra.mxu0 %v1415
        %2089 = vmatmul.bf16.gmra.mxu0 %v611
        %v2090 = vpop.f32.mrf.mxu0
        %v2091 = vadd.f32 %v819, %v2090
        %v2092 = vpop.f32.mrf.mxu0
        %2093 = vdwg.mxu0
        %2094 = vmatpush.bf16.msra.mxu0 %v1475
        %2095 = vmatpush.bf16.msra.mxu0 %v1471
        %2096 = vmatpush.bf16.msra.mxu0 %v1467
        %2097 = vmatpush.bf16.msra.mxu0 %v1463
        %2098 = vmatpush.bf16.msra.mxu0 %v1459
        %2099 = vmatpush.bf16.msra.mxu0 %v1455
        %2100 = vmatpush.bf16.msra.mxu0 %v1451
        %2101 = vmatpush.bf16.msra.mxu0 %v1447
        %2102 = vmatmul.bf16.gmra.mxu0 %v612
        %v2103 = vpop.f32.mrf.mxu0
        %v2104 = vadd.f32 %v2091, %v2103
        %v2105 = vpop.f32.mrf.mxu0
        %2106 = vdwg.mxu0
        %2107 = vmatpush.bf16.msra.mxu0 %v1507
        %2108 = vmatpush.bf16.msra.mxu0 %v1503
        %2109 = vmatpush.bf16.msra.mxu0 %v1499
        %2110 = vmatpush.bf16.msra.mxu0 %v1495
        %2111 = vmatpush.bf16.msra.mxu0 %v1491
        %2112 = vmatpush.bf16.msra.mxu0 %v1487
        %2113 = vmatpush.bf16.msra.mxu0 %v1483
        %2114 = vmatpush.bf16.msra.mxu0 %v1479
        %2115 = vmatmul.bf16.gmra.mxu0 %v613
        %v2116 = vpop.f32.mrf.mxu0
        %v2117 = vadd.f32 %v2104, %v2116
        %v2118 = vpop.f32.mrf.mxu0
        %2119 = vdwg.mxu0
        %2120 = vmatpush.bf16.msra.mxu0 %v1539
        %2121 = vmatpush.bf16.msra.mxu0 %v1535
        %2122 = vmatpush.bf16.msra.mxu0 %v1531
        %2123 = vmatpush.bf16.msra.mxu0 %v1527
        %2124 = vmatpush.bf16.msra.mxu0 %v1523
        %2125 = vmatpush.bf16.msra.mxu0 %v1519
        %2126 = vmatpush.bf16.msra.mxu0 %v1515
        %2127 = vmatpush.bf16.msra.mxu0 %v1511
        %2128 = vmatmul.bf16.gmra.mxu0 %v614
        %v2129 = vpop.f32.mrf.mxu0
        %v2130 = vadd.f32 %v2117, %v2129
        %v2131 = vpop.f32.mrf.mxu0
        %2132 = vdwg.mxu0
        %2133 = vmatpush.bf16.msra.mxu0 %v1571
        %2134 = vmatpush.bf16.msra.mxu0 %v1567
        %2135 = vmatpush.bf16.msra.mxu0 %v1563
        %2136 = vmatpush.bf16.msra.mxu0 %v1559
        %2137 = vmatpush.bf16.msra.mxu0 %v1555
        %2138 = vmatpush.bf16.msra.mxu0 %v1551
        %2139 = vmatpush.bf16.msra.mxu0 %v1547
        %2140 = vmatpush.bf16.msra.mxu0 %v1543
        %2141 = vmatmul.bf16.gmra.mxu0 %v615
        %v2142 = vpop.f32.mrf.mxu0
        %v2143 = vadd.f32 %v2130, %v2142
        %v2144 = vpop.f32.mrf.mxu0
        %2145 = vdwg.mxu0
        %2146 = vmatpush.bf16.msra.mxu0 %v1603
        %2147 = vmatpush.bf16.msra.mxu0 %v1599
        %2148 = vmatpush.bf16.msra.mxu0 %v1595
        %2149 = vmatpush.bf16.msra.mxu0 %v1591
        %2150 = vmatpush.bf16.msra.mxu0 %v1587
        %2151 = vmatpush.bf16.msra.mxu0 %v1583
        %2152 = vmatpush.bf16.msra.mxu0 %v1579
        %2153 = vmatpush.bf16.msra.mxu0 %v1575
        %2154 = vmatmul.bf16.gmra.mxu0 %v616
        %v2155 = vpop.f32.mrf.mxu0
        %v2156 = vadd.f32 %v2143, %v2155
        %v2157 = vpop.f32.mrf.mxu0
        %2158 = vdwg.mxu0
        %2159 = vmatpush.bf16.msra.mxu0 0
        %2160 = vmatpush.bf16.msra.mxu0 0
        %2161 = vmatpush.bf16.msra.mxu0 0
        %2162 = vmatpush.bf16.msra.mxu0 0
        %2163 = vmatpush.bf16.msra.mxu0 0
        %2164 = vmatpush.bf16.msra.mxu0 0
        %2165 = vmatpush.bf16.msra.mxu0 0
        %2166 = vmatpush.bf16.msra.mxu0 %v1607
        %2167 = vmatmul.bf16.gmra.mxu0 %v1806
        %v2168 = vpop.f32.mrf.mxu0
        %v2169 = vadd.f32 %v2156, %v2168
        %v2170 = vpop.f32.mrf.mxu0
        %2171 = vdwg.mxu0
        %v2172 = vmax.f32 %v1896, 0.0
        %v2173 = vmax.f32 %v1987, 0.0
        %v2174 = vmax.f32 %v2078, 0.0
        %v2175 = vmax.f32 %v2169, 0.0
        %v2176 = vpack.c.bf16 %v2172, %v2172
        %v2177 = vpack.c.bf16 %v2173, %v2173
        %v2178 = vpack.c.bf16 %v2174, %v2174
        %v2179 = vpack.c.bf16 %v2175, %v2175
        %v2180 = vld [vmem:[#allocation8] sm:$0xf]
        %v2181 = vld [vmem:[#allocation8 + $0x4] sm:$0xf]
        %v2182 = vld [vmem:[#allocation8 + $0x8] sm:$0xf]
        %v2183 = vld [vmem:[#allocation8 + $0xc] sm:$0xf]
        %v2184 = vld [vmem:[#allocation8 + $0x10] sm:$0xf]
        %v2185 = vld [vmem:[#allocation8 + $0x14] sm:$0xf]
        %v2186 = vld [vmem:[#allocation8 + $0x18] sm:$0xf]
        %v2187 = vld [vmem:[#allocation8 + $0x1c] sm:$0xf]
        %v2188 = vld [vmem:[#allocation8 + $0x20] sm:$0xf]
        %v2189 = vld [vmem:[#allocation8 + $0x24] sm:$0xf]
        %v2190 = vld [vmem:[#allocation8 + $0x28] sm:$0xf]
        %v2191 = vld [vmem:[#allocation8 + $0x2c] sm:$0xf]
        %v2192 = vld [vmem:[#allocation8 + $0x30] sm:$0xf]
        %v2193 = vld [vmem:[#allocation8 + $0x34] sm:$0xf]
        %v2194 = vld [vmem:[#allocation8 + $0x38] sm:$0xf]
        %v2195 = vld [vmem:[#allocation8 + $0x3c] sm:$0xf]
        %v2196 = vld [vmem:[#allocation8 + $0x40] sm:$0xf]
        %v2197 = vld [vmem:[#allocation8 + $0x44] sm:$0xf]
        %v2198 = vld [vmem:[#allocation8 + $0x48] sm:$0xf]
        %v2199 = vld [vmem:[#allocation8 + $0x4c] sm:$0xf]
        %v2200 = vld [vmem:[#allocation8 + $0x50] sm:$0xf]
        %v2201 = vld [vmem:[#allocation8 + $0x54] sm:$0xf]
        %v2202 = vld [vmem:[#allocation8 + $0x58] sm:$0xf]
        %v2203 = vld [vmem:[#allocation8 + $0x5c] sm:$0xf]
        %v2204 = vld [vmem:[#allocation8 + $0x60] sm:$0xf]
        %v2205 = vld [vmem:[#allocation8 + $0x64] sm:$0xf]
        %v2206 = vld [vmem:[#allocation8 + $0x68] sm:$0xf]
        %v2207 = vld [vmem:[#allocation8 + $0x6c] sm:$0xf]
        %v2208 = vld [vmem:[#allocation8 + $0x70] sm:$0xf]
        %v2209 = vld [vmem:[#allocation8 + $0x74] sm:$0xf]
        %v2210 = vld [vmem:[#allocation8 + $0x78] sm:$0xf]
        %v2211 = vld [vmem:[#allocation8 + $0x7c] sm:$0xf]
        %v2212 = vld [vmem:[#allocation8 + $0x80] sm:$0xf]
        %v2213 = vld [vmem:[#allocation8 + $0x84] sm:$0xf]
        %v2214 = vld [vmem:[#allocation8 + $0x88] sm:$0xf]
        %v2215 = vld [vmem:[#allocation8 + $0x8c] sm:$0xf]
        %v2216 = vld [vmem:[#allocation8 + $0x90] sm:$0xf]
        %v2217 = vld [vmem:[#allocation8 + $0x94] sm:$0xf]
        %v2218 = vld [vmem:[#allocation8 + $0x98] sm:$0xf]
        %v2219 = vld [vmem:[#allocation8 + $0x9c] sm:$0xf]
        %v2220 = vld [vmem:[#allocation8 + $0xa0] sm:$0xf]
        %v2221 = vld [vmem:[#allocation8 + $0xa4] sm:$0xf]
        %v2222 = vld [vmem:[#allocation8 + $0xa8] sm:$0xf]
        %v2223 = vld [vmem:[#allocation8 + $0xac] sm:$0xf]
        %v2224 = vld [vmem:[#allocation8 + $0xb0] sm:$0xf]
        %v2225 = vld [vmem:[#allocation8 + $0xb4] sm:$0xf]
        %v2226 = vld [vmem:[#allocation8 + $0xb8] sm:$0xf]
        %v2227 = vld [vmem:[#allocation8 + $0xbc] sm:$0xf]
        %v2228 = vld [vmem:[#allocation8 + $0xc0] sm:$0xf]
        %v2229 = vld [vmem:[#allocation8 + $0xc4] sm:$0xf]
        %v2230 = vld [vmem:[#allocation8 + $0xc8] sm:$0xf]
        %v2231 = vld [vmem:[#allocation8 + $0xcc] sm:$0xf]
        %v2232 = vld [vmem:[#allocation8 + $0xd0] sm:$0xf]
        %v2233 = vld [vmem:[#allocation8 + $0xd4] sm:$0xf]
        %v2234 = vld [vmem:[#allocation8 + $0xd8] sm:$0xf]
        %v2235 = vld [vmem:[#allocation8 + $0xdc] sm:$0xf]
        %v2236 = vld [vmem:[#allocation8 + $0xe0] sm:$0xf]
        %v2237 = vld [vmem:[#allocation8 + $0xe4] sm:$0xf]
        %v2238 = vld [vmem:[#allocation8 + $0xe8] sm:$0xf]
        %v2239 = vld [vmem:[#allocation8 + $0xec] sm:$0xf]
        %v2240 = vld [vmem:[#allocation8 + $0xf0] sm:$0xf]
        %v2241 = vld [vmem:[#allocation8 + $0xf4] sm:$0xf]
        %v2242 = vld [vmem:[#allocation8 + $0xf8] sm:$0xf]
        %v2243 = vld [vmem:[#allocation8 + $0xfc] sm:$0xf]
        %v2244 = vld [vmem:[#allocation10] sm:$0x1]
        %v2246 = vperm.slane %v2244, 0
        %v2312 = vunpack.c.l.b16 %v2180
        %v2313 = vunpack.c.l.b16 %v2181
        %v2314 = vunpack.c.l.b16 %v2182
        %v2315 = vunpack.c.l.b16 %v2183
        %v2316 = vunpack.c.l.b16 %v2184
        %v2317 = vunpack.c.l.b16 %v2185
        %v2318 = vunpack.c.l.b16 %v2186
        %v2319 = vunpack.c.l.b16 %v2187
        %v2320 = vunpack.c.l.b16 %v2188
        %v2321 = vunpack.c.l.b16 %v2189
        %v2322 = vunpack.c.l.b16 %v2190
        %v2323 = vunpack.c.l.b16 %v2191
        %v2324 = vunpack.c.l.b16 %v2192
        %v2325 = vunpack.c.l.b16 %v2193
        %v2326 = vunpack.c.l.b16 %v2194
        %v2327 = vunpack.c.l.b16 %v2195
        %v2328 = vunpack.c.l.b16 %v2196
        %v2329 = vunpack.c.l.b16 %v2197
        %v2330 = vunpack.c.l.b16 %v2198
        %v2331 = vunpack.c.l.b16 %v2199
        %v2332 = vunpack.c.l.b16 %v2200
        %v2333 = vunpack.c.l.b16 %v2201
        %v2334 = vunpack.c.l.b16 %v2202
        %v2335 = vunpack.c.l.b16 %v2203
        %v2336 = vunpack.c.l.b16 %v2204
        %v2337 = vunpack.c.l.b16 %v2205
        %v2338 = vunpack.c.l.b16 %v2206
        %v2339 = vunpack.c.l.b16 %v2207
        %v2340 = vunpack.c.l.b16 %v2208
        %v2341 = vunpack.c.l.b16 %v2209
        %v2342 = vunpack.c.l.b16 %v2210
        %v2343 = vunpack.c.l.b16 %v2211
        %v2344 = vunpack.c.l.b16 %v2212
        %v2345 = vunpack.c.l.b16 %v2213
        %v2346 = vunpack.c.l.b16 %v2214
        %v2347 = vunpack.c.l.b16 %v2215
        %v2348 = vunpack.c.l.b16 %v2216
        %v2349 = vunpack.c.l.b16 %v2217
        %v2350 = vunpack.c.l.b16 %v2218
        %v2351 = vunpack.c.l.b16 %v2219
        %v2352 = vunpack.c.l.b16 %v2220
        %v2353 = vunpack.c.l.b16 %v2221
        %v2354 = vunpack.c.l.b16 %v2222
        %v2355 = vunpack.c.l.b16 %v2223
        %v2356 = vunpack.c.l.b16 %v2224
        %v2357 = vunpack.c.l.b16 %v2225
        %v2358 = vunpack.c.l.b16 %v2226
        %v2359 = vunpack.c.l.b16 %v2227
        %v2360 = vunpack.c.l.b16 %v2228
        %v2361 = vunpack.c.l.b16 %v2229
        %v2362 = vunpack.c.l.b16 %v2230
        %v2363 = vunpack.c.l.b16 %v2231
        %v2364 = vunpack.c.l.b16 %v2232
        %v2365 = vunpack.c.l.b16 %v2233
        %v2366 = vunpack.c.l.b16 %v2234
        %v2367 = vunpack.c.l.b16 %v2235
        %v2368 = vunpack.c.l.b16 %v2236
        %v2369 = vunpack.c.l.b16 %v2237
        %v2370 = vunpack.c.l.b16 %v2238
        %v2371 = vunpack.c.l.b16 %v2239
        %v2372 = vunpack.c.l.b16 %v2240
        %v2373 = vunpack.c.l.b16 %v2241
        %v2374 = vunpack.c.l.b16 %v2242
        %v2375 = vunpack.c.l.b16 %v2243
        %v2376 = vpack.c.b16 %v2313, %v2312
        %v2377 = vpack.c.b16 %v2315, %v2314
        %v2378 = vpack.c.b16 %v2317, %v2316
        %v2379 = vpack.c.b16 %v2319, %v2318
        %v2380 = vpack.c.b16 %v2321, %v2320
        %v2381 = vpack.c.b16 %v2323, %v2322
        %v2382 = vpack.c.b16 %v2325, %v2324
        %v2383 = vpack.c.b16 %v2327, %v2326
        %v2384 = vpack.c.b16 %v2329, %v2328
        %v2385 = vpack.c.b16 %v2331, %v2330
        %v2386 = vpack.c.b16 %v2333, %v2332
        %v2387 = vpack.c.b16 %v2335, %v2334
        %v2388 = vpack.c.b16 %v2337, %v2336
        %v2389 = vpack.c.b16 %v2339, %v2338
        %v2390 = vpack.c.b16 %v2341, %v2340
        %v2391 = vpack.c.b16 %v2343, %v2342
        %v2392 = vpack.c.b16 %v2345, %v2344
        %v2393 = vpack.c.b16 %v2347, %v2346
        %v2394 = vpack.c.b16 %v2349, %v2348
        %v2395 = vpack.c.b16 %v2351, %v2350
        %v2396 = vpack.c.b16 %v2353, %v2352
        %v2397 = vpack.c.b16 %v2355, %v2354
        %v2398 = vpack.c.b16 %v2357, %v2356
        %v2399 = vpack.c.b16 %v2359, %v2358
        %v2400 = vpack.c.b16 %v2361, %v2360
        %v2401 = vpack.c.b16 %v2363, %v2362
        %v2402 = vpack.c.b16 %v2365, %v2364
        %v2403 = vpack.c.b16 %v2367, %v2366
        %v2404 = vpack.c.b16 %v2369, %v2368
        %v2405 = vpack.c.b16 %v2371, %v2370
        %v2406 = vpack.c.b16 %v2373, %v2372
        %v2407 = vpack.c.b16 %v2375, %v2374
        %2440 = vmatpush.bf16.msra.mxu0 %v2383
        %2441 = vmatpush.bf16.msra.mxu0 %v2382
        %2442 = vmatpush.bf16.msra.mxu0 %v2381
        %2443 = vmatpush.bf16.msra.mxu0 %v2380
        %2444 = vmatpush.bf16.msra.mxu0 %v2379
        %2445 = vmatpush.bf16.msra.mxu0 %v2378
        %2446 = vmatpush.bf16.msra.mxu0 %v2377
        %2447 = vmatpush.bf16.msra.mxu0 %v2376
        %2448 = vmatmul.bf16.gmra.mxu0 %v2176
        %v2449 = vpop.f32.mrf.mxu0
        %v2450 = vadd.f32 %v2246, %v2449
        %v2451 = vpop.f32.mrf.mxu0
        %2452 = vdwg.mxu0
        %2453 = vmatpush.bf16.msra.mxu0 %v2391
        %2454 = vmatpush.bf16.msra.mxu0 %v2390
        %2455 = vmatpush.bf16.msra.mxu0 %v2389
        %2456 = vmatpush.bf16.msra.mxu0 %v2388
        %2457 = vmatpush.bf16.msra.mxu0 %v2387
        %2458 = vmatpush.bf16.msra.mxu0 %v2386
        %2459 = vmatpush.bf16.msra.mxu0 %v2385
        %2460 = vmatpush.bf16.msra.mxu0 %v2384
        %2461 = vmatmul.bf16.gmra.mxu0 %v2177
        %v2462 = vpop.f32.mrf.mxu0
        %v2463 = vadd.f32 %v2450, %v2462
        %v2464 = vpop.f32.mrf.mxu0
        %2465 = vdwg.mxu0
        %2466 = vmatpush.bf16.msra.mxu0 %v2399
        %2467 = vmatpush.bf16.msra.mxu0 %v2398
        %2468 = vmatpush.bf16.msra.mxu0 %v2397
        %2469 = vmatpush.bf16.msra.mxu0 %v2396
        %2470 = vmatpush.bf16.msra.mxu0 %v2395
        %2471 = vmatpush.bf16.msra.mxu0 %v2394
        %2472 = vmatpush.bf16.msra.mxu0 %v2393
        %2473 = vmatpush.bf16.msra.mxu0 %v2392
        %2474 = vmatmul.bf16.gmra.mxu0 %v2178
        %v2475 = vpop.f32.mrf.mxu0
        %v2476 = vadd.f32 %v2463, %v2475
        %v2477 = vpop.f32.mrf.mxu0
        %2478 = vdwg.mxu0
        %2479 = vmatpush.bf16.msra.mxu0 %v2407
        %2480 = vmatpush.bf16.msra.mxu0 %v2406
        %2481 = vmatpush.bf16.msra.mxu0 %v2405
        %2482 = vmatpush.bf16.msra.mxu0 %v2404
        %2483 = vmatpush.bf16.msra.mxu0 %v2403
        %2484 = vmatpush.bf16.msra.mxu0 %v2402
        %2485 = vmatpush.bf16.msra.mxu0 %v2401
        %2486 = vmatpush.bf16.msra.mxu0 %v2400
        %2487 = vmatmul.bf16.gmra.mxu0 %v2179
        %v2488 = vpop.f32.mrf.mxu0
        %v2489 = vadd.f32 %v2476, %v2488
        %v2490 = vpop.f32.mrf.mxu0
        %2491 = vdwg.mxu0
        %v2492 = vld [vmem:[#allocation16] sm:$0xff]
        %v2493 = vld [vmem:[#allocation16 + $0x8] sm:$0xff]
        %v2494 = vld [vmem:[#allocation16 + $0x10] sm:$0xff]
        %v2495 = vld [vmem:[#allocation16 + $0x18] sm:$0xff]
        %v2496 = vld [vmem:[#allocation16 + $0x20] sm:$0xff]
        %v2497 = vld [vmem:[#allocation16 + $0x28] sm:$0xff]
        %v2498 = vld [vmem:[#allocation16 + $0x30] sm:$0xff]
        %v2499 = vld [vmem:[#allocation16 + $0x38] sm:$0xff]
        %v2500 = vld [vmem:[#allocation16 + $0x40] sm:$0xff]
        %v2501 = vld [vmem:[#allocation16 + $0x48] sm:$0xff]
        %v2502 = vld [vmem:[#allocation16 + $0x50] sm:$0xff]
        %v2503 = vld [vmem:[#allocation16 + $0x58] sm:$0xff]
        %v2504 = vld [vmem:[#allocation16 + $0x60] sm:$0xff]
        %v2505 = vld [vmem:[#allocation16 + $0x68] sm:$0xff]
        %v2506 = vld [vmem:[#allocation16 + $0x70] sm:$0xff]
        %v2507 = vld [vmem:[#allocation16 + $0x78] sm:$0xff]
        %v2508 = vmul.f32 %v2489, %v2489
        %2509 = vadd.xlane.f32.xlu0 %v2508
        %v2510 = vpop.xlane.xlu0 %2509
        %2511 = vmatpush.xpose.msra.mxu0 %v2507
        %2512 = vmatpush.xpose.msra.mxu0 %v2506
        %2513 = vmatpush.xpose.msra.mxu0 %v2505
        %2514 = vmatpush.xpose.msra.mxu0 %v2504
        %2515 = vmatpush.xpose.msra.mxu0 %v2503
        %2516 = vmatpush.xpose.msra.mxu0 %v2502
        %2517 = vmatpush.xpose.msra.mxu0 %v2501
        %2518 = vmatpush.xpose.msra.mxu0 %v2500
        %2519 = vmatpush.xpose.msra.mxu0 %v2499
        %2520 = vmatpush.xpose.msra.mxu0 %v2498
        %2521 = vmatpush.xpose.msra.mxu0 %v2497
        %2522 = vmatpush.xpose.msra.mxu0 %v2496
        %2523 = vmatpush.xpose.msra.mxu0 %v2495
        %2524 = vmatpush.xpose.msra.mxu0 %v2494
        %2525 = vmatpush.xpose.msra.mxu0 %v2493
        %2526 = vmatpush.xpose.msra.mxu0 %v2492
        %2527 = vmatmul.f32.gmra.mxu0 %v2489
        %v2528 = vpop.f32.mrf.mxu0
        %v2529 = vadd.f32 0.0, %v2528
        %2530 = vdwg.mxu0
        %v2531 = vld [vmem:[%s10] sm:$0x1]
        %v2533 = vperm.slane %v2531, 0
        %v2535 = vadd.f32 %v2510, %v2533
        %v2536 = vmul.f32 %v2529, 2.0
        %v2537 = vsub.f32 %v2535, %v2536
        %v2538 = vlaneseq
        %v2539 = vand.u32 %v2538, 127
        %vm2540 = vcmp.lt.s32.totalorder %v2539, 16
        %v2541 = vsel %vm2540, %v2537, 1e+30
        %2542 = vmin.xlane.f32.xlu0 %v2541
        %v2543 = vpop.xlane.xlu0 %2542
        %vm2544 = vcmp.le.f32.partialorder %v2541, %v2543
        %v2545 = vsel %vm2544, %v2539, 128
        %v2546 = vand.u32 %v2545, 65535
        %v2547 = vshra.s32 %v2545, 16
        %v2548 = vcvt.s32.f32 %v2546
        %v2549 = vcvt.s32.f32 %v2547
        %2550 = vmin.xlane.f32.xlu0 %v2549
        %v2551 = vpop.xlane.xlu0 %2550
        %vm2552 = vcmp.eq.f32.partialorder %v2549, %v2551
        %v2553 = vsel %vm2552, %v2548, inf
        %2554 = vmin.xlane.f32.xlu0 %v2553
        %v2555 = vpop.xlane.xlu0 %2554
        %v2556 = vcvt.f32.s32 %v2555
        %v2557 = vcvt.f32.s32 %v2551
        %v2558 = vshll.u32 %v2557, 16
        %v2559 = vadd.s32 %v2558, %v2556
        %vm2560 = vcmp.eq.s32.totalorder %v2539, %v2559
        %v2561 = vsel %vm2560, 1, 0
        %v2562 = vcvt.s32.f32 %v2561
        %2563 = vmatpush.msra.mxu0 %v2507
        %2564 = vmatpush.msra.mxu0 %v2506
        %2565 = vmatpush.msra.mxu0 %v2505
        %2566 = vmatpush.msra.mxu0 %v2504
        %2567 = vmatpush.msra.mxu0 %v2503
        %2568 = vmatpush.msra.mxu0 %v2502
        %2569 = vmatpush.msra.mxu0 %v2501
        %2570 = vmatpush.msra.mxu0 %v2500
        %2571 = vmatpush.msra.mxu0 %v2499
        %2572 = vmatpush.msra.mxu0 %v2498
        %2573 = vmatpush.msra.mxu0 %v2497
        %2574 = vmatpush.msra.mxu0 %v2496
        %2575 = vmatpush.msra.mxu0 %v2495
        %2576 = vmatpush.msra.mxu0 %v2494
        %2577 = vmatpush.msra.mxu0 %v2493
        %2578 = vmatpush.msra.mxu0 %v2492
        %2579 = vmatmul.f32.gmra.mxu0 %v2562
        %v2580 = vpop.f32.mrf.mxu0
        %v2581 = vadd.f32 0.0, %v2580
        %2582 = vdwg.mxu0
        %v2583 = vpack.c.bf16 %v2581, %v2581
        %v2584 = vld [vmem:[#allocation11] sm:$0xff]
        %v2585 = vld [vmem:[#allocation11 + $0x8] sm:$0xff]
        %v2586 = vld [vmem:[#allocation11 + $0x10] sm:$0xff]
        %v2587 = vld [vmem:[#allocation11 + $0x18] sm:$0xff]
        %v2588 = vld [vmem:[#allocation11 + $0x20] sm:$0xff]
        %v2589 = vld [vmem:[#allocation11 + $0x28] sm:$0xff]
        %v2590 = vld [vmem:[#allocation11 + $0x30] sm:$0xff]
        %v2591 = vld [vmem:[#allocation11 + $0x38] sm:$0xff]
        %v2592 = vld [vmem:[#allocation11 + $0x40] sm:$0xff]
        %v2593 = vld [vmem:[#allocation11 + $0x48] sm:$0xff]
        %v2594 = vld [vmem:[#allocation11 + $0x50] sm:$0xff]
        %v2595 = vld [vmem:[#allocation11 + $0x58] sm:$0xff]
        %v2596 = vld [vmem:[#allocation11 + $0x60] sm:$0xff]
        %v2597 = vld [vmem:[#allocation11 + $0x68] sm:$0xff]
        %v2598 = vld [vmem:[#allocation11 + $0x70] sm:$0xff]
        %v2599 = vld [vmem:[#allocation11 + $0x78] sm:$0xff]
        %v2600 = vld [vmem:[#allocation11 + $0x80] sm:$0xff]
        %v2601 = vld [vmem:[#allocation11 + $0x88] sm:$0xff]
        %v2602 = vld [vmem:[#allocation11 + $0x90] sm:$0xff]
        %v2603 = vld [vmem:[#allocation11 + $0x98] sm:$0xff]
        %v2604 = vld [vmem:[#allocation11 + $0xa0] sm:$0xff]
        %v2605 = vld [vmem:[#allocation11 + $0xa8] sm:$0xff]
        %v2606 = vld [vmem:[#allocation11 + $0xb0] sm:$0xff]
        %v2607 = vld [vmem:[#allocation11 + $0xb8] sm:$0xff]
        %v2608 = vld [vmem:[#allocation11 + $0xc0] sm:$0xff]
        %v2609 = vld [vmem:[#allocation11 + $0xc8] sm:$0xff]
        %v2610 = vld [vmem:[#allocation11 + $0xd0] sm:$0xff]
        %v2611 = vld [vmem:[#allocation11 + $0xd8] sm:$0xff]
        %v2612 = vld [vmem:[#allocation11 + $0xe0] sm:$0xff]
        %v2613 = vld [vmem:[#allocation11 + $0xe8] sm:$0xff]
        %v2614 = vld [vmem:[#allocation11 + $0xf0] sm:$0xff]
        %v2615 = vld [vmem:[#allocation11 + $0xf8] sm:$0xff]
        %v2616 = vld [vmem:[#allocation13] sm:$0xf]
        %v2618 = vperm.slane %v2616, 0
        %v2619 = vperm.slane %v2616, 1
        %v2620 = vperm.slane %v2616, 2
        %v2621 = vperm.slane %v2616, 3
        %v2658 = vunpack.c.l.b16 %v2584
        %v2659 = vunpack.c.h.b16 %v2584
        %v2660 = vunpack.c.l.b16 %v2585
        %v2661 = vunpack.c.h.b16 %v2585
        %v2662 = vunpack.c.l.b16 %v2586
        %v2663 = vunpack.c.h.b16 %v2586
        %v2664 = vunpack.c.l.b16 %v2587
        %v2665 = vunpack.c.h.b16 %v2587
        %v2666 = vunpack.c.l.b16 %v2588
        %v2667 = vunpack.c.h.b16 %v2588
        %v2668 = vunpack.c.l.b16 %v2589
        %v2669 = vunpack.c.h.b16 %v2589
        %v2670 = vunpack.c.l.b16 %v2590
        %v2671 = vunpack.c.h.b16 %v2590
        %v2672 = vunpack.c.l.b16 %v2591
        %v2673 = vunpack.c.h.b16 %v2591
        %v2674 = vunpack.c.l.b16 %v2592
        %v2675 = vunpack.c.h.b16 %v2592
        %v2676 = vunpack.c.l.b16 %v2593
        %v2677 = vunpack.c.h.b16 %v2593
        %v2678 = vunpack.c.l.b16 %v2594
        %v2679 = vunpack.c.h.b16 %v2594
        %v2680 = vunpack.c.l.b16 %v2595
        %v2681 = vunpack.c.h.b16 %v2595
        %v2682 = vunpack.c.l.b16 %v2596
        %v2683 = vunpack.c.h.b16 %v2596
        %v2684 = vunpack.c.l.b16 %v2597
        %v2685 = vunpack.c.h.b16 %v2597
        %v2686 = vunpack.c.l.b16 %v2598
        %v2687 = vunpack.c.h.b16 %v2598
        %v2688 = vunpack.c.l.b16 %v2599
        %v2689 = vunpack.c.h.b16 %v2599
        %v2690 = vunpack.c.l.b16 %v2600
        %v2691 = vunpack.c.h.b16 %v2600
        %v2692 = vunpack.c.l.b16 %v2601
        %v2693 = vunpack.c.h.b16 %v2601
        %v2694 = vunpack.c.l.b16 %v2602
        %v2695 = vunpack.c.h.b16 %v2602
        %v2696 = vunpack.c.l.b16 %v2603
        %v2697 = vunpack.c.h.b16 %v2603
        %v2698 = vunpack.c.l.b16 %v2604
        %v2699 = vunpack.c.h.b16 %v2604
        %v2700 = vunpack.c.l.b16 %v2605
        %v2701 = vunpack.c.h.b16 %v2605
        %v2702 = vunpack.c.l.b16 %v2606
        %v2703 = vunpack.c.h.b16 %v2606
        %v2704 = vunpack.c.l.b16 %v2607
        %v2705 = vunpack.c.h.b16 %v2607
        %v2706 = vunpack.c.l.b16 %v2608
        %v2707 = vunpack.c.h.b16 %v2608
        %v2708 = vunpack.c.l.b16 %v2609
        %v2709 = vunpack.c.h.b16 %v2609
        %v2710 = vunpack.c.l.b16 %v2610
        %v2711 = vunpack.c.h.b16 %v2610
        %v2712 = vunpack.c.l.b16 %v2611
        %v2713 = vunpack.c.h.b16 %v2611
        %v2714 = vunpack.c.l.b16 %v2612
        %v2715 = vunpack.c.h.b16 %v2612
        %v2716 = vunpack.c.l.b16 %v2613
        %v2717 = vunpack.c.h.b16 %v2613
        %v2718 = vunpack.c.l.b16 %v2614
        %v2719 = vunpack.c.h.b16 %v2614
        %v2720 = vunpack.c.l.b16 %v2615
        %v2721 = vunpack.c.h.b16 %v2615
        %v2722 = vpack.c.b16 %v2662, %v2658
        %v2723 = vpack.c.b16 %v2663, %v2659
        %v2724 = vpack.c.b16 %v2664, %v2660
        %v2725 = vpack.c.b16 %v2665, %v2661
        %v2726 = vpack.c.b16 %v2670, %v2666
        %v2727 = vpack.c.b16 %v2671, %v2667
        %v2728 = vpack.c.b16 %v2672, %v2668
        %v2729 = vpack.c.b16 %v2673, %v2669
        %v2730 = vpack.c.b16 %v2678, %v2674
        %v2731 = vpack.c.b16 %v2679, %v2675
        %v2732 = vpack.c.b16 %v2680, %v2676
        %v2733 = vpack.c.b16 %v2681, %v2677
        %v2734 = vpack.c.b16 %v2686, %v2682
        %v2735 = vpack.c.b16 %v2687, %v2683
        %v2736 = vpack.c.b16 %v2688, %v2684
        %v2737 = vpack.c.b16 %v2689, %v2685
        %v2738 = vpack.c.b16 %v2694, %v2690
        %v2739 = vpack.c.b16 %v2695, %v2691
        %v2740 = vpack.c.b16 %v2696, %v2692
        %v2741 = vpack.c.b16 %v2697, %v2693
        %v2742 = vpack.c.b16 %v2702, %v2698
        %v2743 = vpack.c.b16 %v2703, %v2699
        %v2744 = vpack.c.b16 %v2704, %v2700
        %v2745 = vpack.c.b16 %v2705, %v2701
        %v2746 = vpack.c.b16 %v2710, %v2706
        %v2747 = vpack.c.b16 %v2711, %v2707
        %v2748 = vpack.c.b16 %v2712, %v2708
        %v2749 = vpack.c.b16 %v2713, %v2709
        %v2750 = vpack.c.b16 %v2718, %v2714
        %v2751 = vpack.c.b16 %v2719, %v2715
        %v2752 = vpack.c.b16 %v2720, %v2716
        %v2753 = vpack.c.b16 %v2721, %v2717
        %2786 = vmatpush.bf16.msra.mxu0 %v2750
        %2787 = vmatpush.bf16.msra.mxu0 %v2746
        %2788 = vmatpush.bf16.msra.mxu0 %v2742
        %2789 = vmatpush.bf16.msra.mxu0 %v2738
        %2790 = vmatpush.bf16.msra.mxu0 %v2734
        %2791 = vmatpush.bf16.msra.mxu0 %v2730
        %2792 = vmatpush.bf16.msra.mxu0 %v2726
        %2793 = vmatpush.bf16.msra.mxu0 %v2722
        %2794 = vmatmul.bf16.gmra.mxu0 %v2583
        %v2795 = vpop.f32.mrf.mxu0
        %v2796 = vadd.f32 %v2618, %v2795
        %v2797 = vpop.f32.mrf.mxu0
        %2798 = vdwg.mxu0
        %2799 = vmatpush.bf16.msra.mxu0 %v2751
        %2800 = vmatpush.bf16.msra.mxu0 %v2747
        %2801 = vmatpush.bf16.msra.mxu0 %v2743
        %2802 = vmatpush.bf16.msra.mxu0 %v2739
        %2803 = vmatpush.bf16.msra.mxu0 %v2735
        %2804 = vmatpush.bf16.msra.mxu0 %v2731
        %2805 = vmatpush.bf16.msra.mxu0 %v2727
        %2806 = vmatpush.bf16.msra.mxu0 %v2723
        %2807 = vmatmul.bf16.gmra.mxu0 %v2583
        %v2808 = vpop.f32.mrf.mxu0
        %v2809 = vadd.f32 %v2619, %v2808
        %v2810 = vpop.f32.mrf.mxu0
        %2811 = vdwg.mxu0
        %2812 = vmatpush.bf16.msra.mxu0 %v2752
        %2813 = vmatpush.bf16.msra.mxu0 %v2748
        %2814 = vmatpush.bf16.msra.mxu0 %v2744
        %2815 = vmatpush.bf16.msra.mxu0 %v2740
        %2816 = vmatpush.bf16.msra.mxu0 %v2736
        %2817 = vmatpush.bf16.msra.mxu0 %v2732
        %2818 = vmatpush.bf16.msra.mxu0 %v2728
        %2819 = vmatpush.bf16.msra.mxu0 %v2724
        %2820 = vmatmul.bf16.gmra.mxu0 %v2583
        %v2821 = vpop.f32.mrf.mxu0
        %v2822 = vadd.f32 %v2620, %v2821
        %v2823 = vpop.f32.mrf.mxu0
        %2824 = vdwg.mxu0
        %2825 = vmatpush.bf16.msra.mxu0 %v2753
        %2826 = vmatpush.bf16.msra.mxu0 %v2749
        %2827 = vmatpush.bf16.msra.mxu0 %v2745
        %2828 = vmatpush.bf16.msra.mxu0 %v2741
        %2829 = vmatpush.bf16.msra.mxu0 %v2737
        %2830 = vmatpush.bf16.msra.mxu0 %v2733
        %2831 = vmatpush.bf16.msra.mxu0 %v2729
        %2832 = vmatpush.bf16.msra.mxu0 %v2725
        %2833 = vmatmul.bf16.gmra.mxu0 %v2583
        %v2834 = vpop.f32.mrf.mxu0
        %v2835 = vadd.f32 %v2621, %v2834
        %v2836 = vpop.f32.mrf.mxu0
        %2837 = vdwg.mxu0
        %v2838 = vmax.f32 %v2796, 0.0
        %v2839 = vmax.f32 %v2809, 0.0
        %v2840 = vmax.f32 %v2822, 0.0
        %v2841 = vmax.f32 %v2835, 0.0
        %v2842 = vpack.c.bf16 %v2838, %v2838
        %v2843 = vpack.c.bf16 %v2839, %v2839
        %v2844 = vpack.c.bf16 %v2840, %v2840
        %v2845 = vpack.c.bf16 %v2841, %v2841
        %v2846 = vld [vmem:[#allocation14] sm:$0xff]
        %v2847 = vld [vmem:[#allocation14 + $0x8] sm:$0xff]
        %v2848 = vld [vmem:[#allocation14 + $0x10] sm:$0xff]
        %v2849 = vld [vmem:[#allocation14 + $0x18] sm:$0xf]
        %v2850 = vld [vmem:[#allocation14 + $0x1c] sm:$0xff]
        %v2851 = vld [vmem:[#allocation14 + $0x24] sm:$0xff]
        %v2852 = vld [vmem:[#allocation14 + $0x2c] sm:$0xff]
        %v2853 = vld [vmem:[#allocation14 + $0x34] sm:$0xf]
        %v2854 = vld [vmem:[#allocation14 + $0x38] sm:$0xff]
        %v2855 = vld [vmem:[#allocation14 + $0x40] sm:$0xff]
        %v2856 = vld [vmem:[#allocation14 + $0x48] sm:$0xff]
        %v2857 = vld [vmem:[#allocation14 + $0x50] sm:$0xf]
        %v2858 = vld [vmem:[#allocation14 + $0x54] sm:$0xff]
        %v2859 = vld [vmem:[#allocation14 + $0x5c] sm:$0xff]
        %v2860 = vld [vmem:[#allocation14 + $0x64] sm:$0xff]
        %v2861 = vld [vmem:[#allocation14 + $0x6c] sm:$0xf]
        %v2862 = vld [vmem:[#allocation14 + $0x70] sm:$0xff]
        %v2863 = vld [vmem:[#allocation14 + $0x78] sm:$0xff]
        %v2864 = vld [vmem:[#allocation14 + $0x80] sm:$0xff]
        %v2865 = vld [vmem:[#allocation14 + $0x88] sm:$0xf]
        %v2866 = vld [vmem:[#allocation14 + $0x8c] sm:$0xff]
        %v2867 = vld [vmem:[#allocation14 + $0x94] sm:$0xff]
        %v2868 = vld [vmem:[#allocation14 + $0x9c] sm:$0xff]
        %v2869 = vld [vmem:[#allocation14 + $0xa4] sm:$0xf]
        %v2870 = vld [vmem:[#allocation14 + $0xa8] sm:$0xff]
        %v2871 = vld [vmem:[#allocation14 + $0xb0] sm:$0xff]
        %v2872 = vld [vmem:[#allocation14 + $0xb8] sm:$0xff]
        %v2873 = vld [vmem:[#allocation14 + $0xc0] sm:$0xf]
        %v2874 = vld [vmem:[#allocation14 + $0xc4] sm:$0xff]
        %v2875 = vld [vmem:[#allocation14 + $0xcc] sm:$0xff]
        %v2876 = vld [vmem:[#allocation14 + $0xd4] sm:$0xff]
        %v2877 = vld [vmem:[#allocation14 + $0xdc] sm:$0xf]
        %v2878 = vld [vmem:[#allocation14 + $0xe0] sm:$0xff]
        %v2879 = vld [vmem:[#allocation14 + $0xe8] sm:$0xff]
        %v2880 = vld [vmem:[#allocation14 + $0xf0] sm:$0xff]
        %v2881 = vld [vmem:[#allocation14 + $0xf8] sm:$0xf]
        %v2882 = vld [vmem:[#allocation14 + $0xfc] sm:$0xff]
        %v2883 = vld [vmem:[#allocation14 + $0x104] sm:$0xff]
        %v2884 = vld [vmem:[#allocation14 + $0x10c] sm:$0xff]
        %v2885 = vld [vmem:[#allocation14 + $0x114] sm:$0xf]
        %v2886 = vld [vmem:[#allocation14 + $0x118] sm:$0xff]
        %v2887 = vld [vmem:[#allocation14 + $0x120] sm:$0xff]
        %v2888 = vld [vmem:[#allocation14 + $0x128] sm:$0xff]
        %v2889 = vld [vmem:[#allocation14 + $0x130] sm:$0xf]
        %v2890 = vld [vmem:[#allocation14 + $0x134] sm:$0xff]
        %v2891 = vld [vmem:[#allocation14 + $0x13c] sm:$0xff]
        %v2892 = vld [vmem:[#allocation14 + $0x144] sm:$0xff]
        %v2893 = vld [vmem:[#allocation14 + $0x14c] sm:$0xf]
        %v2894 = vld [vmem:[#allocation14 + $0x150] sm:$0xff]
        %v2895 = vld [vmem:[#allocation14 + $0x158] sm:$0xff]
        %v2896 = vld [vmem:[#allocation14 + $0x160] sm:$0xff]
        %v2897 = vld [vmem:[#allocation14 + $0x168] sm:$0xf]
        %v2898 = vld [vmem:[#allocation14 + $0x16c] sm:$0xff]
        %v2899 = vld [vmem:[#allocation14 + $0x174] sm:$0xff]
        %v2900 = vld [vmem:[#allocation14 + $0x17c] sm:$0xff]
        %v2901 = vld [vmem:[#allocation14 + $0x184] sm:$0xf]
        %v2902 = vld [vmem:[#allocation14 + $0x188] sm:$0xff]
        %v2903 = vld [vmem:[#allocation14 + $0x190] sm:$0xff]
        %v2904 = vld [vmem:[#allocation14 + $0x198] sm:$0xff]
        %v2905 = vld [vmem:[#allocation14 + $0x1a0] sm:$0xf]
        %v2906 = vld [vmem:[#allocation14 + $0x1a4] sm:$0xff]
        %v2907 = vld [vmem:[#allocation14 + $0x1ac] sm:$0xff]
        %v2908 = vld [vmem:[#allocation14 + $0x1b4] sm:$0xff]
        %v2909 = vld [vmem:[#allocation14 + $0x1bc] sm:$0xf]
        %v2910 = vld [vmem:[#allocation14 + $0x1c0] sm:$0xff]
        %v2911 = vld [vmem:[#allocation14 + $0x1c8] sm:$0xff]
        %v2912 = vld [vmem:[#allocation14 + $0x1d0] sm:$0xff]
        %v2913 = vld [vmem:[#allocation14 + $0x1d8] sm:$0xf]
        %v2914 = vld [vmem:[#allocation14 + $0x1dc] sm:$0xff]
        %v2915 = vld [vmem:[#allocation14 + $0x1e4] sm:$0xff]
        %v2916 = vld [vmem:[#allocation14 + $0x1ec] sm:$0xff]
        %v2917 = vld [vmem:[#allocation14 + $0x1f4] sm:$0xf]
        %v2918 = vld [vmem:[#allocation14 + $0x1f8] sm:$0xff]
        %v2919 = vld [vmem:[#allocation14 + $0x200] sm:$0xff]
        %v2920 = vld [vmem:[#allocation14 + $0x208] sm:$0xff]
        %v2921 = vld [vmem:[#allocation14 + $0x210] sm:$0xf]
        %v2922 = vld [vmem:[#allocation14 + $0x214] sm:$0xff]
        %v2923 = vld [vmem:[#allocation14 + $0x21c] sm:$0xff]
        %v2924 = vld [vmem:[#allocation14 + $0x224] sm:$0xff]
        %v2925 = vld [vmem:[#allocation14 + $0x22c] sm:$0xf]
        %v2926 = vld [vmem:[#allocation14 + $0x230] sm:$0xff]
        %v2927 = vld [vmem:[#allocation14 + $0x238] sm:$0xff]
        %v2928 = vld [vmem:[#allocation14 + $0x240] sm:$0xff]
        %v2929 = vld [vmem:[#allocation14 + $0x248] sm:$0xf]
        %v2930 = vld [vmem:[#allocation14 + $0x24c] sm:$0xff]
        %v2931 = vld [vmem:[#allocation14 + $0x254] sm:$0xff]
        %v2932 = vld [vmem:[#allocation14 + $0x25c] sm:$0xff]
        %v2933 = vld [vmem:[#allocation14 + $0x264] sm:$0xf]
        %v2934 = vld [vmem:[#allocation14 + $0x268] sm:$0xff]
        %v2935 = vld [vmem:[#allocation14 + $0x270] sm:$0xff]
        %v2936 = vld [vmem:[#allocation14 + $0x278] sm:$0xff]
        %v2937 = vld [vmem:[#allocation14 + $0x280] sm:$0xf]
        %v2938 = vld [vmem:[#allocation14 + $0x284] sm:$0xff]
        %v2939 = vld [vmem:[#allocation14 + $0x28c] sm:$0xff]
        %v2940 = vld [vmem:[#allocation14 + $0x294] sm:$0xff]
        %v2941 = vld [vmem:[#allocation14 + $0x29c] sm:$0xf]
        %v2942 = vld [vmem:[#allocation14 + $0x2a0] sm:$0xff]
        %v2943 = vld [vmem:[#allocation14 + $0x2a8] sm:$0xff]
        %v2944 = vld [vmem:[#allocation14 + $0x2b0] sm:$0xff]
        %v2945 = vld [vmem:[#allocation14 + $0x2b8] sm:$0xf]
        %v2946 = vld [vmem:[#allocation14 + $0x2bc] sm:$0xff]
        %v2947 = vld [vmem:[#allocation14 + $0x2c4] sm:$0xff]
        %v2948 = vld [vmem:[#allocation14 + $0x2cc] sm:$0xff]
        %v2949 = vld [vmem:[#allocation14 + $0x2d4] sm:$0xf]
        %v2950 = vld [vmem:[#allocation14 + $0x2d8] sm:$0xff]
        %v2951 = vld [vmem:[#allocation14 + $0x2e0] sm:$0xff]
        %v2952 = vld [vmem:[#allocation14 + $0x2e8] sm:$0xff]
        %v2953 = vld [vmem:[#allocation14 + $0x2f0] sm:$0xf]
        %v2954 = vld [vmem:[#allocation14 + $0x2f4] sm:$0xff]
        %v2955 = vld [vmem:[#allocation14 + $0x2fc] sm:$0xff]
        %v2956 = vld [vmem:[#allocation14 + $0x304] sm:$0xff]
        %v2957 = vld [vmem:[#allocation14 + $0x30c] sm:$0xf]
        %v2958 = vld [vmem:[#allocation14 + $0x310] sm:$0xff]
        %v2959 = vld [vmem:[#allocation14 + $0x318] sm:$0xff]
        %v2960 = vld [vmem:[#allocation14 + $0x320] sm:$0xff]
        %v2961 = vld [vmem:[#allocation14 + $0x328] sm:$0xf]
        %v2962 = vld [vmem:[#allocation14 + $0x32c] sm:$0xff]
        %v2963 = vld [vmem:[#allocation14 + $0x334] sm:$0xff]
        %v2964 = vld [vmem:[#allocation14 + $0x33c] sm:$0xff]
        %v2965 = vld [vmem:[#allocation14 + $0x344] sm:$0xf]
        %v2966 = vld [vmem:[#allocation14 + $0x348] sm:$0xff]
        %v2967 = vld [vmem:[#allocation14 + $0x350] sm:$0xff]
        %v2968 = vld [vmem:[#allocation14 + $0x358] sm:$0xff]
        %v2969 = vld [vmem:[#allocation14 + $0x360] sm:$0xf]
        %v2970 = vld [vmem:[#allocation14 + $0x364] sm:$0xff]
        %v2971 = vld [vmem:[#allocation14 + $0x36c] sm:$0xff]
        %v2972 = vld [vmem:[#allocation14 + $0x374] sm:$0xff]
        %v2973 = vld [vmem:[#allocation14 + $0x37c] sm:$0xf]
        %v2974 = vld [vmem:[#allocation14 + $0x380] sm:$0xff]
        %v2975 = vld [vmem:[#allocation14 + $0x388] sm:$0xff]
        %v2976 = vld [vmem:[#allocation14 + $0x390] sm:$0xff]
        %v2977 = vld [vmem:[#allocation14 + $0x398] sm:$0xf]
        %v2978 = vld [vmem:[#allocation14 + $0x39c] sm:$0xff]
        %v2979 = vld [vmem:[#allocation14 + $0x3a4] sm:$0xff]
        %v2980 = vld [vmem:[#allocation14 + $0x3ac] sm:$0xff]
        %v2981 = vld [vmem:[#allocation14 + $0x3b4] sm:$0xf]
        %v2982 = vld [vmem:[#allocation14 + $0x3b8] sm:$0xff]
        %v2983 = vld [vmem:[#allocation14 + $0x3c0] sm:$0xff]
        %v2984 = vld [vmem:[#allocation14 + $0x3c8] sm:$0xff]
        %v2985 = vld [vmem:[#allocation14 + $0x3d0] sm:$0xf]
        %v2986 = vld [vmem:[#allocation14 + $0x3d4] sm:$0xff]
        %v2987 = vld [vmem:[#allocation14 + $0x3dc] sm:$0xff]
        %v2988 = vld [vmem:[#allocation14 + $0x3e4] sm:$0xff]
        %v2989 = vld [vmem:[#allocation14 + $0x3ec] sm:$0xf]
        %v2990 = vld [vmem:[#allocation14 + $0x3f0] sm:$0xff]
        %v2991 = vld [vmem:[#allocation14 + $0x3f8] sm:$0xff]
        %v2992 = vld [vmem:[#allocation14 + $0x400] sm:$0xff]
        %v2993 = vld [vmem:[#allocation14 + $0x408] sm:$0xf]
        %v2994 = vld [vmem:[#allocation14 + $0x40c] sm:$0xff]
        %v2995 = vld [vmem:[#allocation14 + $0x414] sm:$0xff]
        %v2996 = vld [vmem:[#allocation14 + $0x41c] sm:$0xff]
        %v2997 = vld [vmem:[#allocation14 + $0x424] sm:$0xf]
        %v2998 = vld [vmem:[#allocation14 + $0x428] sm:$0xff]
        %v2999 = vld [vmem:[#allocation14 + $0x430] sm:$0xff]
        %v3000 = vld [vmem:[#allocation14 + $0x438] sm:$0xff]
        %v3001 = vld [vmem:[#allocation14 + $0x440] sm:$0xf]
        %v3002 = vld [vmem:[#allocation14 + $0x444] sm:$0xff]
        %v3003 = vld [vmem:[#allocation14 + $0x44c] sm:$0xff]
        %v3004 = vld [vmem:[#allocation14 + $0x454] sm:$0xff]
        %v3005 = vld [vmem:[#allocation14 + $0x45c] sm:$0xf]
        %v3006 = vld [vmem:[#allocation14 + $0x460] sm:$0xff]
        %v3007 = vld [vmem:[#allocation14 + $0x468] sm:$0xff]
        %v3008 = vld [vmem:[#allocation14 + $0x470] sm:$0xff]
        %v3009 = vld [vmem:[#allocation14 + $0x478] sm:$0xf]
        %v3010 = vld [vmem:[#allocation14 + $0x47c] sm:$0xff]
        %v3011 = vld [vmem:[#allocation14 + $0x484] sm:$0xff]
        %v3012 = vld [vmem:[#allocation14 + $0x48c] sm:$0xff]
        %v3013 = vld [vmem:[#allocation14 + $0x494] sm:$0xf]
        %v3014 = vld [vmem:[#allocation14 + $0x498] sm:$0xff]
        %v3015 = vld [vmem:[#allocation14 + $0x4a0] sm:$0xff]
        %v3016 = vld [vmem:[#allocation14 + $0x4a8] sm:$0xff]
        %v3017 = vld [vmem:[#allocation14 + $0x4b0] sm:$0xf]
        %v3018 = vld [vmem:[#allocation14 + $0x4b4] sm:$0xff]
        %v3019 = vld [vmem:[#allocation14 + $0x4bc] sm:$0xff]
        %v3020 = vld [vmem:[#allocation14 + $0x4c4] sm:$0xff]
        %v3021 = vld [vmem:[#allocation14 + $0x4cc] sm:$0xf]
        %v3022 = vld [vmem:[#allocation14 + $0x4d0] sm:$0xff]
        %v3023 = vld [vmem:[#allocation14 + $0x4d8] sm:$0xff]
        %v3024 = vld [vmem:[#allocation14 + $0x4e0] sm:$0xff]
        %v3025 = vld [vmem:[#allocation14 + $0x4e8] sm:$0xf]
        %v3026 = vld [vmem:[#allocation14 + $0x4ec] sm:$0xff]
        %v3027 = vld [vmem:[#allocation14 + $0x4f4] sm:$0xff]
        %v3028 = vld [vmem:[#allocation14 + $0x4fc] sm:$0xff]
        %v3029 = vld [vmem:[#allocation14 + $0x504] sm:$0xf]
        %v3030 = vld [vmem:[#allocation14 + $0x508] sm:$0xff]
        %v3031 = vld [vmem:[#allocation14 + $0x510] sm:$0xff]
        %v3032 = vld [vmem:[#allocation14 + $0x518] sm:$0xff]
        %v3033 = vld [vmem:[#allocation14 + $0x520] sm:$0xf]
        %v3034 = vld [vmem:[#allocation14 + $0x524] sm:$0xff]
        %v3035 = vld [vmem:[#allocation14 + $0x52c] sm:$0xff]
        %v3036 = vld [vmem:[#allocation14 + $0x534] sm:$0xff]
        %v3037 = vld [vmem:[#allocation14 + $0x53c] sm:$0xf]
        %v3038 = vld [vmem:[#allocation14 + $0x540] sm:$0xff]
        %v3039 = vld [vmem:[#allocation14 + $0x548] sm:$0xff]
        %v3040 = vld [vmem:[#allocation14 + $0x550] sm:$0xff]
        %v3041 = vld [vmem:[#allocation14 + $0x558] sm:$0xf]
        %v3042 = vld [vmem:[#allocation14 + $0x55c] sm:$0xff]
        %v3043 = vld [vmem:[#allocation14 + $0x564] sm:$0xff]
        %v3044 = vld [vmem:[#allocation14 + $0x56c] sm:$0xff]
        %v3045 = vld [vmem:[#allocation14 + $0x574] sm:$0xf]
        %v3046 = vld [vmem:[#allocation14 + $0x578] sm:$0xff]
        %v3047 = vld [vmem:[#allocation14 + $0x580] sm:$0xff]
        %v3048 = vld [vmem:[#allocation14 + $0x588] sm:$0xff]
        %v3049 = vld [vmem:[#allocation14 + $0x590] sm:$0xf]
        %v3050 = vld [vmem:[#allocation14 + $0x594] sm:$0xff]
        %v3051 = vld [vmem:[#allocation14 + $0x59c] sm:$0xff]
        %v3052 = vld [vmem:[#allocation14 + $0x5a4] sm:$0xff]
        %v3053 = vld [vmem:[#allocation14 + $0x5ac] sm:$0xf]
        %v3054 = vld [vmem:[#allocation14 + $0x5b0] sm:$0xff]
        %v3055 = vld [vmem:[#allocation14 + $0x5b8] sm:$0xff]
        %v3056 = vld [vmem:[#allocation14 + $0x5c0] sm:$0xff]
        %v3057 = vld [vmem:[#allocation14 + $0x5c8] sm:$0xf]
        %v3058 = vld [vmem:[#allocation14 + $0x5cc] sm:$0xff]
        %v3059 = vld [vmem:[#allocation14 + $0x5d4] sm:$0xff]
        %v3060 = vld [vmem:[#allocation14 + $0x5dc] sm:$0xff]
        %v3061 = vld [vmem:[#allocation14 + $0x5e4] sm:$0xf]
        %v3062 = vld [vmem:[#allocation14 + $0x5e8] sm:$0xff]
        %v3063 = vld [vmem:[#allocation14 + $0x5f0] sm:$0xff]
        %v3064 = vld [vmem:[#allocation14 + $0x5f8] sm:$0xff]
        %v3065 = vld [vmem:[#allocation14 + $0x600] sm:$0xf]
        %v3066 = vld [vmem:[#allocation14 + $0x604] sm:$0xff]
        %v3067 = vld [vmem:[#allocation14 + $0x60c] sm:$0xff]
        %v3068 = vld [vmem:[#allocation14 + $0x614] sm:$0xff]
        %v3069 = vld [vmem:[#allocation14 + $0x61c] sm:$0xf]
        %v3070 = vld [vmem:[#allocation14 + $0x620] sm:$0xff]
        %v3071 = vld [vmem:[#allocation14 + $0x628] sm:$0xff]
        %v3072 = vld [vmem:[#allocation14 + $0x630] sm:$0xff]
        %v3073 = vld [vmem:[#allocation14 + $0x638] sm:$0xf]
        %v3074 = vld [vmem:[#allocation14 + $0x63c] sm:$0xff]
        %v3075 = vld [vmem:[#allocation14 + $0x644] sm:$0xff]
        %v3076 = vld [vmem:[#allocation14 + $0x64c] sm:$0xff]
        %v3077 = vld [vmem:[#allocation14 + $0x654] sm:$0xf]
        %v3078 = vld [vmem:[#allocation14 + $0x658] sm:$0xff]
        %v3079 = vld [vmem:[#allocation14 + $0x660] sm:$0xff]
        %v3080 = vld [vmem:[#allocation14 + $0x668] sm:$0xff]
        %v3081 = vld [vmem:[#allocation14 + $0x670] sm:$0xf]
        %v3082 = vld [vmem:[#allocation14 + $0x674] sm:$0xff]
        %v3083 = vld [vmem:[#allocation14 + $0x67c] sm:$0xff]
        %v3084 = vld [vmem:[#allocation14 + $0x684] sm:$0xff]
        %v3085 = vld [vmem:[#allocation14 + $0x68c] sm:$0xf]
        %v3086 = vld [vmem:[#allocation14 + $0x690] sm:$0xff]
        %v3087 = vld [vmem:[#allocation14 + $0x698] sm:$0xff]
        %v3088 = vld [vmem:[#allocation14 + $0x6a0] sm:$0xff]
        %v3089 = vld [vmem:[#allocation14 + $0x6a8] sm:$0xf]
        %v3090 = vld [vmem:[#allocation14 + $0x6ac] sm:$0xff]
        %v3091 = vld [vmem:[#allocation14 + $0x6b4] sm:$0xff]
        %v3092 = vld [vmem:[#allocation14 + $0x6bc] sm:$0xff]
        %v3093 = vld [vmem:[#allocation14 + $0x6c4] sm:$0xf]
        %v3094 = vld [vmem:[#allocation14 + $0x6c8] sm:$0xff]
        %v3095 = vld [vmem:[#allocation14 + $0x6d0] sm:$0xff]
        %v3096 = vld [vmem:[#allocation14 + $0x6d8] sm:$0xff]
        %v3097 = vld [vmem:[#allocation14 + $0x6e0] sm:$0xf]
        %v3098 = vld [vmem:[#allocation14 + $0x6e4] sm:$0xff]
        %v3099 = vld [vmem:[#allocation14 + $0x6ec] sm:$0xff]
        %v3100 = vld [vmem:[#allocation14 + $0x6f4] sm:$0xff]
        %v3101 = vld [vmem:[#allocation14 + $0x6fc] sm:$0xf]
        %v3102 = vld [vmem:[%s8] sm:$0xff]
        %v3104 = vperm.slane %v3102, 0
        %v3105 = vperm.slane %v3102, 1
        %v3106 = vperm.slane %v3102, 2
        %v3107 = vperm.slane %v3102, 3
        %v3108 = vperm.slane %v3102, 4
        %v3109 = vperm.slane %v3102, 5
        %v3110 = vperm.slane %v3102, 6
        %v3374 = vunpack.c.l.b16 %v2846
        %v3375 = vunpack.c.h.b16 %v2846
        %v3376 = vunpack.c.l.b16 %v2847
        %v3377 = vunpack.c.h.b16 %v2847
        %v3378 = vunpack.c.l.b16 %v2848
        %v3379 = vunpack.c.h.b16 %v2848
        %v3380 = vunpack.c.l.b16 %v2849
        %v3381 = vunpack.c.l.b16 %v2850
        %v3382 = vunpack.c.h.b16 %v2850
        %v3383 = vunpack.c.l.b16 %v2851
        %v3384 = vunpack.c.h.b16 %v2851
        %v3385 = vunpack.c.l.b16 %v2852
        %v3386 = vunpack.c.h.b16 %v2852
        %v3387 = vunpack.c.l.b16 %v2853
        %v3388 = vunpack.c.l.b16 %v2854
        %v3389 = vunpack.c.h.b16 %v2854
        %v3390 = vunpack.c.l.b16 %v2855
        %v3391 = vunpack.c.h.b16 %v2855
        %v3392 = vunpack.c.l.b16 %v2856
        %v3393 = vunpack.c.h.b16 %v2856
        %v3394 = vunpack.c.l.b16 %v2857
        %v3395 = vunpack.c.l.b16 %v2858
        %v3396 = vunpack.c.h.b16 %v2858
        %v3397 = vunpack.c.l.b16 %v2859
        %v3398 = vunpack.c.h.b16 %v2859
        %v3399 = vunpack.c.l.b16 %v2860
        %v3400 = vunpack.c.h.b16 %v2860
        %v3401 = vunpack.c.l.b16 %v2861
        %v3402 = vunpack.c.l.b16 %v2862
        %v3403 = vunpack.c.h.b16 %v2862
        %v3404 = vunpack.c.l.b16 %v2863
        %v3405 = vunpack.c.h.b16 %v2863
        %v3406 = vunpack.c.l.b16 %v2864
        %v3407 = vunpack.c.h.b16 %v2864
        %v3408 = vunpack.c.l.b16 %v2865
        %v3409 = vunpack.c.l.b16 %v2866
        %v3410 = vunpack.c.h.b16 %v2866
        %v3411 = vunpack.c.l.b16 %v2867
        %v3412 = vunpack.c.h.b16 %v2867
        %v3413 = vunpack.c.l.b16 %v2868
        %v3414 = vunpack.c.h.b16 %v2868
        %v3415 = vunpack.c.l.b16 %v2869
        %v3416 = vunpack.c.l.b16 %v2870
        %v3417 = vunpack.c.h.b16 %v2870
        %v3418 = vunpack.c.l.b16 %v2871
        %v3419 = vunpack.c.h.b16 %v2871
        %v3420 = vunpack.c.l.b16 %v2872
        %v3421 = vunpack.c.h.b16 %v2872
        %v3422 = vunpack.c.l.b16 %v2873
        %v3423 = vunpack.c.l.b16 %v2874
        %v3424 = vunpack.c.h.b16 %v2874
        %v3425 = vunpack.c.l.b16 %v2875
        %v3426 = vunpack.c.h.b16 %v2875
        %v3427 = vunpack.c.l.b16 %v2876
        %v3428 = vunpack.c.h.b16 %v2876
        %v3429 = vunpack.c.l.b16 %v2877
        %v3430 = vunpack.c.l.b16 %v2878
        %v3431 = vunpack.c.h.b16 %v2878
        %v3432 = vunpack.c.l.b16 %v2879
        %v3433 = vunpack.c.h.b16 %v2879
        %v3434 = vunpack.c.l.b16 %v2880
        %v3435 = vunpack.c.h.b16 %v2880
        %v3436 = vunpack.c.l.b16 %v2881
        %v3437 = vunpack.c.l.b16 %v2882
        %v3438 = vunpack.c.h.b16 %v2882
        %v3439 = vunpack.c.l.b16 %v2883
        %v3440 = vunpack.c.h.b16 %v2883
        %v3441 = vunpack.c.l.b16 %v2884
        %v3442 = vunpack.c.h.b16 %v2884
        %v3443 = vunpack.c.l.b16 %v2885
        %v3444 = vunpack.c.l.b16 %v2886
        %v3445 = vunpack.c.h.b16 %v2886
        %v3446 = vunpack.c.l.b16 %v2887
        %v3447 = vunpack.c.h.b16 %v2887
        %v3448 = vunpack.c.l.b16 %v2888
        %v3449 = vunpack.c.h.b16 %v2888
        %v3450 = vunpack.c.l.b16 %v2889
        %v3451 = vunpack.c.l.b16 %v2890
        %v3452 = vunpack.c.h.b16 %v2890
        %v3453 = vunpack.c.l.b16 %v2891
        %v3454 = vunpack.c.h.b16 %v2891
        %v3455 = vunpack.c.l.b16 %v2892
        %v3456 = vunpack.c.h.b16 %v2892
        %v3457 = vunpack.c.l.b16 %v2893
        %v3458 = vunpack.c.l.b16 %v2894
        %v3459 = vunpack.c.h.b16 %v2894
        %v3460 = vunpack.c.l.b16 %v2895
        %v3461 = vunpack.c.h.b16 %v2895
        %v3462 = vunpack.c.l.b16 %v2896
        %v3463 = vunpack.c.h.b16 %v2896
        %v3464 = vunpack.c.l.b16 %v2897
        %v3465 = vunpack.c.l.b16 %v2898
        %v3466 = vunpack.c.h.b16 %v2898
        %v3467 = vunpack.c.l.b16 %v2899
        %v3468 = vunpack.c.h.b16 %v2899
        %v3469 = vunpack.c.l.b16 %v2900
        %v3470 = vunpack.c.h.b16 %v2900
        %v3471 = vunpack.c.l.b16 %v2901
        %v3472 = vunpack.c.l.b16 %v2902
        %v3473 = vunpack.c.h.b16 %v2902
        %v3474 = vunpack.c.l.b16 %v2903
        %v3475 = vunpack.c.h.b16 %v2903
        %v3476 = vunpack.c.l.b16 %v2904
        %v3477 = vunpack.c.h.b16 %v2904
        %v3478 = vunpack.c.l.b16 %v2905
        %v3479 = vunpack.c.l.b16 %v2906
        %v3480 = vunpack.c.h.b16 %v2906
        %v3481 = vunpack.c.l.b16 %v2907
        %v3482 = vunpack.c.h.b16 %v2907
        %v3483 = vunpack.c.l.b16 %v2908
        %v3484 = vunpack.c.h.b16 %v2908
        %v3485 = vunpack.c.l.b16 %v2909
        %v3486 = vunpack.c.l.b16 %v2910
        %v3487 = vunpack.c.h.b16 %v2910
        %v3488 = vunpack.c.l.b16 %v2911
        %v3489 = vunpack.c.h.b16 %v2911
        %v3490 = vunpack.c.l.b16 %v2912
        %v3491 = vunpack.c.h.b16 %v2912
        %v3492 = vunpack.c.l.b16 %v2913
        %v3493 = vunpack.c.l.b16 %v2914
        %v3494 = vunpack.c.h.b16 %v2914
        %v3495 = vunpack.c.l.b16 %v2915
        %v3496 = vunpack.c.h.b16 %v2915
        %v3497 = vunpack.c.l.b16 %v2916
        %v3498 = vunpack.c.h.b16 %v2916
        %v3499 = vunpack.c.l.b16 %v2917
        %v3500 = vunpack.c.l.b16 %v2918
        %v3501 = vunpack.c.h.b16 %v2918
        %v3502 = vunpack.c.l.b16 %v2919
        %v3503 = vunpack.c.h.b16 %v2919
        %v3504 = vunpack.c.l.b16 %v2920
        %v3505 = vunpack.c.h.b16 %v2920
        %v3506 = vunpack.c.l.b16 %v2921
        %v3507 = vunpack.c.l.b16 %v2922
        %v3508 = vunpack.c.h.b16 %v2922
        %v3509 = vunpack.c.l.b16 %v2923
        %v3510 = vunpack.c.h.b16 %v2923
        %v3511 = vunpack.c.l.b16 %v2924
        %v3512 = vunpack.c.h.b16 %v2924
        %v3513 = vunpack.c.l.b16 %v2925
        %v3514 = vunpack.c.l.b16 %v2926
        %v3515 = vunpack.c.h.b16 %v2926
        %v3516 = vunpack.c.l.b16 %v2927
        %v3517 = vunpack.c.h.b16 %v2927
        %v3518 = vunpack.c.l.b16 %v2928
        %v3519 = vunpack.c.h.b16 %v2928
        %v3520 = vunpack.c.l.b16 %v2929
        %v3521 = vunpack.c.l.b16 %v2930
        %v3522 = vunpack.c.h.b16 %v2930
        %v3523 = vunpack.c.l.b16 %v2931
        %v3524 = vunpack.c.h.b16 %v2931
        %v3525 = vunpack.c.l.b16 %v2932
        %v3526 = vunpack.c.h.b16 %v2932
        %v3527 = vunpack.c.l.b16 %v2933
        %v3528 = vunpack.c.l.b16 %v2934
        %v3529 = vunpack.c.h.b16 %v2934
        %v3530 = vunpack.c.l.b16 %v2935
        %v3531 = vunpack.c.h.b16 %v2935
        %v3532 = vunpack.c.l.b16 %v2936
        %v3533 = vunpack.c.h.b16 %v2936
        %v3534 = vunpack.c.l.b16 %v2937
        %v3535 = vunpack.c.l.b16 %v2938
        %v3536 = vunpack.c.h.b16 %v2938
        %v3537 = vunpack.c.l.b16 %v2939
        %v3538 = vunpack.c.h.b16 %v2939
        %v3539 = vunpack.c.l.b16 %v2940
        %v3540 = vunpack.c.h.b16 %v2940
        %v3541 = vunpack.c.l.b16 %v2941
        %v3542 = vunpack.c.l.b16 %v2942
        %v3543 = vunpack.c.h.b16 %v2942
        %v3544 = vunpack.c.l.b16 %v2943
        %v3545 = vunpack.c.h.b16 %v2943
        %v3546 = vunpack.c.l.b16 %v2944
        %v3547 = vunpack.c.h.b16 %v2944
        %v3548 = vunpack.c.l.b16 %v2945
        %v3549 = vunpack.c.l.b16 %v2946
        %v3550 = vunpack.c.h.b16 %v2946
        %v3551 = vunpack.c.l.b16 %v2947
        %v3552 = vunpack.c.h.b16 %v2947
        %v3553 = vunpack.c.l.b16 %v2948
        %v3554 = vunpack.c.h.b16 %v2948
        %v3555 = vunpack.c.l.b16 %v2949
        %v3556 = vunpack.c.l.b16 %v2950
        %v3557 = vunpack.c.h.b16 %v2950
        %v3558 = vunpack.c.l.b16 %v2951
        %v3559 = vunpack.c.h.b16 %v2951
        %v3560 = vunpack.c.l.b16 %v2952
        %v3561 = vunpack.c.h.b16 %v2952
        %v3562 = vunpack.c.l.b16 %v2953
        %v3563 = vunpack.c.l.b16 %v2954
        %v3564 = vunpack.c.h.b16 %v2954
        %v3565 = vunpack.c.l.b16 %v2955
        %v3566 = vunpack.c.h.b16 %v2955
        %v3567 = vunpack.c.l.b16 %v2956
        %v3568 = vunpack.c.h.b16 %v2956
        %v3569 = vunpack.c.l.b16 %v2957
        %v3570 = vunpack.c.l.b16 %v2958
        %v3571 = vunpack.c.h.b16 %v2958
        %v3572 = vunpack.c.l.b16 %v2959
        %v3573 = vunpack.c.h.b16 %v2959
        %v3574 = vunpack.c.l.b16 %v2960
        %v3575 = vunpack.c.h.b16 %v2960
        %v3576 = vunpack.c.l.b16 %v2961
        %v3577 = vunpack.c.l.b16 %v2962
        %v3578 = vunpack.c.h.b16 %v2962
        %v3579 = vunpack.c.l.b16 %v2963
        %v3580 = vunpack.c.h.b16 %v2963
        %v3581 = vunpack.c.l.b16 %v2964
        %v3582 = vunpack.c.h.b16 %v2964
        %v3583 = vunpack.c.l.b16 %v2965
        %v3584 = vunpack.c.l.b16 %v2966
        %v3585 = vunpack.c.h.b16 %v2966
        %v3586 = vunpack.c.l.b16 %v2967
        %v3587 = vunpack.c.h.b16 %v2967
        %v3588 = vunpack.c.l.b16 %v2968
        %v3589 = vunpack.c.h.b16 %v2968
        %v3590 = vunpack.c.l.b16 %v2969
        %v3591 = vunpack.c.l.b16 %v2970
        %v3592 = vunpack.c.h.b16 %v2970
        %v3593 = vunpack.c.l.b16 %v2971
        %v3594 = vunpack.c.h.b16 %v2971
        %v3595 = vunpack.c.l.b16 %v2972
        %v3596 = vunpack.c.h.b16 %v2972
        %v3597 = vunpack.c.l.b16 %v2973
        %v3598 = vunpack.c.l.b16 %v2974
        %v3599 = vunpack.c.h.b16 %v2974
        %v3600 = vunpack.c.l.b16 %v2975
        %v3601 = vunpack.c.h.b16 %v2975
        %v3602 = vunpack.c.l.b16 %v2976
        %v3603 = vunpack.c.h.b16 %v2976
        %v3604 = vunpack.c.l.b16 %v2977
        %v3605 = vunpack.c.l.b16 %v2978
        %v3606 = vunpack.c.h.b16 %v2978
        %v3607 = vunpack.c.l.b16 %v2979
        %v3608 = vunpack.c.h.b16 %v2979
        %v3609 = vunpack.c.l.b16 %v2980
        %v3610 = vunpack.c.h.b16 %v2980
        %v3611 = vunpack.c.l.b16 %v2981
        %v3612 = vunpack.c.l.b16 %v2982
        %v3613 = vunpack.c.h.b16 %v2982
        %v3614 = vunpack.c.l.b16 %v2983
        %v3615 = vunpack.c.h.b16 %v2983
        %v3616 = vunpack.c.l.b16 %v2984
        %v3617 = vunpack.c.h.b16 %v2984
        %v3618 = vunpack.c.l.b16 %v2985
        %v3619 = vunpack.c.l.b16 %v2986
        %v3620 = vunpack.c.h.b16 %v2986
        %v3621 = vunpack.c.l.b16 %v2987
        %v3622 = vunpack.c.h.b16 %v2987
        %v3623 = vunpack.c.l.b16 %v2988
        %v3624 = vunpack.c.h.b16 %v2988
        %v3625 = vunpack.c.l.b16 %v2989
        %v3626 = vunpack.c.l.b16 %v2990
        %v3627 = vunpack.c.h.b16 %v2990
        %v3628 = vunpack.c.l.b16 %v2991
        %v3629 = vunpack.c.h.b16 %v2991
        %v3630 = vunpack.c.l.b16 %v2992
        %v3631 = vunpack.c.h.b16 %v2992
        %v3632 = vunpack.c.l.b16 %v2993
        %v3633 = vunpack.c.l.b16 %v2994
        %v3634 = vunpack.c.h.b16 %v2994
        %v3635 = vunpack.c.l.b16 %v2995
        %v3636 = vunpack.c.h.b16 %v2995
        %v3637 = vunpack.c.l.b16 %v2996
        %v3638 = vunpack.c.h.b16 %v2996
        %v3639 = vunpack.c.l.b16 %v2997
        %v3640 = vunpack.c.l.b16 %v2998
        %v3641 = vunpack.c.h.b16 %v2998
        %v3642 = vunpack.c.l.b16 %v2999
        %v3643 = vunpack.c.h.b16 %v2999
        %v3644 = vunpack.c.l.b16 %v3000
        %v3645 = vunpack.c.h.b16 %v3000
        %v3646 = vunpack.c.l.b16 %v3001
        %v3647 = vunpack.c.l.b16 %v3002
        %v3648 = vunpack.c.h.b16 %v3002
        %v3649 = vunpack.c.l.b16 %v3003
        %v3650 = vunpack.c.h.b16 %v3003
        %v3651 = vunpack.c.l.b16 %v3004
        %v3652 = vunpack.c.h.b16 %v3004
        %v3653 = vunpack.c.l.b16 %v3005
        %v3654 = vunpack.c.l.b16 %v3006
        %v3655 = vunpack.c.h.b16 %v3006
        %v3656 = vunpack.c.l.b16 %v3007
        %v3657 = vunpack.c.h.b16 %v3007
        %v3658 = vunpack.c.l.b16 %v3008
        %v3659 = vunpack.c.h.b16 %v3008
        %v3660 = vunpack.c.l.b16 %v3009
        %v3661 = vunpack.c.l.b16 %v3010
        %v3662 = vunpack.c.h.b16 %v3010
        %v3663 = vunpack.c.l.b16 %v3011
        %v3664 = vunpack.c.h.b16 %v3011
        %v3665 = vunpack.c.l.b16 %v3012
        %v3666 = vunpack.c.h.b16 %v3012
        %v3667 = vunpack.c.l.b16 %v3013
        %v3668 = vunpack.c.l.b16 %v3014
        %v3669 = vunpack.c.h.b16 %v3014
        %v3670 = vunpack.c.l.b16 %v3015
        %v3671 = vunpack.c.h.b16 %v3015
        %v3672 = vunpack.c.l.b16 %v3016
        %v3673 = vunpack.c.h.b16 %v3016
        %v3674 = vunpack.c.l.b16 %v3017
        %v3675 = vunpack.c.l.b16 %v3018
        %v3676 = vunpack.c.h.b16 %v3018
        %v3677 = vunpack.c.l.b16 %v3019
        %v3678 = vunpack.c.h.b16 %v3019
        %v3679 = vunpack.c.l.b16 %v3020
        %v3680 = vunpack.c.h.b16 %v3020
        %v3681 = vunpack.c.l.b16 %v3021
        %v3682 = vunpack.c.l.b16 %v3022
        %v3683 = vunpack.c.h.b16 %v3022
        %v3684 = vunpack.c.l.b16 %v3023
        %v3685 = vunpack.c.h.b16 %v3023
        %v3686 = vunpack.c.l.b16 %v3024
        %v3687 = vunpack.c.h.b16 %v3024
        %v3688 = vunpack.c.l.b16 %v3025
        %v3689 = vunpack.c.l.b16 %v3026
        %v3690 = vunpack.c.h.b16 %v3026
        %v3691 = vunpack.c.l.b16 %v3027
        %v3692 = vunpack.c.h.b16 %v3027
        %v3693 = vunpack.c.l.b16 %v3028
        %v3694 = vunpack.c.h.b16 %v3028
        %v3695 = vunpack.c.l.b16 %v3029
        %v3696 = vunpack.c.l.b16 %v3030
        %v3697 = vunpack.c.h.b16 %v3030
        %v3698 = vunpack.c.l.b16 %v3031
        %v3699 = vunpack.c.h.b16 %v3031
        %v3700 = vunpack.c.l.b16 %v3032
        %v3701 = vunpack.c.h.b16 %v3032
        %v3702 = vunpack.c.l.b16 %v3033
        %v3703 = vunpack.c.l.b16 %v3034
        %v3704 = vunpack.c.h.b16 %v3034
        %v3705 = vunpack.c.l.b16 %v3035
        %v3706 = vunpack.c.h.b16 %v3035
        %v3707 = vunpack.c.l.b16 %v3036
        %v3708 = vunpack.c.h.b16 %v3036
        %v3709 = vunpack.c.l.b16 %v3037
        %v3710 = vunpack.c.l.b16 %v3038
        %v3711 = vunpack.c.h.b16 %v3038
        %v3712 = vunpack.c.l.b16 %v3039
        %v3713 = vunpack.c.h.b16 %v3039
        %v3714 = vunpack.c.l.b16 %v3040
        %v3715 = vunpack.c.h.b16 %v3040
        %v3716 = vunpack.c.l.b16 %v3041
        %v3717 = vunpack.c.l.b16 %v3042
        %v3718 = vunpack.c.h.b16 %v3042
        %v3719 = vunpack.c.l.b16 %v3043
        %v3720 = vunpack.c.h.b16 %v3043
        %v3721 = vunpack.c.l.b16 %v3044
        %v3722 = vunpack.c.h.b16 %v3044
        %v3723 = vunpack.c.l.b16 %v3045
        %v3724 = vunpack.c.l.b16 %v3046
        %v3725 = vunpack.c.h.b16 %v3046
        %v3726 = vunpack.c.l.b16 %v3047
        %v3727 = vunpack.c.h.b16 %v3047
        %v3728 = vunpack.c.l.b16 %v3048
        %v3729 = vunpack.c.h.b16 %v3048
        %v3730 = vunpack.c.l.b16 %v3049
        %v3731 = vunpack.c.l.b16 %v3050
        %v3732 = vunpack.c.h.b16 %v3050
        %v3733 = vunpack.c.l.b16 %v3051
        %v3734 = vunpack.c.h.b16 %v3051
        %v3735 = vunpack.c.l.b16 %v3052
        %v3736 = vunpack.c.h.b16 %v3052
        %v3737 = vunpack.c.l.b16 %v3053
        %v3738 = vunpack.c.l.b16 %v3054
        %v3739 = vunpack.c.h.b16 %v3054
        %v3740 = vunpack.c.l.b16 %v3055
        %v3741 = vunpack.c.h.b16 %v3055
        %v3742 = vunpack.c.l.b16 %v3056
        %v3743 = vunpack.c.h.b16 %v3056
        %v3744 = vunpack.c.l.b16 %v3057
        %v3745 = vunpack.c.l.b16 %v3058
        %v3746 = vunpack.c.h.b16 %v3058
        %v3747 = vunpack.c.l.b16 %v3059
        %v3748 = vunpack.c.h.b16 %v3059
        %v3749 = vunpack.c.l.b16 %v3060
        %v3750 = vunpack.c.h.b16 %v3060
        %v3751 = vunpack.c.l.b16 %v3061
        %v3752 = vunpack.c.l.b16 %v3062
        %v3753 = vunpack.c.h.b16 %v3062
        %v3754 = vunpack.c.l.b16 %v3063
        %v3755 = vunpack.c.h.b16 %v3063
        %v3756 = vunpack.c.l.b16 %v3064
        %v3757 = vunpack.c.h.b16 %v3064
        %v3758 = vunpack.c.l.b16 %v3065
        %v3759 = vunpack.c.l.b16 %v3066
        %v3760 = vunpack.c.h.b16 %v3066
        %v3761 = vunpack.c.l.b16 %v3067
        %v3762 = vunpack.c.h.b16 %v3067
        %v3763 = vunpack.c.l.b16 %v3068
        %v3764 = vunpack.c.h.b16 %v3068
        %v3765 = vunpack.c.l.b16 %v3069
        %v3766 = vunpack.c.l.b16 %v3070
        %v3767 = vunpack.c.h.b16 %v3070
        %v3768 = vunpack.c.l.b16 %v3071
        %v3769 = vunpack.c.h.b16 %v3071
        %v3770 = vunpack.c.l.b16 %v3072
        %v3771 = vunpack.c.h.b16 %v3072
        %v3772 = vunpack.c.l.b16 %v3073
        %v3773 = vunpack.c.l.b16 %v3074
        %v3774 = vunpack.c.h.b16 %v3074
        %v3775 = vunpack.c.l.b16 %v3075
        %v3776 = vunpack.c.h.b16 %v3075
        %v3777 = vunpack.c.l.b16 %v3076
        %v3778 = vunpack.c.h.b16 %v3076
        %v3779 = vunpack.c.l.b16 %v3077
        %v3780 = vunpack.c.l.b16 %v3078
        %v3781 = vunpack.c.h.b16 %v3078
        %v3782 = vunpack.c.l.b16 %v3079
        %v3783 = vunpack.c.h.b16 %v3079
        %v3784 = vunpack.c.l.b16 %v3080
        %v3785 = vunpack.c.h.b16 %v3080
        %v3786 = vunpack.c.l.b16 %v3081
        %v3787 = vunpack.c.l.b16 %v3082
        %v3788 = vunpack.c.h.b16 %v3082
        %v3789 = vunpack.c.l.b16 %v3083
        %v3790 = vunpack.c.h.b16 %v3083
        %v3791 = vunpack.c.l.b16 %v3084
        %v3792 = vunpack.c.h.b16 %v3084
        %v3793 = vunpack.c.l.b16 %v3085
        %v3794 = vunpack.c.l.b16 %v3086
        %v3795 = vunpack.c.h.b16 %v3086
        %v3796 = vunpack.c.l.b16 %v3087
        %v3797 = vunpack.c.h.b16 %v3087
        %v3798 = vunpack.c.l.b16 %v3088
        %v3799 = vunpack.c.h.b16 %v3088
        %v3800 = vunpack.c.l.b16 %v3089
        %v3801 = vunpack.c.l.b16 %v3090
        %v3802 = vunpack.c.h.b16 %v3090
        %v3803 = vunpack.c.l.b16 %v3091
        %v3804 = vunpack.c.h.b16 %v3091
        %v3805 = vunpack.c.l.b16 %v3092
        %v3806 = vunpack.c.h.b16 %v3092
        %v3807 = vunpack.c.l.b16 %v3093
        %v3808 = vunpack.c.l.b16 %v3094
        %v3809 = vunpack.c.h.b16 %v3094
        %v3810 = vunpack.c.l.b16 %v3095
        %v3811 = vunpack.c.h.b16 %v3095
        %v3812 = vunpack.c.l.b16 %v3096
        %v3813 = vunpack.c.h.b16 %v3096
        %v3814 = vunpack.c.l.b16 %v3097
        %v3815 = vunpack.c.l.b16 %v3098
        %v3816 = vunpack.c.h.b16 %v3098
        %v3817 = vunpack.c.l.b16 %v3099
        %v3818 = vunpack.c.h.b16 %v3099
        %v3819 = vunpack.c.l.b16 %v3100
        %v3820 = vunpack.c.h.b16 %v3100
        %v3821 = vunpack.c.l.b16 %v3101
        %v3822 = vpack.c.b16 %v3381, %v3374
        %v3823 = vpack.c.b16 %v3382, %v3375
        %v3824 = vpack.c.b16 %v3383, %v3376
        %v3825 = vpack.c.b16 %v3384, %v3377
        %v3826 = vpack.c.b16 %v3385, %v3378
        %v3827 = vpack.c.b16 %v3386, %v3379
        %v3828 = vpack.c.b16 %v3387, %v3380
        %v3829 = vpack.c.b16 %v3395, %v3388
        %v3830 = vpack.c.b16 %v3396, %v3389
        %v3831 = vpack.c.b16 %v3397, %v3390
        %v3832 = vpack.c.b16 %v3398, %v3391
        %v3833 = vpack.c.b16 %v3399, %v3392
        %v3834 = vpack.c.b16 %v3400, %v3393
        %v3835 = vpack.c.b16 %v3401, %v3394
        %v3836 = vpack.c.b16 %v3409, %v3402
        %v3837 = vpack.c.b16 %v3410, %v3403
        %v3838 = vpack.c.b16 %v3411, %v3404
        %v3839 = vpack.c.b16 %v3412, %v3405
        %v3840 = vpack.c.b16 %v3413, %v3406
        %v3841 = vpack.c.b16 %v3414, %v3407
        %v3842 = vpack.c.b16 %v3415, %v3408
        %v3843 = vpack.c.b16 %v3423, %v3416
        %v3844 = vpack.c.b16 %v3424, %v3417
        %v3845 = vpack.c.b16 %v3425, %v3418
        %v3846 = vpack.c.b16 %v3426, %v3419
        %v3847 = vpack.c.b16 %v3427, %v3420
        %v3848 = vpack.c.b16 %v3428, %v3421
        %v3849 = vpack.c.b16 %v3429, %v3422
        %v3850 = vpack.c.b16 %v3437, %v3430
        %v3851 = vpack.c.b16 %v3438, %v3431
        %v3852 = vpack.c.b16 %v3439, %v3432
        %v3853 = vpack.c.b16 %v3440, %v3433
        %v3854 = vpack.c.b16 %v3441, %v3434
        %v3855 = vpack.c.b16 %v3442, %v3435
        %v3856 = vpack.c.b16 %v3443, %v3436
        %v3857 = vpack.c.b16 %v3451, %v3444
        %v3858 = vpack.c.b16 %v3452, %v3445
        %v3859 = vpack.c.b16 %v3453, %v3446
        %v3860 = vpack.c.b16 %v3454, %v3447
        %v3861 = vpack.c.b16 %v3455, %v3448
        %v3862 = vpack.c.b16 %v3456, %v3449
        %v3863 = vpack.c.b16 %v3457, %v3450
        %v3864 = vpack.c.b16 %v3465, %v3458
        %v3865 = vpack.c.b16 %v3466, %v3459
        %v3866 = vpack.c.b16 %v3467, %v3460
        %v3867 = vpack.c.b16 %v3468, %v3461
        %v3868 = vpack.c.b16 %v3469, %v3462
        %v3869 = vpack.c.b16 %v3470, %v3463
        %v3870 = vpack.c.b16 %v3471, %v3464
        %v3871 = vpack.c.b16 %v3479, %v3472
        %v3872 = vpack.c.b16 %v3480, %v3473
        %v3873 = vpack.c.b16 %v3481, %v3474
        %v3874 = vpack.c.b16 %v3482, %v3475
        %v3875 = vpack.c.b16 %v3483, %v3476
        %v3876 = vpack.c.b16 %v3484, %v3477
        %v3877 = vpack.c.b16 %v3485, %v3478
        %v3878 = vpack.c.b16 %v3493, %v3486
        %v3879 = vpack.c.b16 %v3494, %v3487
        %v3880 = vpack.c.b16 %v3495, %v3488
        %v3881 = vpack.c.b16 %v3496, %v3489
        %v3882 = vpack.c.b16 %v3497, %v3490
        %v3883 = vpack.c.b16 %v3498, %v3491
        %v3884 = vpack.c.b16 %v3499, %v3492
        %v3885 = vpack.c.b16 %v3507, %v3500
        %v3886 = vpack.c.b16 %v3508, %v3501
        %v3887 = vpack.c.b16 %v3509, %v3502
        %v3888 = vpack.c.b16 %v3510, %v3503
        %v3889 = vpack.c.b16 %v3511, %v3504
        %v3890 = vpack.c.b16 %v3512, %v3505
        %v3891 = vpack.c.b16 %v3513, %v3506
        %v3892 = vpack.c.b16 %v3521, %v3514
        %v3893 = vpack.c.b16 %v3522, %v3515
        %v3894 = vpack.c.b16 %v3523, %v3516
        %v3895 = vpack.c.b16 %v3524, %v3517
        %v3896 = vpack.c.b16 %v3525, %v3518
        %v3897 = vpack.c.b16 %v3526, %v3519
        %v3898 = vpack.c.b16 %v3527, %v3520
        %v3899 = vpack.c.b16 %v3535, %v3528
        %v3900 = vpack.c.b16 %v3536, %v3529
        %v3901 = vpack.c.b16 %v3537, %v3530
        %v3902 = vpack.c.b16 %v3538, %v3531
        %v3903 = vpack.c.b16 %v3539, %v3532
        %v3904 = vpack.c.b16 %v3540, %v3533
        %v3905 = vpack.c.b16 %v3541, %v3534
        %v3906 = vpack.c.b16 %v3549, %v3542
        %v3907 = vpack.c.b16 %v3550, %v3543
        %v3908 = vpack.c.b16 %v3551, %v3544
        %v3909 = vpack.c.b16 %v3552, %v3545
        %v3910 = vpack.c.b16 %v3553, %v3546
        %v3911 = vpack.c.b16 %v3554, %v3547
        %v3912 = vpack.c.b16 %v3555, %v3548
        %v3913 = vpack.c.b16 %v3563, %v3556
        %v3914 = vpack.c.b16 %v3564, %v3557
        %v3915 = vpack.c.b16 %v3565, %v3558
        %v3916 = vpack.c.b16 %v3566, %v3559
        %v3917 = vpack.c.b16 %v3567, %v3560
        %v3918 = vpack.c.b16 %v3568, %v3561
        %v3919 = vpack.c.b16 %v3569, %v3562
        %v3920 = vpack.c.b16 %v3577, %v3570
        %v3921 = vpack.c.b16 %v3578, %v3571
        %v3922 = vpack.c.b16 %v3579, %v3572
        %v3923 = vpack.c.b16 %v3580, %v3573
        %v3924 = vpack.c.b16 %v3581, %v3574
        %v3925 = vpack.c.b16 %v3582, %v3575
        %v3926 = vpack.c.b16 %v3583, %v3576
        %v3927 = vpack.c.b16 %v3591, %v3584
        %v3928 = vpack.c.b16 %v3592, %v3585
        %v3929 = vpack.c.b16 %v3593, %v3586
        %v3930 = vpack.c.b16 %v3594, %v3587
        %v3931 = vpack.c.b16 %v3595, %v3588
        %v3932 = vpack.c.b16 %v3596, %v3589
        %v3933 = vpack.c.b16 %v3597, %v3590
        %v3934 = vpack.c.b16 %v3605, %v3598
        %v3935 = vpack.c.b16 %v3606, %v3599
        %v3936 = vpack.c.b16 %v3607, %v3600
        %v3937 = vpack.c.b16 %v3608, %v3601
        %v3938 = vpack.c.b16 %v3609, %v3602
        %v3939 = vpack.c.b16 %v3610, %v3603
        %v3940 = vpack.c.b16 %v3611, %v3604
        %v3941 = vpack.c.b16 %v3619, %v3612
        %v3942 = vpack.c.b16 %v3620, %v3613
        %v3943 = vpack.c.b16 %v3621, %v3614
        %v3944 = vpack.c.b16 %v3622, %v3615
        %v3945 = vpack.c.b16 %v3623, %v3616
        %v3946 = vpack.c.b16 %v3624, %v3617
        %v3947 = vpack.c.b16 %v3625, %v3618
        %v3948 = vpack.c.b16 %v3633, %v3626
        %v3949 = vpack.c.b16 %v3634, %v3627
        %v3950 = vpack.c.b16 %v3635, %v3628
        %v3951 = vpack.c.b16 %v3636, %v3629
        %v3952 = vpack.c.b16 %v3637, %v3630
        %v3953 = vpack.c.b16 %v3638, %v3631
        %v3954 = vpack.c.b16 %v3639, %v3632
        %v3955 = vpack.c.b16 %v3647, %v3640
        %v3956 = vpack.c.b16 %v3648, %v3641
        %v3957 = vpack.c.b16 %v3649, %v3642
        %v3958 = vpack.c.b16 %v3650, %v3643
        %v3959 = vpack.c.b16 %v3651, %v3644
        %v3960 = vpack.c.b16 %v3652, %v3645
        %v3961 = vpack.c.b16 %v3653, %v3646
        %v3962 = vpack.c.b16 %v3661, %v3654
        %v3963 = vpack.c.b16 %v3662, %v3655
        %v3964 = vpack.c.b16 %v3663, %v3656
        %v3965 = vpack.c.b16 %v3664, %v3657
        %v3966 = vpack.c.b16 %v3665, %v3658
        %v3967 = vpack.c.b16 %v3666, %v3659
        %v3968 = vpack.c.b16 %v3667, %v3660
        %v3969 = vpack.c.b16 %v3675, %v3668
        %v3970 = vpack.c.b16 %v3676, %v3669
        %v3971 = vpack.c.b16 %v3677, %v3670
        %v3972 = vpack.c.b16 %v3678, %v3671
        %v3973 = vpack.c.b16 %v3679, %v3672
        %v3974 = vpack.c.b16 %v3680, %v3673
        %v3975 = vpack.c.b16 %v3681, %v3674
        %v3976 = vpack.c.b16 %v3689, %v3682
        %v3977 = vpack.c.b16 %v3690, %v3683
        %v3978 = vpack.c.b16 %v3691, %v3684
        %v3979 = vpack.c.b16 %v3692, %v3685
        %v3980 = vpack.c.b16 %v3693, %v3686
        %v3981 = vpack.c.b16 %v3694, %v3687
        %v3982 = vpack.c.b16 %v3695, %v3688
        %v3983 = vpack.c.b16 %v3703, %v3696
        %v3984 = vpack.c.b16 %v3704, %v3697
        %v3985 = vpack.c.b16 %v3705, %v3698
        %v3986 = vpack.c.b16 %v3706, %v3699
        %v3987 = vpack.c.b16 %v3707, %v3700
        %v3988 = vpack.c.b16 %v3708, %v3701
        %v3989 = vpack.c.b16 %v3709, %v3702
        %v3990 = vpack.c.b16 %v3717, %v3710
        %v3991 = vpack.c.b16 %v3718, %v3711
        %v3992 = vpack.c.b16 %v3719, %v3712
        %v3993 = vpack.c.b16 %v3720, %v3713
        %v3994 = vpack.c.b16 %v3721, %v3714
        %v3995 = vpack.c.b16 %v3722, %v3715
        %v3996 = vpack.c.b16 %v3723, %v3716
        %v3997 = vpack.c.b16 %v3731, %v3724
        %v3998 = vpack.c.b16 %v3732, %v3725
        %v3999 = vpack.c.b16 %v3733, %v3726
        %v4000 = vpack.c.b16 %v3734, %v3727
        %v4001 = vpack.c.b16 %v3735, %v3728
        %v4002 = vpack.c.b16 %v3736, %v3729
        %v4003 = vpack.c.b16 %v3737, %v3730
        %v4004 = vpack.c.b16 %v3745, %v3738
        %v4005 = vpack.c.b16 %v3746, %v3739
        %v4006 = vpack.c.b16 %v3747, %v3740
        %v4007 = vpack.c.b16 %v3748, %v3741
        %v4008 = vpack.c.b16 %v3749, %v3742
        %v4009 = vpack.c.b16 %v3750, %v3743
        %v4010 = vpack.c.b16 %v3751, %v3744
        %v4011 = vpack.c.b16 %v3759, %v3752
        %v4012 = vpack.c.b16 %v3760, %v3753
        %v4013 = vpack.c.b16 %v3761, %v3754
        %v4014 = vpack.c.b16 %v3762, %v3755
        %v4015 = vpack.c.b16 %v3763, %v3756
        %v4016 = vpack.c.b16 %v3764, %v3757
        %v4017 = vpack.c.b16 %v3765, %v3758
        %v4018 = vpack.c.b16 %v3773, %v3766
        %v4019 = vpack.c.b16 %v3774, %v3767
        %v4020 = vpack.c.b16 %v3775, %v3768
        %v4021 = vpack.c.b16 %v3776, %v3769
        %v4022 = vpack.c.b16 %v3777, %v3770
        %v4023 = vpack.c.b16 %v3778, %v3771
        %v4024 = vpack.c.b16 %v3779, %v3772
        %v4025 = vpack.c.b16 %v3787, %v3780
        %v4026 = vpack.c.b16 %v3788, %v3781
        %v4027 = vpack.c.b16 %v3789, %v3782
        %v4028 = vpack.c.b16 %v3790, %v3783
        %v4029 = vpack.c.b16 %v3791, %v3784
        %v4030 = vpack.c.b16 %v3792, %v3785
        %v4031 = vpack.c.b16 %v3793, %v3786
        %v4032 = vpack.c.b16 %v3801, %v3794
        %v4033 = vpack.c.b16 %v3802, %v3795
        %v4034 = vpack.c.b16 %v3803, %v3796
        %v4035 = vpack.c.b16 %v3804, %v3797
        %v4036 = vpack.c.b16 %v3805, %v3798
        %v4037 = vpack.c.b16 %v3806, %v3799
        %v4038 = vpack.c.b16 %v3807, %v3800
        %v4039 = vpack.c.b16 %v3815, %v3808
        %v4040 = vpack.c.b16 %v3816, %v3809
        %v4041 = vpack.c.b16 %v3817, %v3810
        %v4042 = vpack.c.b16 %v3818, %v3811
        %v4043 = vpack.c.b16 %v3819, %v3812
        %v4044 = vpack.c.b16 %v3820, %v3813
        %v4045 = vpack.c.b16 %v3821, %v3814
        %4270 = vmatpush.bf16.msra.mxu0 %v3871
        %4271 = vmatpush.bf16.msra.mxu0 %v3864
        %4272 = vmatpush.bf16.msra.mxu0 %v3857
        %4273 = vmatpush.bf16.msra.mxu0 %v3850
        %4274 = vmatpush.bf16.msra.mxu0 %v3843
        %4275 = vmatpush.bf16.msra.mxu0 %v3836
        %4276 = vmatpush.bf16.msra.mxu0 %v3829
        %4277 = vmatpush.bf16.msra.mxu0 %v3822
        %4278 = vmatmul.bf16.gmra.mxu0 %v2842
        %v4279 = vpop.f32.mrf.mxu0
        %v4280 = vadd.f32 %v3104, %v4279
        %v4281 = vpop.f32.mrf.mxu0
        %4282 = vdwg.mxu0
        %4283 = vmatpush.bf16.msra.mxu0 %v3927
        %4284 = vmatpush.bf16.msra.mxu0 %v3920
        %4285 = vmatpush.bf16.msra.mxu0 %v3913
        %4286 = vmatpush.bf16.msra.mxu0 %v3906
        %4287 = vmatpush.bf16.msra.mxu0 %v3899
        %4288 = vmatpush.bf16.msra.mxu0 %v3892
        %4289 = vmatpush.bf16.msra.mxu0 %v3885
        %4290 = vmatpush.bf16.msra.mxu0 %v3878
        %4291 = vmatmul.bf16.gmra.mxu0 %v2843
        %v4292 = vpop.f32.mrf.mxu0
        %v4293 = vadd.f32 %v4280, %v4292
        %v4294 = vpop.f32.mrf.mxu0
        %4295 = vdwg.mxu0
        %4296 = vmatpush.bf16.msra.mxu0 %v3983
        %4297 = vmatpush.bf16.msra.mxu0 %v3976
        %4298 = vmatpush.bf16.msra.mxu0 %v3969
        %4299 = vmatpush.bf16.msra.mxu0 %v3962
        %4300 = vmatpush.bf16.msra.mxu0 %v3955
        %4301 = vmatpush.bf16.msra.mxu0 %v3948
        %4302 = vmatpush.bf16.msra.mxu0 %v3941
        %4303 = vmatpush.bf16.msra.mxu0 %v3934
        %4304 = vmatmul.bf16.gmra.mxu0 %v2844
        %v4305 = vpop.f32.mrf.mxu0
        %v4306 = vadd.f32 %v4293, %v4305
        %v4307 = vpop.f32.mrf.mxu0
        %4308 = vdwg.mxu0
        %4309 = vmatpush.bf16.msra.mxu0 %v4039
        %4310 = vmatpush.bf16.msra.mxu0 %v4032
        %4311 = vmatpush.bf16.msra.mxu0 %v4025
        %4312 = vmatpush.bf16.msra.mxu0 %v4018
        %4313 = vmatpush.bf16.msra.mxu0 %v4011
        %4314 = vmatpush.bf16.msra.mxu0 %v4004
        %4315 = vmatpush.bf16.msra.mxu0 %v3997
        %4316 = vmatpush.bf16.msra.mxu0 %v3990
        %4317 = vmatmul.bf16.gmra.mxu0 %v2845
        %v4318 = vpop.f32.mrf.mxu0
        %v4319 = vadd.f32 %v4306, %v4318
        %v4320 = vpop.f32.mrf.mxu0
        %4321 = vdwg.mxu0
        %4322 = vmatpush.bf16.msra.mxu0 %v3872
        %4323 = vmatpush.bf16.msra.mxu0 %v3865
        %4324 = vmatpush.bf16.msra.mxu0 %v3858
        %4325 = vmatpush.bf16.msra.mxu0 %v3851
        %4326 = vmatpush.bf16.msra.mxu0 %v3844
        %4327 = vmatpush.bf16.msra.mxu0 %v3837
        %4328 = vmatpush.bf16.msra.mxu0 %v3830
        %4329 = vmatpush.bf16.msra.mxu0 %v3823
        %4330 = vmatmul.bf16.gmra.mxu0 %v2842
        %v4331 = vpop.f32.mrf.mxu0
        %v4332 = vadd.f32 %v3105, %v4331
        %v4333 = vpop.f32.mrf.mxu0
        %4334 = vdwg.mxu0
        %4335 = vmatpush.bf16.msra.mxu0 %v3928
        %4336 = vmatpush.bf16.msra.mxu0 %v3921
        %4337 = vmatpush.bf16.msra.mxu0 %v3914
        %4338 = vmatpush.bf16.msra.mxu0 %v3907
        %4339 = vmatpush.bf16.msra.mxu0 %v3900
        %4340 = vmatpush.bf16.msra.mxu0 %v3893
        %4341 = vmatpush.bf16.msra.mxu0 %v3886
        %4342 = vmatpush.bf16.msra.mxu0 %v3879
        %4343 = vmatmul.bf16.gmra.mxu0 %v2843
        %v4344 = vpop.f32.mrf.mxu0
        %v4345 = vadd.f32 %v4332, %v4344
        %v4346 = vpop.f32.mrf.mxu0
        %4347 = vdwg.mxu0
        %4348 = vmatpush.bf16.msra.mxu0 %v3984
        %4349 = vmatpush.bf16.msra.mxu0 %v3977
        %4350 = vmatpush.bf16.msra.mxu0 %v3970
        %4351 = vmatpush.bf16.msra.mxu0 %v3963
        %4352 = vmatpush.bf16.msra.mxu0 %v3956
        %4353 = vmatpush.bf16.msra.mxu0 %v3949
        %4354 = vmatpush.bf16.msra.mxu0 %v3942
        %4355 = vmatpush.bf16.msra.mxu0 %v3935
        %4356 = vmatmul.bf16.gmra.mxu0 %v2844
        %v4357 = vpop.f32.mrf.mxu0
        %v4358 = vadd.f32 %v4345, %v4357
        %v4359 = vpop.f32.mrf.mxu0
        %4360 = vdwg.mxu0
        %4361 = vmatpush.bf16.msra.mxu0 %v4040
        %4362 = vmatpush.bf16.msra.mxu0 %v4033
        %4363 = vmatpush.bf16.msra.mxu0 %v4026
        %4364 = vmatpush.bf16.msra.mxu0 %v4019
        %4365 = vmatpush.bf16.msra.mxu0 %v4012
        %4366 = vmatpush.bf16.msra.mxu0 %v4005
        %4367 = vmatpush.bf16.msra.mxu0 %v3998
        %4368 = vmatpush.bf16.msra.mxu0 %v3991
        %4369 = vmatmul.bf16.gmra.mxu0 %v2845
        %v4370 = vpop.f32.mrf.mxu0
        %v4371 = vadd.f32 %v4358, %v4370
        %v4372 = vpop.f32.mrf.mxu0
        %4373 = vdwg.mxu0
        %4374 = vmatpush.bf16.msra.mxu0 %v3873
        %4375 = vmatpush.bf16.msra.mxu0 %v3866
        %4376 = vmatpush.bf16.msra.mxu0 %v3859
        %4377 = vmatpush.bf16.msra.mxu0 %v3852
        %4378 = vmatpush.bf16.msra.mxu0 %v3845
        %4379 = vmatpush.bf16.msra.mxu0 %v3838
        %4380 = vmatpush.bf16.msra.mxu0 %v3831
        %4381 = vmatpush.bf16.msra.mxu0 %v3824
        %4382 = vmatmul.bf16.gmra.mxu0 %v2842
        %v4383 = vpop.f32.mrf.mxu0
        %v4384 = vadd.f32 %v3106, %v4383
        %v4385 = vpop.f32.mrf.mxu0
        %4386 = vdwg.mxu0
        %4387 = vmatpush.bf16.msra.mxu0 %v3929
        %4388 = vmatpush.bf16.msra.mxu0 %v3922
        %4389 = vmatpush.bf16.msra.mxu0 %v3915
        %4390 = vmatpush.bf16.msra.mxu0 %v3908
        %4391 = vmatpush.bf16.msra.mxu0 %v3901
        %4392 = vmatpush.bf16.msra.mxu0 %v3894
        %4393 = vmatpush.bf16.msra.mxu0 %v3887
        %4394 = vmatpush.bf16.msra.mxu0 %v3880
        %4395 = vmatmul.bf16.gmra.mxu0 %v2843
        %v4396 = vpop.f32.mrf.mxu0
        %v4397 = vadd.f32 %v4384, %v4396
        %v4398 = vpop.f32.mrf.mxu0
        %4399 = vdwg.mxu0
        %4400 = vmatpush.bf16.msra.mxu0 %v3985
        %4401 = vmatpush.bf16.msra.mxu0 %v3978
        %4402 = vmatpush.bf16.msra.mxu0 %v3971
        %4403 = vmatpush.bf16.msra.mxu0 %v3964
        %4404 = vmatpush.bf16.msra.mxu0 %v3957
        %4405 = vmatpush.bf16.msra.mxu0 %v3950
        %4406 = vmatpush.bf16.msra.mxu0 %v3943
        %4407 = vmatpush.bf16.msra.mxu0 %v3936
        %4408 = vmatmul.bf16.gmra.mxu0 %v2844
        %v4409 = vpop.f32.mrf.mxu0
        %v4410 = vadd.f32 %v4397, %v4409
        %v4411 = vpop.f32.mrf.mxu0
        %4412 = vdwg.mxu0
        %4413 = vmatpush.bf16.msra.mxu0 %v4041
        %4414 = vmatpush.bf16.msra.mxu0 %v4034
        %4415 = vmatpush.bf16.msra.mxu0 %v4027
        %4416 = vmatpush.bf16.msra.mxu0 %v4020
        %4417 = vmatpush.bf16.msra.mxu0 %v4013
        %4418 = vmatpush.bf16.msra.mxu0 %v4006
        %4419 = vmatpush.bf16.msra.mxu0 %v3999
        %4420 = vmatpush.bf16.msra.mxu0 %v3992
        %4421 = vmatmul.bf16.gmra.mxu0 %v2845
        %v4422 = vpop.f32.mrf.mxu0
        %v4423 = vadd.f32 %v4410, %v4422
        %v4424 = vpop.f32.mrf.mxu0
        %4425 = vdwg.mxu0
        %4426 = vmatpush.bf16.msra.mxu0 %v3874
        %4427 = vmatpush.bf16.msra.mxu0 %v3867
        %4428 = vmatpush.bf16.msra.mxu0 %v3860
        %4429 = vmatpush.bf16.msra.mxu0 %v3853
        %4430 = vmatpush.bf16.msra.mxu0 %v3846
        %4431 = vmatpush.bf16.msra.mxu0 %v3839
        %4432 = vmatpush.bf16.msra.mxu0 %v3832
        %4433 = vmatpush.bf16.msra.mxu0 %v3825
        %4434 = vmatmul.bf16.gmra.mxu0 %v2842
        %v4435 = vpop.f32.mrf.mxu0
        %v4436 = vadd.f32 %v3107, %v4435
        %v4437 = vpop.f32.mrf.mxu0
        %4438 = vdwg.mxu0
        %4439 = vmatpush.bf16.msra.mxu0 %v3930
        %4440 = vmatpush.bf16.msra.mxu0 %v3923
        %4441 = vmatpush.bf16.msra.mxu0 %v3916
        %4442 = vmatpush.bf16.msra.mxu0 %v3909
        %4443 = vmatpush.bf16.msra.mxu0 %v3902
        %4444 = vmatpush.bf16.msra.mxu0 %v3895
        %4445 = vmatpush.bf16.msra.mxu0 %v3888
        %4446 = vmatpush.bf16.msra.mxu0 %v3881
        %4447 = vmatmul.bf16.gmra.mxu0 %v2843
        %v4448 = vpop.f32.mrf.mxu0
        %v4449 = vadd.f32 %v4436, %v4448
        %v4450 = vpop.f32.mrf.mxu0
        %4451 = vdwg.mxu0
        %4452 = vmatpush.bf16.msra.mxu0 %v3986
        %4453 = vmatpush.bf16.msra.mxu0 %v3979
        %4454 = vmatpush.bf16.msra.mxu0 %v3972
        %4455 = vmatpush.bf16.msra.mxu0 %v3965
        %4456 = vmatpush.bf16.msra.mxu0 %v3958
        %4457 = vmatpush.bf16.msra.mxu0 %v3951
        %4458 = vmatpush.bf16.msra.mxu0 %v3944
        %4459 = vmatpush.bf16.msra.mxu0 %v3937
        %4460 = vmatmul.bf16.gmra.mxu0 %v2844
        %v4461 = vpop.f32.mrf.mxu0
        %v4462 = vadd.f32 %v4449, %v4461
        %v4463 = vpop.f32.mrf.mxu0
        %4464 = vdwg.mxu0
        %4465 = vmatpush.bf16.msra.mxu0 %v4042
        %4466 = vmatpush.bf16.msra.mxu0 %v4035
        %4467 = vmatpush.bf16.msra.mxu0 %v4028
        %4468 = vmatpush.bf16.msra.mxu0 %v4021
        %4469 = vmatpush.bf16.msra.mxu0 %v4014
        %4470 = vmatpush.bf16.msra.mxu0 %v4007
        %4471 = vmatpush.bf16.msra.mxu0 %v4000
        %4472 = vmatpush.bf16.msra.mxu0 %v3993
        %4473 = vmatmul.bf16.gmra.mxu0 %v2845
        %v4474 = vpop.f32.mrf.mxu0
        %v4475 = vadd.f32 %v4462, %v4474
        %v4476 = vpop.f32.mrf.mxu0
        %4477 = vdwg.mxu0
        %4478 = vmatpush.bf16.msra.mxu0 %v3875
        %4479 = vmatpush.bf16.msra.mxu0 %v3868
        %4480 = vmatpush.bf16.msra.mxu0 %v3861
        %4481 = vmatpush.bf16.msra.mxu0 %v3854
        %4482 = vmatpush.bf16.msra.mxu0 %v3847
        %4483 = vmatpush.bf16.msra.mxu0 %v3840
        %4484 = vmatpush.bf16.msra.mxu0 %v3833
        %4485 = vmatpush.bf16.msra.mxu0 %v3826
        %4486 = vmatmul.bf16.gmra.mxu0 %v2842
        %v4487 = vpop.f32.mrf.mxu0
        %v4488 = vadd.f32 %v3108, %v4487
        %v4489 = vpop.f32.mrf.mxu0
        %4490 = vdwg.mxu0
        %4491 = vmatpush.bf16.msra.mxu0 %v3931
        %4492 = vmatpush.bf16.msra.mxu0 %v3924
        %4493 = vmatpush.bf16.msra.mxu0 %v3917
        %4494 = vmatpush.bf16.msra.mxu0 %v3910
        %4495 = vmatpush.bf16.msra.mxu0 %v3903
        %4496 = vmatpush.bf16.msra.mxu0 %v3896
        %4497 = vmatpush.bf16.msra.mxu0 %v3889
        %4498 = vmatpush.bf16.msra.mxu0 %v3882
        %4499 = vmatmul.bf16.gmra.mxu0 %v2843
        %v4500 = vpop.f32.mrf.mxu0
        %v4501 = vadd.f32 %v4488, %v4500
        %v4502 = vpop.f32.mrf.mxu0
        %4503 = vdwg.mxu0
        %4504 = vmatpush.bf16.msra.mxu0 %v3987
        %4505 = vmatpush.bf16.msra.mxu0 %v3980
        %4506 = vmatpush.bf16.msra.mxu0 %v3973
        %4507 = vmatpush.bf16.msra.mxu0 %v3966
        %4508 = vmatpush.bf16.msra.mxu0 %v3959
        %4509 = vmatpush.bf16.msra.mxu0 %v3952
        %4510 = vmatpush.bf16.msra.mxu0 %v3945
        %4511 = vmatpush.bf16.msra.mxu0 %v3938
        %4512 = vmatmul.bf16.gmra.mxu0 %v2844
        %v4513 = vpop.f32.mrf.mxu0
        %v4514 = vadd.f32 %v4501, %v4513
        %v4515 = vpop.f32.mrf.mxu0
        %4516 = vdwg.mxu0
        %4517 = vmatpush.bf16.msra.mxu0 %v4043
        %4518 = vmatpush.bf16.msra.mxu0 %v4036
        %4519 = vmatpush.bf16.msra.mxu0 %v4029
        %4520 = vmatpush.bf16.msra.mxu0 %v4022
        %4521 = vmatpush.bf16.msra.mxu0 %v4015
        %4522 = vmatpush.bf16.msra.mxu0 %v4008
        %4523 = vmatpush.bf16.msra.mxu0 %v4001
        %4524 = vmatpush.bf16.msra.mxu0 %v3994
        %4525 = vmatmul.bf16.gmra.mxu0 %v2845
        %v4526 = vpop.f32.mrf.mxu0
        %v4527 = vadd.f32 %v4514, %v4526
        %v4528 = vpop.f32.mrf.mxu0
        %4529 = vdwg.mxu0
        %4530 = vmatpush.bf16.msra.mxu0 %v3876
        %4531 = vmatpush.bf16.msra.mxu0 %v3869
        %4532 = vmatpush.bf16.msra.mxu0 %v3862
        %4533 = vmatpush.bf16.msra.mxu0 %v3855
        %4534 = vmatpush.bf16.msra.mxu0 %v3848
        %4535 = vmatpush.bf16.msra.mxu0 %v3841
        %4536 = vmatpush.bf16.msra.mxu0 %v3834
        %4537 = vmatpush.bf16.msra.mxu0 %v3827
        %4538 = vmatmul.bf16.gmra.mxu0 %v2842
        %v4539 = vpop.f32.mrf.mxu0
        %v4540 = vadd.f32 %v3109, %v4539
        %v4541 = vpop.f32.mrf.mxu0
        %4542 = vdwg.mxu0
        %4543 = vmatpush.bf16.msra.mxu0 %v3932
        %4544 = vmatpush.bf16.msra.mxu0 %v3925
        %4545 = vmatpush.bf16.msra.mxu0 %v3918
        %4546 = vmatpush.bf16.msra.mxu0 %v3911
        %4547 = vmatpush.bf16.msra.mxu0 %v3904
        %4548 = vmatpush.bf16.msra.mxu0 %v3897
        %4549 = vmatpush.bf16.msra.mxu0 %v3890
        %4550 = vmatpush.bf16.msra.mxu0 %v3883
        %4551 = vmatmul.bf16.gmra.mxu0 %v2843
        %v4552 = vpop.f32.mrf.mxu0
        %v4553 = vadd.f32 %v4540, %v4552
        %v4554 = vpop.f32.mrf.mxu0
        %4555 = vdwg.mxu0
        %4556 = vmatpush.bf16.msra.mxu0 %v3988
        %4557 = vmatpush.bf16.msra.mxu0 %v3981
        %4558 = vmatpush.bf16.msra.mxu0 %v3974
        %4559 = vmatpush.bf16.msra.mxu0 %v3967
        %4560 = vmatpush.bf16.msra.mxu0 %v3960
        %4561 = vmatpush.bf16.msra.mxu0 %v3953
        %4562 = vmatpush.bf16.msra.mxu0 %v3946
        %4563 = vmatpush.bf16.msra.mxu0 %v3939
        %4564 = vmatmul.bf16.gmra.mxu0 %v2844
        %v4565 = vpop.f32.mrf.mxu0
        %v4566 = vadd.f32 %v4553, %v4565
        %v4567 = vpop.f32.mrf.mxu0
        %4568 = vdwg.mxu0
        %4569 = vmatpush.bf16.msra.mxu0 %v4044
        %4570 = vmatpush.bf16.msra.mxu0 %v4037
        %4571 = vmatpush.bf16.msra.mxu0 %v4030
        %4572 = vmatpush.bf16.msra.mxu0 %v4023
        %4573 = vmatpush.bf16.msra.mxu0 %v4016
        %4574 = vmatpush.bf16.msra.mxu0 %v4009
        %4575 = vmatpush.bf16.msra.mxu0 %v4002
        %4576 = vmatpush.bf16.msra.mxu0 %v3995
        %4577 = vmatmul.bf16.gmra.mxu0 %v2845
        %v4578 = vpop.f32.mrf.mxu0
        %v4579 = vadd.f32 %v4566, %v4578
        %v4580 = vpop.f32.mrf.mxu0
        %4581 = vdwg.mxu0
        %4582 = vmatpush.bf16.msra.mxu0 %v3877
        %4583 = vmatpush.bf16.msra.mxu0 %v3870
        %4584 = vmatpush.bf16.msra.mxu0 %v3863
        %4585 = vmatpush.bf16.msra.mxu0 %v3856
        %4586 = vmatpush.bf16.msra.mxu0 %v3849
        %4587 = vmatpush.bf16.msra.mxu0 %v3842
        %4588 = vmatpush.bf16.msra.mxu0 %v3835
        %4589 = vmatpush.bf16.msra.mxu0 %v3828
        %4590 = vmatmul.bf16.gmra.mxu0 %v2842
        %v4591 = vpop.f32.mrf.mxu0
        %v4592 = vadd.f32 %v3110, %v4591
        %v4593 = vpop.f32.mrf.mxu0
        %4594 = vdwg.mxu0
        %4595 = vmatpush.bf16.msra.mxu0 %v3933
        %4596 = vmatpush.bf16.msra.mxu0 %v3926
        %4597 = vmatpush.bf16.msra.mxu0 %v3919
        %4598 = vmatpush.bf16.msra.mxu0 %v3912
        %4599 = vmatpush.bf16.msra.mxu0 %v3905
        %4600 = vmatpush.bf16.msra.mxu0 %v3898
        %4601 = vmatpush.bf16.msra.mxu0 %v3891
        %4602 = vmatpush.bf16.msra.mxu0 %v3884
        %4603 = vmatmul.bf16.gmra.mxu0 %v2843
        %v4604 = vpop.f32.mrf.mxu0
        %v4605 = vadd.f32 %v4592, %v4604
        %v4606 = vpop.f32.mrf.mxu0
        %4607 = vdwg.mxu0
        %4608 = vmatpush.bf16.msra.mxu0 %v3989
        %4609 = vmatpush.bf16.msra.mxu0 %v3982
        %4610 = vmatpush.bf16.msra.mxu0 %v3975
        %4611 = vmatpush.bf16.msra.mxu0 %v3968
        %4612 = vmatpush.bf16.msra.mxu0 %v3961
        %4613 = vmatpush.bf16.msra.mxu0 %v3954
        %4614 = vmatpush.bf16.msra.mxu0 %v3947
        %4615 = vmatpush.bf16.msra.mxu0 %v3940
        %4616 = vmatmul.bf16.gmra.mxu0 %v2844
        %v4617 = vpop.f32.mrf.mxu0
        %v4618 = vadd.f32 %v4605, %v4617
        %v4619 = vpop.f32.mrf.mxu0
        %4620 = vdwg.mxu0
        %4621 = vmatpush.bf16.msra.mxu0 %v4045
        %4622 = vmatpush.bf16.msra.mxu0 %v4038
        %4623 = vmatpush.bf16.msra.mxu0 %v4031
        %4624 = vmatpush.bf16.msra.mxu0 %v4024
        %4625 = vmatpush.bf16.msra.mxu0 %v4017
        %4626 = vmatpush.bf16.msra.mxu0 %v4010
        %4627 = vmatpush.bf16.msra.mxu0 %v4003
        %4628 = vmatpush.bf16.msra.mxu0 %v3996
        %4629 = vmatmul.bf16.gmra.mxu0 %v2845
        %v4630 = vpop.f32.mrf.mxu0
        %v4631 = vadd.f32 %v4618, %v4630
        %v4632 = vpop.f32.mrf.mxu0
        %4633 = vdwg.mxu0
        %v4634 = vand.u32 2147483647, %v4319
        %v4635 = vand.u32 2147483647, %v4371
        %v4636 = vand.u32 2147483647, %v4423
        %v4637 = vand.u32 2147483647, %v4475
        %v4638 = vand.u32 2147483647, %v4527
        %v4639 = vand.u32 2147483647, %v4579
        %v4640 = vand.u32 2147483647, %v4631
        %v4641 = vsub.f32 0.0, %v4634
        %v4642 = vsub.f32 0.0, %v4635
        %v4643 = vsub.f32 0.0, %v4636
        %v4644 = vsub.f32 0.0, %v4637
        %v4645 = vsub.f32 0.0, %v4638
        %v4646 = vsub.f32 0.0, %v4639
        %v4647 = vsub.f32 0.0, %v4640
        %v4648 = vmul.f32 %v4641, 1.442695
        %v4649 = vpow.pop %v4648
        %v4650 = vmul.f32 %v4642, 1.442695
        %v4651 = vpow.pop %v4650
        %v4652 = vmul.f32 %v4643, 1.442695
        %v4653 = vpow.pop %v4652
        %v4654 = vmul.f32 %v4644, 1.442695
        %v4655 = vpow.pop %v4654
        %v4656 = vmul.f32 %v4645, 1.442695
        %v4657 = vpow.pop %v4656
        %v4658 = vmul.f32 %v4646, 1.442695
        %v4659 = vpow.pop %v4658
        %v4660 = vmul.f32 %v4647, 1.442695
        %v4661 = vpow.pop %v4660
        %v4662 = vadd.f32 %v4649, 1.0
        %v4663 = vadd.f32 %v4651, 1.0
        %v4664 = vadd.f32 %v4653, 1.0
        %v4665 = vadd.f32 %v4655, 1.0
        %v4666 = vadd.f32 %v4657, 1.0
        %v4667 = vadd.f32 %v4659, 1.0
        %v4668 = vadd.f32 %v4661, 1.0
        %v4669 = vrcp.pop %v4662
        %v4670 = vrcp.pop %v4663
        %v4671 = vrcp.pop %v4664
        %v4672 = vrcp.pop %v4665
        %v4673 = vrcp.pop %v4666
        %v4674 = vrcp.pop %v4667
        %v4675 = vrcp.pop %v4668
        %vm4676 = vcmp.ge.f32.partialorder %v4319, 0.0
        %vm4677 = vcmp.ge.f32.partialorder %v4371, 0.0
        %vm4678 = vcmp.ge.f32.partialorder %v4423, 0.0
        %vm4679 = vcmp.ge.f32.partialorder %v4475, 0.0
        %vm4680 = vcmp.ge.f32.partialorder %v4527, 0.0
        %vm4681 = vcmp.ge.f32.partialorder %v4579, 0.0
        %vm4682 = vcmp.ge.f32.partialorder %v4631, 0.0
        %v4683 = vmul.f32 %v4649, %v4669
        %v4684 = vmul.f32 %v4651, %v4670
        %v4685 = vmul.f32 %v4653, %v4671
        %v4686 = vmul.f32 %v4655, %v4672
        %v4687 = vmul.f32 %v4657, %v4673
        %v4688 = vmul.f32 %v4659, %v4674
        %v4689 = vmul.f32 %v4661, %v4675
        %v4690 = vsel %vm4676, %v4669, %v4683
        %v4691 = vsel %vm4677, %v4670, %v4684
        %v4692 = vsel %vm4678, %v4671, %v4685
        %v4693 = vsel %vm4679, %v4672, %v4686
        %v4694 = vsel %vm4680, %v4673, %v4687
        %v4695 = vsel %vm4681, %v4674, %v4688
        %v4696 = vsel %vm4682, %v4675, %v4689
        %4697 = vst [vmem:[%s588] sm:$0xff] %v4690
        %4698 = vst [vmem:[%s588 + $0x8] sm:$0xff] %v4691
        %4699 = vst [vmem:[%s588 + $0x10] sm:$0xff] %v4692
        %4700 = vst [vmem:[%s588 + $0x18] sm:$0xff] %v4693
        %4701 = vst [vmem:[%s588 + $0x20] sm:$0xff] %v4694
        %4702 = vst [vmem:[%s588 + $0x28] sm:$0xff] %v4695
        %4703 = vst [vmem:[%s588 + $0x30] sm:$0xff] %v4696
        %s4704 = smul.u32 %s38, 8
        %v4705 = vlaneseq
        %v4706 = vshrl.u32 %v4705, 7
        %v4707 = vstv %s4704
        %v4708 = vadd.s32 %v4707, %v4706
        %vm4709 = vcmp.lt.s32.totalorder %v4708, 18
        %v4710 = vld [vmem:[%s509] sm:$0xff]
        %v4711 = vld [vmem:[%s509 + $0x8] sm:$0xff]
        %v4712 = vld [vmem:[%s509 + $0x10] sm:$0xff]
        %v4713 = vld [vmem:[%s509 + $0x18] sm:$0xff]
        %v4714 = vld [vmem:[%s509 + $0x20] sm:$0xff]
        %v4715 = vld [vmem:[%s509 + $0x28] sm:$0xff]
        %v4716 = vld [vmem:[%s509 + $0x30] sm:$0xff]
        %v4717 = vmax.f32 %v4319, 0.0
        %v4718 = vmax.f32 %v4371, 0.0
        %v4719 = vmax.f32 %v4423, 0.0
        %v4720 = vmax.f32 %v4475, 0.0
        %v4721 = vmax.f32 %v4527, 0.0
        %v4722 = vmax.f32 %v4579, 0.0
        %v4723 = vmax.f32 %v4631, 0.0
        %v4724 = vlog2.pop %v4662
        %v4725 = vmul.f32 %v4724, 0.6931472
        %v4726 = vlog2.pop %v4663
        %v4727 = vmul.f32 %v4726, 0.6931472
        %v4728 = vlog2.pop %v4664
        %v4729 = vmul.f32 %v4728, 0.6931472
        %v4730 = vlog2.pop %v4665
        %v4731 = vmul.f32 %v4730, 0.6931472
        %v4732 = vlog2.pop %v4666
        %v4733 = vmul.f32 %v4732, 0.6931472
        %v4734 = vlog2.pop %v4667
        %v4735 = vmul.f32 %v4734, 0.6931472
        %v4736 = vlog2.pop %v4668
        %v4737 = vmul.f32 %v4736, 0.6931472
        %v4738 = vadd.f32 %v4717, %v4725
        %v4739 = vadd.f32 %v4718, %v4727
        %v4740 = vadd.f32 %v4719, %v4729
        %v4741 = vadd.f32 %v4720, %v4731
        %v4742 = vadd.f32 %v4721, %v4733
        %v4743 = vadd.f32 %v4722, %v4735
        %v4744 = vadd.f32 %v4723, %v4737
        %v4745 = vmul.f32 %v4710, %v4319
        %v4746 = vmul.f32 %v4711, %v4371
        %v4747 = vmul.f32 %v4712, %v4423
        %v4748 = vmul.f32 %v4713, %v4475
        %v4749 = vmul.f32 %v4714, %v4527
        %v4750 = vmul.f32 %v4715, %v4579
        %v4751 = vmul.f32 %v4716, %v4631
        %v4752 = vsub.f32 %v4738, %v4745
        %v4753 = vsub.f32 %v4739, %v4746
        %v4754 = vsub.f32 %v4740, %v4747
        %v4755 = vsub.f32 %v4741, %v4748
        %v4756 = vsub.f32 %v4742, %v4749
        %v4757 = vsub.f32 %v4743, %v4750
        %v4758 = vsub.f32 %v4744, %v4751
        %v4759 = vsel %vm4709, 1, 0
        %vm4760 = vcmp.eq.s32.totalorder %v4759, 1
        %v4761 = vsel %vm4760, %v4752, 0.0
        %v4762 = vsel %vm4760, %v4753, 0.0
        %v4763 = vsel %vm4760, %v4754, 0.0
        %v4764 = vsel %vm4760, %v4755, 0.0
        %v4765 = vsel %vm4760, %v4756, 0.0
        %v4766 = vsel %vm4760, %v4757, 0.0
        %v4767 = vsel %vm4760, %v4758, 0.0
        %v4768 = vrot.slane %v4761, 4
        %v4769 = vadd.f32 %v4761, %v4768
        %v4770 = vrot.slane %v4769, 2
        %v4771 = vadd.f32 %v4769, %v4770
        %v4772 = vrot.slane %v4771, 1
        %v4773 = vadd.f32 %v4771, %v4772
        %v4774 = vrot.slane %v4762, 4
        %v4775 = vadd.f32 %v4762, %v4774
        %v4776 = vrot.slane %v4775, 2
        %v4777 = vadd.f32 %v4775, %v4776
        %v4778 = vrot.slane %v4777, 1
        %v4779 = vadd.f32 %v4777, %v4778
        %v4780 = vrot.slane %v4763, 4
        %v4781 = vadd.f32 %v4763, %v4780
        %v4782 = vrot.slane %v4781, 2
        %v4783 = vadd.f32 %v4781, %v4782
        %v4784 = vrot.slane %v4783, 1
        %v4785 = vadd.f32 %v4783, %v4784
        %v4786 = vrot.slane %v4764, 4
        %v4787 = vadd.f32 %v4764, %v4786
        %v4788 = vrot.slane %v4787, 2
        %v4789 = vadd.f32 %v4787, %v4788
        %v4790 = vrot.slane %v4789, 1
        %v4791 = vadd.f32 %v4789, %v4790
        %v4792 = vrot.slane %v4765, 4
        %v4793 = vadd.f32 %v4765, %v4792
        %v4794 = vrot.slane %v4793, 2
        %v4795 = vadd.f32 %v4793, %v4794
        %v4796 = vrot.slane %v4795, 1
        %v4797 = vadd.f32 %v4795, %v4796
        %v4798 = vrot.slane %v4766, 4
        %v4799 = vadd.f32 %v4766, %v4798
        %v4800 = vrot.slane %v4799, 2
        %v4801 = vadd.f32 %v4799, %v4800
        %v4802 = vrot.slane %v4801, 1
        %v4803 = vadd.f32 %v4801, %v4802
        %v4804 = vsel %vm1804, %v4767, 0.0
        %v4805 = vrot.slane %v4804, 4
        %v4806 = vadd.f32 %v4804, %v4805
        %v4807 = vrot.slane %v4806, 2
        %v4808 = vadd.f32 %v4806, %v4807
        %v4809 = vrot.slane %v4808, 1
        %v4810 = vadd.f32 %v4808, %v4809
        %4811 = vst [vmem:[%s595] sm:$0xff] %v4773
        %4812 = vst [vmem:[%s595 + $0x8] sm:$0xff] %v4779
        %4813 = vst [vmem:[%s595 + $0x10] sm:$0xff] %v4785
        %4814 = vst [vmem:[%s595 + $0x18] sm:$0xff] %v4791
        %4815 = vst [vmem:[%s595 + $0x20] sm:$0xff] %v4797
        %4816 = vst [vmem:[%s595 + $0x28] sm:$0xff] %v4803
        %4817 = vst.msk [vmem:[%s595 + $0x30] sm:$0xff] %vm1804, %v4810
        %v4818 = vsub.f32 %v2489, %v2581
        %v4819 = vsel %vm4760, %v4818, 0.0
        %v4820 = vmul.f32 %v4819, %v4819
        %v4821 = vrot.slane %v4820, 4
        %v4822 = vadd.f32 %v4820, %v4821
        %v4823 = vrot.slane %v4822, 2
        %v4824 = vadd.f32 %v4822, %v4823
        %v4825 = vrot.slane %v4824, 1
        %v4826 = vadd.f32 %v4824, %v4825
        %4827 = vst [vmem:[%s602] sm:$0xff] %v4826
        %s4828 = sand.u32 %s282, 1
        %s4829 = scalar_lea.sflag [#allocation4], %s4828
        %s4830 = sand.u32 %s282, 1
        %s4831 = smul.addr %s4830, 56
        %s4832 = scalar_lea.vmem [#allocation17], %s4831
        %s4833 = sand.u32 %s38, 1
        %s4834 = scalar_lea.sflag [#allocation19], %s4833
        %s4835 = sand.u32 %s308, 1
        %s4836 = smul.addr %s4835, 56
        %s4837 = scalar_lea.vmem [#allocation18], %s4836
        %s4838 = sand.u32 %s38, 1
        %s4839 = scalar_lea.sflag [#allocation19], %s4838
        %s4840 = sand.u32 %s334, 1
        %s4841 = smul.addr %s4840, 8
        %s4842 = scalar_lea.vmem [#allocation20], %s4841
        // Predicated region
        $region101: #{tpu_custom_call.1} parent=63 // pred_check
          %p4843 = pneg %p292
        $region102: #{tpu_custom_call.1} parent=63 // pred_check_branch
          %4845 = sbr.rel (%p4843) target = $region104
        $region103: #{tpu_custom_call.1} parent=63 // pred_region
          %4847 = vsyncadd %s4829, 0
          %s4848 = smul.addr %s38, 7
          %s4849 = smul.addr %s4848, 8
          %s4850 = scalar_lea.hbm %s11, %s4849
          %s4852 = sshll.u32 %s4832, 4
          %s4853 = int_to_ptr.vmem [resolvable:$true] %s4852
          %s4854 = sshll.u32 %s4850, 4
          %s4855 = int_to_ptr.hbm [resolvable:$true] %s4854
          %4857 = dma.vmem_to_hbm [thread:$0]  %s4853, 896, %s4855, %s4829
        $region104: #{tpu_custom_call.1} parent=63 // pred_fallthru
          _
        // Predicated region
        $region105: #{tpu_custom_call.1} parent=63 // pred_check
          %p4858 = pneg %p318
        $region106: #{tpu_custom_call.1} parent=63 // pred_check_branch
          %4860 = sbr.rel (%p4858) target = $region108
        $region107: #{tpu_custom_call.1} parent=63 // pred_region
          %4862 = vsyncadd %s4834, 0
          %s4863 = smul.addr %s38, 7
          %s4864 = smul.addr %s4863, 8
          %s4865 = scalar_lea.hbm %s12, %s4864
          %s4867 = sshll.u32 %s4837, 4
          %s4868 = int_to_ptr.vmem [resolvable:$true] %s4867
          %s4869 = sshll.u32 %s4865, 4
          %s4870 = int_to_ptr.hbm [resolvable:$true] %s4869
          %4872 = dma.vmem_to_hbm [thread:$0]  %s4868, 896, %s4870, %s4834
        $region108: #{tpu_custom_call.1} parent=63 // pred_fallthru
          _
        // Predicated region
        $region109: #{tpu_custom_call.1} parent=63 // pred_check
          %p4873 = pneg %p344
        $region110: #{tpu_custom_call.1} parent=63 // pred_check_branch
          %4875 = sbr.rel (%p4873) target = $region112
        $region111: #{tpu_custom_call.1} parent=63 // pred_region
          %4877 = vsyncadd %s4839, 0
          %s4878 = smul.addr %s38, 8
          %s4879 = scalar_lea.hbm %s13, %s4878
          %s4881 = sshll.u32 %s4842, 4
          %s4882 = int_to_ptr.vmem [resolvable:$true] %s4881
          %s4883 = sshll.u32 %s4879, 4
          %s4884 = int_to_ptr.hbm [resolvable:$true] %s4883
          %4886 = dma.vmem_to_hbm [thread:$0]  %s4882, 128, %s4884, %s4839
        $region112: #{tpu_custom_call.1} parent=63 // pred_fallthru
          _
      $region64: #{tpu_custom_call.1} parent=5 // pred_fallthru
        _
      %p4887 = scmp.le.s32.totalorder 2, %s33
      // Predicated region
      $region113: #{tpu_custom_call.1} parent=5 // pred_check
        %p4888 = pneg %p4887
      $region114: #{tpu_custom_call.1} parent=5 // pred_check_branch
        %4890 = sbr.rel (%p4888) target = $region116
      $region115: #{tpu_custom_call.1} parent=5 // pred_region
        %s4891 = ssub.s32 %s33, 2
        // Predicated region
        $region117: #{tpu_custom_call.1} parent=115 // pred_check
          %p4892 = pneg %p298
        $region118: #{tpu_custom_call.1} parent=115 // pred_check_branch
          %4894 = sbr.rel (%p4892) target = $region120
        $region119: #{tpu_custom_call.1} parent=115 // pred_region
          %s4895 = sand.u32 %s283, 1
          %s4896 = scalar_lea.sflag [#allocation4], %s4895
          %s4897 = sand.u32 %s283, 1
          %s4898 = smul.addr %s4897, 56
          %s4899 = scalar_lea.vmem [#allocation17], %s4898
          %4901 = dma.done %s4896, 896
        $region120: #{tpu_custom_call.1} parent=115 // pred_fallthru
          _
        // Predicated region
        $region121: #{tpu_custom_call.1} parent=115 // pred_check
          %p4902 = pneg %p324
        $region122: #{tpu_custom_call.1} parent=115 // pred_check_branch
          %4904 = sbr.rel (%p4902) target = $region124
        $region123: #{tpu_custom_call.1} parent=115 // pred_region
          %s4905 = sand.u32 %s39, 1
          %s4906 = scalar_lea.sflag [#allocation19], %s4905
          %s4907 = sand.u32 %s309, 1
          %s4908 = smul.addr %s4907, 56
          %s4909 = scalar_lea.vmem [#allocation18], %s4908
          %4911 = dma.done %s4906, 896
        $region124: #{tpu_custom_call.1} parent=115 // pred_fallthru
          _
        // Predicated region
        $region125: #{tpu_custom_call.1} parent=115 // pred_check
          %p4912 = pneg %p350
        $region126: #{tpu_custom_call.1} parent=115 // pred_check_branch
          %4914 = sbr.rel (%p4912) target = $region128
        $region127: #{tpu_custom_call.1} parent=115 // pred_region
          %s4915 = sand.u32 %s39, 1
          %s4916 = scalar_lea.sflag [#allocation19], %s4915
          %s4917 = sand.u32 %s335, 1
          %s4918 = smul.addr %s4917, 8
          %s4919 = scalar_lea.vmem [#allocation20], %s4918
          %4921 = dma.done %s4916, 128
        $region128: #{tpu_custom_call.1} parent=115 // pred_fallthru
          _
      $region116: #{tpu_custom_call.1} parent=5 // pred_fallthru
        _
    $region6: #{tpu_custom_call.1} parent=1 // loop_footer
      %s37 = sadd.s32 1, %s33
    $region7: #{tpu_custom_call.1} parent=1 // loop_footer_branch
      %32 = sbr.rel target = $region3
    $region8: #{tpu_custom_call.1} parent=1 // loop_exit
      _
    %4922 = vsyncpa [#allocation3], 1
    %s4923 = scalar_lea.sflag [#allocation3], 1
    %4924 = vsyncpa %s4923, 1
    %4925 = vsyncpa [#allocation6], 1
    %4926 = vsyncpa [#allocation9], 1
    %4927 = vsyncpa [#allocation12], 1
    %4928 = vsyncpa [#allocation15], 1
    %4929 = vsyncpa [#allocation4], 1
    %s4930 = scalar_lea.sflag [#allocation4], 1
    %4931 = vsyncpa %s4930, 1
    %4932 = vsyncpa [#allocation19], 1
    %s4933 = scalar_lea.sflag [#allocation19], 1
    %4934 = vsyncpa %s4933, 1

</llo_original>
